<compile_context>
chip_gen: v6e
topology: v6e:2x2x1
jax: 0.10.0
libtpu: 0.0.40
codegen_flags: <defaults>
</compile_context>

<pallas_src>
import functools

import jax
import jax.numpy as jnp
from jax.experimental import pallas as pl
from jax.experimental.pallas import tpu as pltpu

BETA = 0.95
THRESHOLD = 1.0
NUM_INPUTS = 28 * 28     # 784
NUM_HIDDEN = 1000
NUM_OUTPUTS = 10
NUM_STEPS = 25

HIDDEN_PAD = 1024        # 1000 -> lane-dense multiple of 128
OUT_PAD = 128            # 10   -> lane-dense multiple of 128


def snn_kernel(x_ref, w1_ref, b1_ref, w2_ref, b2_ref,
               spk_ref, memrec_ref, *, num_steps):
    # fc1 is time-invariant: hoisted out of the time loop, computed once.
    cur1 = jnp.dot(x_ref[...], w1_ref[...],
                   preferred_element_type=jnp.float32) + b1_ref[...]
    w2 = w2_ref[...]
    b2 = b2_ref[...]

    b_sz, h_pad = cur1.shape
    o_pad = w2.shape[1]

    # mem1 = lif1.init_leaky(); mem2 = lif2.init_leaky()  (zeros)
    mem1_init = jnp.zeros((b_sz, h_pad), jnp.float32)
    mem2_init = jnp.zeros((b_sz, o_pad), jnp.float32)

    def step(t, carry):
        mem1_prev, mem2_prev = carry

        # spk1, mem1 = lif1(cur1, mem1)
        reset1 = (mem1_prev > THRESHOLD).astype(jnp.float32)
        mem1 = BETA * mem1_prev + cur1 - reset1 * THRESHOLD
        spk1 = (mem1 > THRESHOLD).astype(jnp.float32)

        # cur2 = fc2(spk1)
        cur2 = jnp.dot(spk1, w2, preferred_element_type=jnp.float32) + b2

        # spk2, mem2 = lif2(cur2, mem2)
        reset2 = (mem2_prev > THRESHOLD).astype(jnp.float32)
        mem2 = BETA * mem2_prev + cur2 - reset2 * THRESHOLD
        spk2 = (mem2 > THRESHOLD).astype(jnp.float32)

        # spk2_rec.append(spk2); mem2_rec.append(mem2)  -> resident output rows
        spk_ref[t] = spk2
        memrec_ref[t] = mem2
        return (mem1, mem2)

    jax.lax.fori_loop(0, num_steps, step, (mem1_init, mem2_init), unroll=True)


def snn_forward(x, w1, b1, w2, b2, *, num_steps=NUM_STEPS):
    """x: (B, 784) f32; w1: (784, 1000); b1: (1, 1000); w2: (1000, 10); b2: (1, 10).

    Returns (spk2_rec, mem2_rec), each of shape (num_steps, B, 10), f32.
    """
    B = x.shape[0]
    Bp = ((B + 7) // 8) * 8  # sublane-friendly batch

    # Wrapper-side zero padding to lane-dense feature widths. Padded hidden
    # units get cur1 == 0 so their membrane/spikes stay exactly 0, and padded
    # w2 rows/cols are 0, so results for the real 10 outputs are unchanged.
    x_p = jnp.pad(x, ((0, Bp - B), (0, 0)))
    w1_p = jnp.pad(w1, ((0, 0), (0, HIDDEN_PAD - NUM_HIDDEN)))
    b1_p = jnp.pad(b1, ((0, 0), (0, HIDDEN_PAD - NUM_HIDDEN)))
    w2_p = jnp.pad(w2, ((0, HIDDEN_PAD - NUM_HIDDEN), (0, OUT_PAD - NUM_OUTPUTS)))
    b2_p = jnp.pad(b2, ((0, 0), (0, OUT_PAD - NUM_OUTPUTS)))

    out_shape = (
        jax.ShapeDtypeStruct((num_steps, Bp, OUT_PAD), jnp.float32),
        jax.ShapeDtypeStruct((num_steps, Bp, OUT_PAD), jnp.float32),
    )

    # Single invocation (no grid): every operand/result is a whole-array VMEM
    # block; total VMEM footprint ~4 MB, no double buffering needed.
    spk_p, mem_p = pl.pallas_call(
        functools.partial(snn_kernel, num_steps=num_steps),
        out_shape=out_shape,
        in_specs=[pl.BlockSpec(memory_space=pltpu.MemorySpace.VMEM)] * 5,
        out_specs=(
            pl.BlockSpec(memory_space=pltpu.MemorySpace.VMEM),
            pl.BlockSpec(memory_space=pltpu.MemorySpace.VMEM),
        ),
    )(x_p, w1_p, b1_p, w2_p, b2_p)

    return spk_p[:, :B, :NUM_OUTPUTS], mem_p[:, :B, :NUM_OUTPUTS]


def snn_forward_ref(x, w1, b1, w2, b2, *, num_steps=NUM_STEPS):
    """Pure-JAX reference for correctness checking."""
    B = x.shape[0]
    mem1 = jnp.zeros((B, NUM_HIDDEN), jnp.float32)
    mem2 = jnp.zeros((B, NUM_OUTPUTS), jnp.float32)
    spk_rec, mem_rec = [], []
    cur1 = x @ w1 + b1
    for _ in range(num_steps):
        reset1 = (mem1 > THRESHOLD).astype(jnp.float32)
        mem1 = BETA * mem1 + cur1 - reset1 * THRESHOLD
        spk1 = (mem1 > THRESHOLD).astype(jnp.float32)
        cur2 = spk1 @ w2 + b2
        reset2 = (mem2 > THRESHOLD).astype(jnp.float32)
        mem2 = BETA * mem2 + cur2 - reset2 * THRESHOLD
        spk2 = (mem2 > THRESHOLD).astype(jnp.float32)
        spk_rec.append(spk2)
        mem_rec.append(mem2)
    return jnp.stack(spk_rec, 0), jnp.stack(mem_rec, 0)


def init_params(key):
    """Deterministic init mimicking nn.Linear: U(-1/sqrt(fan_in), 1/sqrt(fan_in))."""
    k1, k2, k3, k4 = jax.random.split(key, 4)
    lim1 = 1.0 / jnp.sqrt(jnp.float32(NUM_INPUTS))
    lim2 = 1.0 / jnp.sqrt(jnp.float32(NUM_HIDDEN))
    # stored pre-transposed: (in, out)
    w1 = jax.random.uniform(k1, (NUM_INPUTS, NUM_HIDDEN), jnp.float32, -lim1, lim1)
    b1 = jax.random.uniform(k2, (1, NUM_HIDDEN), jnp.float32, -lim1, lim1)
    w2 = jax.random.uniform(k3, (NUM_HIDDEN, NUM_OUTPUTS), jnp.float32, -lim2, lim2)
    b2 = jax.random.uniform(k4, (1, NUM_OUTPUTS), jnp.float32, -lim2, lim2)
    return w1, b1, w2, b2


if __name__ == "__main__":
    key = jax.random.PRNGKey(0)
    kx, kp = jax.random.split(key)

    batch = 8
    # MNIST-like input, flattened to (batch, 28*28) as in the tutorial.
    x = jax.random.uniform(kx, (batch, NUM_INPUTS), jnp.float32)

    w1, b1, w2, b2 = init_params(kp)

    spk2_rec, mem2_rec = jax.jit(snn_forward)(x, w1, b1, w2, b2)
    jax.block_until_ready(spk2_rec)
    jax.block_until_ready(mem2_rec)

    spk_ref, mem_ref = snn_forward_ref(x, w1, b1, w2, b2)
    assert spk2_rec.shape == (NUM_STEPS, batch, NUM_OUTPUTS)
    assert mem2_rec.shape == (NUM_STEPS, batch, NUM_OUTPUTS)
    assert jnp.allclose(spk2_rec, spk_ref, atol=1e-5, rtol=1e-5)
    assert jnp.allclose(mem2_rec, mem_ref, atol=1e-4, rtol=1e-4)

    print("KERNEL_OK")
</pallas_src>

<mosaic_0001>
module attributes {stable_mosaic.version = 11 : i64} {
  func.func @snn_kernel(%arg0: memref<8x784xf32, #tpu.memory_space<vmem>>, %arg1: memref<784x1024xf32, #tpu.memory_space<vmem>>, %arg2: memref<1x1024xf32, #tpu.memory_space<vmem>>, %arg3: memref<1024x128xf32, #tpu.memory_space<vmem>>, %arg4: memref<1x128xf32, #tpu.memory_space<vmem>>, %arg5: memref<25x8x128xf32, #tpu.memory_space<vmem>>, %arg6: memref<25x8x128xf32, #tpu.memory_space<vmem>>) attributes {dimension_semantics = [], scalar_prefetch = 0 : i64, scratch_operands = 0 : i64, tpu.core_type = #tpu.core_type<tc>} {
    %c0 = arith.constant 0 : index
    %c0_0 = arith.constant 0 : index
    %0 = vector.load %arg0[%c0, %c0_0] : memref<8x784xf32, #tpu.memory_space<vmem>>, vector<8x784xf32>
    %c0_1 = arith.constant 0 : index
    %c0_2 = arith.constant 0 : index
    %1 = vector.load %arg1[%c0_1, %c0_2] : memref<784x1024xf32, #tpu.memory_space<vmem>>, vector<784x1024xf32>
    %cst = arith.constant dense<0.000000e+00> : vector<8x1024xf32>
    %2 = tpu.matmul %0, %1, %cst {dimension_numbers = #tpu.dot_dimension_numbers<[1], [0], [0], [1], [0, 0, 1, 1], [], []>} : vector<8x784xf32>, vector<784x1024xf32>, vector<8x1024xf32> -> vector<8x1024xf32>
    %c0_3 = arith.constant 0 : index
    %c0_4 = arith.constant 0 : index
    %3 = vector.load %arg2[%c0_3, %c0_4] : memref<1x1024xf32, #tpu.memory_space<vmem>>, vector<1x1024xf32>
    %4 = vector.broadcast %3 : vector<1x1024xf32> to vector<8x1024xf32>
    %5 = arith.addf %2, %4 : vector<8x1024xf32>
    %c0_5 = arith.constant 0 : index
    %c0_6 = arith.constant 0 : index
    %6 = vector.load %arg3[%c0_5, %c0_6] : memref<1024x128xf32, #tpu.memory_space<vmem>>, vector<1024x128xf32>
    %c0_7 = arith.constant 0 : index
    %c0_8 = arith.constant 0 : index
    %7 = vector.load %arg4[%c0_7, %c0_8] : memref<1x128xf32, #tpu.memory_space<vmem>>, vector<1x128xf32>
    %cst_9 = arith.constant 0.000000e+00 : f32
    %8 = vector.broadcast %cst_9 : f32 to vector<8x1024xf32>
    %cst_10 = arith.constant 0.000000e+00 : f32
    %9 = vector.broadcast %cst_10 : f32 to vector<8x128xf32>
    %c0_i32 = arith.constant 0 : i32
    %cst_11 = arith.constant 1.000000e+00 : f32
    %10 = vector.broadcast %cst_11 : f32 to vector<8x1024xf32>
    %11 = arith.cmpf ogt, %8, %10 : vector<8x1024xf32>
    %12 = arith.extui %11 : vector<8x1024xi1> to vector<8x1024xi32>
    %13 = arith.sitofp %12 : vector<8x1024xi32> to vector<8x1024xf32>
    %cst_12 = arith.constant 0.949999988 : f32
    %14 = vector.broadcast %cst_12 : f32 to vector<8x1024xf32>
    %15 = arith.mulf %14, %8 : vector<8x1024xf32>
    %16 = arith.addf %15, %5 : vector<8x1024xf32>
    %cst_13 = arith.constant 1.000000e+00 : f32
    %17 = vector.broadcast %cst_13 : f32 to vector<8x1024xf32>
    %18 = arith.mulf %13, %17 : vector<8x1024xf32>
    %19 = arith.subf %16, %18 : vector<8x1024xf32>
    %cst_14 = arith.constant 1.000000e+00 : f32
    %20 = vector.broadcast %cst_14 : f32 to vector<8x1024xf32>
    %21 = arith.cmpf ogt, %19, %20 : vector<8x1024xf32>
    %22 = arith.extui %21 : vector<8x1024xi1> to vector<8x1024xi32>
    %23 = arith.sitofp %22 : vector<8x1024xi32> to vector<8x1024xf32>
    %cst_15 = arith.constant dense<0.000000e+00> : vector<8x128xf32>
    %24 = tpu.matmul %23, %6, %cst_15 {dimension_numbers = #tpu.dot_dimension_numbers<[1], [0], [0], [1], [0, 0, 1, 1], [], []>} : vector<8x1024xf32>, vector<1024x128xf32>, vector<8x128xf32> -> vector<8x128xf32>
    %25 = vector.broadcast %7 : vector<1x128xf32> to vector<8x128xf32>
    %26 = arith.addf %24, %25 : vector<8x128xf32>
    %cst_16 = arith.constant 1.000000e+00 : f32
    %27 = vector.broadcast %cst_16 : f32 to vector<8x128xf32>
    %28 = arith.cmpf ogt, %9, %27 : vector<8x128xf32>
    %29 = arith.extui %28 : vector<8x128xi1> to vector<8x128xi32>
    %30 = arith.sitofp %29 : vector<8x128xi32> to vector<8x128xf32>
    %cst_17 = arith.constant 0.949999988 : f32
    %31 = vector.broadcast %cst_17 : f32 to vector<8x128xf32>
    %32 = arith.mulf %31, %9 : vector<8x128xf32>
    %33 = arith.addf %32, %26 : vector<8x128xf32>
    %cst_18 = arith.constant 1.000000e+00 : f32
    %34 = vector.broadcast %cst_18 : f32 to vector<8x128xf32>
    %35 = arith.mulf %30, %34 : vector<8x128xf32>
    %36 = arith.subf %33, %35 : vector<8x128xf32>
    %cst_19 = arith.constant 1.000000e+00 : f32
    %37 = vector.broadcast %cst_19 : f32 to vector<8x128xf32>
    %38 = arith.cmpf ogt, %36, %37 : vector<8x128xf32>
    %39 = arith.extui %38 : vector<8x128xi1> to vector<8x128xi32>
    %40 = arith.sitofp %39 : vector<8x128xi32> to vector<8x128xf32>
    %41 = arith.index_cast %c0_i32 : i32 to index
    %c0_20 = arith.constant 0 : index
    %c0_21 = arith.constant 0 : index
    %42 = vector.load %arg5[%41, %c0_20, %c0_21] : memref<25x8x128xf32, #tpu.memory_space<vmem>>, vector<1x8x128xf32>
    %43 = vector.shape_cast %42 : vector<1x8x128xf32> to vector<8x128xf32>
    %44 = vector.shape_cast %40 : vector<8x128xf32> to vector<1x8x128xf32>
    tpu.vector_store %arg5[%41, %c0_20, %c0_21], %44 {strides = array<i32>} : memref<25x8x128xf32, #tpu.memory_space<vmem>>, vector<1x8x128xf32>,
    %45 = arith.index_cast %c0_i32 : i32 to index
    %c0_22 = arith.constant 0 : index
    %c0_23 = arith.constant 0 : index
    %46 = vector.load %arg6[%45, %c0_22, %c0_23] : memref<25x8x128xf32, #tpu.memory_space<vmem>>, vector<1x8x128xf32>
    %47 = vector.shape_cast %46 : vector<1x8x128xf32> to vector<8x128xf32>
    %48 = vector.shape_cast %36 : vector<8x128xf32> to vector<1x8x128xf32>
    tpu.vector_store %arg6[%45, %c0_22, %c0_23], %48 {strides = array<i32>} : memref<25x8x128xf32, #tpu.memory_space<vmem>>, vector<1x8x128xf32>,
    %c1_i32 = arith.constant 1 : i32
    %cst_24 = arith.constant 1.000000e+00 : f32
    %49 = vector.broadcast %cst_24 : f32 to vector<8x1024xf32>
    %50 = arith.cmpf ogt, %19, %49 : vector<8x1024xf32>
    %51 = arith.extui %50 : vector<8x1024xi1> to vector<8x1024xi32>
    %52 = arith.sitofp %51 : vector<8x1024xi32> to vector<8x1024xf32>
    %cst_25 = arith.constant 0.949999988 : f32
    %53 = vector.broadcast %cst_25 : f32 to vector<8x1024xf32>
    %54 = arith.mulf %53, %19 : vector<8x1024xf32>
    %55 = arith.addf %54, %5 : vector<8x1024xf32>
    %cst_26 = arith.constant 1.000000e+00 : f32
    %56 = vector.broadcast %cst_26 : f32 to vector<8x1024xf32>
    %57 = arith.mulf %52, %56 : vector<8x1024xf32>
    %58 = arith.subf %55, %57 : vector<8x1024xf32>
    %cst_27 = arith.constant 1.000000e+00 : f32
    %59 = vector.broadcast %cst_27 : f32 to vector<8x1024xf32>
    %60 = arith.cmpf ogt, %58, %59 : vector<8x1024xf32>
    %61 = arith.extui %60 : vector<8x1024xi1> to vector<8x1024xi32>
    %62 = arith.sitofp %61 : vector<8x1024xi32> to vector<8x1024xf32>
    %cst_28 = arith.constant dense<0.000000e+00> : vector<8x128xf32>
    %63 = tpu.matmul %62, %6, %cst_28 {dimension_numbers = #tpu.dot_dimension_numbers<[1], [0], [0], [1], [0, 0, 1, 1], [], []>} : vector<8x1024xf32>, vector<1024x128xf32>, vector<8x128xf32> -> vector<8x128xf32>
    %64 = vector.broadcast %7 : vector<1x128xf32> to vector<8x128xf32>
    %65 = arith.addf %63, %64 : vector<8x128xf32>
    %cst_29 = arith.constant 1.000000e+00 : f32
    %66 = vector.broadcast %cst_29 : f32 to vector<8x128xf32>
    %67 = arith.cmpf ogt, %36, %66 : vector<8x128xf32>
    %68 = arith.extui %67 : vector<8x128xi1> to vector<8x128xi32>
    %69 = arith.sitofp %68 : vector<8x128xi32> to vector<8x128xf32>
    %cst_30 = arith.constant 0.949999988 : f32
    %70 = vector.broadcast %cst_30 : f32 to vector<8x128xf32>
    %71 = arith.mulf %70, %36 : vector<8x128xf32>
    %72 = arith.addf %71, %65 : vector<8x128xf32>
    %cst_31 = arith.constant 1.000000e+00 : f32
    %73 = vector.broadcast %cst_31 : f32 to vector<8x128xf32>
    %74 = arith.mulf %69, %73 : vector<8x128xf32>
    %75 = arith.subf %72, %74 : vector<8x128xf32>
    %cst_32 = arith.constant 1.000000e+00 : f32
    %76 = vector.broadcast %cst_32 : f32 to vector<8x128xf32>
    %77 = arith.cmpf ogt, %75, %76 : vector<8x128xf32>
    %78 = arith.extui %77 : vector<8x128xi1> to vector<8x128xi32>
    %79 = arith.sitofp %78 : vector<8x128xi32> to vector<8x128xf32>
    %80 = arith.index_cast %c1_i32 : i32 to index
    %c0_33 = arith.constant 0 : index
    %c0_34 = arith.constant 0 : index
    %81 = vector.load %arg5[%80, %c0_33, %c0_34] : memref<25x8x128xf32, #tpu.memory_space<vmem>>, vector<1x8x128xf32>
    %82 = vector.shape_cast %81 : vector<1x8x128xf32> to vector<8x128xf32>
    %83 = vector.shape_cast %79 : vector<8x128xf32> to vector<1x8x128xf32>
    tpu.vector_store %arg5[%80, %c0_33, %c0_34], %83 {strides = array<i32>} : memref<25x8x128xf32, #tpu.memory_space<vmem>>, vector<1x8x128xf32>,
    %84 = arith.index_cast %c1_i32 : i32 to index
    %c0_35 = arith.constant 0 : index
    %c0_36 = arith.constant 0 : index
    %85 = vector.load %arg6[%84, %c0_35, %c0_36] : memref<25x8x128xf32, #tpu.memory_space<vmem>>, vector<1x8x128xf32>
    %86 = vector.shape_cast %85 : vector<1x8x128xf32> to vector<8x128xf32>
    %87 = vector.shape_cast %75 : vector<8x128xf32> to vector<1x8x128xf32>
    tpu.vector_store %arg6[%84, %c0_35, %c0_36], %87 {strides = array<i32>} : memref<25x8x128xf32, #tpu.memory_space<vmem>>, vector<1x8x128xf32>,
    %c2_i32 = arith.constant 2 : i32
    %cst_37 = arith.constant 1.000000e+00 : f32
    %88 = vector.broadcast %cst_37 : f32 to vector<8x1024xf32>
    %89 = arith.cmpf ogt, %58, %88 : vector<8x1024xf32>
    %90 = arith.extui %89 : vector<8x1024xi1> to vector<8x1024xi32>
    %91 = arith.sitofp %90 : vector<8x1024xi32> to vector<8x1024xf32>
    %cst_38 = arith.constant 0.949999988 : f32
    %92 = vector.broadcast %cst_38 : f32 to vector<8x1024xf32>
    %93 = arith.mulf %92, %58 : vector<8x1024xf32>
    %94 = arith.addf %93, %5 : vector<8x1024xf32>
    %cst_39 = arith.constant 1.000000e+00 : f32
    %95 = vector.broadcast %cst_39 : f32 to vector<8x1024xf32>
    %96 = arith.mulf %91, %95 : vector<8x1024xf32>
    %97 = arith.subf %94, %96 : vector<8x1024xf32>
    %cst_40 = arith.constant 1.000000e+00 : f32
    %98 = vector.broadcast %cst_40 : f32 to vector<8x1024xf32>
    %99 = arith.cmpf ogt, %97, %98 : vector<8x1024xf32>
    %100 = arith.extui %99 : vector<8x1024xi1> to vector<8x1024xi32>
    %101 = arith.sitofp %100 : vector<8x1024xi32> to vector<8x1024xf32>
    %cst_41 = arith.constant dense<0.000000e+00> : vector<8x128xf32>
    %102 = tpu.matmul %101, %6, %cst_41 {dimension_numbers = #tpu.dot_dimension_numbers<[1], [0], [0], [1], [0, 0, 1, 1], [], []>} : vector<8x1024xf32>, vector<1024x128xf32>, vector<8x128xf32> -> vector<8x128xf32>
    %103 = vector.broadcast %7 : vector<1x128xf32> to vector<8x128xf32>
    %104 = arith.addf %102, %103 : vector<8x128xf32>
    %cst_42 = arith.constant 1.000000e+00 : f32
    %105 = vector.broadcast %cst_42 : f32 to vector<8x128xf32>
    %106 = arith.cmpf ogt, %75, %105 : vector<8x128xf32>
    %107 = arith.extui %106 : vector<8x128xi1> to vector<8x128xi32>
    %108 = arith.sitofp %107 : vector<8x128xi32> to vector<8x128xf32>
    %cst_43 = arith.constant 0.949999988 : f32
    %109 = vector.broadcast %cst_43 : f32 to vector<8x128xf32>
    %110 = arith.mulf %109, %75 : vector<8x128xf32>
    %111 = arith.addf %110, %104 : vector<8x128xf32>
    %cst_44 = arith.constant 1.000000e+00 : f32
    %112 = vector.broadcast %cst_44 : f32 to vector<8x128xf32>
    %113 = arith.mulf %108, %112 : vector<8x128xf32>
    %114 = arith.subf %111, %113 : vector<8x128xf32>
    %cst_45 = arith.constant 1.000000e+00 : f32
    %115 = vector.broadcast %cst_45 : f32 to vector<8x128xf32>
    %116 = arith.cmpf ogt, %114, %115 : vector<8x128xf32>
    %117 = arith.extui %116 : vector<8x128xi1> to vector<8x128xi32>
    %118 = arith.sitofp %117 : vector<8x128xi32> to vector<8x128xf32>
    %119 = arith.index_cast %c2_i32 : i32 to index
    %c0_46 = arith.constant 0 : index
    %c0_47 = arith.constant 0 : index
    %120 = vector.load %arg5[%119, %c0_46, %c0_47] : memref<25x8x128xf32, #tpu.memory_space<vmem>>, vector<1x8x128xf32>
    %121 = vector.shape_cast %120 : vector<1x8x128xf32> to vector<8x128xf32>
    %122 = vector.shape_cast %118 : vector<8x128xf32> to vector<1x8x128xf32>
    tpu.vector_store %arg5[%119, %c0_46, %c0_47], %122 {strides = array<i32>} : memref<25x8x128xf32, #tpu.memory_space<vmem>>, vector<1x8x128xf32>,
    %123 = arith.index_cast %c2_i32 : i32 to index
    %c0_48 = arith.constant 0 : index
    %c0_49 = arith.constant 0 : index
    %124 = vector.load %arg6[%123, %c0_48, %c0_49] : memref<25x8x128xf32, #tpu.memory_space<vmem>>, vector<1x8x128xf32>
    %125 = vector.shape_cast %124 : vector<1x8x128xf32> to vector<8x128xf32>
    %126 = vector.shape_cast %114 : vector<8x128xf32> to vector<1x8x128xf32>
    tpu.vector_store %arg6[%123, %c0_48, %c0_49], %126 {strides = array<i32>} : memref<25x8x128xf32, #tpu.memory_space<vmem>>, vector<1x8x128xf32>,
    %c3_i32 = arith.constant 3 : i32
    %cst_50 = arith.constant 1.000000e+00 : f32
    %127 = vector.broadcast %cst_50 : f32 to vector<8x1024xf32>
    %128 = arith.cmpf ogt, %97, %127 : vector<8x1024xf32>
    %129 = arith.extui %128 : vector<8x1024xi1> to vector<8x1024xi32>
    %130 = arith.sitofp %129 : vector<8x1024xi32> to vector<8x1024xf32>
    %cst_51 = arith.constant 0.949999988 : f32
    %131 = vector.broadcast %cst_51 : f32 to vector<8x1024xf32>
    %132 = arith.mulf %131, %97 : vector<8x1024xf32>
    %133 = arith.addf %132, %5 : vector<8x1024xf32>
    %cst_52 = arith.constant 1.000000e+00 : f32
    %134 = vector.broadcast %cst_52 : f32 to vector<8x1024xf32>
    %135 = arith.mulf %130, %134 : vector<8x1024xf32>
    %136 = arith.subf %133, %135 : vector<8x1024xf32>
    %cst_53 = arith.constant 1.000000e+00 : f32
    %137 = vector.broadcast %cst_53 : f32 to vector<8x1024xf32>
    %138 = arith.cmpf ogt, %136, %137 : vector<8x1024xf32>
    %139 = arith.extui %138 : vector<8x1024xi1> to vector<8x1024xi32>
    %140 = arith.sitofp %139 : vector<8x1024xi32> to vector<8x1024xf32>
    %cst_54 = arith.constant dense<0.000000e+00> : vector<8x128xf32>
    %141 = tpu.matmul %140, %6, %cst_54 {dimension_numbers = #tpu.dot_dimension_numbers<[1], [0], [0], [1], [0, 0, 1, 1], [], []>} : vector<8x1024xf32>, vector<1024x128xf32>, vector<8x128xf32> -> vector<8x128xf32>
    %142 = vector.broadcast %7 : vector<1x128xf32> to vector<8x128xf32>
    %143 = arith.addf %141, %142 : vector<8x128xf32>
    %cst_55 = arith.constant 1.000000e+00 : f32
    %144 = vector.broadcast %cst_55 : f32 to vector<8x128xf32>
    %145 = arith.cmpf ogt, %114, %144 : vector<8x128xf32>
    %146 = arith.extui %145 : vector<8x128xi1> to vector<8x128xi32>
    %147 = arith.sitofp %146 : vector<8x128xi32> to vector<8x128xf32>
    %cst_56 = arith.constant 0.949999988 : f32
    %148 = vector.broadcast %cst_56 : f32 to vector<8x128xf32>
    %149 = arith.mulf %148, %114 : vector<8x128xf32>
    %150 = arith.addf %149, %143 : vector<8x128xf32>
    %cst_57 = arith.constant 1.000000e+00 : f32
    %151 = vector.broadcast %cst_57 : f32 to vector<8x128xf32>
    %152 = arith.mulf %147, %151 : vector<8x128xf32>
    %153 = arith.subf %150, %152 : vector<8x128xf32>
    %cst_58 = arith.constant 1.000000e+00 : f32
    %154 = vector.broadcast %cst_58 : f32 to vector<8x128xf32>
    %155 = arith.cmpf ogt, %153, %154 : vector<8x128xf32>
    %156 = arith.extui %155 : vector<8x128xi1> to vector<8x128xi32>
    %157 = arith.sitofp %156 : vector<8x128xi32> to vector<8x128xf32>
    %158 = arith.index_cast %c3_i32 : i32 to index
    %c0_59 = arith.constant 0 : index
    %c0_60 = arith.constant 0 : index
    %159 = vector.load %arg5[%158, %c0_59, %c0_60] : memref<25x8x128xf32, #tpu.memory_space<vmem>>, vector<1x8x128xf32>
    %160 = vector.shape_cast %159 : vector<1x8x128xf32> to vector<8x128xf32>
    %161 = vector.shape_cast %157 : vector<8x128xf32> to vector<1x8x128xf32>
    tpu.vector_store %arg5[%158, %c0_59, %c0_60], %161 {strides = array<i32>} : memref<25x8x128xf32, #tpu.memory_space<vmem>>, vector<1x8x128xf32>,
    %162 = arith.index_cast %c3_i32 : i32 to index
    %c0_61 = arith.constant 0 : index
    %c0_62 = arith.constant 0 : index
    %163 = vector.load %arg6[%162, %c0_61, %c0_62] : memref<25x8x128xf32, #tpu.memory_space<vmem>>, vector<1x8x128xf32>
    %164 = vector.shape_cast %163 : vector<1x8x128xf32> to vector<8x128xf32>
    %165 = vector.shape_cast %153 : vector<8x128xf32> to vector<1x8x128xf32>
    tpu.vector_store %arg6[%162, %c0_61, %c0_62], %165 {strides = array<i32>} : memref<25x8x128xf32, #tpu.memory_space<vmem>>, vector<1x8x128xf32>,
    %c4_i32 = arith.constant 4 : i32
    %cst_63 = arith.constant 1.000000e+00 : f32
    %166 = vector.broadcast %cst_63 : f32 to vector<8x1024xf32>
    %167 = arith.cmpf ogt, %136, %166 : vector<8x1024xf32>
    %168 = arith.extui %167 : vector<8x1024xi1> to vector<8x1024xi32>
    %169 = arith.sitofp %168 : vector<8x1024xi32> to vector<8x1024xf32>
    %cst_64 = arith.constant 0.949999988 : f32
    %170 = vector.broadcast %cst_64 : f32 to vector<8x1024xf32>
    %171 = arith.mulf %170, %136 : vector<8x1024xf32>
    %172 = arith.addf %171, %5 : vector<8x1024xf32>
    %cst_65 = arith.constant 1.000000e+00 : f32
    %173 = vector.broadcast %cst_65 : f32 to vector<8x1024xf32>
    %174 = arith.mulf %169, %173 : vector<8x1024xf32>
    %175 = arith.subf %172, %174 : vector<8x1024xf32>
    %cst_66 = arith.constant 1.000000e+00 : f32
    %176 = vector.broadcast %cst_66 : f32 to vector<8x1024xf32>
    %177 = arith.cmpf ogt, %175, %176 : vector<8x1024xf32>
    %178 = arith.extui %177 : vector<8x1024xi1> to vector<8x1024xi32>
    %179 = arith.sitofp %178 : vector<8x1024xi32> to vector<8x1024xf32>
    %cst_67 = arith.constant dense<0.000000e+00> : vector<8x128xf32>
    %180 = tpu.matmul %179, %6, %cst_67 {dimension_numbers = #tpu.dot_dimension_numbers<[1], [0], [0], [1], [0, 0, 1, 1], [], []>} : vector<8x1024xf32>, vector<1024x128xf32>, vector<8x128xf32> -> vector<8x128xf32>
    %181 = vector.broadcast %7 : vector<1x128xf32> to vector<8x128xf32>
    %182 = arith.addf %180, %181 : vector<8x128xf32>
    %cst_68 = arith.constant 1.000000e+00 : f32
    %183 = vector.broadcast %cst_68 : f32 to vector<8x128xf32>
    %184 = arith.cmpf ogt, %153, %183 : vector<8x128xf32>
    %185 = arith.extui %184 : vector<8x128xi1> to vector<8x128xi32>
    %186 = arith.sitofp %185 : vector<8x128xi32> to vector<8x128xf32>
    %cst_69 = arith.constant 0.949999988 : f32
    %187 = vector.broadcast %cst_69 : f32 to vector<8x128xf32>
    %188 = arith.mulf %187, %153 : vector<8x128xf32>
    %189 = arith.addf %188, %182 : vector<8x128xf32>
    %cst_70 = arith.constant 1.000000e+00 : f32
    %190 = vector.broadcast %cst_70 : f32 to vector<8x128xf32>
    %191 = arith.mulf %186, %190 : vector<8x128xf32>
    %192 = arith.subf %189, %191 : vector<8x128xf32>
    %cst_71 = arith.constant 1.000000e+00 : f32
    %193 = vector.broadcast %cst_71 : f32 to vector<8x128xf32>
    %194 = arith.cmpf ogt, %192, %193 : vector<8x128xf32>
    %195 = arith.extui %194 : vector<8x128xi1> to vector<8x128xi32>
    %196 = arith.sitofp %195 : vector<8x128xi32> to vector<8x128xf32>
    %197 = arith.index_cast %c4_i32 : i32 to index
    %c0_72 = arith.constant 0 : index
    %c0_73 = arith.constant 0 : index
    %198 = vector.load %arg5[%197, %c0_72, %c0_73] : memref<25x8x128xf32, #tpu.memory_space<vmem>>, vector<1x8x128xf32>
    %199 = vector.shape_cast %198 : vector<1x8x128xf32> to vector<8x128xf32>
    %200 = vector.shape_cast %196 : vector<8x128xf32> to vector<1x8x128xf32>
    tpu.vector_store %arg5[%197, %c0_72, %c0_73], %200 {strides = array<i32>} : memref<25x8x128xf32, #tpu.memory_space<vmem>>, vector<1x8x128xf32>,
    %201 = arith.index_cast %c4_i32 : i32 to index
    %c0_74 = arith.constant 0 : index
    %c0_75 = arith.constant 0 : index
    %202 = vector.load %arg6[%201, %c0_74, %c0_75] : memref<25x8x128xf32, #tpu.memory_space<vmem>>, vector<1x8x128xf32>
    %203 = vector.shape_cast %202 : vector<1x8x128xf32> to vector<8x128xf32>
    %204 = vector.shape_cast %192 : vector<8x128xf32> to vector<1x8x128xf32>
    tpu.vector_store %arg6[%201, %c0_74, %c0_75], %204 {strides = array<i32>} : memref<25x8x128xf32, #tpu.memory_space<vmem>>, vector<1x8x128xf32>,
    %c5_i32 = arith.constant 5 : i32
    %cst_76 = arith.constant 1.000000e+00 : f32
    %205 = vector.broadcast %cst_76 : f32 to vector<8x1024xf32>
    %206 = arith.cmpf ogt, %175, %205 : vector<8x1024xf32>
    %207 = arith.extui %206 : vector<8x1024xi1> to vector<8x1024xi32>
    %208 = arith.sitofp %207 : vector<8x1024xi32> to vector<8x1024xf32>
    %cst_77 = arith.constant 0.949999988 : f32
    %209 = vector.broadcast %cst_77 : f32 to vector<8x1024xf32>
    %210 = arith.mulf %209, %175 : vector<8x1024xf32>
    %211 = arith.addf %210, %5 : vector<8x1024xf32>
    %cst_78 = arith.constant 1.000000e+00 : f32
    %212 = vector.broadcast %cst_78 : f32 to vector<8x1024xf32>
    %213 = arith.mulf %208, %212 : vector<8x1024xf32>
    %214 = arith.subf %211, %213 : vector<8x1024xf32>
    %cst_79 = arith.constant 1.000000e+00 : f32
    %215 = vector.broadcast %cst_79 : f32 to vector<8x1024xf32>
    %216 = arith.cmpf ogt, %214, %215 : vector<8x1024xf32>
    %217 = arith.extui %216 : vector<8x1024xi1> to vector<8x1024xi32>
    %218 = arith.sitofp %217 : vector<8x1024xi32> to vector<8x1024xf32>
    %cst_80 = arith.constant dense<0.000000e+00> : vector<8x128xf32>
    %219 = tpu.matmul %218, %6, %cst_80 {dimension_numbers = #tpu.dot_dimension_numbers<[1], [0], [0], [1], [0, 0, 1, 1], [], []>} : vector<8x1024xf32>, vector<1024x128xf32>, vector<8x128xf32> -> vector<8x128xf32>
    %220 = vector.broadcast %7 : vector<1x128xf32> to vector<8x128xf32>
    %221 = arith.addf %219, %220 : vector<8x128xf32>
    %cst_81 = arith.constant 1.000000e+00 : f32
    %222 = vector.broadcast %cst_81 : f32 to vector<8x128xf32>
    %223 = arith.cmpf ogt, %192, %222 : vector<8x128xf32>
    %224 = arith.extui %223 : vector<8x128xi1> to vector<8x128xi32>
    %225 = arith.sitofp %224 : vector<8x128xi32> to vector<8x128xf32>
    %cst_82 = arith.constant 0.949999988 : f32
    %226 = vector.broadcast %cst_82 : f32 to vector<8x128xf32>
    %227 = arith.mulf %226, %192 : vector<8x128xf32>
    %228 = arith.addf %227, %221 : vector<8x128xf32>
    %cst_83 = arith.constant 1.000000e+00 : f32
    %229 = vector.broadcast %cst_83 : f32 to vector<8x128xf32>
    %230 = arith.mulf %225, %229 : vector<8x128xf32>
    %231 = arith.subf %228, %230 : vector<8x128xf32>
    %cst_84 = arith.constant 1.000000e+00 : f32
    %232 = vector.broadcast %cst_84 : f32 to vector<8x128xf32>
    %233 = arith.cmpf ogt, %231, %232 : vector<8x128xf32>
    %234 = arith.extui %233 : vector<8x128xi1> to vector<8x128xi32>
    %235 = arith.sitofp %234 : vector<8x128xi32> to vector<8x128xf32>
    %236 = arith.index_cast %c5_i32 : i32 to index
    %c0_85 = arith.constant 0 : index
    %c0_86 = arith.constant 0 : index
    %237 = vector.load %arg5[%236, %c0_85, %c0_86] : memref<25x8x128xf32, #tpu.memory_space<vmem>>, vector<1x8x128xf32>
    %238 = vector.shape_cast %237 : vector<1x8x128xf32> to vector<8x128xf32>
    %239 = vector.shape_cast %235 : vector<8x128xf32> to vector<1x8x128xf32>
    tpu.vector_store %arg5[%236, %c0_85, %c0_86], %239 {strides = array<i32>} : memref<25x8x128xf32, #tpu.memory_space<vmem>>, vector<1x8x128xf32>,
    %240 = arith.index_cast %c5_i32 : i32 to index
    %c0_87 = arith.constant 0 : index
    %c0_88 = arith.constant 0 : index
    %241 = vector.load %arg6[%240, %c0_87, %c0_88] : memref<25x8x128xf32, #tpu.memory_space<vmem>>, vector<1x8x128xf32>
    %242 = vector.shape_cast %241 : vector<1x8x128xf32> to vector<8x128xf32>
    %243 = vector.shape_cast %231 : vector<8x128xf32> to vector<1x8x128xf32>
    tpu.vector_store %arg6[%240, %c0_87, %c0_88], %243 {strides = array<i32>} : memref<25x8x128xf32, #tpu.memory_space<vmem>>, vector<1x8x128xf32>,
    %c6_i32 = arith.constant 6 : i32
    %cst_89 = arith.constant 1.000000e+00 : f32
    %244 = vector.broadcast %cst_89 : f32 to vector<8x1024xf32>
    %245 = arith.cmpf ogt, %214, %244 : vector<8x1024xf32>
    %246 = arith.extui %245 : vector<8x1024xi1> to vector<8x1024xi32>
    %247 = arith.sitofp %246 : vector<8x1024xi32> to vector<8x1024xf32>
    %cst_90 = arith.constant 0.949999988 : f32
    %248 = vector.broadcast %cst_90 : f32 to vector<8x1024xf32>
    %249 = arith.mulf %248, %214 : vector<8x1024xf32>
    %250 = arith.addf %249, %5 : vector<8x1024xf32>
    %cst_91 = arith.constant 1.000000e+00 : f32
    %251 = vector.broadcast %cst_91 : f32 to vector<8x1024xf32>
    %252 = arith.mulf %247, %251 : vector<8x1024xf32>
    %253 = arith.subf %250, %252 : vector<8x1024xf32>
    %cst_92 = arith.constant 1.000000e+00 : f32
    %254 = vector.broadcast %cst_92 : f32 to vector<8x1024xf32>
    %255 = arith.cmpf ogt, %253, %254 : vector<8x1024xf32>
    %256 = arith.extui %255 : vector<8x1024xi1> to vector<8x1024xi32>
    %257 = arith.sitofp %256 : vector<8x1024xi32> to vector<8x1024xf32>
    %cst_93 = arith.constant dense<0.000000e+00> : vector<8x128xf32>
    %258 = tpu.matmul %257, %6, %cst_93 {dimension_numbers = #tpu.dot_dimension_numbers<[1], [0], [0], [1], [0, 0, 1, 1], [], []>} : vector<8x1024xf32>, vector<1024x128xf32>, vector<8x128xf32> -> vector<8x128xf32>
    %259 = vector.broadcast %7 : vector<1x128xf32> to vector<8x128xf32>
    %260 = arith.addf %258, %259 : vector<8x128xf32>
    %cst_94 = arith.constant 1.000000e+00 : f32
    %261 = vector.broadcast %cst_94 : f32 to vector<8x128xf32>
    %262 = arith.cmpf ogt, %231, %261 : vector<8x128xf32>
    %263 = arith.extui %262 : vector<8x128xi1> to vector<8x128xi32>
    %264 = arith.sitofp %263 : vector<8x128xi32> to vector<8x128xf32>
    %cst_95 = arith.constant 0.949999988 : f32
    %265 = vector.broadcast %cst_95 : f32 to vector<8x128xf32>
    %266 = arith.mulf %265, %231 : vector<8x128xf32>
    %267 = arith.addf %266, %260 : vector<8x128xf32>
    %cst_96 = arith.constant 1.000000e+00 : f32
    %268 = vector.broadcast %cst_96 : f32 to vector<8x128xf32>
    %269 = arith.mulf %264, %268 : vector<8x128xf32>
    %270 = arith.subf %267, %269 : vector<8x128xf32>
    %cst_97 = arith.constant 1.000000e+00 : f32
    %271 = vector.broadcast %cst_97 : f32 to vector<8x128xf32>
    %272 = arith.cmpf ogt, %270, %271 : vector<8x128xf32>
    %273 = arith.extui %272 : vector<8x128xi1> to vector<8x128xi32>
    %274 = arith.sitofp %273 : vector<8x128xi32> to vector<8x128xf32>
    %275 = arith.index_cast %c6_i32 : i32 to index
    %c0_98 = arith.constant 0 : index
    %c0_99 = arith.constant 0 : index
    %276 = vector.load %arg5[%275, %c0_98, %c0_99] : memref<25x8x128xf32, #tpu.memory_space<vmem>>, vector<1x8x128xf32>
    %277 = vector.shape_cast %276 : vector<1x8x128xf32> to vector<8x128xf32>
    %278 = vector.shape_cast %274 : vector<8x128xf32> to vector<1x8x128xf32>
    tpu.vector_store %arg5[%275, %c0_98, %c0_99], %278 {strides = array<i32>} : memref<25x8x128xf32, #tpu.memory_space<vmem>>, vector<1x8x128xf32>,
    %279 = arith.index_cast %c6_i32 : i32 to index
    %c0_100 = arith.constant 0 : index
    %c0_101 = arith.constant 0 : index
    %280 = vector.load %arg6[%279, %c0_100, %c0_101] : memref<25x8x128xf32, #tpu.memory_space<vmem>>, vector<1x8x128xf32>
    %281 = vector.shape_cast %280 : vector<1x8x128xf32> to vector<8x128xf32>
    %282 = vector.shape_cast %270 : vector<8x128xf32> to vector<1x8x128xf32>
    tpu.vector_store %arg6[%279, %c0_100, %c0_101], %282 {strides = array<i32>} : memref<25x8x128xf32, #tpu.memory_space<vmem>>, vector<1x8x128xf32>,
    %c7_i32 = arith.constant 7 : i32
    %cst_102 = arith.constant 1.000000e+00 : f32
    %283 = vector.broadcast %cst_102 : f32 to vector<8x1024xf32>
    %284 = arith.cmpf ogt, %253, %283 : vector<8x1024xf32>
    %285 = arith.extui %284 : vector<8x1024xi1> to vector<8x1024xi32>
    %286 = arith.sitofp %285 : vector<8x1024xi32> to vector<8x1024xf32>
    %cst_103 = arith.constant 0.949999988 : f32
    %287 = vector.broadcast %cst_103 : f32 to vector<8x1024xf32>
    %288 = arith.mulf %287, %253 : vector<8x1024xf32>
    %289 = arith.addf %288, %5 : vector<8x1024xf32>
    %cst_104 = arith.constant 1.000000e+00 : f32
    %290 = vector.broadcast %cst_104 : f32 to vector<8x1024xf32>
    %291 = arith.mulf %286, %290 : vector<8x1024xf32>
    %292 = arith.subf %289, %291 : vector<8x1024xf32>
    %cst_105 = arith.constant 1.000000e+00 : f32
    %293 = vector.broadcast %cst_105 : f32 to vector<8x1024xf32>
    %294 = arith.cmpf ogt, %292, %293 : vector<8x1024xf32>
    %295 = arith.extui %294 : vector<8x1024xi1> to vector<8x1024xi32>
    %296 = arith.sitofp %295 : vector<8x1024xi32> to vector<8x1024xf32>
    %cst_106 = arith.constant dense<0.000000e+00> : vector<8x128xf32>
    %297 = tpu.matmul %296, %6, %cst_106 {dimension_numbers = #tpu.dot_dimension_numbers<[1], [0], [0], [1], [0, 0, 1, 1], [], []>} : vector<8x1024xf32>, vector<1024x128xf32>, vector<8x128xf32> -> vector<8x128xf32>
    %298 = vector.broadcast %7 : vector<1x128xf32> to vector<8x128xf32>
    %299 = arith.addf %297, %298 : vector<8x128xf32>
    %cst_107 = arith.constant 1.000000e+00 : f32
    %300 = vector.broadcast %cst_107 : f32 to vector<8x128xf32>
    %301 = arith.cmpf ogt, %270, %300 : vector<8x128xf32>
    %302 = arith.extui %301 : vector<8x128xi1> to vector<8x128xi32>
    %303 = arith.sitofp %302 : vector<8x128xi32> to vector<8x128xf32>
    %cst_108 = arith.constant 0.949999988 : f32
    %304 = vector.broadcast %cst_108 : f32 to vector<8x128xf32>
    %305 = arith.mulf %304, %270 : vector<8x128xf32>
    %306 = arith.addf %305, %299 : vector<8x128xf32>
    %cst_109 = arith.constant 1.000000e+00 : f32
    %307 = vector.broadcast %cst_109 : f32 to vector<8x128xf32>
    %308 = arith.mulf %303, %307 : vector<8x128xf32>
    %309 = arith.subf %306, %308 : vector<8x128xf32>
    %cst_110 = arith.constant 1.000000e+00 : f32
    %310 = vector.broadcast %cst_110 : f32 to vector<8x128xf32>
    %311 = arith.cmpf ogt, %309, %310 : vector<8x128xf32>
    %312 = arith.extui %311 : vector<8x128xi1> to vector<8x128xi32>
    %313 = arith.sitofp %312 : vector<8x128xi32> to vector<8x128xf32>
    %314 = arith.index_cast %c7_i32 : i32 to index
    %c0_111 = arith.constant 0 : index
    %c0_112 = arith.constant 0 : index
    %315 = vector.load %arg5[%314, %c0_111, %c0_112] : memref<25x8x128xf32, #tpu.memory_space<vmem>>, vector<1x8x128xf32>
    %316 = vector.shape_cast %315 : vector<1x8x128xf32> to vector<8x128xf32>
    %317 = vector.shape_cast %313 : vector<8x128xf32> to vector<1x8x128xf32>
    tpu.vector_store %arg5[%314, %c0_111, %c0_112], %317 {strides = array<i32>} : memref<25x8x128xf32, #tpu.memory_space<vmem>>, vector<1x8x128xf32>,
    %318 = arith.index_cast %c7_i32 : i32 to index
    %c0_113 = arith.constant 0 : index
    %c0_114 = arith.constant 0 : index
    %319 = vector.load %arg6[%318, %c0_113, %c0_114] : memref<25x8x128xf32, #tpu.memory_space<vmem>>, vector<1x8x128xf32>
    %320 = vector.shape_cast %319 : vector<1x8x128xf32> to vector<8x128xf32>
    %321 = vector.shape_cast %309 : vector<8x128xf32> to vector<1x8x128xf32>
    tpu.vector_store %arg6[%318, %c0_113, %c0_114], %321 {strides = array<i32>} : memref<25x8x128xf32, #tpu.memory_space<vmem>>, vector<1x8x128xf32>,
    %c8_i32 = arith.constant 8 : i32
    %cst_115 = arith.constant 1.000000e+00 : f32
    %322 = vector.broadcast %cst_115 : f32 to vector<8x1024xf32>
    %323 = arith.cmpf ogt, %292, %322 : vector<8x1024xf32>
    %324 = arith.extui %323 : vector<8x1024xi1> to vector<8x1024xi32>
    %325 = arith.sitofp %324 : vector<8x1024xi32> to vector<8x1024xf32>
    %cst_116 = arith.constant 0.949999988 : f32
    %326 = vector.broadcast %cst_116 : f32 to vector<8x1024xf32>
    %327 = arith.mulf %326, %292 : vector<8x1024xf32>
    %328 = arith.addf %327, %5 : vector<8x1024xf32>
    %cst_117 = arith.constant 1.000000e+00 : f32
    %329 = vector.broadcast %cst_117 : f32 to vector<8x1024xf32>
    %330 = arith.mulf %325, %329 : vector<8x1024xf32>
    %331 = arith.subf %328, %330 : vector<8x1024xf32>
    %cst_118 = arith.constant 1.000000e+00 : f32
    %332 = vector.broadcast %cst_118 : f32 to vector<8x1024xf32>
    %333 = arith.cmpf ogt, %331, %332 : vector<8x1024xf32>
    %334 = arith.extui %333 : vector<8x1024xi1> to vector<8x1024xi32>
    %335 = arith.sitofp %334 : vector<8x1024xi32> to vector<8x1024xf32>
    %cst_119 = arith.constant dense<0.000000e+00> : vector<8x128xf32>
    %336 = tpu.matmul %335, %6, %cst_119 {dimension_numbers = #tpu.dot_dimension_numbers<[1], [0], [0], [1], [0, 0, 1, 1], [], []>} : vector<8x1024xf32>, vector<1024x128xf32>, vector<8x128xf32> -> vector<8x128xf32>
    %337 = vector.broadcast %7 : vector<1x128xf32> to vector<8x128xf32>
    %338 = arith.addf %336, %337 : vector<8x128xf32>
    %cst_120 = arith.constant 1.000000e+00 : f32
    %339 = vector.broadcast %cst_120 : f32 to vector<8x128xf32>
    %340 = arith.cmpf ogt, %309, %339 : vector<8x128xf32>
    %341 = arith.extui %340 : vector<8x128xi1> to vector<8x128xi32>
    %342 = arith.sitofp %341 : vector<8x128xi32> to vector<8x128xf32>
    %cst_121 = arith.constant 0.949999988 : f32
    %343 = vector.broadcast %cst_121 : f32 to vector<8x128xf32>
    %344 = arith.mulf %343, %309 : vector<8x128xf32>
    %345 = arith.addf %344, %338 : vector<8x128xf32>
    %cst_122 = arith.constant 1.000000e+00 : f32
    %346 = vector.broadcast %cst_122 : f32 to vector<8x128xf32>
    %347 = arith.mulf %342, %346 : vector<8x128xf32>
    %348 = arith.subf %345, %347 : vector<8x128xf32>
    %cst_123 = arith.constant 1.000000e+00 : f32
    %349 = vector.broadcast %cst_123 : f32 to vector<8x128xf32>
    %350 = arith.cmpf ogt, %348, %349 : vector<8x128xf32>
    %351 = arith.extui %350 : vector<8x128xi1> to vector<8x128xi32>
    %352 = arith.sitofp %351 : vector<8x128xi32> to vector<8x128xf32>
    %353 = arith.index_cast %c8_i32 : i32 to index
    %c0_124 = arith.constant 0 : index
    %c0_125 = arith.constant 0 : index
    %354 = vector.load %arg5[%353, %c0_124, %c0_125] : memref<25x8x128xf32, #tpu.memory_space<vmem>>, vector<1x8x128xf32>
    %355 = vector.shape_cast %354 : vector<1x8x128xf32> to vector<8x128xf32>
    %356 = vector.shape_cast %352 : vector<8x128xf32> to vector<1x8x128xf32>
    tpu.vector_store %arg5[%353, %c0_124, %c0_125], %356 {strides = array<i32>} : memref<25x8x128xf32, #tpu.memory_space<vmem>>, vector<1x8x128xf32>,
    %357 = arith.index_cast %c8_i32 : i32 to index
    %c0_126 = arith.constant 0 : index
    %c0_127 = arith.constant 0 : index
    %358 = vector.load %arg6[%357, %c0_126, %c0_127] : memref<25x8x128xf32, #tpu.memory_space<vmem>>, vector<1x8x128xf32>
    %359 = vector.shape_cast %358 : vector<1x8x128xf32> to vector<8x128xf32>
    %360 = vector.shape_cast %348 : vector<8x128xf32> to vector<1x8x128xf32>
    tpu.vector_store %arg6[%357, %c0_126, %c0_127], %360 {strides = array<i32>} : memref<25x8x128xf32, #tpu.memory_space<vmem>>, vector<1x8x128xf32>,
    %c9_i32 = arith.constant 9 : i32
    %cst_128 = arith.constant 1.000000e+00 : f32
    %361 = vector.broadcast %cst_128 : f32 to vector<8x1024xf32>
    %362 = arith.cmpf ogt, %331, %361 : vector<8x1024xf32>
    %363 = arith.extui %362 : vector<8x1024xi1> to vector<8x1024xi32>
    %364 = arith.sitofp %363 : vector<8x1024xi32> to vector<8x1024xf32>
    %cst_129 = arith.constant 0.949999988 : f32
    %365 = vector.broadcast %cst_129 : f32 to vector<8x1024xf32>
    %366 = arith.mulf %365, %331 : vector<8x1024xf32>
    %367 = arith.addf %366, %5 : vector<8x1024xf32>
    %cst_130 = arith.constant 1.000000e+00 : f32
    %368 = vector.broadcast %cst_130 : f32 to vector<8x1024xf32>
    %369 = arith.mulf %364, %368 : vector<8x1024xf32>
    %370 = arith.subf %367, %369 : vector<8x1024xf32>
    %cst_131 = arith.constant 1.000000e+00 : f32
    %371 = vector.broadcast %cst_131 : f32 to vector<8x1024xf32>
    %372 = arith.cmpf ogt, %370, %371 : vector<8x1024xf32>
    %373 = arith.extui %372 : vector<8x1024xi1> to vector<8x1024xi32>
    %374 = arith.sitofp %373 : vector<8x1024xi32> to vector<8x1024xf32>
    %cst_132 = arith.constant dense<0.000000e+00> : vector<8x128xf32>
    %375 = tpu.matmul %374, %6, %cst_132 {dimension_numbers = #tpu.dot_dimension_numbers<[1], [0], [0], [1], [0, 0, 1, 1], [], []>} : vector<8x1024xf32>, vector<1024x128xf32>, vector<8x128xf32> -> vector<8x128xf32>
    %376 = vector.broadcast %7 : vector<1x128xf32> to vector<8x128xf32>
    %377 = arith.addf %375, %376 : vector<8x128xf32>
    %cst_133 = arith.constant 1.000000e+00 : f32
    %378 = vector.broadcast %cst_133 : f32 to vector<8x128xf32>
    %379 = arith.cmpf ogt, %348, %378 : vector<8x128xf32>
    %380 = arith.extui %379 : vector<8x128xi1> to vector<8x128xi32>
    %381 = arith.sitofp %380 : vector<8x128xi32> to vector<8x128xf32>
    %cst_134 = arith.constant 0.949999988 : f32
    %382 = vector.broadcast %cst_134 : f32 to vector<8x128xf32>
    %383 = arith.mulf %382, %348 : vector<8x128xf32>
    %384 = arith.addf %383, %377 : vector<8x128xf32>
    %cst_135 = arith.constant 1.000000e+00 : f32
    %385 = vector.broadcast %cst_135 : f32 to vector<8x128xf32>
    %386 = arith.mulf %381, %385 : vector<8x128xf32>
    %387 = arith.subf %384, %386 : vector<8x128xf32>
    %cst_136 = arith.constant 1.000000e+00 : f32
    %388 = vector.broadcast %cst_136 : f32 to vector<8x128xf32>
    %389 = arith.cmpf ogt, %387, %388 : vector<8x128xf32>
    %390 = arith.extui %389 : vector<8x128xi1> to vector<8x128xi32>
    %391 = arith.sitofp %390 : vector<8x128xi32> to vector<8x128xf32>
    %392 = arith.index_cast %c9_i32 : i32 to index
    %c0_137 = arith.constant 0 : index
    %c0_138 = arith.constant 0 : index
    %393 = vector.load %arg5[%392, %c0_137, %c0_138] : memref<25x8x128xf32, #tpu.memory_space<vmem>>, vector<1x8x128xf32>
    %394 = vector.shape_cast %393 : vector<1x8x128xf32> to vector<8x128xf32>
    %395 = vector.shape_cast %391 : vector<8x128xf32> to vector<1x8x128xf32>
    tpu.vector_store %arg5[%392, %c0_137, %c0_138], %395 {strides = array<i32>} : memref<25x8x128xf32, #tpu.memory_space<vmem>>, vector<1x8x128xf32>,
    %396 = arith.index_cast %c9_i32 : i32 to index
    %c0_139 = arith.constant 0 : index
    %c0_140 = arith.constant 0 : index
    %397 = vector.load %arg6[%396, %c0_139, %c0_140] : memref<25x8x128xf32, #tpu.memory_space<vmem>>, vector<1x8x128xf32>
    %398 = vector.shape_cast %397 : vector<1x8x128xf32> to vector<8x128xf32>
    %399 = vector.shape_cast %387 : vector<8x128xf32> to vector<1x8x128xf32>
    tpu.vector_store %arg6[%396, %c0_139, %c0_140], %399 {strides = array<i32>} : memref<25x8x128xf32, #tpu.memory_space<vmem>>, vector<1x8x128xf32>,
    %c10_i32 = arith.constant 10 : i32
    %cst_141 = arith.constant 1.000000e+00 : f32
    %400 = vector.broadcast %cst_141 : f32 to vector<8x1024xf32>
    %401 = arith.cmpf ogt, %370, %400 : vector<8x1024xf32>
    %402 = arith.extui %401 : vector<8x1024xi1> to vector<8x1024xi32>
    %403 = arith.sitofp %402 : vector<8x1024xi32> to vector<8x1024xf32>
    %cst_142 = arith.constant 0.949999988 : f32
    %404 = vector.broadcast %cst_142 : f32 to vector<8x1024xf32>
    %405 = arith.mulf %404, %370 : vector<8x1024xf32>
    %406 = arith.addf %405, %5 : vector<8x1024xf32>
    %cst_143 = arith.constant 1.000000e+00 : f32
    %407 = vector.broadcast %cst_143 : f32 to vector<8x1024xf32>
    %408 = arith.mulf %403, %407 : vector<8x1024xf32>
    %409 = arith.subf %406, %408 : vector<8x1024xf32>
    %cst_144 = arith.constant 1.000000e+00 : f32
    %410 = vector.broadcast %cst_144 : f32 to vector<8x1024xf32>
    %411 = arith.cmpf ogt, %409, %410 : vector<8x1024xf32>
    %412 = arith.extui %411 : vector<8x1024xi1> to vector<8x1024xi32>
    %413 = arith.sitofp %412 : vector<8x1024xi32> to vector<8x1024xf32>
    %cst_145 = arith.constant dense<0.000000e+00> : vector<8x128xf32>
    %414 = tpu.matmul %413, %6, %cst_145 {dimension_numbers = #tpu.dot_dimension_numbers<[1], [0], [0], [1], [0, 0, 1, 1], [], []>} : vector<8x1024xf32>, vector<1024x128xf32>, vector<8x128xf32> -> vector<8x128xf32>
    %415 = vector.broadcast %7 : vector<1x128xf32> to vector<8x128xf32>
    %416 = arith.addf %414, %415 : vector<8x128xf32>
    %cst_146 = arith.constant 1.000000e+00 : f32
    %417 = vector.broadcast %cst_146 : f32 to vector<8x128xf32>
    %418 = arith.cmpf ogt, %387, %417 : vector<8x128xf32>
    %419 = arith.extui %418 : vector<8x128xi1> to vector<8x128xi32>
    %420 = arith.sitofp %419 : vector<8x128xi32> to vector<8x128xf32>
    %cst_147 = arith.constant 0.949999988 : f32
    %421 = vector.broadcast %cst_147 : f32 to vector<8x128xf32>
    %422 = arith.mulf %421, %387 : vector<8x128xf32>
    %423 = arith.addf %422, %416 : vector<8x128xf32>
    %cst_148 = arith.constant 1.000000e+00 : f32
    %424 = vector.broadcast %cst_148 : f32 to vector<8x128xf32>
    %425 = arith.mulf %420, %424 : vector<8x128xf32>
    %426 = arith.subf %423, %425 : vector<8x128xf32>
    %cst_149 = arith.constant 1.000000e+00 : f32
    %427 = vector.broadcast %cst_149 : f32 to vector<8x128xf32>
    %428 = arith.cmpf ogt, %426, %427 : vector<8x128xf32>
    %429 = arith.extui %428 : vector<8x128xi1> to vector<8x128xi32>
    %430 = arith.sitofp %429 : vector<8x128xi32> to vector<8x128xf32>
    %431 = arith.index_cast %c10_i32 : i32 to index
    %c0_150 = arith.constant 0 : index
    %c0_151 = arith.constant 0 : index
    %432 = vector.load %arg5[%431, %c0_150, %c0_151] : memref<25x8x128xf32, #tpu.memory_space<vmem>>, vector<1x8x128xf32>
    %433 = vector.shape_cast %432 : vector<1x8x128xf32> to vector<8x128xf32>
    %434 = vector.shape_cast %430 : vector<8x128xf32> to vector<1x8x128xf32>
    tpu.vector_store %arg5[%431, %c0_150, %c0_151], %434 {strides = array<i32>} : memref<25x8x128xf32, #tpu.memory_space<vmem>>, vector<1x8x128xf32>,
    %435 = arith.index_cast %c10_i32 : i32 to index
    %c0_152 = arith.constant 0 : index
    %c0_153 = arith.constant 0 : index
    %436 = vector.load %arg6[%435, %c0_152, %c0_153] : memref<25x8x128xf32, #tpu.memory_space<vmem>>, vector<1x8x128xf32>
    %437 = vector.shape_cast %436 : vector<1x8x128xf32> to vector<8x128xf32>
    %438 = vector.shape_cast %426 : vector<8x128xf32> to vector<1x8x128xf32>
    tpu.vector_store %arg6[%435, %c0_152, %c0_153], %438 {strides = array<i32>} : memref<25x8x128xf32, #tpu.memory_space<vmem>>, vector<1x8x128xf32>,
    %c11_i32 = arith.constant 11 : i32
    %cst_154 = arith.constant 1.000000e+00 : f32
    %439 = vector.broadcast %cst_154 : f32 to vector<8x1024xf32>
    %440 = arith.cmpf ogt, %409, %439 : vector<8x1024xf32>
    %441 = arith.extui %440 : vector<8x1024xi1> to vector<8x1024xi32>
    %442 = arith.sitofp %441 : vector<8x1024xi32> to vector<8x1024xf32>
    %cst_155 = arith.constant 0.949999988 : f32
    %443 = vector.broadcast %cst_155 : f32 to vector<8x1024xf32>
    %444 = arith.mulf %443, %409 : vector<8x1024xf32>
    %445 = arith.addf %444, %5 : vector<8x1024xf32>
    %cst_156 = arith.constant 1.000000e+00 : f32
    %446 = vector.broadcast %cst_156 : f32 to vector<8x1024xf32>
    %447 = arith.mulf %442, %446 : vector<8x1024xf32>
    %448 = arith.subf %445, %447 : vector<8x1024xf32>
    %cst_157 = arith.constant 1.000000e+00 : f32
    %449 = vector.broadcast %cst_157 : f32 to vector<8x1024xf32>
    %450 = arith.cmpf ogt, %448, %449 : vector<8x1024xf32>
    %451 = arith.extui %450 : vector<8x1024xi1> to vector<8x1024xi32>
    %452 = arith.sitofp %451 : vector<8x1024xi32> to vector<8x1024xf32>
    %cst_158 = arith.constant dense<0.000000e+00> : vector<8x128xf32>
    %453 = tpu.matmul %452, %6, %cst_158 {dimension_numbers = #tpu.dot_dimension_numbers<[1], [0], [0], [1], [0, 0, 1, 1], [], []>} : vector<8x1024xf32>, vector<1024x128xf32>, vector<8x128xf32> -> vector<8x128xf32>
    %454 = vector.broadcast %7 : vector<1x128xf32> to vector<8x128xf32>
    %455 = arith.addf %453, %454 : vector<8x128xf32>
    %cst_159 = arith.constant 1.000000e+00 : f32
    %456 = vector.broadcast %cst_159 : f32 to vector<8x128xf32>
    %457 = arith.cmpf ogt, %426, %456 : vector<8x128xf32>
    %458 = arith.extui %457 : vector<8x128xi1> to vector<8x128xi32>
    %459 = arith.sitofp %458 : vector<8x128xi32> to vector<8x128xf32>
    %cst_160 = arith.constant 0.949999988 : f32
    %460 = vector.broadcast %cst_160 : f32 to vector<8x128xf32>
    %461 = arith.mulf %460, %426 : vector<8x128xf32>
    %462 = arith.addf %461, %455 : vector<8x128xf32>
    %cst_161 = arith.constant 1.000000e+00 : f32
    %463 = vector.broadcast %cst_161 : f32 to vector<8x128xf32>
    %464 = arith.mulf %459, %463 : vector<8x128xf32>
    %465 = arith.subf %462, %464 : vector<8x128xf32>
    %cst_162 = arith.constant 1.000000e+00 : f32
    %466 = vector.broadcast %cst_162 : f32 to vector<8x128xf32>
    %467 = arith.cmpf ogt, %465, %466 : vector<8x128xf32>
    %468 = arith.extui %467 : vector<8x128xi1> to vector<8x128xi32>
    %469 = arith.sitofp %468 : vector<8x128xi32> to vector<8x128xf32>
    %470 = arith.index_cast %c11_i32 : i32 to index
    %c0_163 = arith.constant 0 : index
    %c0_164 = arith.constant 0 : index
    %471 = vector.load %arg5[%470, %c0_163, %c0_164] : memref<25x8x128xf32, #tpu.memory_space<vmem>>, vector<1x8x128xf32>
    %472 = vector.shape_cast %471 : vector<1x8x128xf32> to vector<8x128xf32>
    %473 = vector.shape_cast %469 : vector<8x128xf32> to vector<1x8x128xf32>
    tpu.vector_store %arg5[%470, %c0_163, %c0_164], %473 {strides = array<i32>} : memref<25x8x128xf32, #tpu.memory_space<vmem>>, vector<1x8x128xf32>,
    %474 = arith.index_cast %c11_i32 : i32 to index
    %c0_165 = arith.constant 0 : index
    %c0_166 = arith.constant 0 : index
    %475 = vector.load %arg6[%474, %c0_165, %c0_166] : memref<25x8x128xf32, #tpu.memory_space<vmem>>, vector<1x8x128xf32>
    %476 = vector.shape_cast %475 : vector<1x8x128xf32> to vector<8x128xf32>
    %477 = vector.shape_cast %465 : vector<8x128xf32> to vector<1x8x128xf32>
    tpu.vector_store %arg6[%474, %c0_165, %c0_166], %477 {strides = array<i32>} : memref<25x8x128xf32, #tpu.memory_space<vmem>>, vector<1x8x128xf32>,
    %c12_i32 = arith.constant 12 : i32
    %cst_167 = arith.constant 1.000000e+00 : f32
    %478 = vector.broadcast %cst_167 : f32 to vector<8x1024xf32>
    %479 = arith.cmpf ogt, %448, %478 : vector<8x1024xf32>
    %480 = arith.extui %479 : vector<8x1024xi1> to vector<8x1024xi32>
    %481 = arith.sitofp %480 : vector<8x1024xi32> to vector<8x1024xf32>
    %cst_168 = arith.constant 0.949999988 : f32
    %482 = vector.broadcast %cst_168 : f32 to vector<8x1024xf32>
    %483 = arith.mulf %482, %448 : vector<8x1024xf32>
    %484 = arith.addf %483, %5 : vector<8x1024xf32>
    %cst_169 = arith.constant 1.000000e+00 : f32
    %485 = vector.broadcast %cst_169 : f32 to vector<8x1024xf32>
    %486 = arith.mulf %481, %485 : vector<8x1024xf32>
    %487 = arith.subf %484, %486 : vector<8x1024xf32>
    %cst_170 = arith.constant 1.000000e+00 : f32
    %488 = vector.broadcast %cst_170 : f32 to vector<8x1024xf32>
    %489 = arith.cmpf ogt, %487, %488 : vector<8x1024xf32>
    %490 = arith.extui %489 : vector<8x1024xi1> to vector<8x1024xi32>
    %491 = arith.sitofp %490 : vector<8x1024xi32> to vector<8x1024xf32>
    %cst_171 = arith.constant dense<0.000000e+00> : vector<8x128xf32>
    %492 = tpu.matmul %491, %6, %cst_171 {dimension_numbers = #tpu.dot_dimension_numbers<[1], [0], [0], [1], [0, 0, 1, 1], [], []>} : vector<8x1024xf32>, vector<1024x128xf32>, vector<8x128xf32> -> vector<8x128xf32>
    %493 = vector.broadcast %7 : vector<1x128xf32> to vector<8x128xf32>
    %494 = arith.addf %492, %493 : vector<8x128xf32>
    %cst_172 = arith.constant 1.000000e+00 : f32
    %495 = vector.broadcast %cst_172 : f32 to vector<8x128xf32>
    %496 = arith.cmpf ogt, %465, %495 : vector<8x128xf32>
    %497 = arith.extui %496 : vector<8x128xi1> to vector<8x128xi32>
    %498 = arith.sitofp %497 : vector<8x128xi32> to vector<8x128xf32>
    %cst_173 = arith.constant 0.949999988 : f32
    %499 = vector.broadcast %cst_173 : f32 to vector<8x128xf32>
    %500 = arith.mulf %499, %465 : vector<8x128xf32>
    %501 = arith.addf %500, %494 : vector<8x128xf32>
    %cst_174 = arith.constant 1.000000e+00 : f32
    %502 = vector.broadcast %cst_174 : f32 to vector<8x128xf32>
    %503 = arith.mulf %498, %502 : vector<8x128xf32>
    %504 = arith.subf %501, %503 : vector<8x128xf32>
    %cst_175 = arith.constant 1.000000e+00 : f32
    %505 = vector.broadcast %cst_175 : f32 to vector<8x128xf32>
    %506 = arith.cmpf ogt, %504, %505 : vector<8x128xf32>
    %507 = arith.extui %506 : vector<8x128xi1> to vector<8x128xi32>
    %508 = arith.sitofp %507 : vector<8x128xi32> to vector<8x128xf32>
    %509 = arith.index_cast %c12_i32 : i32 to index
    %c0_176 = arith.constant 0 : index
    %c0_177 = arith.constant 0 : index
    %510 = vector.load %arg5[%509, %c0_176, %c0_177] : memref<25x8x128xf32, #tpu.memory_space<vmem>>, vector<1x8x128xf32>
    %511 = vector.shape_cast %510 : vector<1x8x128xf32> to vector<8x128xf32>
    %512 = vector.shape_cast %508 : vector<8x128xf32> to vector<1x8x128xf32>
    tpu.vector_store %arg5[%509, %c0_176, %c0_177], %512 {strides = array<i32>} : memref<25x8x128xf32, #tpu.memory_space<vmem>>, vector<1x8x128xf32>,
    %513 = arith.index_cast %c12_i32 : i32 to index
    %c0_178 = arith.constant 0 : index
    %c0_179 = arith.constant 0 : index
    %514 = vector.load %arg6[%513, %c0_178, %c0_179] : memref<25x8x128xf32, #tpu.memory_space<vmem>>, vector<1x8x128xf32>
    %515 = vector.shape_cast %514 : vector<1x8x128xf32> to vector<8x128xf32>
    %516 = vector.shape_cast %504 : vector<8x128xf32> to vector<1x8x128xf32>
    tpu.vector_store %arg6[%513, %c0_178, %c0_179], %516 {strides = array<i32>} : memref<25x8x128xf32, #tpu.memory_space<vmem>>, vector<1x8x128xf32>,
    %c13_i32 = arith.constant 13 : i32
    %cst_180 = arith.constant 1.000000e+00 : f32
    %517 = vector.broadcast %cst_180 : f32 to vector<8x1024xf32>
    %518 = arith.cmpf ogt, %487, %517 : vector<8x1024xf32>
    %519 = arith.extui %518 : vector<8x1024xi1> to vector<8x1024xi32>
    %520 = arith.sitofp %519 : vector<8x1024xi32> to vector<8x1024xf32>
    %cst_181 = arith.constant 0.949999988 : f32
    %521 = vector.broadcast %cst_181 : f32 to vector<8x1024xf32>
    %522 = arith.mulf %521, %487 : vector<8x1024xf32>
    %523 = arith.addf %522, %5 : vector<8x1024xf32>
    %cst_182 = arith.constant 1.000000e+00 : f32
    %524 = vector.broadcast %cst_182 : f32 to vector<8x1024xf32>
    %525 = arith.mulf %520, %524 : vector<8x1024xf32>
    %526 = arith.subf %523, %525 : vector<8x1024xf32>
    %cst_183 = arith.constant 1.000000e+00 : f32
    %527 = vector.broadcast %cst_183 : f32 to vector<8x1024xf32>
    %528 = arith.cmpf ogt, %526, %527 : vector<8x1024xf32>
    %529 = arith.extui %528 : vector<8x1024xi1> to vector<8x1024xi32>
    %530 = arith.sitofp %529 : vector<8x1024xi32> to vector<8x1024xf32>
    %cst_184 = arith.constant dense<0.000000e+00> : vector<8x128xf32>
    %531 = tpu.matmul %530, %6, %cst_184 {dimension_numbers = #tpu.dot_dimension_numbers<[1], [0], [0], [1], [0, 0, 1, 1], [], []>} : vector<8x1024xf32>, vector<1024x128xf32>, vector<8x128xf32> -> vector<8x128xf32>
    %532 = vector.broadcast %7 : vector<1x128xf32> to vector<8x128xf32>
    %533 = arith.addf %531, %532 : vector<8x128xf32>
    %cst_185 = arith.constant 1.000000e+00 : f32
    %534 = vector.broadcast %cst_185 : f32 to vector<8x128xf32>
    %535 = arith.cmpf ogt, %504, %534 : vector<8x128xf32>
    %536 = arith.extui %535 : vector<8x128xi1> to vector<8x128xi32>
    %537 = arith.sitofp %536 : vector<8x128xi32> to vector<8x128xf32>
    %cst_186 = arith.constant 0.949999988 : f32
    %538 = vector.broadcast %cst_186 : f32 to vector<8x128xf32>
    %539 = arith.mulf %538, %504 : vector<8x128xf32>
    %540 = arith.addf %539, %533 : vector<8x128xf32>
    %cst_187 = arith.constant 1.000000e+00 : f32
    %541 = vector.broadcast %cst_187 : f32 to vector<8x128xf32>
    %542 = arith.mulf %537, %541 : vector<8x128xf32>
    %543 = arith.subf %540, %542 : vector<8x128xf32>
    %cst_188 = arith.constant 1.000000e+00 : f32
    %544 = vector.broadcast %cst_188 : f32 to vector<8x128xf32>
    %545 = arith.cmpf ogt, %543, %544 : vector<8x128xf32>
    %546 = arith.extui %545 : vector<8x128xi1> to vector<8x128xi32>
    %547 = arith.sitofp %546 : vector<8x128xi32> to vector<8x128xf32>
    %548 = arith.index_cast %c13_i32 : i32 to index
    %c0_189 = arith.constant 0 : index
    %c0_190 = arith.constant 0 : index
    %549 = vector.load %arg5[%548, %c0_189, %c0_190] : memref<25x8x128xf32, #tpu.memory_space<vmem>>, vector<1x8x128xf32>
    %550 = vector.shape_cast %549 : vector<1x8x128xf32> to vector<8x128xf32>
    %551 = vector.shape_cast %547 : vector<8x128xf32> to vector<1x8x128xf32>
    tpu.vector_store %arg5[%548, %c0_189, %c0_190], %551 {strides = array<i32>} : memref<25x8x128xf32, #tpu.memory_space<vmem>>, vector<1x8x128xf32>,
    %552 = arith.index_cast %c13_i32 : i32 to index
    %c0_191 = arith.constant 0 : index
    %c0_192 = arith.constant 0 : index
    %553 = vector.load %arg6[%552, %c0_191, %c0_192] : memref<25x8x128xf32, #tpu.memory_space<vmem>>, vector<1x8x128xf32>
    %554 = vector.shape_cast %553 : vector<1x8x128xf32> to vector<8x128xf32>
    %555 = vector.shape_cast %543 : vector<8x128xf32> to vector<1x8x128xf32>
    tpu.vector_store %arg6[%552, %c0_191, %c0_192], %555 {strides = array<i32>} : memref<25x8x128xf32, #tpu.memory_space<vmem>>, vector<1x8x128xf32>,
    %c14_i32 = arith.constant 14 : i32
    %cst_193 = arith.constant 1.000000e+00 : f32
    %556 = vector.broadcast %cst_193 : f32 to vector<8x1024xf32>
    %557 = arith.cmpf ogt, %526, %556 : vector<8x1024xf32>
    %558 = arith.extui %557 : vector<8x1024xi1> to vector<8x1024xi32>
    %559 = arith.sitofp %558 : vector<8x1024xi32> to vector<8x1024xf32>
    %cst_194 = arith.constant 0.949999988 : f32
    %560 = vector.broadcast %cst_194 : f32 to vector<8x1024xf32>
    %561 = arith.mulf %560, %526 : vector<8x1024xf32>
    %562 = arith.addf %561, %5 : vector<8x1024xf32>
    %cst_195 = arith.constant 1.000000e+00 : f32
    %563 = vector.broadcast %cst_195 : f32 to vector<8x1024xf32>
    %564 = arith.mulf %559, %563 : vector<8x1024xf32>
    %565 = arith.subf %562, %564 : vector<8x1024xf32>
    %cst_196 = arith.constant 1.000000e+00 : f32
    %566 = vector.broadcast %cst_196 : f32 to vector<8x1024xf32>
    %567 = arith.cmpf ogt, %565, %566 : vector<8x1024xf32>
    %568 = arith.extui %567 : vector<8x1024xi1> to vector<8x1024xi32>
    %569 = arith.sitofp %568 : vector<8x1024xi32> to vector<8x1024xf32>
    %cst_197 = arith.constant dense<0.000000e+00> : vector<8x128xf32>
    %570 = tpu.matmul %569, %6, %cst_197 {dimension_numbers = #tpu.dot_dimension_numbers<[1], [0], [0], [1], [0, 0, 1, 1], [], []>} : vector<8x1024xf32>, vector<1024x128xf32>, vector<8x128xf32> -> vector<8x128xf32>
    %571 = vector.broadcast %7 : vector<1x128xf32> to vector<8x128xf32>
    %572 = arith.addf %570, %571 : vector<8x128xf32>
    %cst_198 = arith.constant 1.000000e+00 : f32
    %573 = vector.broadcast %cst_198 : f32 to vector<8x128xf32>
    %574 = arith.cmpf ogt, %543, %573 : vector<8x128xf32>
    %575 = arith.extui %574 : vector<8x128xi1> to vector<8x128xi32>
    %576 = arith.sitofp %575 : vector<8x128xi32> to vector<8x128xf32>
    %cst_199 = arith.constant 0.949999988 : f32
    %577 = vector.broadcast %cst_199 : f32 to vector<8x128xf32>
    %578 = arith.mulf %577, %543 : vector<8x128xf32>
    %579 = arith.addf %578, %572 : vector<8x128xf32>
    %cst_200 = arith.constant 1.000000e+00 : f32
    %580 = vector.broadcast %cst_200 : f32 to vector<8x128xf32>
    %581 = arith.mulf %576, %580 : vector<8x128xf32>
    %582 = arith.subf %579, %581 : vector<8x128xf32>
    %cst_201 = arith.constant 1.000000e+00 : f32
    %583 = vector.broadcast %cst_201 : f32 to vector<8x128xf32>
    %584 = arith.cmpf ogt, %582, %583 : vector<8x128xf32>
    %585 = arith.extui %584 : vector<8x128xi1> to vector<8x128xi32>
    %586 = arith.sitofp %585 : vector<8x128xi32> to vector<8x128xf32>
    %587 = arith.index_cast %c14_i32 : i32 to index
    %c0_202 = arith.constant 0 : index
    %c0_203 = arith.constant 0 : index
    %588 = vector.load %arg5[%587, %c0_202, %c0_203] : memref<25x8x128xf32, #tpu.memory_space<vmem>>, vector<1x8x128xf32>
    %589 = vector.shape_cast %588 : vector<1x8x128xf32> to vector<8x128xf32>
    %590 = vector.shape_cast %586 : vector<8x128xf32> to vector<1x8x128xf32>
    tpu.vector_store %arg5[%587, %c0_202, %c0_203], %590 {strides = array<i32>} : memref<25x8x128xf32, #tpu.memory_space<vmem>>, vector<1x8x128xf32>,
    %591 = arith.index_cast %c14_i32 : i32 to index
    %c0_204 = arith.constant 0 : index
    %c0_205 = arith.constant 0 : index
    %592 = vector.load %arg6[%591, %c0_204, %c0_205] : memref<25x8x128xf32, #tpu.memory_space<vmem>>, vector<1x8x128xf32>
    %593 = vector.shape_cast %592 : vector<1x8x128xf32> to vector<8x128xf32>
    %594 = vector.shape_cast %582 : vector<8x128xf32> to vector<1x8x128xf32>
    tpu.vector_store %arg6[%591, %c0_204, %c0_205], %594 {strides = array<i32>} : memref<25x8x128xf32, #tpu.memory_space<vmem>>, vector<1x8x128xf32>,
    %c15_i32 = arith.constant 15 : i32
    %cst_206 = arith.constant 1.000000e+00 : f32
    %595 = vector.broadcast %cst_206 : f32 to vector<8x1024xf32>
    %596 = arith.cmpf ogt, %565, %595 : vector<8x1024xf32>
    %597 = arith.extui %596 : vector<8x1024xi1> to vector<8x1024xi32>
    %598 = arith.sitofp %597 : vector<8x1024xi32> to vector<8x1024xf32>
    %cst_207 = arith.constant 0.949999988 : f32
    %599 = vector.broadcast %cst_207 : f32 to vector<8x1024xf32>
    %600 = arith.mulf %599, %565 : vector<8x1024xf32>
    %601 = arith.addf %600, %5 : vector<8x1024xf32>
    %cst_208 = arith.constant 1.000000e+00 : f32
    %602 = vector.broadcast %cst_208 : f32 to vector<8x1024xf32>
    %603 = arith.mulf %598, %602 : vector<8x1024xf32>
    %604 = arith.subf %601, %603 : vector<8x1024xf32>
    %cst_209 = arith.constant 1.000000e+00 : f32
    %605 = vector.broadcast %cst_209 : f32 to vector<8x1024xf32>
    %606 = arith.cmpf ogt, %604, %605 : vector<8x1024xf32>
    %607 = arith.extui %606 : vector<8x1024xi1> to vector<8x1024xi32>
    %608 = arith.sitofp %607 : vector<8x1024xi32> to vector<8x1024xf32>
    %cst_210 = arith.constant dense<0.000000e+00> : vector<8x128xf32>
    %609 = tpu.matmul %608, %6, %cst_210 {dimension_numbers = #tpu.dot_dimension_numbers<[1], [0], [0], [1], [0, 0, 1, 1], [], []>} : vector<8x1024xf32>, vector<1024x128xf32>, vector<8x128xf32> -> vector<8x128xf32>
    %610 = vector.broadcast %7 : vector<1x128xf32> to vector<8x128xf32>
    %611 = arith.addf %609, %610 : vector<8x128xf32>
    %cst_211 = arith.constant 1.000000e+00 : f32
    %612 = vector.broadcast %cst_211 : f32 to vector<8x128xf32>
    %613 = arith.cmpf ogt, %582, %612 : vector<8x128xf32>
    %614 = arith.extui %613 : vector<8x128xi1> to vector<8x128xi32>
    %615 = arith.sitofp %614 : vector<8x128xi32> to vector<8x128xf32>
    %cst_212 = arith.constant 0.949999988 : f32
    %616 = vector.broadcast %cst_212 : f32 to vector<8x128xf32>
    %617 = arith.mulf %616, %582 : vector<8x128xf32>
    %618 = arith.addf %617, %611 : vector<8x128xf32>
    %cst_213 = arith.constant 1.000000e+00 : f32
    %619 = vector.broadcast %cst_213 : f32 to vector<8x128xf32>
    %620 = arith.mulf %615, %619 : vector<8x128xf32>
    %621 = arith.subf %618, %620 : vector<8x128xf32>
    %cst_214 = arith.constant 1.000000e+00 : f32
    %622 = vector.broadcast %cst_214 : f32 to vector<8x128xf32>
    %623 = arith.cmpf ogt, %621, %622 : vector<8x128xf32>
    %624 = arith.extui %623 : vector<8x128xi1> to vector<8x128xi32>
    %625 = arith.sitofp %624 : vector<8x128xi32> to vector<8x128xf32>
    %626 = arith.index_cast %c15_i32 : i32 to index
    %c0_215 = arith.constant 0 : index
    %c0_216 = arith.constant 0 : index
    %627 = vector.load %arg5[%626, %c0_215, %c0_216] : memref<25x8x128xf32, #tpu.memory_space<vmem>>, vector<1x8x128xf32>
    %628 = vector.shape_cast %627 : vector<1x8x128xf32> to vector<8x128xf32>
    %629 = vector.shape_cast %625 : vector<8x128xf32> to vector<1x8x128xf32>
    tpu.vector_store %arg5[%626, %c0_215, %c0_216], %629 {strides = array<i32>} : memref<25x8x128xf32, #tpu.memory_space<vmem>>, vector<1x8x128xf32>,
    %630 = arith.index_cast %c15_i32 : i32 to index
    %c0_217 = arith.constant 0 : index
    %c0_218 = arith.constant 0 : index
    %631 = vector.load %arg6[%630, %c0_217, %c0_218] : memref<25x8x128xf32, #tpu.memory_space<vmem>>, vector<1x8x128xf32>
    %632 = vector.shape_cast %631 : vector<1x8x128xf32> to vector<8x128xf32>
    %633 = vector.shape_cast %621 : vector<8x128xf32> to vector<1x8x128xf32>
    tpu.vector_store %arg6[%630, %c0_217, %c0_218], %633 {strides = array<i32>} : memref<25x8x128xf32, #tpu.memory_space<vmem>>, vector<1x8x128xf32>,
    %c16_i32 = arith.constant 16 : i32
    %cst_219 = arith.constant 1.000000e+00 : f32
    %634 = vector.broadcast %cst_219 : f32 to vector<8x1024xf32>
    %635 = arith.cmpf ogt, %604, %634 : vector<8x1024xf32>
    %636 = arith.extui %635 : vector<8x1024xi1> to vector<8x1024xi32>
    %637 = arith.sitofp %636 : vector<8x1024xi32> to vector<8x1024xf32>
    %cst_220 = arith.constant 0.949999988 : f32
    %638 = vector.broadcast %cst_220 : f32 to vector<8x1024xf32>
    %639 = arith.mulf %638, %604 : vector<8x1024xf32>
    %640 = arith.addf %639, %5 : vector<8x1024xf32>
    %cst_221 = arith.constant 1.000000e+00 : f32
    %641 = vector.broadcast %cst_221 : f32 to vector<8x1024xf32>
    %642 = arith.mulf %637, %641 : vector<8x1024xf32>
    %643 = arith.subf %640, %642 : vector<8x1024xf32>
    %cst_222 = arith.constant 1.000000e+00 : f32
    %644 = vector.broadcast %cst_222 : f32 to vector<8x1024xf32>
    %645 = arith.cmpf ogt, %643, %644 : vector<8x1024xf32>
    %646 = arith.extui %645 : vector<8x1024xi1> to vector<8x1024xi32>
    %647 = arith.sitofp %646 : vector<8x1024xi32> to vector<8x1024xf32>
    %cst_223 = arith.constant dense<0.000000e+00> : vector<8x128xf32>
    %648 = tpu.matmul %647, %6, %cst_223 {dimension_numbers = #tpu.dot_dimension_numbers<[1], [0], [0], [1], [0, 0, 1, 1], [], []>} : vector<8x1024xf32>, vector<1024x128xf32>, vector<8x128xf32> -> vector<8x128xf32>
    %649 = vector.broadcast %7 : vector<1x128xf32> to vector<8x128xf32>
    %650 = arith.addf %648, %649 : vector<8x128xf32>
    %cst_224 = arith.constant 1.000000e+00 : f32
    %651 = vector.broadcast %cst_224 : f32 to vector<8x128xf32>
    %652 = arith.cmpf ogt, %621, %651 : vector<8x128xf32>
    %653 = arith.extui %652 : vector<8x128xi1> to vector<8x128xi32>
    %654 = arith.sitofp %653 : vector<8x128xi32> to vector<8x128xf32>
    %cst_225 = arith.constant 0.949999988 : f32
    %655 = vector.broadcast %cst_225 : f32 to vector<8x128xf32>
    %656 = arith.mulf %655, %621 : vector<8x128xf32>
    %657 = arith.addf %656, %650 : vector<8x128xf32>
    %cst_226 = arith.constant 1.000000e+00 : f32
    %658 = vector.broadcast %cst_226 : f32 to vector<8x128xf32>
    %659 = arith.mulf %654, %658 : vector<8x128xf32>
    %660 = arith.subf %657, %659 : vector<8x128xf32>
    %cst_227 = arith.constant 1.000000e+00 : f32
    %661 = vector.broadcast %cst_227 : f32 to vector<8x128xf32>
    %662 = arith.cmpf ogt, %660, %661 : vector<8x128xf32>
    %663 = arith.extui %662 : vector<8x128xi1> to vector<8x128xi32>
    %664 = arith.sitofp %663 : vector<8x128xi32> to vector<8x128xf32>
    %665 = arith.index_cast %c16_i32 : i32 to index
    %c0_228 = arith.constant 0 : index
    %c0_229 = arith.constant 0 : index
    %666 = vector.load %arg5[%665, %c0_228, %c0_229] : memref<25x8x128xf32, #tpu.memory_space<vmem>>, vector<1x8x128xf32>
    %667 = vector.shape_cast %666 : vector<1x8x128xf32> to vector<8x128xf32>
    %668 = vector.shape_cast %664 : vector<8x128xf32> to vector<1x8x128xf32>
    tpu.vector_store %arg5[%665, %c0_228, %c0_229], %668 {strides = array<i32>} : memref<25x8x128xf32, #tpu.memory_space<vmem>>, vector<1x8x128xf32>,
    %669 = arith.index_cast %c16_i32 : i32 to index
    %c0_230 = arith.constant 0 : index
    %c0_231 = arith.constant 0 : index
    %670 = vector.load %arg6[%669, %c0_230, %c0_231] : memref<25x8x128xf32, #tpu.memory_space<vmem>>, vector<1x8x128xf32>
    %671 = vector.shape_cast %670 : vector<1x8x128xf32> to vector<8x128xf32>
    %672 = vector.shape_cast %660 : vector<8x128xf32> to vector<1x8x128xf32>
    tpu.vector_store %arg6[%669, %c0_230, %c0_231], %672 {strides = array<i32>} : memref<25x8x128xf32, #tpu.memory_space<vmem>>, vector<1x8x128xf32>,
    %c17_i32 = arith.constant 17 : i32
    %cst_232 = arith.constant 1.000000e+00 : f32
    %673 = vector.broadcast %cst_232 : f32 to vector<8x1024xf32>
    %674 = arith.cmpf ogt, %643, %673 : vector<8x1024xf32>
    %675 = arith.extui %674 : vector<8x1024xi1> to vector<8x1024xi32>
    %676 = arith.sitofp %675 : vector<8x1024xi32> to vector<8x1024xf32>
    %cst_233 = arith.constant 0.949999988 : f32
    %677 = vector.broadcast %cst_233 : f32 to vector<8x1024xf32>
    %678 = arith.mulf %677, %643 : vector<8x1024xf32>
    %679 = arith.addf %678, %5 : vector<8x1024xf32>
    %cst_234 = arith.constant 1.000000e+00 : f32
    %680 = vector.broadcast %cst_234 : f32 to vector<8x1024xf32>
    %681 = arith.mulf %676, %680 : vector<8x1024xf32>
    %682 = arith.subf %679, %681 : vector<8x1024xf32>
    %cst_235 = arith.constant 1.000000e+00 : f32
    %683 = vector.broadcast %cst_235 : f32 to vector<8x1024xf32>
    %684 = arith.cmpf ogt, %682, %683 : vector<8x1024xf32>
    %685 = arith.extui %684 : vector<8x1024xi1> to vector<8x1024xi32>
    %686 = arith.sitofp %685 : vector<8x1024xi32> to vector<8x1024xf32>
    %cst_236 = arith.constant dense<0.000000e+00> : vector<8x128xf32>
    %687 = tpu.matmul %686, %6, %cst_236 {dimension_numbers = #tpu.dot_dimension_numbers<[1], [0], [0], [1], [0, 0, 1, 1], [], []>} : vector<8x1024xf32>, vector<1024x128xf32>, vector<8x128xf32> -> vector<8x128xf32>
    %688 = vector.broadcast %7 : vector<1x128xf32> to vector<8x128xf32>
    %689 = arith.addf %687, %688 : vector<8x128xf32>
    %cst_237 = arith.constant 1.000000e+00 : f32
    %690 = vector.broadcast %cst_237 : f32 to vector<8x128xf32>
    %691 = arith.cmpf ogt, %660, %690 : vector<8x128xf32>
    %692 = arith.extui %691 : vector<8x128xi1> to vector<8x128xi32>
    %693 = arith.sitofp %692 : vector<8x128xi32> to vector<8x128xf32>
    %cst_238 = arith.constant 0.949999988 : f32
    %694 = vector.broadcast %cst_238 : f32 to vector<8x128xf32>
    %695 = arith.mulf %694, %660 : vector<8x128xf32>
    %696 = arith.addf %695, %689 : vector<8x128xf32>
    %cst_239 = arith.constant 1.000000e+00 : f32
    %697 = vector.broadcast %cst_239 : f32 to vector<8x128xf32>
    %698 = arith.mulf %693, %697 : vector<8x128xf32>
    %699 = arith.subf %696, %698 : vector<8x128xf32>
    %cst_240 = arith.constant 1.000000e+00 : f32
    %700 = vector.broadcast %cst_240 : f32 to vector<8x128xf32>
    %701 = arith.cmpf ogt, %699, %700 : vector<8x128xf32>
    %702 = arith.extui %701 : vector<8x128xi1> to vector<8x128xi32>
    %703 = arith.sitofp %702 : vector<8x128xi32> to vector<8x128xf32>
    %704 = arith.index_cast %c17_i32 : i32 to index
    %c0_241 = arith.constant 0 : index
    %c0_242 = arith.constant 0 : index
    %705 = vector.load %arg5[%704, %c0_241, %c0_242] : memref<25x8x128xf32, #tpu.memory_space<vmem>>, vector<1x8x128xf32>
    %706 = vector.shape_cast %705 : vector<1x8x128xf32> to vector<8x128xf32>
    %707 = vector.shape_cast %703 : vector<8x128xf32> to vector<1x8x128xf32>
    tpu.vector_store %arg5[%704, %c0_241, %c0_242], %707 {strides = array<i32>} : memref<25x8x128xf32, #tpu.memory_space<vmem>>, vector<1x8x128xf32>,
    %708 = arith.index_cast %c17_i32 : i32 to index
    %c0_243 = arith.constant 0 : index
    %c0_244 = arith.constant 0 : index
    %709 = vector.load %arg6[%708, %c0_243, %c0_244] : memref<25x8x128xf32, #tpu.memory_space<vmem>>, vector<1x8x128xf32>
    %710 = vector.shape_cast %709 : vector<1x8x128xf32> to vector<8x128xf32>
    %711 = vector.shape_cast %699 : vector<8x128xf32> to vector<1x8x128xf32>
    tpu.vector_store %arg6[%708, %c0_243, %c0_244], %711 {strides = array<i32>} : memref<25x8x128xf32, #tpu.memory_space<vmem>>, vector<1x8x128xf32>,
    %c18_i32 = arith.constant 18 : i32
    %cst_245 = arith.constant 1.000000e+00 : f32
    %712 = vector.broadcast %cst_245 : f32 to vector<8x1024xf32>
    %713 = arith.cmpf ogt, %682, %712 : vector<8x1024xf32>
    %714 = arith.extui %713 : vector<8x1024xi1> to vector<8x1024xi32>
    %715 = arith.sitofp %714 : vector<8x1024xi32> to vector<8x1024xf32>
    %cst_246 = arith.constant 0.949999988 : f32
    %716 = vector.broadcast %cst_246 : f32 to vector<8x1024xf32>
    %717 = arith.mulf %716, %682 : vector<8x1024xf32>
    %718 = arith.addf %717, %5 : vector<8x1024xf32>
    %cst_247 = arith.constant 1.000000e+00 : f32
    %719 = vector.broadcast %cst_247 : f32 to vector<8x1024xf32>
    %720 = arith.mulf %715, %719 : vector<8x1024xf32>
    %721 = arith.subf %718, %720 : vector<8x1024xf32>
    %cst_248 = arith.constant 1.000000e+00 : f32
    %722 = vector.broadcast %cst_248 : f32 to vector<8x1024xf32>
    %723 = arith.cmpf ogt, %721, %722 : vector<8x1024xf32>
    %724 = arith.extui %723 : vector<8x1024xi1> to vector<8x1024xi32>
    %725 = arith.sitofp %724 : vector<8x1024xi32> to vector<8x1024xf32>
    %cst_249 = arith.constant dense<0.000000e+00> : vector<8x128xf32>
    %726 = tpu.matmul %725, %6, %cst_249 {dimension_numbers = #tpu.dot_dimension_numbers<[1], [0], [0], [1], [0, 0, 1, 1], [], []>} : vector<8x1024xf32>, vector<1024x128xf32>, vector<8x128xf32> -> vector<8x128xf32>
    %727 = vector.broadcast %7 : vector<1x128xf32> to vector<8x128xf32>
    %728 = arith.addf %726, %727 : vector<8x128xf32>
    %cst_250 = arith.constant 1.000000e+00 : f32
    %729 = vector.broadcast %cst_250 : f32 to vector<8x128xf32>
    %730 = arith.cmpf ogt, %699, %729 : vector<8x128xf32>
    %731 = arith.extui %730 : vector<8x128xi1> to vector<8x128xi32>
    %732 = arith.sitofp %731 : vector<8x128xi32> to vector<8x128xf32>
    %cst_251 = arith.constant 0.949999988 : f32
    %733 = vector.broadcast %cst_251 : f32 to vector<8x128xf32>
    %734 = arith.mulf %733, %699 : vector<8x128xf32>
    %735 = arith.addf %734, %728 : vector<8x128xf32>
    %cst_252 = arith.constant 1.000000e+00 : f32
    %736 = vector.broadcast %cst_252 : f32 to vector<8x128xf32>
    %737 = arith.mulf %732, %736 : vector<8x128xf32>
    %738 = arith.subf %735, %737 : vector<8x128xf32>
    %cst_253 = arith.constant 1.000000e+00 : f32
    %739 = vector.broadcast %cst_253 : f32 to vector<8x128xf32>
    %740 = arith.cmpf ogt, %738, %739 : vector<8x128xf32>
    %741 = arith.extui %740 : vector<8x128xi1> to vector<8x128xi32>
    %742 = arith.sitofp %741 : vector<8x128xi32> to vector<8x128xf32>
    %743 = arith.index_cast %c18_i32 : i32 to index
    %c0_254 = arith.constant 0 : index
    %c0_255 = arith.constant 0 : index
    %744 = vector.load %arg5[%743, %c0_254, %c0_255] : memref<25x8x128xf32, #tpu.memory_space<vmem>>, vector<1x8x128xf32>
    %745 = vector.shape_cast %744 : vector<1x8x128xf32> to vector<8x128xf32>
    %746 = vector.shape_cast %742 : vector<8x128xf32> to vector<1x8x128xf32>
    tpu.vector_store %arg5[%743, %c0_254, %c0_255], %746 {strides = array<i32>} : memref<25x8x128xf32, #tpu.memory_space<vmem>>, vector<1x8x128xf32>,
    %747 = arith.index_cast %c18_i32 : i32 to index
    %c0_256 = arith.constant 0 : index
    %c0_257 = arith.constant 0 : index
    %748 = vector.load %arg6[%747, %c0_256, %c0_257] : memref<25x8x128xf32, #tpu.memory_space<vmem>>, vector<1x8x128xf32>
    %749 = vector.shape_cast %748 : vector<1x8x128xf32> to vector<8x128xf32>
    %750 = vector.shape_cast %738 : vector<8x128xf32> to vector<1x8x128xf32>
    tpu.vector_store %arg6[%747, %c0_256, %c0_257], %750 {strides = array<i32>} : memref<25x8x128xf32, #tpu.memory_space<vmem>>, vector<1x8x128xf32>,
    %c19_i32 = arith.constant 19 : i32
    %cst_258 = arith.constant 1.000000e+00 : f32
    %751 = vector.broadcast %cst_258 : f32 to vector<8x1024xf32>
    %752 = arith.cmpf ogt, %721, %751 : vector<8x1024xf32>
    %753 = arith.extui %752 : vector<8x1024xi1> to vector<8x1024xi32>
    %754 = arith.sitofp %753 : vector<8x1024xi32> to vector<8x1024xf32>
    %cst_259 = arith.constant 0.949999988 : f32
    %755 = vector.broadcast %cst_259 : f32 to vector<8x1024xf32>
    %756 = arith.mulf %755, %721 : vector<8x1024xf32>
    %757 = arith.addf %756, %5 : vector<8x1024xf32>
    %cst_260 = arith.constant 1.000000e+00 : f32
    %758 = vector.broadcast %cst_260 : f32 to vector<8x1024xf32>
    %759 = arith.mulf %754, %758 : vector<8x1024xf32>
    %760 = arith.subf %757, %759 : vector<8x1024xf32>
    %cst_261 = arith.constant 1.000000e+00 : f32
    %761 = vector.broadcast %cst_261 : f32 to vector<8x1024xf32>
    %762 = arith.cmpf ogt, %760, %761 : vector<8x1024xf32>
    %763 = arith.extui %762 : vector<8x1024xi1> to vector<8x1024xi32>
    %764 = arith.sitofp %763 : vector<8x1024xi32> to vector<8x1024xf32>
    %cst_262 = arith.constant dense<0.000000e+00> : vector<8x128xf32>
    %765 = tpu.matmul %764, %6, %cst_262 {dimension_numbers = #tpu.dot_dimension_numbers<[1], [0], [0], [1], [0, 0, 1, 1], [], []>} : vector<8x1024xf32>, vector<1024x128xf32>, vector<8x128xf32> -> vector<8x128xf32>
    %766 = vector.broadcast %7 : vector<1x128xf32> to vector<8x128xf32>
    %767 = arith.addf %765, %766 : vector<8x128xf32>
    %cst_263 = arith.constant 1.000000e+00 : f32
    %768 = vector.broadcast %cst_263 : f32 to vector<8x128xf32>
    %769 = arith.cmpf ogt, %738, %768 : vector<8x128xf32>
    %770 = arith.extui %769 : vector<8x128xi1> to vector<8x128xi32>
    %771 = arith.sitofp %770 : vector<8x128xi32> to vector<8x128xf32>
    %cst_264 = arith.constant 0.949999988 : f32
    %772 = vector.broadcast %cst_264 : f32 to vector<8x128xf32>
    %773 = arith.mulf %772, %738 : vector<8x128xf32>
    %774 = arith.addf %773, %767 : vector<8x128xf32>
    %cst_265 = arith.constant 1.000000e+00 : f32
    %775 = vector.broadcast %cst_265 : f32 to vector<8x128xf32>
    %776 = arith.mulf %771, %775 : vector<8x128xf32>
    %777 = arith.subf %774, %776 : vector<8x128xf32>
    %cst_266 = arith.constant 1.000000e+00 : f32
    %778 = vector.broadcast %cst_266 : f32 to vector<8x128xf32>
    %779 = arith.cmpf ogt, %777, %778 : vector<8x128xf32>
    %780 = arith.extui %779 : vector<8x128xi1> to vector<8x128xi32>
    %781 = arith.sitofp %780 : vector<8x128xi32> to vector<8x128xf32>
    %782 = arith.index_cast %c19_i32 : i32 to index
    %c0_267 = arith.constant 0 : index
    %c0_268 = arith.constant 0 : index
    %783 = vector.load %arg5[%782, %c0_267, %c0_268] : memref<25x8x128xf32, #tpu.memory_space<vmem>>, vector<1x8x128xf32>
    %784 = vector.shape_cast %783 : vector<1x8x128xf32> to vector<8x128xf32>
    %785 = vector.shape_cast %781 : vector<8x128xf32> to vector<1x8x128xf32>
    tpu.vector_store %arg5[%782, %c0_267, %c0_268], %785 {strides = array<i32>} : memref<25x8x128xf32, #tpu.memory_space<vmem>>, vector<1x8x128xf32>,
    %786 = arith.index_cast %c19_i32 : i32 to index
    %c0_269 = arith.constant 0 : index
    %c0_270 = arith.constant 0 : index
    %787 = vector.load %arg6[%786, %c0_269, %c0_270] : memref<25x8x128xf32, #tpu.memory_space<vmem>>, vector<1x8x128xf32>
    %788 = vector.shape_cast %787 : vector<1x8x128xf32> to vector<8x128xf32>
    %789 = vector.shape_cast %777 : vector<8x128xf32> to vector<1x8x128xf32>
    tpu.vector_store %arg6[%786, %c0_269, %c0_270], %789 {strides = array<i32>} : memref<25x8x128xf32, #tpu.memory_space<vmem>>, vector<1x8x128xf32>,
    %c20_i32 = arith.constant 20 : i32
    %cst_271 = arith.constant 1.000000e+00 : f32
    %790 = vector.broadcast %cst_271 : f32 to vector<8x1024xf32>
    %791 = arith.cmpf ogt, %760, %790 : vector<8x1024xf32>
    %792 = arith.extui %791 : vector<8x1024xi1> to vector<8x1024xi32>
    %793 = arith.sitofp %792 : vector<8x1024xi32> to vector<8x1024xf32>
    %cst_272 = arith.constant 0.949999988 : f32
    %794 = vector.broadcast %cst_272 : f32 to vector<8x1024xf32>
    %795 = arith.mulf %794, %760 : vector<8x1024xf32>
    %796 = arith.addf %795, %5 : vector<8x1024xf32>
    %cst_273 = arith.constant 1.000000e+00 : f32
    %797 = vector.broadcast %cst_273 : f32 to vector<8x1024xf32>
    %798 = arith.mulf %793, %797 : vector<8x1024xf32>
    %799 = arith.subf %796, %798 : vector<8x1024xf32>
    %cst_274 = arith.constant 1.000000e+00 : f32
    %800 = vector.broadcast %cst_274 : f32 to vector<8x1024xf32>
    %801 = arith.cmpf ogt, %799, %800 : vector<8x1024xf32>
    %802 = arith.extui %801 : vector<8x1024xi1> to vector<8x1024xi32>
    %803 = arith.sitofp %802 : vector<8x1024xi32> to vector<8x1024xf32>
    %cst_275 = arith.constant dense<0.000000e+00> : vector<8x128xf32>
    %804 = tpu.matmul %803, %6, %cst_275 {dimension_numbers = #tpu.dot_dimension_numbers<[1], [0], [0], [1], [0, 0, 1, 1], [], []>} : vector<8x1024xf32>, vector<1024x128xf32>, vector<8x128xf32> -> vector<8x128xf32>
    %805 = vector.broadcast %7 : vector<1x128xf32> to vector<8x128xf32>
    %806 = arith.addf %804, %805 : vector<8x128xf32>
    %cst_276 = arith.constant 1.000000e+00 : f32
    %807 = vector.broadcast %cst_276 : f32 to vector<8x128xf32>
    %808 = arith.cmpf ogt, %777, %807 : vector<8x128xf32>
    %809 = arith.extui %808 : vector<8x128xi1> to vector<8x128xi32>
    %810 = arith.sitofp %809 : vector<8x128xi32> to vector<8x128xf32>
    %cst_277 = arith.constant 0.949999988 : f32
    %811 = vector.broadcast %cst_277 : f32 to vector<8x128xf32>
    %812 = arith.mulf %811, %777 : vector<8x128xf32>
    %813 = arith.addf %812, %806 : vector<8x128xf32>
    %cst_278 = arith.constant 1.000000e+00 : f32
    %814 = vector.broadcast %cst_278 : f32 to vector<8x128xf32>
    %815 = arith.mulf %810, %814 : vector<8x128xf32>
    %816 = arith.subf %813, %815 : vector<8x128xf32>
    %cst_279 = arith.constant 1.000000e+00 : f32
    %817 = vector.broadcast %cst_279 : f32 to vector<8x128xf32>
    %818 = arith.cmpf ogt, %816, %817 : vector<8x128xf32>
    %819 = arith.extui %818 : vector<8x128xi1> to vector<8x128xi32>
    %820 = arith.sitofp %819 : vector<8x128xi32> to vector<8x128xf32>
    %821 = arith.index_cast %c20_i32 : i32 to index
    %c0_280 = arith.constant 0 : index
    %c0_281 = arith.constant 0 : index
    %822 = vector.load %arg5[%821, %c0_280, %c0_281] : memref<25x8x128xf32, #tpu.memory_space<vmem>>, vector<1x8x128xf32>
    %823 = vector.shape_cast %822 : vector<1x8x128xf32> to vector<8x128xf32>
    %824 = vector.shape_cast %820 : vector<8x128xf32> to vector<1x8x128xf32>
    tpu.vector_store %arg5[%821, %c0_280, %c0_281], %824 {strides = array<i32>} : memref<25x8x128xf32, #tpu.memory_space<vmem>>, vector<1x8x128xf32>,
    %825 = arith.index_cast %c20_i32 : i32 to index
    %c0_282 = arith.constant 0 : index
    %c0_283 = arith.constant 0 : index
    %826 = vector.load %arg6[%825, %c0_282, %c0_283] : memref<25x8x128xf32, #tpu.memory_space<vmem>>, vector<1x8x128xf32>
    %827 = vector.shape_cast %826 : vector<1x8x128xf32> to vector<8x128xf32>
    %828 = vector.shape_cast %816 : vector<8x128xf32> to vector<1x8x128xf32>
    tpu.vector_store %arg6[%825, %c0_282, %c0_283], %828 {strides = array<i32>} : memref<25x8x128xf32, #tpu.memory_space<vmem>>, vector<1x8x128xf32>,
    %c21_i32 = arith.constant 21 : i32
    %cst_284 = arith.constant 1.000000e+00 : f32
    %829 = vector.broadcast %cst_284 : f32 to vector<8x1024xf32>
    %830 = arith.cmpf ogt, %799, %829 : vector<8x1024xf32>
    %831 = arith.extui %830 : vector<8x1024xi1> to vector<8x1024xi32>
    %832 = arith.sitofp %831 : vector<8x1024xi32> to vector<8x1024xf32>
    %cst_285 = arith.constant 0.949999988 : f32
    %833 = vector.broadcast %cst_285 : f32 to vector<8x1024xf32>
    %834 = arith.mulf %833, %799 : vector<8x1024xf32>
    %835 = arith.addf %834, %5 : vector<8x1024xf32>
    %cst_286 = arith.constant 1.000000e+00 : f32
    %836 = vector.broadcast %cst_286 : f32 to vector<8x1024xf32>
    %837 = arith.mulf %832, %836 : vector<8x1024xf32>
    %838 = arith.subf %835, %837 : vector<8x1024xf32>
    %cst_287 = arith.constant 1.000000e+00 : f32
    %839 = vector.broadcast %cst_287 : f32 to vector<8x1024xf32>
    %840 = arith.cmpf ogt, %838, %839 : vector<8x1024xf32>
    %841 = arith.extui %840 : vector<8x1024xi1> to vector<8x1024xi32>
    %842 = arith.sitofp %841 : vector<8x1024xi32> to vector<8x1024xf32>
    %cst_288 = arith.constant dense<0.000000e+00> : vector<8x128xf32>
    %843 = tpu.matmul %842, %6, %cst_288 {dimension_numbers = #tpu.dot_dimension_numbers<[1], [0], [0], [1], [0, 0, 1, 1], [], []>} : vector<8x1024xf32>, vector<1024x128xf32>, vector<8x128xf32> -> vector<8x128xf32>
    %844 = vector.broadcast %7 : vector<1x128xf32> to vector<8x128xf32>
    %845 = arith.addf %843, %844 : vector<8x128xf32>
    %cst_289 = arith.constant 1.000000e+00 : f32
    %846 = vector.broadcast %cst_289 : f32 to vector<8x128xf32>
    %847 = arith.cmpf ogt, %816, %846 : vector<8x128xf32>
    %848 = arith.extui %847 : vector<8x128xi1> to vector<8x128xi32>
    %849 = arith.sitofp %848 : vector<8x128xi32> to vector<8x128xf32>
    %cst_290 = arith.constant 0.949999988 : f32
    %850 = vector.broadcast %cst_290 : f32 to vector<8x128xf32>
    %851 = arith.mulf %850, %816 : vector<8x128xf32>
    %852 = arith.addf %851, %845 : vector<8x128xf32>
    %cst_291 = arith.constant 1.000000e+00 : f32
    %853 = vector.broadcast %cst_291 : f32 to vector<8x128xf32>
    %854 = arith.mulf %849, %853 : vector<8x128xf32>
    %855 = arith.subf %852, %854 : vector<8x128xf32>
    %cst_292 = arith.constant 1.000000e+00 : f32
    %856 = vector.broadcast %cst_292 : f32 to vector<8x128xf32>
    %857 = arith.cmpf ogt, %855, %856 : vector<8x128xf32>
    %858 = arith.extui %857 : vector<8x128xi1> to vector<8x128xi32>
    %859 = arith.sitofp %858 : vector<8x128xi32> to vector<8x128xf32>
    %860 = arith.index_cast %c21_i32 : i32 to index
    %c0_293 = arith.constant 0 : index
    %c0_294 = arith.constant 0 : index
    %861 = vector.load %arg5[%860, %c0_293, %c0_294] : memref<25x8x128xf32, #tpu.memory_space<vmem>>, vector<1x8x128xf32>
    %862 = vector.shape_cast %861 : vector<1x8x128xf32> to vector<8x128xf32>
    %863 = vector.shape_cast %859 : vector<8x128xf32> to vector<1x8x128xf32>
    tpu.vector_store %arg5[%860, %c0_293, %c0_294], %863 {strides = array<i32>} : memref<25x8x128xf32, #tpu.memory_space<vmem>>, vector<1x8x128xf32>,
    %864 = arith.index_cast %c21_i32 : i32 to index
    %c0_295 = arith.constant 0 : index
    %c0_296 = arith.constant 0 : index
    %865 = vector.load %arg6[%864, %c0_295, %c0_296] : memref<25x8x128xf32, #tpu.memory_space<vmem>>, vector<1x8x128xf32>
    %866 = vector.shape_cast %865 : vector<1x8x128xf32> to vector<8x128xf32>
    %867 = vector.shape_cast %855 : vector<8x128xf32> to vector<1x8x128xf32>
    tpu.vector_store %arg6[%864, %c0_295, %c0_296], %867 {strides = array<i32>} : memref<25x8x128xf32, #tpu.memory_space<vmem>>, vector<1x8x128xf32>,
    %c22_i32 = arith.constant 22 : i32
    %cst_297 = arith.constant 1.000000e+00 : f32
    %868 = vector.broadcast %cst_297 : f32 to vector<8x1024xf32>
    %869 = arith.cmpf ogt, %838, %868 : vector<8x1024xf32>
    %870 = arith.extui %869 : vector<8x1024xi1> to vector<8x1024xi32>
    %871 = arith.sitofp %870 : vector<8x1024xi32> to vector<8x1024xf32>
    %cst_298 = arith.constant 0.949999988 : f32
    %872 = vector.broadcast %cst_298 : f32 to vector<8x1024xf32>
    %873 = arith.mulf %872, %838 : vector<8x1024xf32>
    %874 = arith.addf %873, %5 : vector<8x1024xf32>
    %cst_299 = arith.constant 1.000000e+00 : f32
    %875 = vector.broadcast %cst_299 : f32 to vector<8x1024xf32>
    %876 = arith.mulf %871, %875 : vector<8x1024xf32>
    %877 = arith.subf %874, %876 : vector<8x1024xf32>
    %cst_300 = arith.constant 1.000000e+00 : f32
    %878 = vector.broadcast %cst_300 : f32 to vector<8x1024xf32>
    %879 = arith.cmpf ogt, %877, %878 : vector<8x1024xf32>
    %880 = arith.extui %879 : vector<8x1024xi1> to vector<8x1024xi32>
    %881 = arith.sitofp %880 : vector<8x1024xi32> to vector<8x1024xf32>
    %cst_301 = arith.constant dense<0.000000e+00> : vector<8x128xf32>
    %882 = tpu.matmul %881, %6, %cst_301 {dimension_numbers = #tpu.dot_dimension_numbers<[1], [0], [0], [1], [0, 0, 1, 1], [], []>} : vector<8x1024xf32>, vector<1024x128xf32>, vector<8x128xf32> -> vector<8x128xf32>
    %883 = vector.broadcast %7 : vector<1x128xf32> to vector<8x128xf32>
    %884 = arith.addf %882, %883 : vector<8x128xf32>
    %cst_302 = arith.constant 1.000000e+00 : f32
    %885 = vector.broadcast %cst_302 : f32 to vector<8x128xf32>
    %886 = arith.cmpf ogt, %855, %885 : vector<8x128xf32>
    %887 = arith.extui %886 : vector<8x128xi1> to vector<8x128xi32>
    %888 = arith.sitofp %887 : vector<8x128xi32> to vector<8x128xf32>
    %cst_303 = arith.constant 0.949999988 : f32
    %889 = vector.broadcast %cst_303 : f32 to vector<8x128xf32>
    %890 = arith.mulf %889, %855 : vector<8x128xf32>
    %891 = arith.addf %890, %884 : vector<8x128xf32>
    %cst_304 = arith.constant 1.000000e+00 : f32
    %892 = vector.broadcast %cst_304 : f32 to vector<8x128xf32>
    %893 = arith.mulf %888, %892 : vector<8x128xf32>
    %894 = arith.subf %891, %893 : vector<8x128xf32>
    %cst_305 = arith.constant 1.000000e+00 : f32
    %895 = vector.broadcast %cst_305 : f32 to vector<8x128xf32>
    %896 = arith.cmpf ogt, %894, %895 : vector<8x128xf32>
    %897 = arith.extui %896 : vector<8x128xi1> to vector<8x128xi32>
    %898 = arith.sitofp %897 : vector<8x128xi32> to vector<8x128xf32>
    %899 = arith.index_cast %c22_i32 : i32 to index
    %c0_306 = arith.constant 0 : index
    %c0_307 = arith.constant 0 : index
    %900 = vector.load %arg5[%899, %c0_306, %c0_307] : memref<25x8x128xf32, #tpu.memory_space<vmem>>, vector<1x8x128xf32>
    %901 = vector.shape_cast %900 : vector<1x8x128xf32> to vector<8x128xf32>
    %902 = vector.shape_cast %898 : vector<8x128xf32> to vector<1x8x128xf32>
    tpu.vector_store %arg5[%899, %c0_306, %c0_307], %902 {strides = array<i32>} : memref<25x8x128xf32, #tpu.memory_space<vmem>>, vector<1x8x128xf32>,
    %903 = arith.index_cast %c22_i32 : i32 to index
    %c0_308 = arith.constant 0 : index
    %c0_309 = arith.constant 0 : index
    %904 = vector.load %arg6[%903, %c0_308, %c0_309] : memref<25x8x128xf32, #tpu.memory_space<vmem>>, vector<1x8x128xf32>
    %905 = vector.shape_cast %904 : vector<1x8x128xf32> to vector<8x128xf32>
    %906 = vector.shape_cast %894 : vector<8x128xf32> to vector<1x8x128xf32>
    tpu.vector_store %arg6[%903, %c0_308, %c0_309], %906 {strides = array<i32>} : memref<25x8x128xf32, #tpu.memory_space<vmem>>, vector<1x8x128xf32>,
    %c23_i32 = arith.constant 23 : i32
    %cst_310 = arith.constant 1.000000e+00 : f32
    %907 = vector.broadcast %cst_310 : f32 to vector<8x1024xf32>
    %908 = arith.cmpf ogt, %877, %907 : vector<8x1024xf32>
    %909 = arith.extui %908 : vector<8x1024xi1> to vector<8x1024xi32>
    %910 = arith.sitofp %909 : vector<8x1024xi32> to vector<8x1024xf32>
    %cst_311 = arith.constant 0.949999988 : f32
    %911 = vector.broadcast %cst_311 : f32 to vector<8x1024xf32>
    %912 = arith.mulf %911, %877 : vector<8x1024xf32>
    %913 = arith.addf %912, %5 : vector<8x1024xf32>
    %cst_312 = arith.constant 1.000000e+00 : f32
    %914 = vector.broadcast %cst_312 : f32 to vector<8x1024xf32>
    %915 = arith.mulf %910, %914 : vector<8x1024xf32>
    %916 = arith.subf %913, %915 : vector<8x1024xf32>
    %cst_313 = arith.constant 1.000000e+00 : f32
    %917 = vector.broadcast %cst_313 : f32 to vector<8x1024xf32>
    %918 = arith.cmpf ogt, %916, %917 : vector<8x1024xf32>
    %919 = arith.extui %918 : vector<8x1024xi1> to vector<8x1024xi32>
    %920 = arith.sitofp %919 : vector<8x1024xi32> to vector<8x1024xf32>
    %cst_314 = arith.constant dense<0.000000e+00> : vector<8x128xf32>
    %921 = tpu.matmul %920, %6, %cst_314 {dimension_numbers = #tpu.dot_dimension_numbers<[1], [0], [0], [1], [0, 0, 1, 1], [], []>} : vector<8x1024xf32>, vector<1024x128xf32>, vector<8x128xf32> -> vector<8x128xf32>
    %922 = vector.broadcast %7 : vector<1x128xf32> to vector<8x128xf32>
    %923 = arith.addf %921, %922 : vector<8x128xf32>
    %cst_315 = arith.constant 1.000000e+00 : f32
    %924 = vector.broadcast %cst_315 : f32 to vector<8x128xf32>
    %925 = arith.cmpf ogt, %894, %924 : vector<8x128xf32>
    %926 = arith.extui %925 : vector<8x128xi1> to vector<8x128xi32>
    %927 = arith.sitofp %926 : vector<8x128xi32> to vector<8x128xf32>
    %cst_316 = arith.constant 0.949999988 : f32
    %928 = vector.broadcast %cst_316 : f32 to vector<8x128xf32>
    %929 = arith.mulf %928, %894 : vector<8x128xf32>
    %930 = arith.addf %929, %923 : vector<8x128xf32>
    %cst_317 = arith.constant 1.000000e+00 : f32
    %931 = vector.broadcast %cst_317 : f32 to vector<8x128xf32>
    %932 = arith.mulf %927, %931 : vector<8x128xf32>
    %933 = arith.subf %930, %932 : vector<8x128xf32>
    %cst_318 = arith.constant 1.000000e+00 : f32
    %934 = vector.broadcast %cst_318 : f32 to vector<8x128xf32>
    %935 = arith.cmpf ogt, %933, %934 : vector<8x128xf32>
    %936 = arith.extui %935 : vector<8x128xi1> to vector<8x128xi32>
    %937 = arith.sitofp %936 : vector<8x128xi32> to vector<8x128xf32>
    %938 = arith.index_cast %c23_i32 : i32 to index
    %c0_319 = arith.constant 0 : index
    %c0_320 = arith.constant 0 : index
    %939 = vector.load %arg5[%938, %c0_319, %c0_320] : memref<25x8x128xf32, #tpu.memory_space<vmem>>, vector<1x8x128xf32>
    %940 = vector.shape_cast %939 : vector<1x8x128xf32> to vector<8x128xf32>
    %941 = vector.shape_cast %937 : vector<8x128xf32> to vector<1x8x128xf32>
    tpu.vector_store %arg5[%938, %c0_319, %c0_320], %941 {strides = array<i32>} : memref<25x8x128xf32, #tpu.memory_space<vmem>>, vector<1x8x128xf32>,
    %942 = arith.index_cast %c23_i32 : i32 to index
    %c0_321 = arith.constant 0 : index
    %c0_322 = arith.constant 0 : index
    %943 = vector.load %arg6[%942, %c0_321, %c0_322] : memref<25x8x128xf32, #tpu.memory_space<vmem>>, vector<1x8x128xf32>
    %944 = vector.shape_cast %943 : vector<1x8x128xf32> to vector<8x128xf32>
    %945 = vector.shape_cast %933 : vector<8x128xf32> to vector<1x8x128xf32>
    tpu.vector_store %arg6[%942, %c0_321, %c0_322], %945 {strides = array<i32>} : memref<25x8x128xf32, #tpu.memory_space<vmem>>, vector<1x8x128xf32>,
    %c24_i32 = arith.constant 24 : i32
    %cst_323 = arith.constant 1.000000e+00 : f32
    %946 = vector.broadcast %cst_323 : f32 to vector<8x1024xf32>
    %947 = arith.cmpf ogt, %916, %946 : vector<8x1024xf32>
    %948 = arith.extui %947 : vector<8x1024xi1> to vector<8x1024xi32>
    %949 = arith.sitofp %948 : vector<8x1024xi32> to vector<8x1024xf32>
    %cst_324 = arith.constant 0.949999988 : f32
    %950 = vector.broadcast %cst_324 : f32 to vector<8x1024xf32>
    %951 = arith.mulf %950, %916 : vector<8x1024xf32>
    %952 = arith.addf %951, %5 : vector<8x1024xf32>
    %cst_325 = arith.constant 1.000000e+00 : f32
    %953 = vector.broadcast %cst_325 : f32 to vector<8x1024xf32>
    %954 = arith.mulf %949, %953 : vector<8x1024xf32>
    %955 = arith.subf %952, %954 : vector<8x1024xf32>
    %cst_326 = arith.constant 1.000000e+00 : f32
    %956 = vector.broadcast %cst_326 : f32 to vector<8x1024xf32>
    %957 = arith.cmpf ogt, %955, %956 : vector<8x1024xf32>
    %958 = arith.extui %957 : vector<8x1024xi1> to vector<8x1024xi32>
    %959 = arith.sitofp %958 : vector<8x1024xi32> to vector<8x1024xf32>
    %cst_327 = arith.constant dense<0.000000e+00> : vector<8x128xf32>
    %960 = tpu.matmul %959, %6, %cst_327 {dimension_numbers = #tpu.dot_dimension_numbers<[1], [0], [0], [1], [0, 0, 1, 1], [], []>} : vector<8x1024xf32>, vector<1024x128xf32>, vector<8x128xf32> -> vector<8x128xf32>
    %961 = vector.broadcast %7 : vector<1x128xf32> to vector<8x128xf32>
    %962 = arith.addf %960, %961 : vector<8x128xf32>
    %cst_328 = arith.constant 1.000000e+00 : f32
    %963 = vector.broadcast %cst_328 : f32 to vector<8x128xf32>
    %964 = arith.cmpf ogt, %933, %963 : vector<8x128xf32>
    %965 = arith.extui %964 : vector<8x128xi1> to vector<8x128xi32>
    %966 = arith.sitofp %965 : vector<8x128xi32> to vector<8x128xf32>
    %cst_329 = arith.constant 0.949999988 : f32
    %967 = vector.broadcast %cst_329 : f32 to vector<8x128xf32>
    %968 = arith.mulf %967, %933 : vector<8x128xf32>
    %969 = arith.addf %968, %962 : vector<8x128xf32>
    %cst_330 = arith.constant 1.000000e+00 : f32
    %970 = vector.broadcast %cst_330 : f32 to vector<8x128xf32>
    %971 = arith.mulf %966, %970 : vector<8x128xf32>
    %972 = arith.subf %969, %971 : vector<8x128xf32>
    %cst_331 = arith.constant 1.000000e+00 : f32
    %973 = vector.broadcast %cst_331 : f32 to vector<8x128xf32>
    %974 = arith.cmpf ogt, %972, %973 : vector<8x128xf32>
    %975 = arith.extui %974 : vector<8x128xi1> to vector<8x128xi32>
    %976 = arith.sitofp %975 : vector<8x128xi32> to vector<8x128xf32>
    %977 = arith.index_cast %c24_i32 : i32 to index
    %c0_332 = arith.constant 0 : index
    %c0_333 = arith.constant 0 : index
    %978 = vector.load %arg5[%977, %c0_332, %c0_333] : memref<25x8x128xf32, #tpu.memory_space<vmem>>, vector<1x8x128xf32>
    %979 = vector.shape_cast %978 : vector<1x8x128xf32> to vector<8x128xf32>
    %980 = vector.shape_cast %976 : vector<8x128xf32> to vector<1x8x128xf32>
    tpu.vector_store %arg5[%977, %c0_332, %c0_333], %980 {strides = array<i32>} : memref<25x8x128xf32, #tpu.memory_space<vmem>>, vector<1x8x128xf32>,
    %981 = arith.index_cast %c24_i32 : i32 to index
    %c0_334 = arith.constant 0 : index
    %c0_335 = arith.constant 0 : index
    %982 = vector.load %arg6[%981, %c0_334, %c0_335] : memref<25x8x128xf32, #tpu.memory_space<vmem>>, vector<1x8x128xf32>
    %983 = vector.shape_cast %982 : vector<1x8x128xf32> to vector<8x128xf32>
    %984 = vector.shape_cast %972 : vector<8x128xf32> to vector<1x8x128xf32>
    tpu.vector_store %arg6[%981, %c0_334, %c0_335], %984 {strides = array<i32>} : memref<25x8x128xf32, #tpu.memory_space<vmem>>, vector<1x8x128xf32>,
    %c25_i32 = arith.constant 25 : i32
    return
  }
}

</mosaic_0001>

<llo_original>
// kernel: snn_forward.1
$region0: #{snn_forward.1}
  #allocation0 [shape = 'u32[]', space=smem, size = 0x4, offset = 0x4, fixed_abs, tag = 'smem constant byte address 0x4 - core index']
  #allocation1 [shape = 'u32[144,128]{1,0:T(1,128)}', space=vmem, size = 0x12000, scoped, tag = 'internal scratch']
  %s0 = inlined_call_operand.vmem [shape: f32[8,784], index: 0, kind: input, shape index: {}]
  %s1 = inlined_call_operand.vmem [shape: f32[784,1024], index: 1, kind: input, shape index: {}]
  %s2 = inlined_call_operand.vmem [shape: f32[1,1024], index: 2, kind: input, shape index: {}]
  %s3 = inlined_call_operand.vmem [shape: f32[1024,128], index: 3, kind: input, shape index: {}]
  %s4 = inlined_call_operand.vmem [shape: f32[1,128], index: 4, kind: input, shape index: {}]
  %s5 = inlined_call_operand.vmem [shape: f32[25,8,128], index: 5, kind: output, shape index: {0}]
  %s6 = inlined_call_operand.vmem [shape: f32[25,8,128], index: 6, kind: output, shape index: {1}]
  %7 = xla_tuple %s5, %s6
  %s8 = sld [smem:[#allocation0]]
  $region38: #{snn_forward.1} parent=0
    _
  %s10 = ssub.s32 1, %s8
  %s11 = scalar_select 0, %s10, %s8
  // Predicated region
  $region2: #{snn_forward.1} parent=0 // pred_check
    _
  $region3: #{snn_forward.1} parent=0 // pred_check_branch
    %13 = sbr.rel (0) target = $region5
  $region4: #{snn_forward.1} parent=0 // pred_region
    _
  $region5: #{snn_forward.1} parent=0 // pred_fallthru
    _
  // Predicated region
  $region6: #{snn_forward.1} parent=0 // pred_check
    _
  $region7: #{snn_forward.1} parent=0 // pred_check_branch
    %15 = sbr.rel (0) target = $region9
  $region8: #{snn_forward.1} parent=0 // pred_region
    _
  $region9: #{snn_forward.1} parent=0 // pred_fallthru
    _
  // Predicated region
  $region10: #{snn_forward.1} parent=0 // pred_check
    _
  $region11: #{snn_forward.1} parent=0 // pred_check_branch
    %17 = sbr.rel (0) target = $region13
  $region12: #{snn_forward.1} parent=0 // pred_region
    _
  $region13: #{snn_forward.1} parent=0 // pred_fallthru
    _
  // Predicated region
  $region14: #{snn_forward.1} parent=0 // pred_check
    _
  $region15: #{snn_forward.1} parent=0 // pred_check_branch
    %19 = sbr.rel (0) target = $region17
  $region16: #{snn_forward.1} parent=0 // pred_region
    _
  $region17: #{snn_forward.1} parent=0 // pred_fallthru
    _
  // Predicated region
  $region18: #{snn_forward.1} parent=0 // pred_check
    _
  $region19: #{snn_forward.1} parent=0 // pred_check_branch
    %21 = sbr.rel (0) target = $region21
  $region20: #{snn_forward.1} parent=0 // pred_region
    _
  $region21: #{snn_forward.1} parent=0 // pred_fallthru
    _
  %v22 = vld [vmem:[%s0] sm:$0xff]
  %v23 = vld [vmem:[%s0 + $0x8] sm:$0xff]
  %v24 = vld [vmem:[%s0 + $0x10] sm:$0xff]
  %v25 = vld [vmem:[%s0 + $0x18] sm:$0xff]
  %v26 = vld [vmem:[%s0 + $0x20] sm:$0xff]
  %v27 = vld [vmem:[%s0 + $0x28] sm:$0xff]
  %v28 = vld [vmem:[%s0 + $0x30] sm:$0xff]
  %v29 = vld [vmem:[%s1] sm:$0xff]
  %v30 = vld [vmem:[%s1 + $0x8] sm:$0xff]
  %v31 = vld [vmem:[%s1 + $0x10] sm:$0xff]
  %v32 = vld [vmem:[%s1 + $0x18] sm:$0xff]
  %v33 = vld [vmem:[%s1 + $0x20] sm:$0xff]
  %v34 = vld [vmem:[%s1 + $0x28] sm:$0xff]
  %v35 = vld [vmem:[%s1 + $0x30] sm:$0xff]
  %v36 = vld [vmem:[%s1 + $0x38] sm:$0xff]
  %v37 = vld [vmem:[%s1 + $0x40] sm:$0xff]
  %v38 = vld [vmem:[%s1 + $0x48] sm:$0xff]
  %v39 = vld [vmem:[%s1 + $0x50] sm:$0xff]
  %v40 = vld [vmem:[%s1 + $0x58] sm:$0xff]
  %v41 = vld [vmem:[%s1 + $0x60] sm:$0xff]
  %v42 = vld [vmem:[%s1 + $0x68] sm:$0xff]
  %v43 = vld [vmem:[%s1 + $0x70] sm:$0xff]
  %v44 = vld [vmem:[%s1 + $0x78] sm:$0xff]
  %v45 = vld [vmem:[%s1 + $0x80] sm:$0xff]
  %v46 = vld [vmem:[%s1 + $0x88] sm:$0xff]
  %v47 = vld [vmem:[%s1 + $0x90] sm:$0xff]
  %v48 = vld [vmem:[%s1 + $0x98] sm:$0xff]
  %v49 = vld [vmem:[%s1 + $0xa0] sm:$0xff]
  %v50 = vld [vmem:[%s1 + $0xa8] sm:$0xff]
  %v51 = vld [vmem:[%s1 + $0xb0] sm:$0xff]
  %v52 = vld [vmem:[%s1 + $0xb8] sm:$0xff]
  %v53 = vld [vmem:[%s1 + $0xc0] sm:$0xff]
  %v54 = vld [vmem:[%s1 + $0xc8] sm:$0xff]
  %v55 = vld [vmem:[%s1 + $0xd0] sm:$0xff]
  %v56 = vld [vmem:[%s1 + $0xd8] sm:$0xff]
  %v57 = vld [vmem:[%s1 + $0xe0] sm:$0xff]
  %v58 = vld [vmem:[%s1 + $0xe8] sm:$0xff]
  %v59 = vld [vmem:[%s1 + $0xf0] sm:$0xff]
  %v60 = vld [vmem:[%s1 + $0xf8] sm:$0xff]
  %v61 = vld [vmem:[%s1 + $0x100] sm:$0xff]
  %v62 = vld [vmem:[%s1 + $0x108] sm:$0xff]
  %v63 = vld [vmem:[%s1 + $0x110] sm:$0xff]
  %v64 = vld [vmem:[%s1 + $0x118] sm:$0xff]
  %v65 = vld [vmem:[%s1 + $0x120] sm:$0xff]
  %v66 = vld [vmem:[%s1 + $0x128] sm:$0xff]
  %v67 = vld [vmem:[%s1 + $0x130] sm:$0xff]
  %v68 = vld [vmem:[%s1 + $0x138] sm:$0xff]
  %v69 = vld [vmem:[%s1 + $0x140] sm:$0xff]
  %v70 = vld [vmem:[%s1 + $0x148] sm:$0xff]
  %v71 = vld [vmem:[%s1 + $0x150] sm:$0xff]
  %v72 = vld [vmem:[%s1 + $0x158] sm:$0xff]
  %v73 = vld [vmem:[%s1 + $0x160] sm:$0xff]
  %v74 = vld [vmem:[%s1 + $0x168] sm:$0xff]
  %v75 = vld [vmem:[%s1 + $0x170] sm:$0xff]
  %v76 = vld [vmem:[%s1 + $0x178] sm:$0xff]
  %v77 = vld [vmem:[%s1 + $0x180] sm:$0xff]
  %v78 = vld [vmem:[%s1 + $0x188] sm:$0xff]
  %v79 = vld [vmem:[%s1 + $0x190] sm:$0xff]
  %v80 = vld [vmem:[%s1 + $0x198] sm:$0xff]
  %v81 = vld [vmem:[%s1 + $0x1a0] sm:$0xff]
  %v82 = vld [vmem:[%s1 + $0x1a8] sm:$0xff]
  %v83 = vld [vmem:[%s1 + $0x1b0] sm:$0xff]
  %v84 = vld [vmem:[%s1 + $0x1b8] sm:$0xff]
  %v85 = vld [vmem:[%s1 + $0x1c0] sm:$0xff]
  %v86 = vld [vmem:[%s1 + $0x1c8] sm:$0xff]
  %v87 = vld [vmem:[%s1 + $0x1d0] sm:$0xff]
  %v88 = vld [vmem:[%s1 + $0x1d8] sm:$0xff]
  %v89 = vld [vmem:[%s1 + $0x1e0] sm:$0xff]
  %v90 = vld [vmem:[%s1 + $0x1e8] sm:$0xff]
  %v91 = vld [vmem:[%s1 + $0x1f0] sm:$0xff]
  %v92 = vld [vmem:[%s1 + $0x1f8] sm:$0xff]
  %v93 = vld [vmem:[%s1 + $0x200] sm:$0xff]
  %v94 = vld [vmem:[%s1 + $0x208] sm:$0xff]
  %v95 = vld [vmem:[%s1 + $0x210] sm:$0xff]
  %v96 = vld [vmem:[%s1 + $0x218] sm:$0xff]
  %v97 = vld [vmem:[%s1 + $0x220] sm:$0xff]
  %v98 = vld [vmem:[%s1 + $0x228] sm:$0xff]
  %v99 = vld [vmem:[%s1 + $0x230] sm:$0xff]
  %v100 = vld [vmem:[%s1 + $0x238] sm:$0xff]
  %v101 = vld [vmem:[%s1 + $0x240] sm:$0xff]
  %v102 = vld [vmem:[%s1 + $0x248] sm:$0xff]
  %v103 = vld [vmem:[%s1 + $0x250] sm:$0xff]
  %v104 = vld [vmem:[%s1 + $0x258] sm:$0xff]
  %v105 = vld [vmem:[%s1 + $0x260] sm:$0xff]
  %v106 = vld [vmem:[%s1 + $0x268] sm:$0xff]
  %v107 = vld [vmem:[%s1 + $0x270] sm:$0xff]
  %v108 = vld [vmem:[%s1 + $0x278] sm:$0xff]
  %v109 = vld [vmem:[%s1 + $0x280] sm:$0xff]
  %v110 = vld [vmem:[%s1 + $0x288] sm:$0xff]
  %v111 = vld [vmem:[%s1 + $0x290] sm:$0xff]
  %v112 = vld [vmem:[%s1 + $0x298] sm:$0xff]
  %v113 = vld [vmem:[%s1 + $0x2a0] sm:$0xff]
  %v114 = vld [vmem:[%s1 + $0x2a8] sm:$0xff]
  %v115 = vld [vmem:[%s1 + $0x2b0] sm:$0xff]
  %v116 = vld [vmem:[%s1 + $0x2b8] sm:$0xff]
  %v117 = vld [vmem:[%s1 + $0x2c0] sm:$0xff]
  %v118 = vld [vmem:[%s1 + $0x2c8] sm:$0xff]
  %v119 = vld [vmem:[%s1 + $0x2d0] sm:$0xff]
  %v120 = vld [vmem:[%s1 + $0x2d8] sm:$0xff]
  %v121 = vld [vmem:[%s1 + $0x2e0] sm:$0xff]
  %v122 = vld [vmem:[%s1 + $0x2e8] sm:$0xff]
  %v123 = vld [vmem:[%s1 + $0x2f0] sm:$0xff]
  %v124 = vld [vmem:[%s1 + $0x2f8] sm:$0xff]
  %v125 = vld [vmem:[%s1 + $0x300] sm:$0xff]
  %v126 = vld [vmem:[%s1 + $0x308] sm:$0xff]
  %v127 = vld [vmem:[%s1 + $0x310] sm:$0xff]
  %v128 = vld [vmem:[%s1 + $0x318] sm:$0xff]
  %v129 = vld [vmem:[%s1 + $0x320] sm:$0xff]
  %v130 = vld [vmem:[%s1 + $0x328] sm:$0xff]
  %v131 = vld [vmem:[%s1 + $0x330] sm:$0xff]
  %v132 = vld [vmem:[%s1 + $0x338] sm:$0xff]
  %v133 = vld [vmem:[%s1 + $0x340] sm:$0xff]
  %v134 = vld [vmem:[%s1 + $0x348] sm:$0xff]
  %v135 = vld [vmem:[%s1 + $0x350] sm:$0xff]
  %v136 = vld [vmem:[%s1 + $0x358] sm:$0xff]
  %v137 = vld [vmem:[%s1 + $0x360] sm:$0xff]
  %v138 = vld [vmem:[%s1 + $0x368] sm:$0xff]
  %v139 = vld [vmem:[%s1 + $0x370] sm:$0xff]
  %v140 = vld [vmem:[%s1 + $0x378] sm:$0xff]
  %v141 = vld [vmem:[%s1 + $0x380] sm:$0xff]
  %v142 = vld [vmem:[%s1 + $0x388] sm:$0xff]
  %v143 = vld [vmem:[%s1 + $0x390] sm:$0xff]
  %v144 = vld [vmem:[%s1 + $0x398] sm:$0xff]
  %v145 = vld [vmem:[%s1 + $0x3a0] sm:$0xff]
  %v146 = vld [vmem:[%s1 + $0x3a8] sm:$0xff]
  %v147 = vld [vmem:[%s1 + $0x3b0] sm:$0xff]
  %v148 = vld [vmem:[%s1 + $0x3b8] sm:$0xff]
  %v149 = vld [vmem:[%s1 + $0x3c0] sm:$0xff]
  %v150 = vld [vmem:[%s1 + $0x3c8] sm:$0xff]
  %v151 = vld [vmem:[%s1 + $0x3d0] sm:$0xff]
  %v152 = vld [vmem:[%s1 + $0x3d8] sm:$0xff]
  %v153 = vld [vmem:[%s1 + $0x3e0] sm:$0xff]
  %v154 = vld [vmem:[%s1 + $0x3e8] sm:$0xff]
  %v155 = vld [vmem:[%s1 + $0x3f0] sm:$0xff]
  %v156 = vld [vmem:[%s1 + $0x3f8] sm:$0xff]
  %v157 = vld [vmem:[%s1 + $0x400] sm:$0xff]
  %v158 = vld [vmem:[%s1 + $0x408] sm:$0xff]
  %v159 = vld [vmem:[%s1 + $0x410] sm:$0xff]
  %v160 = vld [vmem:[%s1 + $0x418] sm:$0xff]
  %v161 = vld [vmem:[%s1 + $0x420] sm:$0xff]
  %v162 = vld [vmem:[%s1 + $0x428] sm:$0xff]
  %v163 = vld [vmem:[%s1 + $0x430] sm:$0xff]
  %v164 = vld [vmem:[%s1 + $0x438] sm:$0xff]
  %v165 = vld [vmem:[%s1 + $0x440] sm:$0xff]
  %v166 = vld [vmem:[%s1 + $0x448] sm:$0xff]
  %v167 = vld [vmem:[%s1 + $0x450] sm:$0xff]
  %v168 = vld [vmem:[%s1 + $0x458] sm:$0xff]
  %v169 = vld [vmem:[%s1 + $0x460] sm:$0xff]
  %v170 = vld [vmem:[%s1 + $0x468] sm:$0xff]
  %v171 = vld [vmem:[%s1 + $0x470] sm:$0xff]
  %v172 = vld [vmem:[%s1 + $0x478] sm:$0xff]
  %v173 = vld [vmem:[%s1 + $0x480] sm:$0xff]
  %v174 = vld [vmem:[%s1 + $0x488] sm:$0xff]
  %v175 = vld [vmem:[%s1 + $0x490] sm:$0xff]
  %v176 = vld [vmem:[%s1 + $0x498] sm:$0xff]
  %v177 = vld [vmem:[%s1 + $0x4a0] sm:$0xff]
  %v178 = vld [vmem:[%s1 + $0x4a8] sm:$0xff]
  %v179 = vld [vmem:[%s1 + $0x4b0] sm:$0xff]
  %v180 = vld [vmem:[%s1 + $0x4b8] sm:$0xff]
  %v181 = vld [vmem:[%s1 + $0x4c0] sm:$0xff]
  %v182 = vld [vmem:[%s1 + $0x4c8] sm:$0xff]
  %v183 = vld [vmem:[%s1 + $0x4d0] sm:$0xff]
  %v184 = vld [vmem:[%s1 + $0x4d8] sm:$0xff]
  %v185 = vld [vmem:[%s1 + $0x4e0] sm:$0xff]
  %v186 = vld [vmem:[%s1 + $0x4e8] sm:$0xff]
  %v187 = vld [vmem:[%s1 + $0x4f0] sm:$0xff]
  %v188 = vld [vmem:[%s1 + $0x4f8] sm:$0xff]
  %v189 = vld [vmem:[%s1 + $0x500] sm:$0xff]
  %v190 = vld [vmem:[%s1 + $0x508] sm:$0xff]
  %v191 = vld [vmem:[%s1 + $0x510] sm:$0xff]
  %v192 = vld [vmem:[%s1 + $0x518] sm:$0xff]
  %v193 = vld [vmem:[%s1 + $0x520] sm:$0xff]
  %v194 = vld [vmem:[%s1 + $0x528] sm:$0xff]
  %v195 = vld [vmem:[%s1 + $0x530] sm:$0xff]
  %v196 = vld [vmem:[%s1 + $0x538] sm:$0xff]
  %v197 = vld [vmem:[%s1 + $0x540] sm:$0xff]
  %v198 = vld [vmem:[%s1 + $0x548] sm:$0xff]
  %v199 = vld [vmem:[%s1 + $0x550] sm:$0xff]
  %v200 = vld [vmem:[%s1 + $0x558] sm:$0xff]
  %v201 = vld [vmem:[%s1 + $0x560] sm:$0xff]
  %v202 = vld [vmem:[%s1 + $0x568] sm:$0xff]
  %v203 = vld [vmem:[%s1 + $0x570] sm:$0xff]
  %v204 = vld [vmem:[%s1 + $0x578] sm:$0xff]
  %v205 = vld [vmem:[%s1 + $0x580] sm:$0xff]
  %v206 = vld [vmem:[%s1 + $0x588] sm:$0xff]
  %v207 = vld [vmem:[%s1 + $0x590] sm:$0xff]
  %v208 = vld [vmem:[%s1 + $0x598] sm:$0xff]
  %v209 = vld [vmem:[%s1 + $0x5a0] sm:$0xff]
  %v210 = vld [vmem:[%s1 + $0x5a8] sm:$0xff]
  %v211 = vld [vmem:[%s1 + $0x5b0] sm:$0xff]
  %v212 = vld [vmem:[%s1 + $0x5b8] sm:$0xff]
  %v213 = vld [vmem:[%s1 + $0x5c0] sm:$0xff]
  %v214 = vld [vmem:[%s1 + $0x5c8] sm:$0xff]
  %v215 = vld [vmem:[%s1 + $0x5d0] sm:$0xff]
  %v216 = vld [vmem:[%s1 + $0x5d8] sm:$0xff]
  %v217 = vld [vmem:[%s1 + $0x5e0] sm:$0xff]
  %v218 = vld [vmem:[%s1 + $0x5e8] sm:$0xff]
  %v219 = vld [vmem:[%s1 + $0x5f0] sm:$0xff]
  %v220 = vld [vmem:[%s1 + $0x5f8] sm:$0xff]
  %v221 = vld [vmem:[%s1 + $0x600] sm:$0xff]
  %v222 = vld [vmem:[%s1 + $0x608] sm:$0xff]
  %v223 = vld [vmem:[%s1 + $0x610] sm:$0xff]
  %v224 = vld [vmem:[%s1 + $0x618] sm:$0xff]
  %v225 = vld [vmem:[%s1 + $0x620] sm:$0xff]
  %v226 = vld [vmem:[%s1 + $0x628] sm:$0xff]
  %v227 = vld [vmem:[%s1 + $0x630] sm:$0xff]
  %v228 = vld [vmem:[%s1 + $0x638] sm:$0xff]
  %v229 = vld [vmem:[%s1 + $0x640] sm:$0xff]
  %v230 = vld [vmem:[%s1 + $0x648] sm:$0xff]
  %v231 = vld [vmem:[%s1 + $0x650] sm:$0xff]
  %v232 = vld [vmem:[%s1 + $0x658] sm:$0xff]
  %v233 = vld [vmem:[%s1 + $0x660] sm:$0xff]
  %v234 = vld [vmem:[%s1 + $0x668] sm:$0xff]
  %v235 = vld [vmem:[%s1 + $0x670] sm:$0xff]
  %v236 = vld [vmem:[%s1 + $0x678] sm:$0xff]
  %v237 = vld [vmem:[%s1 + $0x680] sm:$0xff]
  %v238 = vld [vmem:[%s1 + $0x688] sm:$0xff]
  %v239 = vld [vmem:[%s1 + $0x690] sm:$0xff]
  %v240 = vld [vmem:[%s1 + $0x698] sm:$0xff]
  %v241 = vld [vmem:[%s1 + $0x6a0] sm:$0xff]
  %v242 = vld [vmem:[%s1 + $0x6a8] sm:$0xff]
  %v243 = vld [vmem:[%s1 + $0x6b0] sm:$0xff]
  %v244 = vld [vmem:[%s1 + $0x6b8] sm:$0xff]
  %v245 = vld [vmem:[%s1 + $0x6c0] sm:$0xff]
  %v246 = vld [vmem:[%s1 + $0x6c8] sm:$0xff]
  %v247 = vld [vmem:[%s1 + $0x6d0] sm:$0xff]
  %v248 = vld [vmem:[%s1 + $0x6d8] sm:$0xff]
  %v249 = vld [vmem:[%s1 + $0x6e0] sm:$0xff]
  %v250 = vld [vmem:[%s1 + $0x6e8] sm:$0xff]
  %v251 = vld [vmem:[%s1 + $0x6f0] sm:$0xff]
  %v252 = vld [vmem:[%s1 + $0x6f8] sm:$0xff]
  %v253 = vld [vmem:[%s1 + $0x700] sm:$0xff]
  %v254 = vld [vmem:[%s1 + $0x708] sm:$0xff]
  %v255 = vld [vmem:[%s1 + $0x710] sm:$0xff]
  %v256 = vld [vmem:[%s1 + $0x718] sm:$0xff]
  %v257 = vld [vmem:[%s1 + $0x720] sm:$0xff]
  %v258 = vld [vmem:[%s1 + $0x728] sm:$0xff]
  %v259 = vld [vmem:[%s1 + $0x730] sm:$0xff]
  %v260 = vld [vmem:[%s1 + $0x738] sm:$0xff]
  %v261 = vld [vmem:[%s1 + $0x740] sm:$0xff]
  %v262 = vld [vmem:[%s1 + $0x748] sm:$0xff]
  %v263 = vld [vmem:[%s1 + $0x750] sm:$0xff]
  %v264 = vld [vmem:[%s1 + $0x758] sm:$0xff]
  %v265 = vld [vmem:[%s1 + $0x760] sm:$0xff]
  %v266 = vld [vmem:[%s1 + $0x768] sm:$0xff]
  %v267 = vld [vmem:[%s1 + $0x770] sm:$0xff]
  %v268 = vld [vmem:[%s1 + $0x778] sm:$0xff]
  %v269 = vld [vmem:[%s1 + $0x780] sm:$0xff]
  %v270 = vld [vmem:[%s1 + $0x788] sm:$0xff]
  %v271 = vld [vmem:[%s1 + $0x790] sm:$0xff]
  %v272 = vld [vmem:[%s1 + $0x798] sm:$0xff]
  %v273 = vld [vmem:[%s1 + $0x7a0] sm:$0xff]
  %v274 = vld [vmem:[%s1 + $0x7a8] sm:$0xff]
  %v275 = vld [vmem:[%s1 + $0x7b0] sm:$0xff]
  %v276 = vld [vmem:[%s1 + $0x7b8] sm:$0xff]
  %v277 = vld [vmem:[%s1 + $0x7c0] sm:$0xff]
  %v278 = vld [vmem:[%s1 + $0x7c8] sm:$0xff]
  %v279 = vld [vmem:[%s1 + $0x7d0] sm:$0xff]
  %v280 = vld [vmem:[%s1 + $0x7d8] sm:$0xff]
  %v281 = vld [vmem:[%s1 + $0x7e0] sm:$0xff]
  %v282 = vld [vmem:[%s1 + $0x7e8] sm:$0xff]
  %v283 = vld [vmem:[%s1 + $0x7f0] sm:$0xff]
  %v284 = vld [vmem:[%s1 + $0x7f8] sm:$0xff]
  %v285 = vld [vmem:[%s1 + $0x800] sm:$0xff]
  %v286 = vld [vmem:[%s1 + $0x808] sm:$0xff]
  %v287 = vld [vmem:[%s1 + $0x810] sm:$0xff]
  %v288 = vld [vmem:[%s1 + $0x818] sm:$0xff]
  %v289 = vld [vmem:[%s1 + $0x820] sm:$0xff]
  %v290 = vld [vmem:[%s1 + $0x828] sm:$0xff]
  %v291 = vld [vmem:[%s1 + $0x830] sm:$0xff]
  %v292 = vld [vmem:[%s1 + $0x838] sm:$0xff]
  %v293 = vld [vmem:[%s1 + $0x840] sm:$0xff]
  %v294 = vld [vmem:[%s1 + $0x848] sm:$0xff]
  %v295 = vld [vmem:[%s1 + $0x850] sm:$0xff]
  %v296 = vld [vmem:[%s1 + $0x858] sm:$0xff]
  %v297 = vld [vmem:[%s1 + $0x860] sm:$0xff]
  %v298 = vld [vmem:[%s1 + $0x868] sm:$0xff]
  %v299 = vld [vmem:[%s1 + $0x870] sm:$0xff]
  %v300 = vld [vmem:[%s1 + $0x878] sm:$0xff]
  %v301 = vld [vmem:[%s1 + $0x880] sm:$0xff]
  %v302 = vld [vmem:[%s1 + $0x888] sm:$0xff]
  %v303 = vld [vmem:[%s1 + $0x890] sm:$0xff]
  %v304 = vld [vmem:[%s1 + $0x898] sm:$0xff]
  %v305 = vld [vmem:[%s1 + $0x8a0] sm:$0xff]
  %v306 = vld [vmem:[%s1 + $0x8a8] sm:$0xff]
  %v307 = vld [vmem:[%s1 + $0x8b0] sm:$0xff]
  %v308 = vld [vmem:[%s1 + $0x8b8] sm:$0xff]
  %v309 = vld [vmem:[%s1 + $0x8c0] sm:$0xff]
  %v310 = vld [vmem:[%s1 + $0x8c8] sm:$0xff]
  %v311 = vld [vmem:[%s1 + $0x8d0] sm:$0xff]
  %v312 = vld [vmem:[%s1 + $0x8d8] sm:$0xff]
  %v313 = vld [vmem:[%s1 + $0x8e0] sm:$0xff]
  %v314 = vld [vmem:[%s1 + $0x8e8] sm:$0xff]
  %v315 = vld [vmem:[%s1 + $0x8f0] sm:$0xff]
  %v316 = vld [vmem:[%s1 + $0x8f8] sm:$0xff]
  %v317 = vld [vmem:[%s1 + $0x900] sm:$0xff]
  %v318 = vld [vmem:[%s1 + $0x908] sm:$0xff]
  %v319 = vld [vmem:[%s1 + $0x910] sm:$0xff]
  %v320 = vld [vmem:[%s1 + $0x918] sm:$0xff]
  %v321 = vld [vmem:[%s1 + $0x920] sm:$0xff]
  %v322 = vld [vmem:[%s1 + $0x928] sm:$0xff]
  %v323 = vld [vmem:[%s1 + $0x930] sm:$0xff]
  %v324 = vld [vmem:[%s1 + $0x938] sm:$0xff]
  %v325 = vld [vmem:[%s1 + $0x940] sm:$0xff]
  %v326 = vld [vmem:[%s1 + $0x948] sm:$0xff]
  %v327 = vld [vmem:[%s1 + $0x950] sm:$0xff]
  %v328 = vld [vmem:[%s1 + $0x958] sm:$0xff]
  %v329 = vld [vmem:[%s1 + $0x960] sm:$0xff]
  %v330 = vld [vmem:[%s1 + $0x968] sm:$0xff]
  %v331 = vld [vmem:[%s1 + $0x970] sm:$0xff]
  %v332 = vld [vmem:[%s1 + $0x978] sm:$0xff]
  %v333 = vld [vmem:[%s1 + $0x980] sm:$0xff]
  %v334 = vld [vmem:[%s1 + $0x988] sm:$0xff]
  %v335 = vld [vmem:[%s1 + $0x990] sm:$0xff]
  %v336 = vld [vmem:[%s1 + $0x998] sm:$0xff]
  %v337 = vld [vmem:[%s1 + $0x9a0] sm:$0xff]
  %v338 = vld [vmem:[%s1 + $0x9a8] sm:$0xff]
  %v339 = vld [vmem:[%s1 + $0x9b0] sm:$0xff]
  %v340 = vld [vmem:[%s1 + $0x9b8] sm:$0xff]
  %v341 = vld [vmem:[%s1 + $0x9c0] sm:$0xff]
  %v342 = vld [vmem:[%s1 + $0x9c8] sm:$0xff]
  %v343 = vld [vmem:[%s1 + $0x9d0] sm:$0xff]
  %v344 = vld [vmem:[%s1 + $0x9d8] sm:$0xff]
  %v345 = vld [vmem:[%s1 + $0x9e0] sm:$0xff]
  %v346 = vld [vmem:[%s1 + $0x9e8] sm:$0xff]
  %v347 = vld [vmem:[%s1 + $0x9f0] sm:$0xff]
  %v348 = vld [vmem:[%s1 + $0x9f8] sm:$0xff]
  %v349 = vld [vmem:[%s1 + $0xa00] sm:$0xff]
  %v350 = vld [vmem:[%s1 + $0xa08] sm:$0xff]
  %v351 = vld [vmem:[%s1 + $0xa10] sm:$0xff]
  %v352 = vld [vmem:[%s1 + $0xa18] sm:$0xff]
  %v353 = vld [vmem:[%s1 + $0xa20] sm:$0xff]
  %v354 = vld [vmem:[%s1 + $0xa28] sm:$0xff]
  %v355 = vld [vmem:[%s1 + $0xa30] sm:$0xff]
  %v356 = vld [vmem:[%s1 + $0xa38] sm:$0xff]
  %v357 = vld [vmem:[%s1 + $0xa40] sm:$0xff]
  %v358 = vld [vmem:[%s1 + $0xa48] sm:$0xff]
  %v359 = vld [vmem:[%s1 + $0xa50] sm:$0xff]
  %v360 = vld [vmem:[%s1 + $0xa58] sm:$0xff]
  %v361 = vld [vmem:[%s1 + $0xa60] sm:$0xff]
  %v362 = vld [vmem:[%s1 + $0xa68] sm:$0xff]
  %v363 = vld [vmem:[%s1 + $0xa70] sm:$0xff]
  %v364 = vld [vmem:[%s1 + $0xa78] sm:$0xff]
  %v365 = vld [vmem:[%s1 + $0xa80] sm:$0xff]
  %v366 = vld [vmem:[%s1 + $0xa88] sm:$0xff]
  %v367 = vld [vmem:[%s1 + $0xa90] sm:$0xff]
  %v368 = vld [vmem:[%s1 + $0xa98] sm:$0xff]
  %v369 = vld [vmem:[%s1 + $0xaa0] sm:$0xff]
  %v370 = vld [vmem:[%s1 + $0xaa8] sm:$0xff]
  %v371 = vld [vmem:[%s1 + $0xab0] sm:$0xff]
  %v372 = vld [vmem:[%s1 + $0xab8] sm:$0xff]
  %v373 = vld [vmem:[%s1 + $0xac0] sm:$0xff]
  %v374 = vld [vmem:[%s1 + $0xac8] sm:$0xff]
  %v375 = vld [vmem:[%s1 + $0xad0] sm:$0xff]
  %v376 = vld [vmem:[%s1 + $0xad8] sm:$0xff]
  %v377 = vld [vmem:[%s1 + $0xae0] sm:$0xff]
  %v378 = vld [vmem:[%s1 + $0xae8] sm:$0xff]
  %v379 = vld [vmem:[%s1 + $0xaf0] sm:$0xff]
  %v380 = vld [vmem:[%s1 + $0xaf8] sm:$0xff]
  %v381 = vld [vmem:[%s1 + $0xb00] sm:$0xff]
  %v382 = vld [vmem:[%s1 + $0xb08] sm:$0xff]
  %v383 = vld [vmem:[%s1 + $0xb10] sm:$0xff]
  %v384 = vld [vmem:[%s1 + $0xb18] sm:$0xff]
  %v385 = vld [vmem:[%s1 + $0xb20] sm:$0xff]
  %v386 = vld [vmem:[%s1 + $0xb28] sm:$0xff]
  %v387 = vld [vmem:[%s1 + $0xb30] sm:$0xff]
  %v388 = vld [vmem:[%s1 + $0xb38] sm:$0xff]
  %v389 = vld [vmem:[%s1 + $0xb40] sm:$0xff]
  %v390 = vld [vmem:[%s1 + $0xb48] sm:$0xff]
  %v391 = vld [vmem:[%s1 + $0xb50] sm:$0xff]
  %v392 = vld [vmem:[%s1 + $0xb58] sm:$0xff]
  %v393 = vld [vmem:[%s1 + $0xb60] sm:$0xff]
  %v394 = vld [vmem:[%s1 + $0xb68] sm:$0xff]
  %v395 = vld [vmem:[%s1 + $0xb70] sm:$0xff]
  %v396 = vld [vmem:[%s1 + $0xb78] sm:$0xff]
  %v397 = vld [vmem:[%s1 + $0xb80] sm:$0xff]
  %v398 = vld [vmem:[%s1 + $0xb88] sm:$0xff]
  %v399 = vld [vmem:[%s1 + $0xb90] sm:$0xff]
  %v400 = vld [vmem:[%s1 + $0xb98] sm:$0xff]
  %v401 = vld [vmem:[%s1 + $0xba0] sm:$0xff]
  %v402 = vld [vmem:[%s1 + $0xba8] sm:$0xff]
  %v403 = vld [vmem:[%s1 + $0xbb0] sm:$0xff]
  %v404 = vld [vmem:[%s1 + $0xbb8] sm:$0xff]
  %v405 = vld [vmem:[%s1 + $0xbc0] sm:$0xff]
  %v406 = vld [vmem:[%s1 + $0xbc8] sm:$0xff]
  %v407 = vld [vmem:[%s1 + $0xbd0] sm:$0xff]
  %v408 = vld [vmem:[%s1 + $0xbd8] sm:$0xff]
  %v409 = vld [vmem:[%s1 + $0xbe0] sm:$0xff]
  %v410 = vld [vmem:[%s1 + $0xbe8] sm:$0xff]
  %v411 = vld [vmem:[%s1 + $0xbf0] sm:$0xff]
  %v412 = vld [vmem:[%s1 + $0xbf8] sm:$0xff]
  %v413 = vld [vmem:[%s1 + $0xc00] sm:$0xff]
  %v414 = vld [vmem:[%s1 + $0xc08] sm:$0xff]
  %v415 = vld [vmem:[%s1 + $0xc10] sm:$0xff]
  %v416 = vld [vmem:[%s1 + $0xc18] sm:$0xff]
  %v417 = vld [vmem:[%s1 + $0xc20] sm:$0xff]
  %v418 = vld [vmem:[%s1 + $0xc28] sm:$0xff]
  %v419 = vld [vmem:[%s1 + $0xc30] sm:$0xff]
  %v420 = vld [vmem:[%s1 + $0xc38] sm:$0xff]
  %v421 = vld [vmem:[%s1 + $0xc40] sm:$0xff]
  %v422 = vld [vmem:[%s1 + $0xc48] sm:$0xff]
  %v423 = vld [vmem:[%s1 + $0xc50] sm:$0xff]
  %v424 = vld [vmem:[%s1 + $0xc58] sm:$0xff]
  %v425 = vld [vmem:[%s1 + $0xc60] sm:$0xff]
  %v426 = vld [vmem:[%s1 + $0xc68] sm:$0xff]
  %v427 = vld [vmem:[%s1 + $0xc70] sm:$0xff]
  %v428 = vld [vmem:[%s1 + $0xc78] sm:$0xff]
  %v429 = vld [vmem:[%s1 + $0xc80] sm:$0xff]
  %v430 = vld [vmem:[%s1 + $0xc88] sm:$0xff]
  %v431 = vld [vmem:[%s1 + $0xc90] sm:$0xff]
  %v432 = vld [vmem:[%s1 + $0xc98] sm:$0xff]
  %v433 = vld [vmem:[%s1 + $0xca0] sm:$0xff]
  %v434 = vld [vmem:[%s1 + $0xca8] sm:$0xff]
  %v435 = vld [vmem:[%s1 + $0xcb0] sm:$0xff]
  %v436 = vld [vmem:[%s1 + $0xcb8] sm:$0xff]
  %v437 = vld [vmem:[%s1 + $0xcc0] sm:$0xff]
  %v438 = vld [vmem:[%s1 + $0xcc8] sm:$0xff]
  %v439 = vld [vmem:[%s1 + $0xcd0] sm:$0xff]
  %v440 = vld [vmem:[%s1 + $0xcd8] sm:$0xff]
  %v441 = vld [vmem:[%s1 + $0xce0] sm:$0xff]
  %v442 = vld [vmem:[%s1 + $0xce8] sm:$0xff]
  %v443 = vld [vmem:[%s1 + $0xcf0] sm:$0xff]
  %v444 = vld [vmem:[%s1 + $0xcf8] sm:$0xff]
  %v445 = vld [vmem:[%s1 + $0xd00] sm:$0xff]
  %v446 = vld [vmem:[%s1 + $0xd08] sm:$0xff]
  %v447 = vld [vmem:[%s1 + $0xd10] sm:$0xff]
  %v448 = vld [vmem:[%s1 + $0xd18] sm:$0xff]
  %v449 = vld [vmem:[%s1 + $0xd20] sm:$0xff]
  %v450 = vld [vmem:[%s1 + $0xd28] sm:$0xff]
  %v451 = vld [vmem:[%s1 + $0xd30] sm:$0xff]
  %v452 = vld [vmem:[%s1 + $0xd38] sm:$0xff]
  %v453 = vld [vmem:[%s1 + $0xd40] sm:$0xff]
  %v454 = vld [vmem:[%s1 + $0xd48] sm:$0xff]
  %v455 = vld [vmem:[%s1 + $0xd50] sm:$0xff]
  %v456 = vld [vmem:[%s1 + $0xd58] sm:$0xff]
  %v457 = vld [vmem:[%s1 + $0xd60] sm:$0xff]
  %v458 = vld [vmem:[%s1 + $0xd68] sm:$0xff]
  %v459 = vld [vmem:[%s1 + $0xd70] sm:$0xff]
  %v460 = vld [vmem:[%s1 + $0xd78] sm:$0xff]
  %v461 = vld [vmem:[%s1 + $0xd80] sm:$0xff]
  %v462 = vld [vmem:[%s1 + $0xd88] sm:$0xff]
  %v463 = vld [vmem:[%s1 + $0xd90] sm:$0xff]
  %v464 = vld [vmem:[%s1 + $0xd98] sm:$0xff]
  %v465 = vld [vmem:[%s1 + $0xda0] sm:$0xff]
  %v466 = vld [vmem:[%s1 + $0xda8] sm:$0xff]
  %v467 = vld [vmem:[%s1 + $0xdb0] sm:$0xff]
  %v468 = vld [vmem:[%s1 + $0xdb8] sm:$0xff]
  %v469 = vld [vmem:[%s1 + $0xdc0] sm:$0xff]
  %v470 = vld [vmem:[%s1 + $0xdc8] sm:$0xff]
  %v471 = vld [vmem:[%s1 + $0xdd0] sm:$0xff]
  %v472 = vld [vmem:[%s1 + $0xdd8] sm:$0xff]
  %v473 = vld [vmem:[%s1 + $0xde0] sm:$0xff]
  %v474 = vld [vmem:[%s1 + $0xde8] sm:$0xff]
  %v475 = vld [vmem:[%s1 + $0xdf0] sm:$0xff]
  %v476 = vld [vmem:[%s1 + $0xdf8] sm:$0xff]
  %v477 = vld [vmem:[%s1 + $0xe00] sm:$0xff]
  %v478 = vld [vmem:[%s1 + $0xe08] sm:$0xff]
  %v479 = vld [vmem:[%s1 + $0xe10] sm:$0xff]
  %v480 = vld [vmem:[%s1 + $0xe18] sm:$0xff]
  %v481 = vld [vmem:[%s1 + $0xe20] sm:$0xff]
  %v482 = vld [vmem:[%s1 + $0xe28] sm:$0xff]
  %v483 = vld [vmem:[%s1 + $0xe30] sm:$0xff]
  %v484 = vld [vmem:[%s1 + $0xe38] sm:$0xff]
  %v485 = vld [vmem:[%s1 + $0xe40] sm:$0xff]
  %v486 = vld [vmem:[%s1 + $0xe48] sm:$0xff]
  %v487 = vld [vmem:[%s1 + $0xe50] sm:$0xff]
  %v488 = vld [vmem:[%s1 + $0xe58] sm:$0xff]
  %v489 = vld [vmem:[%s1 + $0xe60] sm:$0xff]
  %v490 = vld [vmem:[%s1 + $0xe68] sm:$0xff]
  %v491 = vld [vmem:[%s1 + $0xe70] sm:$0xff]
  %v492 = vld [vmem:[%s1 + $0xe78] sm:$0xff]
  %v493 = vld [vmem:[%s1 + $0xe80] sm:$0xff]
  %v494 = vld [vmem:[%s1 + $0xe88] sm:$0xff]
  %v495 = vld [vmem:[%s1 + $0xe90] sm:$0xff]
  %v496 = vld [vmem:[%s1 + $0xe98] sm:$0xff]
  %v497 = vld [vmem:[%s1 + $0xea0] sm:$0xff]
  %v498 = vld [vmem:[%s1 + $0xea8] sm:$0xff]
  %v499 = vld [vmem:[%s1 + $0xeb0] sm:$0xff]
  %v500 = vld [vmem:[%s1 + $0xeb8] sm:$0xff]
  %v501 = vld [vmem:[%s1 + $0xec0] sm:$0xff]
  %v502 = vld [vmem:[%s1 + $0xec8] sm:$0xff]
  %v503 = vld [vmem:[%s1 + $0xed0] sm:$0xff]
  %v504 = vld [vmem:[%s1 + $0xed8] sm:$0xff]
  %v505 = vld [vmem:[%s1 + $0xee0] sm:$0xff]
  %v506 = vld [vmem:[%s1 + $0xee8] sm:$0xff]
  %v507 = vld [vmem:[%s1 + $0xef0] sm:$0xff]
  %v508 = vld [vmem:[%s1 + $0xef8] sm:$0xff]
  %v509 = vld [vmem:[%s1 + $0xf00] sm:$0xff]
  %v510 = vld [vmem:[%s1 + $0xf08] sm:$0xff]
  %v511 = vld [vmem:[%s1 + $0xf10] sm:$0xff]
  %v512 = vld [vmem:[%s1 + $0xf18] sm:$0xff]
  %v513 = vld [vmem:[%s1 + $0xf20] sm:$0xff]
  %v514 = vld [vmem:[%s1 + $0xf28] sm:$0xff]
  %v515 = vld [vmem:[%s1 + $0xf30] sm:$0xff]
  %v516 = vld [vmem:[%s1 + $0xf38] sm:$0xff]
  %v517 = vld [vmem:[%s1 + $0xf40] sm:$0xff]
  %v518 = vld [vmem:[%s1 + $0xf48] sm:$0xff]
  %v519 = vld [vmem:[%s1 + $0xf50] sm:$0xff]
  %v520 = vld [vmem:[%s1 + $0xf58] sm:$0xff]
  %v521 = vld [vmem:[%s1 + $0xf60] sm:$0xff]
  %v522 = vld [vmem:[%s1 + $0xf68] sm:$0xff]
  %v523 = vld [vmem:[%s1 + $0xf70] sm:$0xff]
  %v524 = vld [vmem:[%s1 + $0xf78] sm:$0xff]
  %v525 = vld [vmem:[%s1 + $0xf80] sm:$0xff]
  %v526 = vld [vmem:[%s1 + $0xf88] sm:$0xff]
  %v527 = vld [vmem:[%s1 + $0xf90] sm:$0xff]
  %v528 = vld [vmem:[%s1 + $0xf98] sm:$0xff]
  %v529 = vld [vmem:[%s1 + $0xfa0] sm:$0xff]
  %v530 = vld [vmem:[%s1 + $0xfa8] sm:$0xff]
  %v531 = vld [vmem:[%s1 + $0xfb0] sm:$0xff]
  %v532 = vld [vmem:[%s1 + $0xfb8] sm:$0xff]
  %v533 = vld [vmem:[%s1 + $0xfc0] sm:$0xff]
  %v534 = vld [vmem:[%s1 + $0xfc8] sm:$0xff]
  %v535 = vld [vmem:[%s1 + $0xfd0] sm:$0xff]
  %v536 = vld [vmem:[%s1 + $0xfd8] sm:$0xff]
  %v537 = vld [vmem:[%s1 + $0xfe0] sm:$0xff]
  %v538 = vld [vmem:[%s1 + $0xfe8] sm:$0xff]
  %v539 = vld [vmem:[%s1 + $0xff0] sm:$0xff]
  %v540 = vld [vmem:[%s1 + $0xff8] sm:$0xff]
  %v541 = vld [vmem:[%s1 + $0x1000] sm:$0xff]
  %v542 = vld [vmem:[%s1 + $0x1008] sm:$0xff]
  %v543 = vld [vmem:[%s1 + $0x1010] sm:$0xff]
  %v544 = vld [vmem:[%s1 + $0x1018] sm:$0xff]
  %v545 = vld [vmem:[%s1 + $0x1020] sm:$0xff]
  %v546 = vld [vmem:[%s1 + $0x1028] sm:$0xff]
  %v547 = vld [vmem:[%s1 + $0x1030] sm:$0xff]
  %v548 = vld [vmem:[%s1 + $0x1038] sm:$0xff]
  %v549 = vld [vmem:[%s1 + $0x1040] sm:$0xff]
  %v550 = vld [vmem:[%s1 + $0x1048] sm:$0xff]
  %v551 = vld [vmem:[%s1 + $0x1050] sm:$0xff]
  %v552 = vld [vmem:[%s1 + $0x1058] sm:$0xff]
  %v553 = vld [vmem:[%s1 + $0x1060] sm:$0xff]
  %v554 = vld [vmem:[%s1 + $0x1068] sm:$0xff]
  %v555 = vld [vmem:[%s1 + $0x1070] sm:$0xff]
  %v556 = vld [vmem:[%s1 + $0x1078] sm:$0xff]
  %v557 = vld [vmem:[%s1 + $0x1080] sm:$0xff]
  %v558 = vld [vmem:[%s1 + $0x1088] sm:$0xff]
  %v559 = vld [vmem:[%s1 + $0x1090] sm:$0xff]
  %v560 = vld [vmem:[%s1 + $0x1098] sm:$0xff]
  %v561 = vld [vmem:[%s1 + $0x10a0] sm:$0xff]
  %v562 = vld [vmem:[%s1 + $0x10a8] sm:$0xff]
  %v563 = vld [vmem:[%s1 + $0x10b0] sm:$0xff]
  %v564 = vld [vmem:[%s1 + $0x10b8] sm:$0xff]
  %v565 = vld [vmem:[%s1 + $0x10c0] sm:$0xff]
  %v566 = vld [vmem:[%s1 + $0x10c8] sm:$0xff]
  %v567 = vld [vmem:[%s1 + $0x10d0] sm:$0xff]
  %v568 = vld [vmem:[%s1 + $0x10d8] sm:$0xff]
  %v569 = vld [vmem:[%s1 + $0x10e0] sm:$0xff]
  %v570 = vld [vmem:[%s1 + $0x10e8] sm:$0xff]
  %v571 = vld [vmem:[%s1 + $0x10f0] sm:$0xff]
  %v572 = vld [vmem:[%s1 + $0x10f8] sm:$0xff]
  %v573 = vld [vmem:[%s1 + $0x1100] sm:$0xff]
  %v574 = vld [vmem:[%s1 + $0x1108] sm:$0xff]
  %v575 = vld [vmem:[%s1 + $0x1110] sm:$0xff]
  %v576 = vld [vmem:[%s1 + $0x1118] sm:$0xff]
  %v577 = vld [vmem:[%s1 + $0x1120] sm:$0xff]
  %v578 = vld [vmem:[%s1 + $0x1128] sm:$0xff]
  %v579 = vld [vmem:[%s1 + $0x1130] sm:$0xff]
  %v580 = vld [vmem:[%s1 + $0x1138] sm:$0xff]
  %v581 = vld [vmem:[%s1 + $0x1140] sm:$0xff]
  %v582 = vld [vmem:[%s1 + $0x1148] sm:$0xff]
  %v583 = vld [vmem:[%s1 + $0x1150] sm:$0xff]
  %v584 = vld [vmem:[%s1 + $0x1158] sm:$0xff]
  %v585 = vld [vmem:[%s1 + $0x1160] sm:$0xff]
  %v586 = vld [vmem:[%s1 + $0x1168] sm:$0xff]
  %v587 = vld [vmem:[%s1 + $0x1170] sm:$0xff]
  %v588 = vld [vmem:[%s1 + $0x1178] sm:$0xff]
  %v589 = vld [vmem:[%s1 + $0x1180] sm:$0xff]
  %v590 = vld [vmem:[%s1 + $0x1188] sm:$0xff]
  %v591 = vld [vmem:[%s1 + $0x1190] sm:$0xff]
  %v592 = vld [vmem:[%s1 + $0x1198] sm:$0xff]
  %v593 = vld [vmem:[%s1 + $0x11a0] sm:$0xff]
  %v594 = vld [vmem:[%s1 + $0x11a8] sm:$0xff]
  %v595 = vld [vmem:[%s1 + $0x11b0] sm:$0xff]
  %v596 = vld [vmem:[%s1 + $0x11b8] sm:$0xff]
  %v597 = vld [vmem:[%s1 + $0x11c0] sm:$0xff]
  %v598 = vld [vmem:[%s1 + $0x11c8] sm:$0xff]
  %v599 = vld [vmem:[%s1 + $0x11d0] sm:$0xff]
  %v600 = vld [vmem:[%s1 + $0x11d8] sm:$0xff]
  %v601 = vld [vmem:[%s1 + $0x11e0] sm:$0xff]
  %v602 = vld [vmem:[%s1 + $0x11e8] sm:$0xff]
  %v603 = vld [vmem:[%s1 + $0x11f0] sm:$0xff]
  %v604 = vld [vmem:[%s1 + $0x11f8] sm:$0xff]
  %v605 = vld [vmem:[%s1 + $0x1200] sm:$0xff]
  %v606 = vld [vmem:[%s1 + $0x1208] sm:$0xff]
  %v607 = vld [vmem:[%s1 + $0x1210] sm:$0xff]
  %v608 = vld [vmem:[%s1 + $0x1218] sm:$0xff]
  %v609 = vld [vmem:[%s1 + $0x1220] sm:$0xff]
  %v610 = vld [vmem:[%s1 + $0x1228] sm:$0xff]
  %v611 = vld [vmem:[%s1 + $0x1230] sm:$0xff]
  %v612 = vld [vmem:[%s1 + $0x1238] sm:$0xff]
  %v613 = vld [vmem:[%s1 + $0x1240] sm:$0xff]
  %v614 = vld [vmem:[%s1 + $0x1248] sm:$0xff]
  %v615 = vld [vmem:[%s1 + $0x1250] sm:$0xff]
  %v616 = vld [vmem:[%s1 + $0x1258] sm:$0xff]
  %v617 = vld [vmem:[%s1 + $0x1260] sm:$0xff]
  %v618 = vld [vmem:[%s1 + $0x1268] sm:$0xff]
  %v619 = vld [vmem:[%s1 + $0x1270] sm:$0xff]
  %v620 = vld [vmem:[%s1 + $0x1278] sm:$0xff]
  %v621 = vld [vmem:[%s1 + $0x1280] sm:$0xff]
  %v622 = vld [vmem:[%s1 + $0x1288] sm:$0xff]
  %v623 = vld [vmem:[%s1 + $0x1290] sm:$0xff]
  %v624 = vld [vmem:[%s1 + $0x1298] sm:$0xff]
  %v625 = vld [vmem:[%s1 + $0x12a0] sm:$0xff]
  %v626 = vld [vmem:[%s1 + $0x12a8] sm:$0xff]
  %v627 = vld [vmem:[%s1 + $0x12b0] sm:$0xff]
  %v628 = vld [vmem:[%s1 + $0x12b8] sm:$0xff]
  %v629 = vld [vmem:[%s1 + $0x12c0] sm:$0xff]
  %v630 = vld [vmem:[%s1 + $0x12c8] sm:$0xff]
  %v631 = vld [vmem:[%s1 + $0x12d0] sm:$0xff]
  %v632 = vld [vmem:[%s1 + $0x12d8] sm:$0xff]
  %v633 = vld [vmem:[%s1 + $0x12e0] sm:$0xff]
  %v634 = vld [vmem:[%s1 + $0x12e8] sm:$0xff]
  %v635 = vld [vmem:[%s1 + $0x12f0] sm:$0xff]
  %v636 = vld [vmem:[%s1 + $0x12f8] sm:$0xff]
  %v637 = vld [vmem:[%s1 + $0x1300] sm:$0xff]
  %v638 = vld [vmem:[%s1 + $0x1308] sm:$0xff]
  %v639 = vld [vmem:[%s1 + $0x1310] sm:$0xff]
  %v640 = vld [vmem:[%s1 + $0x1318] sm:$0xff]
  %v641 = vld [vmem:[%s1 + $0x1320] sm:$0xff]
  %v642 = vld [vmem:[%s1 + $0x1328] sm:$0xff]
  %v643 = vld [vmem:[%s1 + $0x1330] sm:$0xff]
  %v644 = vld [vmem:[%s1 + $0x1338] sm:$0xff]
  %v645 = vld [vmem:[%s1 + $0x1340] sm:$0xff]
  %v646 = vld [vmem:[%s1 + $0x1348] sm:$0xff]
  %v647 = vld [vmem:[%s1 + $0x1350] sm:$0xff]
  %v648 = vld [vmem:[%s1 + $0x1358] sm:$0xff]
  %v649 = vld [vmem:[%s1 + $0x1360] sm:$0xff]
  %v650 = vld [vmem:[%s1 + $0x1368] sm:$0xff]
  %v651 = vld [vmem:[%s1 + $0x1370] sm:$0xff]
  %v652 = vld [vmem:[%s1 + $0x1378] sm:$0xff]
  %v653 = vld [vmem:[%s1 + $0x1380] sm:$0xff]
  %v654 = vld [vmem:[%s1 + $0x1388] sm:$0xff]
  %v655 = vld [vmem:[%s1 + $0x1390] sm:$0xff]
  %v656 = vld [vmem:[%s1 + $0x1398] sm:$0xff]
  %v657 = vld [vmem:[%s1 + $0x13a0] sm:$0xff]
  %v658 = vld [vmem:[%s1 + $0x13a8] sm:$0xff]
  %v659 = vld [vmem:[%s1 + $0x13b0] sm:$0xff]
  %v660 = vld [vmem:[%s1 + $0x13b8] sm:$0xff]
  %v661 = vld [vmem:[%s1 + $0x13c0] sm:$0xff]
  %v662 = vld [vmem:[%s1 + $0x13c8] sm:$0xff]
  %v663 = vld [vmem:[%s1 + $0x13d0] sm:$0xff]
  %v664 = vld [vmem:[%s1 + $0x13d8] sm:$0xff]
  %v665 = vld [vmem:[%s1 + $0x13e0] sm:$0xff]
  %v666 = vld [vmem:[%s1 + $0x13e8] sm:$0xff]
  %v667 = vld [vmem:[%s1 + $0x13f0] sm:$0xff]
  %v668 = vld [vmem:[%s1 + $0x13f8] sm:$0xff]
  %v669 = vld [vmem:[%s1 + $0x1400] sm:$0xff]
  %v670 = vld [vmem:[%s1 + $0x1408] sm:$0xff]
  %v671 = vld [vmem:[%s1 + $0x1410] sm:$0xff]
  %v672 = vld [vmem:[%s1 + $0x1418] sm:$0xff]
  %v673 = vld [vmem:[%s1 + $0x1420] sm:$0xff]
  %v674 = vld [vmem:[%s1 + $0x1428] sm:$0xff]
  %v675 = vld [vmem:[%s1 + $0x1430] sm:$0xff]
  %v676 = vld [vmem:[%s1 + $0x1438] sm:$0xff]
  %v677 = vld [vmem:[%s1 + $0x1440] sm:$0xff]
  %v678 = vld [vmem:[%s1 + $0x1448] sm:$0xff]
  %v679 = vld [vmem:[%s1 + $0x1450] sm:$0xff]
  %v680 = vld [vmem:[%s1 + $0x1458] sm:$0xff]
  %v681 = vld [vmem:[%s1 + $0x1460] sm:$0xff]
  %v682 = vld [vmem:[%s1 + $0x1468] sm:$0xff]
  %v683 = vld [vmem:[%s1 + $0x1470] sm:$0xff]
  %v684 = vld [vmem:[%s1 + $0x1478] sm:$0xff]
  %v685 = vld [vmem:[%s1 + $0x1480] sm:$0xff]
  %v686 = vld [vmem:[%s1 + $0x1488] sm:$0xff]
  %v687 = vld [vmem:[%s1 + $0x1490] sm:$0xff]
  %v688 = vld [vmem:[%s1 + $0x1498] sm:$0xff]
  %v689 = vld [vmem:[%s1 + $0x14a0] sm:$0xff]
  %v690 = vld [vmem:[%s1 + $0x14a8] sm:$0xff]
  %v691 = vld [vmem:[%s1 + $0x14b0] sm:$0xff]
  %v692 = vld [vmem:[%s1 + $0x14b8] sm:$0xff]
  %v693 = vld [vmem:[%s1 + $0x14c0] sm:$0xff]
  %v694 = vld [vmem:[%s1 + $0x14c8] sm:$0xff]
  %v695 = vld [vmem:[%s1 + $0x14d0] sm:$0xff]
  %v696 = vld [vmem:[%s1 + $0x14d8] sm:$0xff]
  %v697 = vld [vmem:[%s1 + $0x14e0] sm:$0xff]
  %v698 = vld [vmem:[%s1 + $0x14e8] sm:$0xff]
  %v699 = vld [vmem:[%s1 + $0x14f0] sm:$0xff]
  %v700 = vld [vmem:[%s1 + $0x14f8] sm:$0xff]
  %v701 = vld [vmem:[%s1 + $0x1500] sm:$0xff]
  %v702 = vld [vmem:[%s1 + $0x1508] sm:$0xff]
  %v703 = vld [vmem:[%s1 + $0x1510] sm:$0xff]
  %v704 = vld [vmem:[%s1 + $0x1518] sm:$0xff]
  %v705 = vld [vmem:[%s1 + $0x1520] sm:$0xff]
  %v706 = vld [vmem:[%s1 + $0x1528] sm:$0xff]
  %v707 = vld [vmem:[%s1 + $0x1530] sm:$0xff]
  %v708 = vld [vmem:[%s1 + $0x1538] sm:$0xff]
  %v709 = vld [vmem:[%s1 + $0x1540] sm:$0xff]
  %v710 = vld [vmem:[%s1 + $0x1548] sm:$0xff]
  %v711 = vld [vmem:[%s1 + $0x1550] sm:$0xff]
  %v712 = vld [vmem:[%s1 + $0x1558] sm:$0xff]
  %v713 = vld [vmem:[%s1 + $0x1560] sm:$0xff]
  %v714 = vld [vmem:[%s1 + $0x1568] sm:$0xff]
  %v715 = vld [vmem:[%s1 + $0x1570] sm:$0xff]
  %v716 = vld [vmem:[%s1 + $0x1578] sm:$0xff]
  %v717 = vld [vmem:[%s1 + $0x1580] sm:$0xff]
  %v718 = vld [vmem:[%s1 + $0x1588] sm:$0xff]
  %v719 = vld [vmem:[%s1 + $0x1590] sm:$0xff]
  %v720 = vld [vmem:[%s1 + $0x1598] sm:$0xff]
  %v721 = vld [vmem:[%s1 + $0x15a0] sm:$0xff]
  %v722 = vld [vmem:[%s1 + $0x15a8] sm:$0xff]
  %v723 = vld [vmem:[%s1 + $0x15b0] sm:$0xff]
  %v724 = vld [vmem:[%s1 + $0x15b8] sm:$0xff]
  %v725 = vld [vmem:[%s1 + $0x15c0] sm:$0xff]
  %v726 = vld [vmem:[%s1 + $0x15c8] sm:$0xff]
  %v727 = vld [vmem:[%s1 + $0x15d0] sm:$0xff]
  %v728 = vld [vmem:[%s1 + $0x15d8] sm:$0xff]
  %v729 = vld [vmem:[%s1 + $0x15e0] sm:$0xff]
  %v730 = vld [vmem:[%s1 + $0x15e8] sm:$0xff]
  %v731 = vld [vmem:[%s1 + $0x15f0] sm:$0xff]
  %v732 = vld [vmem:[%s1 + $0x15f8] sm:$0xff]
  %v733 = vld [vmem:[%s1 + $0x1600] sm:$0xff]
  %v734 = vld [vmem:[%s1 + $0x1608] sm:$0xff]
  %v735 = vld [vmem:[%s1 + $0x1610] sm:$0xff]
  %v736 = vld [vmem:[%s1 + $0x1618] sm:$0xff]
  %v737 = vld [vmem:[%s1 + $0x1620] sm:$0xff]
  %v738 = vld [vmem:[%s1 + $0x1628] sm:$0xff]
  %v739 = vld [vmem:[%s1 + $0x1630] sm:$0xff]
  %v740 = vld [vmem:[%s1 + $0x1638] sm:$0xff]
  %v741 = vld [vmem:[%s1 + $0x1640] sm:$0xff]
  %v742 = vld [vmem:[%s1 + $0x1648] sm:$0xff]
  %v743 = vld [vmem:[%s1 + $0x1650] sm:$0xff]
  %v744 = vld [vmem:[%s1 + $0x1658] sm:$0xff]
  %v745 = vld [vmem:[%s1 + $0x1660] sm:$0xff]
  %v746 = vld [vmem:[%s1 + $0x1668] sm:$0xff]
  %v747 = vld [vmem:[%s1 + $0x1670] sm:$0xff]
  %v748 = vld [vmem:[%s1 + $0x1678] sm:$0xff]
  %v749 = vld [vmem:[%s1 + $0x1680] sm:$0xff]
  %v750 = vld [vmem:[%s1 + $0x1688] sm:$0xff]
  %v751 = vld [vmem:[%s1 + $0x1690] sm:$0xff]
  %v752 = vld [vmem:[%s1 + $0x1698] sm:$0xff]
  %v753 = vld [vmem:[%s1 + $0x16a0] sm:$0xff]
  %v754 = vld [vmem:[%s1 + $0x16a8] sm:$0xff]
  %v755 = vld [vmem:[%s1 + $0x16b0] sm:$0xff]
  %v756 = vld [vmem:[%s1 + $0x16b8] sm:$0xff]
  %v757 = vld [vmem:[%s1 + $0x16c0] sm:$0xff]
  %v758 = vld [vmem:[%s1 + $0x16c8] sm:$0xff]
  %v759 = vld [vmem:[%s1 + $0x16d0] sm:$0xff]
  %v760 = vld [vmem:[%s1 + $0x16d8] sm:$0xff]
  %v761 = vld [vmem:[%s1 + $0x16e0] sm:$0xff]
  %v762 = vld [vmem:[%s1 + $0x16e8] sm:$0xff]
  %v763 = vld [vmem:[%s1 + $0x16f0] sm:$0xff]
  %v764 = vld [vmem:[%s1 + $0x16f8] sm:$0xff]
  %v765 = vld [vmem:[%s1 + $0x1700] sm:$0xff]
  %v766 = vld [vmem:[%s1 + $0x1708] sm:$0xff]
  %v767 = vld [vmem:[%s1 + $0x1710] sm:$0xff]
  %v768 = vld [vmem:[%s1 + $0x1718] sm:$0xff]
  %v769 = vld [vmem:[%s1 + $0x1720] sm:$0xff]
  %v770 = vld [vmem:[%s1 + $0x1728] sm:$0xff]
  %v771 = vld [vmem:[%s1 + $0x1730] sm:$0xff]
  %v772 = vld [vmem:[%s1 + $0x1738] sm:$0xff]
  %v773 = vld [vmem:[%s1 + $0x1740] sm:$0xff]
  %v774 = vld [vmem:[%s1 + $0x1748] sm:$0xff]
  %v775 = vld [vmem:[%s1 + $0x1750] sm:$0xff]
  %v776 = vld [vmem:[%s1 + $0x1758] sm:$0xff]
  %v777 = vld [vmem:[%s1 + $0x1760] sm:$0xff]
  %v778 = vld [vmem:[%s1 + $0x1768] sm:$0xff]
  %v779 = vld [vmem:[%s1 + $0x1770] sm:$0xff]
  %v780 = vld [vmem:[%s1 + $0x1778] sm:$0xff]
  %v781 = vld [vmem:[%s1 + $0x1780] sm:$0xff]
  %v782 = vld [vmem:[%s1 + $0x1788] sm:$0xff]
  %v783 = vld [vmem:[%s1 + $0x1790] sm:$0xff]
  %v784 = vld [vmem:[%s1 + $0x1798] sm:$0xff]
  %v785 = vld [vmem:[%s1 + $0x17a0] sm:$0xff]
  %v786 = vld [vmem:[%s1 + $0x17a8] sm:$0xff]
  %v787 = vld [vmem:[%s1 + $0x17b0] sm:$0xff]
  %v788 = vld [vmem:[%s1 + $0x17b8] sm:$0xff]
  %v789 = vld [vmem:[%s1 + $0x17c0] sm:$0xff]
  %v790 = vld [vmem:[%s1 + $0x17c8] sm:$0xff]
  %v791 = vld [vmem:[%s1 + $0x17d0] sm:$0xff]
  %v792 = vld [vmem:[%s1 + $0x17d8] sm:$0xff]
  %v793 = vld [vmem:[%s1 + $0x17e0] sm:$0xff]
  %v794 = vld [vmem:[%s1 + $0x17e8] sm:$0xff]
  %v795 = vld [vmem:[%s1 + $0x17f0] sm:$0xff]
  %v796 = vld [vmem:[%s1 + $0x17f8] sm:$0xff]
  %v797 = vld [vmem:[%s1 + $0x1800] sm:$0xff]
  %v798 = vld [vmem:[%s1 + $0x1808] sm:$0xff]
  %v799 = vld [vmem:[%s1 + $0x1810] sm:$0xff]
  %v800 = vld [vmem:[%s1 + $0x1818] sm:$0xff]
  %v801 = vld [vmem:[%s1 + $0x1820] sm:$0xff]
  %v802 = vld [vmem:[%s1 + $0x1828] sm:$0xff]
  %v803 = vld [vmem:[%s1 + $0x1830] sm:$0xff]
  %v804 = vld [vmem:[%s1 + $0x1838] sm:$0xff]
  %v805 = vld [vmem:[%s1 + $0x1840] sm:$0xff]
  %v806 = vld [vmem:[%s1 + $0x1848] sm:$0xff]
  %v807 = vld [vmem:[%s1 + $0x1850] sm:$0xff]
  %v808 = vld [vmem:[%s1 + $0x1858] sm:$0xff]
  %v809 = vld [vmem:[%s1 + $0x1860] sm:$0xff]
  %v810 = vld [vmem:[%s1 + $0x1868] sm:$0xff]
  %v811 = vld [vmem:[%s1 + $0x1870] sm:$0xff]
  %v812 = vld [vmem:[%s1 + $0x1878] sm:$0xff]
  %v813 = vld [vmem:[%s2] sm:$0xff]
  %v815 = vlaneseq
  %v816 = vshrl.u32 %v815, 7
  %v817 = vsub.s32 0, %v816
  %v818 = vrot.slane %v813, %v817
  %v819 = vlaneseq
  %v820 = vshrl.u32 %v819, 7
  %v821 = vsub.s32 1, %v820
  %v822 = vrot.slane %v813, %v821
  %v823 = vlaneseq
  %v824 = vshrl.u32 %v823, 7
  %v825 = vsub.s32 2, %v824
  %v826 = vrot.slane %v813, %v825
  %v827 = vlaneseq
  %v828 = vshrl.u32 %v827, 7
  %v829 = vsub.s32 3, %v828
  %v830 = vrot.slane %v813, %v829
  %v831 = vlaneseq
  %v832 = vshrl.u32 %v831, 7
  %v833 = vsub.s32 4, %v832
  %v834 = vrot.slane %v813, %v833
  %v835 = vlaneseq
  %v836 = vshrl.u32 %v835, 7
  %v837 = vsub.s32 5, %v836
  %v838 = vrot.slane %v813, %v837
  %v839 = vlaneseq
  %v840 = vshrl.u32 %v839, 7
  %v841 = vsub.s32 6, %v840
  %v842 = vrot.slane %v813, %v841
  %v843 = vlaneseq
  %v844 = vshrl.u32 %v843, 7
  %v845 = vsub.s32 7, %v844
  %v846 = vrot.slane %v813, %v845
  %vm855 = vcmask 130048
  %v857 = vsel %vm855, %v28, 0
  %859 = vmatprep.subr.mxu0 %v150
  %860 = vmatpush1.msra.mxu0 %v149
  %861 = vmatprep.subr.mxu0 %v142
  %862 = vmatpush1.msra.mxu0 %v141
  %863 = vmatprep.subr.mxu0 %v134
  %864 = vmatpush1.msra.mxu0 %v133
  %865 = vmatprep.subr.mxu0 %v126
  %866 = vmatpush1.msra.mxu0 %v125
  %867 = vmatprep.subr.mxu0 %v118
  %868 = vmatpush1.msra.mxu0 %v117
  %869 = vmatprep.subr.mxu0 %v110
  %870 = vmatpush1.msra.mxu0 %v109
  %871 = vmatprep.subr.mxu0 %v102
  %872 = vmatpush1.msra.mxu0 %v101
  %873 = vmatprep.subr.mxu0 %v94
  %874 = vmatpush1.msra.mxu0 %v93
  %875 = vmatprep.subr.mxu0 %v86
  %876 = vmatpush1.msra.mxu0 %v85
  %877 = vmatprep.subr.mxu0 %v78
  %878 = vmatpush1.msra.mxu0 %v77
  %879 = vmatprep.subr.mxu0 %v70
  %880 = vmatpush1.msra.mxu0 %v69
  %881 = vmatprep.subr.mxu0 %v62
  %882 = vmatpush1.msra.mxu0 %v61
  %883 = vmatprep.subr.mxu0 %v54
  %884 = vmatpush1.msra.mxu0 %v53
  %885 = vmatprep.subr.mxu0 %v46
  %886 = vmatpush1.msra.mxu0 %v45
  %887 = vmatprep.subr.mxu0 %v38
  %888 = vmatpush1.msra.mxu0 %v37
  %889 = vmatprep.subr.mxu0 %v30
  %890 = vmatpush1.msra.mxu0 %v29
  %891 = vmatprep.subr.mxu0 %v278
  %892 = vmatpush2.msra.mxu0 %v277
  %893 = vmatprep.subr.mxu0 %v270
  %894 = vmatpush2.msra.mxu0 %v269
  %895 = vmatprep.subr.mxu0 %v262
  %896 = vmatpush2.msra.mxu0 %v261
  %897 = vmatprep.subr.mxu0 %v254
  %898 = vmatpush2.msra.mxu0 %v253
  %899 = vmatprep.subr.mxu0 %v246
  %900 = vmatpush2.msra.mxu0 %v245
  %901 = vmatprep.subr.mxu0 %v238
  %902 = vmatpush2.msra.mxu0 %v237
  %903 = vmatprep.subr.mxu0 %v230
  %904 = vmatpush2.msra.mxu0 %v229
  %905 = vmatprep.subr.mxu0 %v222
  %906 = vmatpush2.msra.mxu0 %v221
  %907 = vmatprep.subr.mxu0 %v214
  %908 = vmatpush2.msra.mxu0 %v213
  %909 = vmatprep.subr.mxu0 %v206
  %910 = vmatpush2.msra.mxu0 %v205
  %911 = vmatprep.subr.mxu0 %v198
  %912 = vmatpush2.msra.mxu0 %v197
  %913 = vmatprep.subr.mxu0 %v190
  %914 = vmatpush2.msra.mxu0 %v189
  %915 = vmatprep.subr.mxu0 %v182
  %916 = vmatpush2.msra.mxu0 %v181
  %917 = vmatprep.subr.mxu0 %v174
  %918 = vmatpush2.msra.mxu0 %v173
  %919 = vmatprep.subr.mxu0 %v166
  %920 = vmatpush2.msra.mxu0 %v165
  %921 = vmatprep.subr.mxu0 %v158
  %922 = vmatpush2.msra.mxu0 %v157
  %923 = vmatprep.mubr.f32.mxu0 %v23
  %924 = vmatmul.mubr.f32.gmra.mxu0 %v22
  %v925 = vpop.f32.mrf.mxu0
  %v926 = vadd.f32 %v818, %v925
  %v927 = vpop.f32.mrf.mxu0
  %v928 = vadd.f32 %v822, %v927
  %929 = vdwg.mxu0
  %930 = vmatprep.subr.mxu0 %v406
  %931 = vmatpush1.msra.mxu0 %v405
  %932 = vmatprep.subr.mxu0 %v398
  %933 = vmatpush1.msra.mxu0 %v397
  %934 = vmatprep.subr.mxu0 %v390
  %935 = vmatpush1.msra.mxu0 %v389
  %936 = vmatprep.subr.mxu0 %v382
  %937 = vmatpush1.msra.mxu0 %v381
  %938 = vmatprep.subr.mxu0 %v374
  %939 = vmatpush1.msra.mxu0 %v373
  %940 = vmatprep.subr.mxu0 %v366
  %941 = vmatpush1.msra.mxu0 %v365
  %942 = vmatprep.subr.mxu0 %v358
  %943 = vmatpush1.msra.mxu0 %v357
  %944 = vmatprep.subr.mxu0 %v350
  %945 = vmatpush1.msra.mxu0 %v349
  %946 = vmatprep.subr.mxu0 %v342
  %947 = vmatpush1.msra.mxu0 %v341
  %948 = vmatprep.subr.mxu0 %v334
  %949 = vmatpush1.msra.mxu0 %v333
  %950 = vmatprep.subr.mxu0 %v326
  %951 = vmatpush1.msra.mxu0 %v325
  %952 = vmatprep.subr.mxu0 %v318
  %953 = vmatpush1.msra.mxu0 %v317
  %954 = vmatprep.subr.mxu0 %v310
  %955 = vmatpush1.msra.mxu0 %v309
  %956 = vmatprep.subr.mxu0 %v302
  %957 = vmatpush1.msra.mxu0 %v301
  %958 = vmatprep.subr.mxu0 %v294
  %959 = vmatpush1.msra.mxu0 %v293
  %960 = vmatprep.subr.mxu0 %v286
  %961 = vmatpush1.msra.mxu0 %v285
  %962 = vmatprep.subr.mxu0 %v534
  %963 = vmatpush2.msra.mxu0 %v533
  %964 = vmatprep.subr.mxu0 %v526
  %965 = vmatpush2.msra.mxu0 %v525
  %966 = vmatprep.subr.mxu0 %v518
  %967 = vmatpush2.msra.mxu0 %v517
  %968 = vmatprep.subr.mxu0 %v510
  %969 = vmatpush2.msra.mxu0 %v509
  %970 = vmatprep.subr.mxu0 %v502
  %971 = vmatpush2.msra.mxu0 %v501
  %972 = vmatprep.subr.mxu0 %v494
  %973 = vmatpush2.msra.mxu0 %v493
  %974 = vmatprep.subr.mxu0 %v486
  %975 = vmatpush2.msra.mxu0 %v485
  %976 = vmatprep.subr.mxu0 %v478
  %977 = vmatpush2.msra.mxu0 %v477
  %978 = vmatprep.subr.mxu0 %v470
  %979 = vmatpush2.msra.mxu0 %v469
  %980 = vmatprep.subr.mxu0 %v462
  %981 = vmatpush2.msra.mxu0 %v461
  %982 = vmatprep.subr.mxu0 %v454
  %983 = vmatpush2.msra.mxu0 %v453
  %984 = vmatprep.subr.mxu0 %v446
  %985 = vmatpush2.msra.mxu0 %v445
  %986 = vmatprep.subr.mxu0 %v438
  %987 = vmatpush2.msra.mxu0 %v437
  %988 = vmatprep.subr.mxu0 %v430
  %989 = vmatpush2.msra.mxu0 %v429
  %990 = vmatprep.subr.mxu0 %v422
  %991 = vmatpush2.msra.mxu0 %v421
  %992 = vmatprep.subr.mxu0 %v414
  %993 = vmatpush2.msra.mxu0 %v413
  %994 = vmatprep.mubr.f32.mxu0 %v25
  %995 = vmatmul.mubr.f32.gmra.mxu0 %v24
  %v996 = vpop.f32.mrf.mxu0
  %v997 = vadd.f32 %v926, %v996
  %v998 = vpop.f32.mrf.mxu0
  %v999 = vadd.f32 %v928, %v998
  %1000 = vdwg.mxu0
  %1001 = vmatprep.subr.mxu0 %v662
  %1002 = vmatpush1.msra.mxu0 %v661
  %1003 = vmatprep.subr.mxu0 %v654
  %1004 = vmatpush1.msra.mxu0 %v653
  %1005 = vmatprep.subr.mxu0 %v646
  %1006 = vmatpush1.msra.mxu0 %v645
  %1007 = vmatprep.subr.mxu0 %v638
  %1008 = vmatpush1.msra.mxu0 %v637
  %1009 = vmatprep.subr.mxu0 %v630
  %1010 = vmatpush1.msra.mxu0 %v629
  %1011 = vmatprep.subr.mxu0 %v622
  %1012 = vmatpush1.msra.mxu0 %v621
  %1013 = vmatprep.subr.mxu0 %v614
  %1014 = vmatpush1.msra.mxu0 %v613
  %1015 = vmatprep.subr.mxu0 %v606
  %1016 = vmatpush1.msra.mxu0 %v605
  %1017 = vmatprep.subr.mxu0 %v598
  %1018 = vmatpush1.msra.mxu0 %v597
  %1019 = vmatprep.subr.mxu0 %v590
  %1020 = vmatpush1.msra.mxu0 %v589
  %1021 = vmatprep.subr.mxu0 %v582
  %1022 = vmatpush1.msra.mxu0 %v581
  %1023 = vmatprep.subr.mxu0 %v574
  %1024 = vmatpush1.msra.mxu0 %v573
  %1025 = vmatprep.subr.mxu0 %v566
  %1026 = vmatpush1.msra.mxu0 %v565
  %1027 = vmatprep.subr.mxu0 %v558
  %1028 = vmatpush1.msra.mxu0 %v557
  %1029 = vmatprep.subr.mxu0 %v550
  %1030 = vmatpush1.msra.mxu0 %v549
  %1031 = vmatprep.subr.mxu0 %v542
  %1032 = vmatpush1.msra.mxu0 %v541
  %1033 = vmatprep.subr.mxu0 %v790
  %1034 = vmatpush2.msra.mxu0 %v789
  %1035 = vmatprep.subr.mxu0 %v782
  %1036 = vmatpush2.msra.mxu0 %v781
  %1037 = vmatprep.subr.mxu0 %v774
  %1038 = vmatpush2.msra.mxu0 %v773
  %1039 = vmatprep.subr.mxu0 %v766
  %1040 = vmatpush2.msra.mxu0 %v765
  %1041 = vmatprep.subr.mxu0 %v758
  %1042 = vmatpush2.msra.mxu0 %v757
  %1043 = vmatprep.subr.mxu0 %v750
  %1044 = vmatpush2.msra.mxu0 %v749
  %1045 = vmatprep.subr.mxu0 %v742
  %1046 = vmatpush2.msra.mxu0 %v741
  %1047 = vmatprep.subr.mxu0 %v734
  %1048 = vmatpush2.msra.mxu0 %v733
  %1049 = vmatprep.subr.mxu0 %v726
  %1050 = vmatpush2.msra.mxu0 %v725
  %1051 = vmatprep.subr.mxu0 %v718
  %1052 = vmatpush2.msra.mxu0 %v717
  %1053 = vmatprep.subr.mxu0 %v710
  %1054 = vmatpush2.msra.mxu0 %v709
  %1055 = vmatprep.subr.mxu0 %v702
  %1056 = vmatpush2.msra.mxu0 %v701
  %1057 = vmatprep.subr.mxu0 %v694
  %1058 = vmatpush2.msra.mxu0 %v693
  %1059 = vmatprep.subr.mxu0 %v686
  %1060 = vmatpush2.msra.mxu0 %v685
  %1061 = vmatprep.subr.mxu0 %v678
  %1062 = vmatpush2.msra.mxu0 %v677
  %1063 = vmatprep.subr.mxu0 %v670
  %1064 = vmatpush2.msra.mxu0 %v669
  %1065 = vmatprep.mubr.f32.mxu0 %v27
  %1066 = vmatmul.mubr.f32.gmra.mxu0 %v26
  %v1067 = vpop.f32.mrf.mxu0
  %v1068 = vadd.f32 %v997, %v1067
  %v1069 = vpop.f32.mrf.mxu0
  %v1070 = vadd.f32 %v999, %v1069
  %1071 = vdwg.mxu0
  %1072 = vmatprep.subr.mxu0 0.0
  %1073 = vmatpush1.msra.mxu0 0.0
  %1074 = vmatprep.subr.mxu0 0.0
  %1075 = vmatpush1.msra.mxu0 0.0
  %1076 = vmatprep.subr.mxu0 0.0
  %1077 = vmatpush1.msra.mxu0 0.0
  %1078 = vmatprep.subr.mxu0 0.0
  %1079 = vmatpush1.msra.mxu0 0.0
  %1080 = vmatprep.subr.mxu0 0.0
  %1081 = vmatpush1.msra.mxu0 0.0
  %1082 = vmatprep.subr.mxu0 0.0
  %1083 = vmatpush1.msra.mxu0 0.0
  %1084 = vmatprep.subr.mxu0 0.0
  %1085 = vmatpush1.msra.mxu0 0.0
  %1086 = vmatprep.subr.mxu0 0.0
  %1087 = vmatpush1.msra.mxu0 0.0
  %1088 = vmatprep.subr.mxu0 0.0
  %1089 = vmatpush1.msra.mxu0 0.0
  %1090 = vmatprep.subr.mxu0 0.0
  %1091 = vmatpush1.msra.mxu0 0.0
  %1092 = vmatprep.subr.mxu0 0.0
  %1093 = vmatpush1.msra.mxu0 0.0
  %1094 = vmatprep.subr.mxu0 0.0
  %1095 = vmatpush1.msra.mxu0 0.0
  %1096 = vmatprep.subr.mxu0 0.0
  %1097 = vmatpush1.msra.mxu0 0.0
  %1098 = vmatprep.subr.mxu0 0.0
  %1099 = vmatpush1.msra.mxu0 0.0
  %1100 = vmatprep.subr.mxu0 %v806
  %1101 = vmatpush1.msra.mxu0 %v805
  %1102 = vmatprep.subr.mxu0 %v798
  %1103 = vmatpush1.msra.mxu0 %v797
  %1104 = vmatprep.subr.mxu0 0.0
  %1105 = vmatpush2.msra.mxu0 0.0
  %1106 = vmatprep.subr.mxu0 0.0
  %1107 = vmatpush2.msra.mxu0 0.0
  %1108 = vmatprep.subr.mxu0 0.0
  %1109 = vmatpush2.msra.mxu0 0.0
  %1110 = vmatprep.subr.mxu0 0.0
  %1111 = vmatpush2.msra.mxu0 0.0
  %1112 = vmatprep.subr.mxu0 0.0
  %1113 = vmatpush2.msra.mxu0 0.0
  %1114 = vmatprep.subr.mxu0 0.0
  %1115 = vmatpush2.msra.mxu0 0.0
  %1116 = vmatprep.subr.mxu0 0.0
  %1117 = vmatpush2.msra.mxu0 0.0
  %1118 = vmatprep.subr.mxu0 0.0
  %1119 = vmatpush2.msra.mxu0 0.0
  %1120 = vmatprep.subr.mxu0 0.0
  %1121 = vmatpush2.msra.mxu0 0.0
  %1122 = vmatprep.subr.mxu0 0.0
  %1123 = vmatpush2.msra.mxu0 0.0
  %1124 = vmatprep.subr.mxu0 0.0
  %1125 = vmatpush2.msra.mxu0 0.0
  %1126 = vmatprep.subr.mxu0 0.0
  %1127 = vmatpush2.msra.mxu0 0.0
  %1128 = vmatprep.subr.mxu0 0.0
  %1129 = vmatpush2.msra.mxu0 0.0
  %1130 = vmatprep.subr.mxu0 0.0
  %1131 = vmatpush2.msra.mxu0 0.0
  %1132 = vmatprep.subr.mxu0 0.0
  %1133 = vmatpush2.msra.mxu0 0.0
  %1134 = vmatprep.subr.mxu0 0.0
  %1135 = vmatpush2.msra.mxu0 0.0
  %1136 = vmatprep.mubr.f32.mxu0 0.0
  %1137 = vmatmul.mubr.f32.gmra.mxu0 %v857
  %v1138 = vpop.f32.mrf.mxu0
  %v1139 = vadd.f32 %v1068, %v1138
  %v1140 = vpop.f32.mrf.mxu0
  %v1141 = vadd.f32 %v1070, %v1140
  %1142 = vdwg.mxu0
  %1143 = vmatprep.subr.mxu0 %v152
  %1144 = vmatpush1.msra.mxu0 %v151
  %1145 = vmatprep.subr.mxu0 %v144
  %1146 = vmatpush1.msra.mxu0 %v143
  %1147 = vmatprep.subr.mxu0 %v136
  %1148 = vmatpush1.msra.mxu0 %v135
  %1149 = vmatprep.subr.mxu0 %v128
  %1150 = vmatpush1.msra.mxu0 %v127
  %1151 = vmatprep.subr.mxu0 %v120
  %1152 = vmatpush1.msra.mxu0 %v119
  %1153 = vmatprep.subr.mxu0 %v112
  %1154 = vmatpush1.msra.mxu0 %v111
  %1155 = vmatprep.subr.mxu0 %v104
  %1156 = vmatpush1.msra.mxu0 %v103
  %1157 = vmatprep.subr.mxu0 %v96
  %1158 = vmatpush1.msra.mxu0 %v95
  %1159 = vmatprep.subr.mxu0 %v88
  %1160 = vmatpush1.msra.mxu0 %v87
  %1161 = vmatprep.subr.mxu0 %v80
  %1162 = vmatpush1.msra.mxu0 %v79
  %1163 = vmatprep.subr.mxu0 %v72
  %1164 = vmatpush1.msra.mxu0 %v71
  %1165 = vmatprep.subr.mxu0 %v64
  %1166 = vmatpush1.msra.mxu0 %v63
  %1167 = vmatprep.subr.mxu0 %v56
  %1168 = vmatpush1.msra.mxu0 %v55
  %1169 = vmatprep.subr.mxu0 %v48
  %1170 = vmatpush1.msra.mxu0 %v47
  %1171 = vmatprep.subr.mxu0 %v40
  %1172 = vmatpush1.msra.mxu0 %v39
  %1173 = vmatprep.subr.mxu0 %v32
  %1174 = vmatpush1.msra.mxu0 %v31
  %1175 = vmatprep.subr.mxu0 %v280
  %1176 = vmatpush2.msra.mxu0 %v279
  %1177 = vmatprep.subr.mxu0 %v272
  %1178 = vmatpush2.msra.mxu0 %v271
  %1179 = vmatprep.subr.mxu0 %v264
  %1180 = vmatpush2.msra.mxu0 %v263
  %1181 = vmatprep.subr.mxu0 %v256
  %1182 = vmatpush2.msra.mxu0 %v255
  %1183 = vmatprep.subr.mxu0 %v248
  %1184 = vmatpush2.msra.mxu0 %v247
  %1185 = vmatprep.subr.mxu0 %v240
  %1186 = vmatpush2.msra.mxu0 %v239
  %1187 = vmatprep.subr.mxu0 %v232
  %1188 = vmatpush2.msra.mxu0 %v231
  %1189 = vmatprep.subr.mxu0 %v224
  %1190 = vmatpush2.msra.mxu0 %v223
  %1191 = vmatprep.subr.mxu0 %v216
  %1192 = vmatpush2.msra.mxu0 %v215
  %1193 = vmatprep.subr.mxu0 %v208
  %1194 = vmatpush2.msra.mxu0 %v207
  %1195 = vmatprep.subr.mxu0 %v200
  %1196 = vmatpush2.msra.mxu0 %v199
  %1197 = vmatprep.subr.mxu0 %v192
  %1198 = vmatpush2.msra.mxu0 %v191
  %1199 = vmatprep.subr.mxu0 %v184
  %1200 = vmatpush2.msra.mxu0 %v183
  %1201 = vmatprep.subr.mxu0 %v176
  %1202 = vmatpush2.msra.mxu0 %v175
  %1203 = vmatprep.subr.mxu0 %v168
  %1204 = vmatpush2.msra.mxu0 %v167
  %1205 = vmatprep.subr.mxu0 %v160
  %1206 = vmatpush2.msra.mxu0 %v159
  %1207 = vmatprep.mubr.f32.mxu0 %v23
  %1208 = vmatmul.mubr.f32.gmra.mxu0 %v22
  %v1209 = vpop.f32.mrf.mxu0
  %v1210 = vadd.f32 %v826, %v1209
  %v1211 = vpop.f32.mrf.mxu0
  %v1212 = vadd.f32 %v830, %v1211
  %1213 = vdwg.mxu0
  %1214 = vmatprep.subr.mxu0 %v408
  %1215 = vmatpush1.msra.mxu0 %v407
  %1216 = vmatprep.subr.mxu0 %v400
  %1217 = vmatpush1.msra.mxu0 %v399
  %1218 = vmatprep.subr.mxu0 %v392
  %1219 = vmatpush1.msra.mxu0 %v391
  %1220 = vmatprep.subr.mxu0 %v384
  %1221 = vmatpush1.msra.mxu0 %v383
  %1222 = vmatprep.subr.mxu0 %v376
  %1223 = vmatpush1.msra.mxu0 %v375
  %1224 = vmatprep.subr.mxu0 %v368
  %1225 = vmatpush1.msra.mxu0 %v367
  %1226 = vmatprep.subr.mxu0 %v360
  %1227 = vmatpush1.msra.mxu0 %v359
  %1228 = vmatprep.subr.mxu0 %v352
  %1229 = vmatpush1.msra.mxu0 %v351
  %1230 = vmatprep.subr.mxu0 %v344
  %1231 = vmatpush1.msra.mxu0 %v343
  %1232 = vmatprep.subr.mxu0 %v336
  %1233 = vmatpush1.msra.mxu0 %v335
  %1234 = vmatprep.subr.mxu0 %v328
  %1235 = vmatpush1.msra.mxu0 %v327
  %1236 = vmatprep.subr.mxu0 %v320
  %1237 = vmatpush1.msra.mxu0 %v319
  %1238 = vmatprep.subr.mxu0 %v312
  %1239 = vmatpush1.msra.mxu0 %v311
  %1240 = vmatprep.subr.mxu0 %v304
  %1241 = vmatpush1.msra.mxu0 %v303
  %1242 = vmatprep.subr.mxu0 %v296
  %1243 = vmatpush1.msra.mxu0 %v295
  %1244 = vmatprep.subr.mxu0 %v288
  %1245 = vmatpush1.msra.mxu0 %v287
  %1246 = vmatprep.subr.mxu0 %v536
  %1247 = vmatpush2.msra.mxu0 %v535
  %1248 = vmatprep.subr.mxu0 %v528
  %1249 = vmatpush2.msra.mxu0 %v527
  %1250 = vmatprep.subr.mxu0 %v520
  %1251 = vmatpush2.msra.mxu0 %v519
  %1252 = vmatprep.subr.mxu0 %v512
  %1253 = vmatpush2.msra.mxu0 %v511
  %1254 = vmatprep.subr.mxu0 %v504
  %1255 = vmatpush2.msra.mxu0 %v503
  %1256 = vmatprep.subr.mxu0 %v496
  %1257 = vmatpush2.msra.mxu0 %v495
  %1258 = vmatprep.subr.mxu0 %v488
  %1259 = vmatpush2.msra.mxu0 %v487
  %1260 = vmatprep.subr.mxu0 %v480
  %1261 = vmatpush2.msra.mxu0 %v479
  %1262 = vmatprep.subr.mxu0 %v472
  %1263 = vmatpush2.msra.mxu0 %v471
  %1264 = vmatprep.subr.mxu0 %v464
  %1265 = vmatpush2.msra.mxu0 %v463
  %1266 = vmatprep.subr.mxu0 %v456
  %1267 = vmatpush2.msra.mxu0 %v455
  %1268 = vmatprep.subr.mxu0 %v448
  %1269 = vmatpush2.msra.mxu0 %v447
  %1270 = vmatprep.subr.mxu0 %v440
  %1271 = vmatpush2.msra.mxu0 %v439
  %1272 = vmatprep.subr.mxu0 %v432
  %1273 = vmatpush2.msra.mxu0 %v431
  %1274 = vmatprep.subr.mxu0 %v424
  %1275 = vmatpush2.msra.mxu0 %v423
  %1276 = vmatprep.subr.mxu0 %v416
  %1277 = vmatpush2.msra.mxu0 %v415
  %1278 = vmatprep.mubr.f32.mxu0 %v25
  %1279 = vmatmul.mubr.f32.gmra.mxu0 %v24
  %v1280 = vpop.f32.mrf.mxu0
  %v1281 = vadd.f32 %v1210, %v1280
  %v1282 = vpop.f32.mrf.mxu0
  %v1283 = vadd.f32 %v1212, %v1282
  %1284 = vdwg.mxu0
  %1285 = vmatprep.subr.mxu0 %v664
  %1286 = vmatpush1.msra.mxu0 %v663
  %1287 = vmatprep.subr.mxu0 %v656
  %1288 = vmatpush1.msra.mxu0 %v655
  %1289 = vmatprep.subr.mxu0 %v648
  %1290 = vmatpush1.msra.mxu0 %v647
  %1291 = vmatprep.subr.mxu0 %v640
  %1292 = vmatpush1.msra.mxu0 %v639
  %1293 = vmatprep.subr.mxu0 %v632
  %1294 = vmatpush1.msra.mxu0 %v631
  %1295 = vmatprep.subr.mxu0 %v624
  %1296 = vmatpush1.msra.mxu0 %v623
  %1297 = vmatprep.subr.mxu0 %v616
  %1298 = vmatpush1.msra.mxu0 %v615
  %1299 = vmatprep.subr.mxu0 %v608
  %1300 = vmatpush1.msra.mxu0 %v607
  %1301 = vmatprep.subr.mxu0 %v600
  %1302 = vmatpush1.msra.mxu0 %v599
  %1303 = vmatprep.subr.mxu0 %v592
  %1304 = vmatpush1.msra.mxu0 %v591
  %1305 = vmatprep.subr.mxu0 %v584
  %1306 = vmatpush1.msra.mxu0 %v583
  %1307 = vmatprep.subr.mxu0 %v576
  %1308 = vmatpush1.msra.mxu0 %v575
  %1309 = vmatprep.subr.mxu0 %v568
  %1310 = vmatpush1.msra.mxu0 %v567
  %1311 = vmatprep.subr.mxu0 %v560
  %1312 = vmatpush1.msra.mxu0 %v559
  %1313 = vmatprep.subr.mxu0 %v552
  %1314 = vmatpush1.msra.mxu0 %v551
  %1315 = vmatprep.subr.mxu0 %v544
  %1316 = vmatpush1.msra.mxu0 %v543
  %1317 = vmatprep.subr.mxu0 %v792
  %1318 = vmatpush2.msra.mxu0 %v791
  %1319 = vmatprep.subr.mxu0 %v784
  %1320 = vmatpush2.msra.mxu0 %v783
  %1321 = vmatprep.subr.mxu0 %v776
  %1322 = vmatpush2.msra.mxu0 %v775
  %1323 = vmatprep.subr.mxu0 %v768
  %1324 = vmatpush2.msra.mxu0 %v767
  %1325 = vmatprep.subr.mxu0 %v760
  %1326 = vmatpush2.msra.mxu0 %v759
  %1327 = vmatprep.subr.mxu0 %v752
  %1328 = vmatpush2.msra.mxu0 %v751
  %1329 = vmatprep.subr.mxu0 %v744
  %1330 = vmatpush2.msra.mxu0 %v743
  %1331 = vmatprep.subr.mxu0 %v736
  %1332 = vmatpush2.msra.mxu0 %v735
  %1333 = vmatprep.subr.mxu0 %v728
  %1334 = vmatpush2.msra.mxu0 %v727
  %1335 = vmatprep.subr.mxu0 %v720
  %1336 = vmatpush2.msra.mxu0 %v719
  %1337 = vmatprep.subr.mxu0 %v712
  %1338 = vmatpush2.msra.mxu0 %v711
  %1339 = vmatprep.subr.mxu0 %v704
  %1340 = vmatpush2.msra.mxu0 %v703
  %1341 = vmatprep.subr.mxu0 %v696
  %1342 = vmatpush2.msra.mxu0 %v695
  %1343 = vmatprep.subr.mxu0 %v688
  %1344 = vmatpush2.msra.mxu0 %v687
  %1345 = vmatprep.subr.mxu0 %v680
  %1346 = vmatpush2.msra.mxu0 %v679
  %1347 = vmatprep.subr.mxu0 %v672
  %1348 = vmatpush2.msra.mxu0 %v671
  %1349 = vmatprep.mubr.f32.mxu0 %v27
  %1350 = vmatmul.mubr.f32.gmra.mxu0 %v26
  %v1351 = vpop.f32.mrf.mxu0
  %v1352 = vadd.f32 %v1281, %v1351
  %v1353 = vpop.f32.mrf.mxu0
  %v1354 = vadd.f32 %v1283, %v1353
  %1355 = vdwg.mxu0
  %1356 = vmatprep.subr.mxu0 0.0
  %1357 = vmatpush1.msra.mxu0 0.0
  %1358 = vmatprep.subr.mxu0 0.0
  %1359 = vmatpush1.msra.mxu0 0.0
  %1360 = vmatprep.subr.mxu0 0.0
  %1361 = vmatpush1.msra.mxu0 0.0
  %1362 = vmatprep.subr.mxu0 0.0
  %1363 = vmatpush1.msra.mxu0 0.0
  %1364 = vmatprep.subr.mxu0 0.0
  %1365 = vmatpush1.msra.mxu0 0.0
  %1366 = vmatprep.subr.mxu0 0.0
  %1367 = vmatpush1.msra.mxu0 0.0
  %1368 = vmatprep.subr.mxu0 0.0
  %1369 = vmatpush1.msra.mxu0 0.0
  %1370 = vmatprep.subr.mxu0 0.0
  %1371 = vmatpush1.msra.mxu0 0.0
  %1372 = vmatprep.subr.mxu0 0.0
  %1373 = vmatpush1.msra.mxu0 0.0
  %1374 = vmatprep.subr.mxu0 0.0
  %1375 = vmatpush1.msra.mxu0 0.0
  %1376 = vmatprep.subr.mxu0 0.0
  %1377 = vmatpush1.msra.mxu0 0.0
  %1378 = vmatprep.subr.mxu0 0.0
  %1379 = vmatpush1.msra.mxu0 0.0
  %1380 = vmatprep.subr.mxu0 0.0
  %1381 = vmatpush1.msra.mxu0 0.0
  %1382 = vmatprep.subr.mxu0 0.0
  %1383 = vmatpush1.msra.mxu0 0.0
  %1384 = vmatprep.subr.mxu0 %v808
  %1385 = vmatpush1.msra.mxu0 %v807
  %1386 = vmatprep.subr.mxu0 %v800
  %1387 = vmatpush1.msra.mxu0 %v799
  %1388 = vmatprep.subr.mxu0 0.0
  %1389 = vmatpush2.msra.mxu0 0.0
  %1390 = vmatprep.subr.mxu0 0.0
  %1391 = vmatpush2.msra.mxu0 0.0
  %1392 = vmatprep.subr.mxu0 0.0
  %1393 = vmatpush2.msra.mxu0 0.0
  %1394 = vmatprep.subr.mxu0 0.0
  %1395 = vmatpush2.msra.mxu0 0.0
  %1396 = vmatprep.subr.mxu0 0.0
  %1397 = vmatpush2.msra.mxu0 0.0
  %1398 = vmatprep.subr.mxu0 0.0
  %1399 = vmatpush2.msra.mxu0 0.0
  %1400 = vmatprep.subr.mxu0 0.0
  %1401 = vmatpush2.msra.mxu0 0.0
  %1402 = vmatprep.subr.mxu0 0.0
  %1403 = vmatpush2.msra.mxu0 0.0
  %1404 = vmatprep.subr.mxu0 0.0
  %1405 = vmatpush2.msra.mxu0 0.0
  %1406 = vmatprep.subr.mxu0 0.0
  %1407 = vmatpush2.msra.mxu0 0.0
  %1408 = vmatprep.subr.mxu0 0.0
  %1409 = vmatpush2.msra.mxu0 0.0
  %1410 = vmatprep.subr.mxu0 0.0
  %1411 = vmatpush2.msra.mxu0 0.0
  %1412 = vmatprep.subr.mxu0 0.0
  %1413 = vmatpush2.msra.mxu0 0.0
  %1414 = vmatprep.subr.mxu0 0.0
  %1415 = vmatpush2.msra.mxu0 0.0
  %1416 = vmatprep.subr.mxu0 0.0
  %1417 = vmatpush2.msra.mxu0 0.0
  %1418 = vmatprep.subr.mxu0 0.0
  %1419 = vmatpush2.msra.mxu0 0.0
  %1420 = vmatprep.mubr.f32.mxu0 0.0
  %1421 = vmatmul.mubr.f32.gmra.mxu0 %v857
  %v1422 = vpop.f32.mrf.mxu0
  %v1423 = vadd.f32 %v1352, %v1422
  %v1424 = vpop.f32.mrf.mxu0
  %v1425 = vadd.f32 %v1354, %v1424
  %1426 = vdwg.mxu0
  %1427 = vmatprep.subr.mxu0 %v154
  %1428 = vmatpush1.msra.mxu0 %v153
  %1429 = vmatprep.subr.mxu0 %v146
  %1430 = vmatpush1.msra.mxu0 %v145
  %1431 = vmatprep.subr.mxu0 %v138
  %1432 = vmatpush1.msra.mxu0 %v137
  %1433 = vmatprep.subr.mxu0 %v130
  %1434 = vmatpush1.msra.mxu0 %v129
  %1435 = vmatprep.subr.mxu0 %v122
  %1436 = vmatpush1.msra.mxu0 %v121
  %1437 = vmatprep.subr.mxu0 %v114
  %1438 = vmatpush1.msra.mxu0 %v113
  %1439 = vmatprep.subr.mxu0 %v106
  %1440 = vmatpush1.msra.mxu0 %v105
  %1441 = vmatprep.subr.mxu0 %v98
  %1442 = vmatpush1.msra.mxu0 %v97
  %1443 = vmatprep.subr.mxu0 %v90
  %1444 = vmatpush1.msra.mxu0 %v89
  %1445 = vmatprep.subr.mxu0 %v82
  %1446 = vmatpush1.msra.mxu0 %v81
  %1447 = vmatprep.subr.mxu0 %v74
  %1448 = vmatpush1.msra.mxu0 %v73
  %1449 = vmatprep.subr.mxu0 %v66
  %1450 = vmatpush1.msra.mxu0 %v65
  %1451 = vmatprep.subr.mxu0 %v58
  %1452 = vmatpush1.msra.mxu0 %v57
  %1453 = vmatprep.subr.mxu0 %v50
  %1454 = vmatpush1.msra.mxu0 %v49
  %1455 = vmatprep.subr.mxu0 %v42
  %1456 = vmatpush1.msra.mxu0 %v41
  %1457 = vmatprep.subr.mxu0 %v34
  %1458 = vmatpush1.msra.mxu0 %v33
  %1459 = vmatprep.subr.mxu0 %v282
  %1460 = vmatpush2.msra.mxu0 %v281
  %1461 = vmatprep.subr.mxu0 %v274
  %1462 = vmatpush2.msra.mxu0 %v273
  %1463 = vmatprep.subr.mxu0 %v266
  %1464 = vmatpush2.msra.mxu0 %v265
  %1465 = vmatprep.subr.mxu0 %v258
  %1466 = vmatpush2.msra.mxu0 %v257
  %1467 = vmatprep.subr.mxu0 %v250
  %1468 = vmatpush2.msra.mxu0 %v249
  %1469 = vmatprep.subr.mxu0 %v242
  %1470 = vmatpush2.msra.mxu0 %v241
  %1471 = vmatprep.subr.mxu0 %v234
  %1472 = vmatpush2.msra.mxu0 %v233
  %1473 = vmatprep.subr.mxu0 %v226
  %1474 = vmatpush2.msra.mxu0 %v225
  %1475 = vmatprep.subr.mxu0 %v218
  %1476 = vmatpush2.msra.mxu0 %v217
  %1477 = vmatprep.subr.mxu0 %v210
  %1478 = vmatpush2.msra.mxu0 %v209
  %1479 = vmatprep.subr.mxu0 %v202
  %1480 = vmatpush2.msra.mxu0 %v201
  %1481 = vmatprep.subr.mxu0 %v194
  %1482 = vmatpush2.msra.mxu0 %v193
  %1483 = vmatprep.subr.mxu0 %v186
  %1484 = vmatpush2.msra.mxu0 %v185
  %1485 = vmatprep.subr.mxu0 %v178
  %1486 = vmatpush2.msra.mxu0 %v177
  %1487 = vmatprep.subr.mxu0 %v170
  %1488 = vmatpush2.msra.mxu0 %v169
  %1489 = vmatprep.subr.mxu0 %v162
  %1490 = vmatpush2.msra.mxu0 %v161
  %1491 = vmatprep.mubr.f32.mxu0 %v23
  %1492 = vmatmul.mubr.f32.gmra.mxu0 %v22
  %v1493 = vpop.f32.mrf.mxu0
  %v1494 = vadd.f32 %v834, %v1493
  %v1495 = vpop.f32.mrf.mxu0
  %v1496 = vadd.f32 %v838, %v1495
  %1497 = vdwg.mxu0
  %1498 = vmatprep.subr.mxu0 %v410
  %1499 = vmatpush1.msra.mxu0 %v409
  %1500 = vmatprep.subr.mxu0 %v402
  %1501 = vmatpush1.msra.mxu0 %v401
  %1502 = vmatprep.subr.mxu0 %v394
  %1503 = vmatpush1.msra.mxu0 %v393
  %1504 = vmatprep.subr.mxu0 %v386
  %1505 = vmatpush1.msra.mxu0 %v385
  %1506 = vmatprep.subr.mxu0 %v378
  %1507 = vmatpush1.msra.mxu0 %v377
  %1508 = vmatprep.subr.mxu0 %v370
  %1509 = vmatpush1.msra.mxu0 %v369
  %1510 = vmatprep.subr.mxu0 %v362
  %1511 = vmatpush1.msra.mxu0 %v361
  %1512 = vmatprep.subr.mxu0 %v354
  %1513 = vmatpush1.msra.mxu0 %v353
  %1514 = vmatprep.subr.mxu0 %v346
  %1515 = vmatpush1.msra.mxu0 %v345
  %1516 = vmatprep.subr.mxu0 %v338
  %1517 = vmatpush1.msra.mxu0 %v337
  %1518 = vmatprep.subr.mxu0 %v330
  %1519 = vmatpush1.msra.mxu0 %v329
  %1520 = vmatprep.subr.mxu0 %v322
  %1521 = vmatpush1.msra.mxu0 %v321
  %1522 = vmatprep.subr.mxu0 %v314
  %1523 = vmatpush1.msra.mxu0 %v313
  %1524 = vmatprep.subr.mxu0 %v306
  %1525 = vmatpush1.msra.mxu0 %v305
  %1526 = vmatprep.subr.mxu0 %v298
  %1527 = vmatpush1.msra.mxu0 %v297
  %1528 = vmatprep.subr.mxu0 %v290
  %1529 = vmatpush1.msra.mxu0 %v289
  %1530 = vmatprep.subr.mxu0 %v538
  %1531 = vmatpush2.msra.mxu0 %v537
  %1532 = vmatprep.subr.mxu0 %v530
  %1533 = vmatpush2.msra.mxu0 %v529
  %1534 = vmatprep.subr.mxu0 %v522
  %1535 = vmatpush2.msra.mxu0 %v521
  %1536 = vmatprep.subr.mxu0 %v514
  %1537 = vmatpush2.msra.mxu0 %v513
  %1538 = vmatprep.subr.mxu0 %v506
  %1539 = vmatpush2.msra.mxu0 %v505
  %1540 = vmatprep.subr.mxu0 %v498
  %1541 = vmatpush2.msra.mxu0 %v497
  %1542 = vmatprep.subr.mxu0 %v490
  %1543 = vmatpush2.msra.mxu0 %v489
  %1544 = vmatprep.subr.mxu0 %v482
  %1545 = vmatpush2.msra.mxu0 %v481
  %1546 = vmatprep.subr.mxu0 %v474
  %1547 = vmatpush2.msra.mxu0 %v473
  %1548 = vmatprep.subr.mxu0 %v466
  %1549 = vmatpush2.msra.mxu0 %v465
  %1550 = vmatprep.subr.mxu0 %v458
  %1551 = vmatpush2.msra.mxu0 %v457
  %1552 = vmatprep.subr.mxu0 %v450
  %1553 = vmatpush2.msra.mxu0 %v449
  %1554 = vmatprep.subr.mxu0 %v442
  %1555 = vmatpush2.msra.mxu0 %v441
  %1556 = vmatprep.subr.mxu0 %v434
  %1557 = vmatpush2.msra.mxu0 %v433
  %1558 = vmatprep.subr.mxu0 %v426
  %1559 = vmatpush2.msra.mxu0 %v425
  %1560 = vmatprep.subr.mxu0 %v418
  %1561 = vmatpush2.msra.mxu0 %v417
  %1562 = vmatprep.mubr.f32.mxu0 %v25
  %1563 = vmatmul.mubr.f32.gmra.mxu0 %v24
  %v1564 = vpop.f32.mrf.mxu0
  %v1565 = vadd.f32 %v1494, %v1564
  %v1566 = vpop.f32.mrf.mxu0
  %v1567 = vadd.f32 %v1496, %v1566
  %1568 = vdwg.mxu0
  %1569 = vmatprep.subr.mxu0 %v666
  %1570 = vmatpush1.msra.mxu0 %v665
  %1571 = vmatprep.subr.mxu0 %v658
  %1572 = vmatpush1.msra.mxu0 %v657
  %1573 = vmatprep.subr.mxu0 %v650
  %1574 = vmatpush1.msra.mxu0 %v649
  %1575 = vmatprep.subr.mxu0 %v642
  %1576 = vmatpush1.msra.mxu0 %v641
  %1577 = vmatprep.subr.mxu0 %v634
  %1578 = vmatpush1.msra.mxu0 %v633
  %1579 = vmatprep.subr.mxu0 %v626
  %1580 = vmatpush1.msra.mxu0 %v625
  %1581 = vmatprep.subr.mxu0 %v618
  %1582 = vmatpush1.msra.mxu0 %v617
  %1583 = vmatprep.subr.mxu0 %v610
  %1584 = vmatpush1.msra.mxu0 %v609
  %1585 = vmatprep.subr.mxu0 %v602
  %1586 = vmatpush1.msra.mxu0 %v601
  %1587 = vmatprep.subr.mxu0 %v594
  %1588 = vmatpush1.msra.mxu0 %v593
  %1589 = vmatprep.subr.mxu0 %v586
  %1590 = vmatpush1.msra.mxu0 %v585
  %1591 = vmatprep.subr.mxu0 %v578
  %1592 = vmatpush1.msra.mxu0 %v577
  %1593 = vmatprep.subr.mxu0 %v570
  %1594 = vmatpush1.msra.mxu0 %v569
  %1595 = vmatprep.subr.mxu0 %v562
  %1596 = vmatpush1.msra.mxu0 %v561
  %1597 = vmatprep.subr.mxu0 %v554
  %1598 = vmatpush1.msra.mxu0 %v553
  %1599 = vmatprep.subr.mxu0 %v546
  %1600 = vmatpush1.msra.mxu0 %v545
  %1601 = vmatprep.subr.mxu0 %v794
  %1602 = vmatpush2.msra.mxu0 %v793
  %1603 = vmatprep.subr.mxu0 %v786
  %1604 = vmatpush2.msra.mxu0 %v785
  %1605 = vmatprep.subr.mxu0 %v778
  %1606 = vmatpush2.msra.mxu0 %v777
  %1607 = vmatprep.subr.mxu0 %v770
  %1608 = vmatpush2.msra.mxu0 %v769
  %1609 = vmatprep.subr.mxu0 %v762
  %1610 = vmatpush2.msra.mxu0 %v761
  %1611 = vmatprep.subr.mxu0 %v754
  %1612 = vmatpush2.msra.mxu0 %v753
  %1613 = vmatprep.subr.mxu0 %v746
  %1614 = vmatpush2.msra.mxu0 %v745
  %1615 = vmatprep.subr.mxu0 %v738
  %1616 = vmatpush2.msra.mxu0 %v737
  %1617 = vmatprep.subr.mxu0 %v730
  %1618 = vmatpush2.msra.mxu0 %v729
  %1619 = vmatprep.subr.mxu0 %v722
  %1620 = vmatpush2.msra.mxu0 %v721
  %1621 = vmatprep.subr.mxu0 %v714
  %1622 = vmatpush2.msra.mxu0 %v713
  %1623 = vmatprep.subr.mxu0 %v706
  %1624 = vmatpush2.msra.mxu0 %v705
  %1625 = vmatprep.subr.mxu0 %v698
  %1626 = vmatpush2.msra.mxu0 %v697
  %1627 = vmatprep.subr.mxu0 %v690
  %1628 = vmatpush2.msra.mxu0 %v689
  %1629 = vmatprep.subr.mxu0 %v682
  %1630 = vmatpush2.msra.mxu0 %v681
  %1631 = vmatprep.subr.mxu0 %v674
  %1632 = vmatpush2.msra.mxu0 %v673
  %1633 = vmatprep.mubr.f32.mxu0 %v27
  %1634 = vmatmul.mubr.f32.gmra.mxu0 %v26
  %v1635 = vpop.f32.mrf.mxu0
  %v1636 = vadd.f32 %v1565, %v1635
  %v1637 = vpop.f32.mrf.mxu0
  %v1638 = vadd.f32 %v1567, %v1637
  %1639 = vdwg.mxu0
  %1640 = vmatprep.subr.mxu0 0.0
  %1641 = vmatpush1.msra.mxu0 0.0
  %1642 = vmatprep.subr.mxu0 0.0
  %1643 = vmatpush1.msra.mxu0 0.0
  %1644 = vmatprep.subr.mxu0 0.0
  %1645 = vmatpush1.msra.mxu0 0.0
  %1646 = vmatprep.subr.mxu0 0.0
  %1647 = vmatpush1.msra.mxu0 0.0
  %1648 = vmatprep.subr.mxu0 0.0
  %1649 = vmatpush1.msra.mxu0 0.0
  %1650 = vmatprep.subr.mxu0 0.0
  %1651 = vmatpush1.msra.mxu0 0.0
  %1652 = vmatprep.subr.mxu0 0.0
  %1653 = vmatpush1.msra.mxu0 0.0
  %1654 = vmatprep.subr.mxu0 0.0
  %1655 = vmatpush1.msra.mxu0 0.0
  %1656 = vmatprep.subr.mxu0 0.0
  %1657 = vmatpush1.msra.mxu0 0.0
  %1658 = vmatprep.subr.mxu0 0.0
  %1659 = vmatpush1.msra.mxu0 0.0
  %1660 = vmatprep.subr.mxu0 0.0
  %1661 = vmatpush1.msra.mxu0 0.0
  %1662 = vmatprep.subr.mxu0 0.0
  %1663 = vmatpush1.msra.mxu0 0.0
  %1664 = vmatprep.subr.mxu0 0.0
  %1665 = vmatpush1.msra.mxu0 0.0
  %1666 = vmatprep.subr.mxu0 0.0
  %1667 = vmatpush1.msra.mxu0 0.0
  %1668 = vmatprep.subr.mxu0 %v810
  %1669 = vmatpush1.msra.mxu0 %v809
  %1670 = vmatprep.subr.mxu0 %v802
  %1671 = vmatpush1.msra.mxu0 %v801
  %1672 = vmatprep.subr.mxu0 0.0
  %1673 = vmatpush2.msra.mxu0 0.0
  %1674 = vmatprep.subr.mxu0 0.0
  %1675 = vmatpush2.msra.mxu0 0.0
  %1676 = vmatprep.subr.mxu0 0.0
  %1677 = vmatpush2.msra.mxu0 0.0
  %1678 = vmatprep.subr.mxu0 0.0
  %1679 = vmatpush2.msra.mxu0 0.0
  %1680 = vmatprep.subr.mxu0 0.0
  %1681 = vmatpush2.msra.mxu0 0.0
  %1682 = vmatprep.subr.mxu0 0.0
  %1683 = vmatpush2.msra.mxu0 0.0
  %1684 = vmatprep.subr.mxu0 0.0
  %1685 = vmatpush2.msra.mxu0 0.0
  %1686 = vmatprep.subr.mxu0 0.0
  %1687 = vmatpush2.msra.mxu0 0.0
  %1688 = vmatprep.subr.mxu0 0.0
  %1689 = vmatpush2.msra.mxu0 0.0
  %1690 = vmatprep.subr.mxu0 0.0
  %1691 = vmatpush2.msra.mxu0 0.0
  %1692 = vmatprep.subr.mxu0 0.0
  %1693 = vmatpush2.msra.mxu0 0.0
  %1694 = vmatprep.subr.mxu0 0.0
  %1695 = vmatpush2.msra.mxu0 0.0
  %1696 = vmatprep.subr.mxu0 0.0
  %1697 = vmatpush2.msra.mxu0 0.0
  %1698 = vmatprep.subr.mxu0 0.0
  %1699 = vmatpush2.msra.mxu0 0.0
  %1700 = vmatprep.subr.mxu0 0.0
  %1701 = vmatpush2.msra.mxu0 0.0
  %1702 = vmatprep.subr.mxu0 0.0
  %1703 = vmatpush2.msra.mxu0 0.0
  %1704 = vmatprep.mubr.f32.mxu0 0.0
  %1705 = vmatmul.mubr.f32.gmra.mxu0 %v857
  %v1706 = vpop.f32.mrf.mxu0
  %v1707 = vadd.f32 %v1636, %v1706
  %v1708 = vpop.f32.mrf.mxu0
  %v1709 = vadd.f32 %v1638, %v1708
  %1710 = vdwg.mxu0
  %1711 = vmatprep.subr.mxu0 %v156
  %1712 = vmatpush1.msra.mxu0 %v155
  %1713 = vmatprep.subr.mxu0 %v148
  %1714 = vmatpush1.msra.mxu0 %v147
  %1715 = vmatprep.subr.mxu0 %v140
  %1716 = vmatpush1.msra.mxu0 %v139
  %1717 = vmatprep.subr.mxu0 %v132
  %1718 = vmatpush1.msra.mxu0 %v131
  %1719 = vmatprep.subr.mxu0 %v124
  %1720 = vmatpush1.msra.mxu0 %v123
  %1721 = vmatprep.subr.mxu0 %v116
  %1722 = vmatpush1.msra.mxu0 %v115
  %1723 = vmatprep.subr.mxu0 %v108
  %1724 = vmatpush1.msra.mxu0 %v107
  %1725 = vmatprep.subr.mxu0 %v100
  %1726 = vmatpush1.msra.mxu0 %v99
  %1727 = vmatprep.subr.mxu0 %v92
  %1728 = vmatpush1.msra.mxu0 %v91
  %1729 = vmatprep.subr.mxu0 %v84
  %1730 = vmatpush1.msra.mxu0 %v83
  %1731 = vmatprep.subr.mxu0 %v76
  %1732 = vmatpush1.msra.mxu0 %v75
  %1733 = vmatprep.subr.mxu0 %v68
  %1734 = vmatpush1.msra.mxu0 %v67
  %1735 = vmatprep.subr.mxu0 %v60
  %1736 = vmatpush1.msra.mxu0 %v59
  %1737 = vmatprep.subr.mxu0 %v52
  %1738 = vmatpush1.msra.mxu0 %v51
  %1739 = vmatprep.subr.mxu0 %v44
  %1740 = vmatpush1.msra.mxu0 %v43
  %1741 = vmatprep.subr.mxu0 %v36
  %1742 = vmatpush1.msra.mxu0 %v35
  %1743 = vmatprep.subr.mxu0 %v284
  %1744 = vmatpush2.msra.mxu0 %v283
  %1745 = vmatprep.subr.mxu0 %v276
  %1746 = vmatpush2.msra.mxu0 %v275
  %1747 = vmatprep.subr.mxu0 %v268
  %1748 = vmatpush2.msra.mxu0 %v267
  %1749 = vmatprep.subr.mxu0 %v260
  %1750 = vmatpush2.msra.mxu0 %v259
  %1751 = vmatprep.subr.mxu0 %v252
  %1752 = vmatpush2.msra.mxu0 %v251
  %1753 = vmatprep.subr.mxu0 %v244
  %1754 = vmatpush2.msra.mxu0 %v243
  %1755 = vmatprep.subr.mxu0 %v236
  %1756 = vmatpush2.msra.mxu0 %v235
  %1757 = vmatprep.subr.mxu0 %v228
  %1758 = vmatpush2.msra.mxu0 %v227
  %1759 = vmatprep.subr.mxu0 %v220
  %1760 = vmatpush2.msra.mxu0 %v219
  %1761 = vmatprep.subr.mxu0 %v212
  %1762 = vmatpush2.msra.mxu0 %v211
  %1763 = vmatprep.subr.mxu0 %v204
  %1764 = vmatpush2.msra.mxu0 %v203
  %1765 = vmatprep.subr.mxu0 %v196
  %1766 = vmatpush2.msra.mxu0 %v195
  %1767 = vmatprep.subr.mxu0 %v188
  %1768 = vmatpush2.msra.mxu0 %v187
  %1769 = vmatprep.subr.mxu0 %v180
  %1770 = vmatpush2.msra.mxu0 %v179
  %1771 = vmatprep.subr.mxu0 %v172
  %1772 = vmatpush2.msra.mxu0 %v171
  %1773 = vmatprep.subr.mxu0 %v164
  %1774 = vmatpush2.msra.mxu0 %v163
  %1775 = vmatprep.mubr.f32.mxu0 %v23
  %1776 = vmatmul.mubr.f32.gmra.mxu0 %v22
  %v1777 = vpop.f32.mrf.mxu0
  %v1778 = vadd.f32 %v842, %v1777
  %v1779 = vpop.f32.mrf.mxu0
  %v1780 = vadd.f32 %v846, %v1779
  %1781 = vdwg.mxu0
  %1782 = vmatprep.subr.mxu0 %v412
  %1783 = vmatpush1.msra.mxu0 %v411
  %1784 = vmatprep.subr.mxu0 %v404
  %1785 = vmatpush1.msra.mxu0 %v403
  %1786 = vmatprep.subr.mxu0 %v396
  %1787 = vmatpush1.msra.mxu0 %v395
  %1788 = vmatprep.subr.mxu0 %v388
  %1789 = vmatpush1.msra.mxu0 %v387
  %1790 = vmatprep.subr.mxu0 %v380
  %1791 = vmatpush1.msra.mxu0 %v379
  %1792 = vmatprep.subr.mxu0 %v372
  %1793 = vmatpush1.msra.mxu0 %v371
  %1794 = vmatprep.subr.mxu0 %v364
  %1795 = vmatpush1.msra.mxu0 %v363
  %1796 = vmatprep.subr.mxu0 %v356
  %1797 = vmatpush1.msra.mxu0 %v355
  %1798 = vmatprep.subr.mxu0 %v348
  %1799 = vmatpush1.msra.mxu0 %v347
  %1800 = vmatprep.subr.mxu0 %v340
  %1801 = vmatpush1.msra.mxu0 %v339
  %1802 = vmatprep.subr.mxu0 %v332
  %1803 = vmatpush1.msra.mxu0 %v331
  %1804 = vmatprep.subr.mxu0 %v324
  %1805 = vmatpush1.msra.mxu0 %v323
  %1806 = vmatprep.subr.mxu0 %v316
  %1807 = vmatpush1.msra.mxu0 %v315
  %1808 = vmatprep.subr.mxu0 %v308
  %1809 = vmatpush1.msra.mxu0 %v307
  %1810 = vmatprep.subr.mxu0 %v300
  %1811 = vmatpush1.msra.mxu0 %v299
  %1812 = vmatprep.subr.mxu0 %v292
  %1813 = vmatpush1.msra.mxu0 %v291
  %1814 = vmatprep.subr.mxu0 %v540
  %1815 = vmatpush2.msra.mxu0 %v539
  %1816 = vmatprep.subr.mxu0 %v532
  %1817 = vmatpush2.msra.mxu0 %v531
  %1818 = vmatprep.subr.mxu0 %v524
  %1819 = vmatpush2.msra.mxu0 %v523
  %1820 = vmatprep.subr.mxu0 %v516
  %1821 = vmatpush2.msra.mxu0 %v515
  %1822 = vmatprep.subr.mxu0 %v508
  %1823 = vmatpush2.msra.mxu0 %v507
  %1824 = vmatprep.subr.mxu0 %v500
  %1825 = vmatpush2.msra.mxu0 %v499
  %1826 = vmatprep.subr.mxu0 %v492
  %1827 = vmatpush2.msra.mxu0 %v491
  %1828 = vmatprep.subr.mxu0 %v484
  %1829 = vmatpush2.msra.mxu0 %v483
  %1830 = vmatprep.subr.mxu0 %v476
  %1831 = vmatpush2.msra.mxu0 %v475
  %1832 = vmatprep.subr.mxu0 %v468
  %1833 = vmatpush2.msra.mxu0 %v467
  %1834 = vmatprep.subr.mxu0 %v460
  %1835 = vmatpush2.msra.mxu0 %v459
  %1836 = vmatprep.subr.mxu0 %v452
  %1837 = vmatpush2.msra.mxu0 %v451
  %1838 = vmatprep.subr.mxu0 %v444
  %1839 = vmatpush2.msra.mxu0 %v443
  %1840 = vmatprep.subr.mxu0 %v436
  %1841 = vmatpush2.msra.mxu0 %v435
  %1842 = vmatprep.subr.mxu0 %v428
  %1843 = vmatpush2.msra.mxu0 %v427
  %1844 = vmatprep.subr.mxu0 %v420
  %1845 = vmatpush2.msra.mxu0 %v419
  %1846 = vmatprep.mubr.f32.mxu0 %v25
  %1847 = vmatmul.mubr.f32.gmra.mxu0 %v24
  %v1848 = vpop.f32.mrf.mxu0
  %v1849 = vadd.f32 %v1778, %v1848
  %v1850 = vpop.f32.mrf.mxu0
  %v1851 = vadd.f32 %v1780, %v1850
  %1852 = vdwg.mxu0
  %1853 = vmatprep.subr.mxu0 %v668
  %1854 = vmatpush1.msra.mxu0 %v667
  %1855 = vmatprep.subr.mxu0 %v660
  %1856 = vmatpush1.msra.mxu0 %v659
  %1857 = vmatprep.subr.mxu0 %v652
  %1858 = vmatpush1.msra.mxu0 %v651
  %1859 = vmatprep.subr.mxu0 %v644
  %1860 = vmatpush1.msra.mxu0 %v643
  %1861 = vmatprep.subr.mxu0 %v636
  %1862 = vmatpush1.msra.mxu0 %v635
  %1863 = vmatprep.subr.mxu0 %v628
  %1864 = vmatpush1.msra.mxu0 %v627
  %1865 = vmatprep.subr.mxu0 %v620
  %1866 = vmatpush1.msra.mxu0 %v619
  %1867 = vmatprep.subr.mxu0 %v612
  %1868 = vmatpush1.msra.mxu0 %v611
  %1869 = vmatprep.subr.mxu0 %v604
  %1870 = vmatpush1.msra.mxu0 %v603
  %1871 = vmatprep.subr.mxu0 %v596
  %1872 = vmatpush1.msra.mxu0 %v595
  %1873 = vmatprep.subr.mxu0 %v588
  %1874 = vmatpush1.msra.mxu0 %v587
  %1875 = vmatprep.subr.mxu0 %v580
  %1876 = vmatpush1.msra.mxu0 %v579
  %1877 = vmatprep.subr.mxu0 %v572
  %1878 = vmatpush1.msra.mxu0 %v571
  %1879 = vmatprep.subr.mxu0 %v564
  %1880 = vmatpush1.msra.mxu0 %v563
  %1881 = vmatprep.subr.mxu0 %v556
  %1882 = vmatpush1.msra.mxu0 %v555
  %1883 = vmatprep.subr.mxu0 %v548
  %1884 = vmatpush1.msra.mxu0 %v547
  %1885 = vmatprep.subr.mxu0 %v796
  %1886 = vmatpush2.msra.mxu0 %v795
  %1887 = vmatprep.subr.mxu0 %v788
  %1888 = vmatpush2.msra.mxu0 %v787
  %1889 = vmatprep.subr.mxu0 %v780
  %1890 = vmatpush2.msra.mxu0 %v779
  %1891 = vmatprep.subr.mxu0 %v772
  %1892 = vmatpush2.msra.mxu0 %v771
  %1893 = vmatprep.subr.mxu0 %v764
  %1894 = vmatpush2.msra.mxu0 %v763
  %1895 = vmatprep.subr.mxu0 %v756
  %1896 = vmatpush2.msra.mxu0 %v755
  %1897 = vmatprep.subr.mxu0 %v748
  %1898 = vmatpush2.msra.mxu0 %v747
  %1899 = vmatprep.subr.mxu0 %v740
  %1900 = vmatpush2.msra.mxu0 %v739
  %1901 = vmatprep.subr.mxu0 %v732
  %1902 = vmatpush2.msra.mxu0 %v731
  %1903 = vmatprep.subr.mxu0 %v724
  %1904 = vmatpush2.msra.mxu0 %v723
  %1905 = vmatprep.subr.mxu0 %v716
  %1906 = vmatpush2.msra.mxu0 %v715
  %1907 = vmatprep.subr.mxu0 %v708
  %1908 = vmatpush2.msra.mxu0 %v707
  %1909 = vmatprep.subr.mxu0 %v700
  %1910 = vmatpush2.msra.mxu0 %v699
  %1911 = vmatprep.subr.mxu0 %v692
  %1912 = vmatpush2.msra.mxu0 %v691
  %1913 = vmatprep.subr.mxu0 %v684
  %1914 = vmatpush2.msra.mxu0 %v683
  %1915 = vmatprep.subr.mxu0 %v676
  %1916 = vmatpush2.msra.mxu0 %v675
  %1917 = vmatprep.mubr.f32.mxu0 %v27
  %1918 = vmatmul.mubr.f32.gmra.mxu0 %v26
  %v1919 = vpop.f32.mrf.mxu0
  %v1920 = vadd.f32 %v1849, %v1919
  %v1921 = vpop.f32.mrf.mxu0
  %v1922 = vadd.f32 %v1851, %v1921
  %1923 = vdwg.mxu0
  %1924 = vmatprep.subr.mxu0 0.0
  %1925 = vmatpush1.msra.mxu0 0.0
  %1926 = vmatprep.subr.mxu0 0.0
  %1927 = vmatpush1.msra.mxu0 0.0
  %1928 = vmatprep.subr.mxu0 0.0
  %1929 = vmatpush1.msra.mxu0 0.0
  %1930 = vmatprep.subr.mxu0 0.0
  %1931 = vmatpush1.msra.mxu0 0.0
  %1932 = vmatprep.subr.mxu0 0.0
  %1933 = vmatpush1.msra.mxu0 0.0
  %1934 = vmatprep.subr.mxu0 0.0
  %1935 = vmatpush1.msra.mxu0 0.0
  %1936 = vmatprep.subr.mxu0 0.0
  %1937 = vmatpush1.msra.mxu0 0.0
  %1938 = vmatprep.subr.mxu0 0.0
  %1939 = vmatpush1.msra.mxu0 0.0
  %1940 = vmatprep.subr.mxu0 0.0
  %1941 = vmatpush1.msra.mxu0 0.0
  %1942 = vmatprep.subr.mxu0 0.0
  %1943 = vmatpush1.msra.mxu0 0.0
  %1944 = vmatprep.subr.mxu0 0.0
  %1945 = vmatpush1.msra.mxu0 0.0
  %1946 = vmatprep.subr.mxu0 0.0
  %1947 = vmatpush1.msra.mxu0 0.0
  %1948 = vmatprep.subr.mxu0 0.0
  %1949 = vmatpush1.msra.mxu0 0.0
  %1950 = vmatprep.subr.mxu0 0.0
  %1951 = vmatpush1.msra.mxu0 0.0
  %1952 = vmatprep.subr.mxu0 %v812
  %1953 = vmatpush1.msra.mxu0 %v811
  %1954 = vmatprep.subr.mxu0 %v804
  %1955 = vmatpush1.msra.mxu0 %v803
  %1956 = vmatprep.subr.mxu0 0.0
  %1957 = vmatpush2.msra.mxu0 0.0
  %1958 = vmatprep.subr.mxu0 0.0
  %1959 = vmatpush2.msra.mxu0 0.0
  %1960 = vmatprep.subr.mxu0 0.0
  %1961 = vmatpush2.msra.mxu0 0.0
  %1962 = vmatprep.subr.mxu0 0.0
  %1963 = vmatpush2.msra.mxu0 0.0
  %1964 = vmatprep.subr.mxu0 0.0
  %1965 = vmatpush2.msra.mxu0 0.0
  %1966 = vmatprep.subr.mxu0 0.0
  %1967 = vmatpush2.msra.mxu0 0.0
  %1968 = vmatprep.subr.mxu0 0.0
  %1969 = vmatpush2.msra.mxu0 0.0
  %1970 = vmatprep.subr.mxu0 0.0
  %1971 = vmatpush2.msra.mxu0 0.0
  %1972 = vmatprep.subr.mxu0 0.0
  %1973 = vmatpush2.msra.mxu0 0.0
  %1974 = vmatprep.subr.mxu0 0.0
  %1975 = vmatpush2.msra.mxu0 0.0
  %1976 = vmatprep.subr.mxu0 0.0
  %1977 = vmatpush2.msra.mxu0 0.0
  %1978 = vmatprep.subr.mxu0 0.0
  %1979 = vmatpush2.msra.mxu0 0.0
  %1980 = vmatprep.subr.mxu0 0.0
  %1981 = vmatpush2.msra.mxu0 0.0
  %1982 = vmatprep.subr.mxu0 0.0
  %1983 = vmatpush2.msra.mxu0 0.0
  %1984 = vmatprep.subr.mxu0 0.0
  %1985 = vmatpush2.msra.mxu0 0.0
  %1986 = vmatprep.subr.mxu0 0.0
  %1987 = vmatpush2.msra.mxu0 0.0
  %1988 = vmatprep.mubr.f32.mxu0 0.0
  %1989 = vmatmul.mubr.f32.gmra.mxu0 %v857
  %v1990 = vpop.f32.mrf.mxu0
  %v1991 = vadd.f32 %v1920, %v1990
  %v1992 = vpop.f32.mrf.mxu0
  %v1993 = vadd.f32 %v1922, %v1992
  %1994 = vdwg.mxu0
  %v1995 = vld [vmem:[%s3] sm:$0xff]
  %v1996 = vld [vmem:[%s3 + $0x8] sm:$0xff]
  %v1997 = vld [vmem:[%s3 + $0x10] sm:$0xff]
  %v1998 = vld [vmem:[%s3 + $0x18] sm:$0xff]
  %v1999 = vld [vmem:[%s3 + $0x20] sm:$0xff]
  %v2000 = vld [vmem:[%s3 + $0x28] sm:$0xff]
  %v2001 = vld [vmem:[%s3 + $0x30] sm:$0xff]
  %v2002 = vld [vmem:[%s3 + $0x38] sm:$0xff]
  %v2003 = vld [vmem:[%s3 + $0x40] sm:$0xff]
  %v2004 = vld [vmem:[%s3 + $0x48] sm:$0xff]
  %v2005 = vld [vmem:[%s3 + $0x50] sm:$0xff]
  %v2006 = vld [vmem:[%s3 + $0x58] sm:$0xff]
  %v2007 = vld [vmem:[%s3 + $0x60] sm:$0xff]
  %v2008 = vld [vmem:[%s3 + $0x68] sm:$0xff]
  %v2009 = vld [vmem:[%s3 + $0x70] sm:$0xff]
  %v2010 = vld [vmem:[%s3 + $0x78] sm:$0xff]
  %v2011 = vld [vmem:[%s3 + $0x80] sm:$0xff]
  %v2012 = vld [vmem:[%s3 + $0x88] sm:$0xff]
  %v2013 = vld [vmem:[%s3 + $0x90] sm:$0xff]
  %v2014 = vld [vmem:[%s3 + $0x98] sm:$0xff]
  %v2015 = vld [vmem:[%s3 + $0xa0] sm:$0xff]
  %v2016 = vld [vmem:[%s3 + $0xa8] sm:$0xff]
  %v2017 = vld [vmem:[%s3 + $0xb0] sm:$0xff]
  %v2018 = vld [vmem:[%s3 + $0xb8] sm:$0xff]
  %v2019 = vld [vmem:[%s3 + $0xc0] sm:$0xff]
  %v2020 = vld [vmem:[%s3 + $0xc8] sm:$0xff]
  %v2021 = vld [vmem:[%s3 + $0xd0] sm:$0xff]
  %v2022 = vld [vmem:[%s3 + $0xd8] sm:$0xff]
  %v2023 = vld [vmem:[%s3 + $0xe0] sm:$0xff]
  %v2024 = vld [vmem:[%s3 + $0xe8] sm:$0xff]
  %v2025 = vld [vmem:[%s3 + $0xf0] sm:$0xff]
  %v2026 = vld [vmem:[%s3 + $0xf8] sm:$0xff]
  %v2027 = vld [vmem:[%s3 + $0x100] sm:$0xff]
  %v2028 = vld [vmem:[%s3 + $0x108] sm:$0xff]
  %v2029 = vld [vmem:[%s3 + $0x110] sm:$0xff]
  %v2030 = vld [vmem:[%s3 + $0x118] sm:$0xff]
  %v2031 = vld [vmem:[%s3 + $0x120] sm:$0xff]
  %v2032 = vld [vmem:[%s3 + $0x128] sm:$0xff]
  %v2033 = vld [vmem:[%s3 + $0x130] sm:$0xff]
  %v2034 = vld [vmem:[%s3 + $0x138] sm:$0xff]
  %v2035 = vld [vmem:[%s3 + $0x140] sm:$0xff]
  %v2036 = vld [vmem:[%s3 + $0x148] sm:$0xff]
  %v2037 = vld [vmem:[%s3 + $0x150] sm:$0xff]
  %v2038 = vld [vmem:[%s3 + $0x158] sm:$0xff]
  %v2039 = vld [vmem:[%s3 + $0x160] sm:$0xff]
  %v2040 = vld [vmem:[%s3 + $0x168] sm:$0xff]
  %v2041 = vld [vmem:[%s3 + $0x170] sm:$0xff]
  %v2042 = vld [vmem:[%s3 + $0x178] sm:$0xff]
  %v2043 = vld [vmem:[%s3 + $0x180] sm:$0xff]
  %v2044 = vld [vmem:[%s3 + $0x188] sm:$0xff]
  %v2045 = vld [vmem:[%s3 + $0x190] sm:$0xff]
  %v2046 = vld [vmem:[%s3 + $0x198] sm:$0xff]
  %v2047 = vld [vmem:[%s3 + $0x1a0] sm:$0xff]
  %v2048 = vld [vmem:[%s3 + $0x1a8] sm:$0xff]
  %v2049 = vld [vmem:[%s3 + $0x1b0] sm:$0xff]
  %v2050 = vld [vmem:[%s3 + $0x1b8] sm:$0xff]
  %v2051 = vld [vmem:[%s3 + $0x1c0] sm:$0xff]
  %v2052 = vld [vmem:[%s3 + $0x1c8] sm:$0xff]
  %v2053 = vld [vmem:[%s3 + $0x1d0] sm:$0xff]
  %v2054 = vld [vmem:[%s3 + $0x1d8] sm:$0xff]
  %v2055 = vld [vmem:[%s3 + $0x1e0] sm:$0xff]
  %v2056 = vld [vmem:[%s3 + $0x1e8] sm:$0xff]
  %v2057 = vld [vmem:[%s3 + $0x1f0] sm:$0xff]
  %v2058 = vld [vmem:[%s3 + $0x1f8] sm:$0xff]
  %v2059 = vld [vmem:[%s3 + $0x200] sm:$0xff]
  %v2060 = vld [vmem:[%s3 + $0x208] sm:$0xff]
  %v2061 = vld [vmem:[%s3 + $0x210] sm:$0xff]
  %v2062 = vld [vmem:[%s3 + $0x218] sm:$0xff]
  %v2063 = vld [vmem:[%s3 + $0x220] sm:$0xff]
  %v2064 = vld [vmem:[%s3 + $0x228] sm:$0xff]
  %v2065 = vld [vmem:[%s3 + $0x230] sm:$0xff]
  %v2066 = vld [vmem:[%s3 + $0x238] sm:$0xff]
  %v2067 = vld [vmem:[%s3 + $0x240] sm:$0xff]
  %v2068 = vld [vmem:[%s3 + $0x248] sm:$0xff]
  %v2069 = vld [vmem:[%s3 + $0x250] sm:$0xff]
  %v2070 = vld [vmem:[%s3 + $0x258] sm:$0xff]
  %v2071 = vld [vmem:[%s3 + $0x260] sm:$0xff]
  %v2072 = vld [vmem:[%s3 + $0x268] sm:$0xff]
  %v2073 = vld [vmem:[%s3 + $0x270] sm:$0xff]
  %v2074 = vld [vmem:[%s3 + $0x278] sm:$0xff]
  %v2075 = vld [vmem:[%s3 + $0x280] sm:$0xff]
  %v2076 = vld [vmem:[%s3 + $0x288] sm:$0xff]
  %v2077 = vld [vmem:[%s3 + $0x290] sm:$0xff]
  %v2078 = vld [vmem:[%s3 + $0x298] sm:$0xff]
  %v2079 = vld [vmem:[%s3 + $0x2a0] sm:$0xff]
  %v2080 = vld [vmem:[%s3 + $0x2a8] sm:$0xff]
  %v2081 = vld [vmem:[%s3 + $0x2b0] sm:$0xff]
  %v2082 = vld [vmem:[%s3 + $0x2b8] sm:$0xff]
  %v2083 = vld [vmem:[%s3 + $0x2c0] sm:$0xff]
  %v2084 = vld [vmem:[%s3 + $0x2c8] sm:$0xff]
  %v2085 = vld [vmem:[%s3 + $0x2d0] sm:$0xff]
  %v2086 = vld [vmem:[%s3 + $0x2d8] sm:$0xff]
  %v2087 = vld [vmem:[%s3 + $0x2e0] sm:$0xff]
  %v2088 = vld [vmem:[%s3 + $0x2e8] sm:$0xff]
  %v2089 = vld [vmem:[%s3 + $0x2f0] sm:$0xff]
  %v2090 = vld [vmem:[%s3 + $0x2f8] sm:$0xff]
  %v2091 = vld [vmem:[%s3 + $0x300] sm:$0xff]
  %v2092 = vld [vmem:[%s3 + $0x308] sm:$0xff]
  %v2093 = vld [vmem:[%s3 + $0x310] sm:$0xff]
  %v2094 = vld [vmem:[%s3 + $0x318] sm:$0xff]
  %v2095 = vld [vmem:[%s3 + $0x320] sm:$0xff]
  %v2096 = vld [vmem:[%s3 + $0x328] sm:$0xff]
  %v2097 = vld [vmem:[%s3 + $0x330] sm:$0xff]
  %v2098 = vld [vmem:[%s3 + $0x338] sm:$0xff]
  %v2099 = vld [vmem:[%s3 + $0x340] sm:$0xff]
  %v2100 = vld [vmem:[%s3 + $0x348] sm:$0xff]
  %v2101 = vld [vmem:[%s3 + $0x350] sm:$0xff]
  %v2102 = vld [vmem:[%s3 + $0x358] sm:$0xff]
  %v2103 = vld [vmem:[%s3 + $0x360] sm:$0xff]
  %v2104 = vld [vmem:[%s3 + $0x368] sm:$0xff]
  %v2105 = vld [vmem:[%s3 + $0x370] sm:$0xff]
  %v2106 = vld [vmem:[%s3 + $0x378] sm:$0xff]
  %v2107 = vld [vmem:[%s3 + $0x380] sm:$0xff]
  %v2108 = vld [vmem:[%s3 + $0x388] sm:$0xff]
  %v2109 = vld [vmem:[%s3 + $0x390] sm:$0xff]
  %v2110 = vld [vmem:[%s3 + $0x398] sm:$0xff]
  %v2111 = vld [vmem:[%s3 + $0x3a0] sm:$0xff]
  %v2112 = vld [vmem:[%s3 + $0x3a8] sm:$0xff]
  %v2113 = vld [vmem:[%s3 + $0x3b0] sm:$0xff]
  %v2114 = vld [vmem:[%s3 + $0x3b8] sm:$0xff]
  %v2115 = vld [vmem:[%s3 + $0x3c0] sm:$0xff]
  %v2116 = vld [vmem:[%s3 + $0x3c8] sm:$0xff]
  %v2117 = vld [vmem:[%s3 + $0x3d0] sm:$0xff]
  %v2118 = vld [vmem:[%s3 + $0x3d8] sm:$0xff]
  %v2119 = vld [vmem:[%s3 + $0x3e0] sm:$0xff]
  %v2120 = vld [vmem:[%s3 + $0x3e8] sm:$0xff]
  %v2121 = vld [vmem:[%s3 + $0x3f0] sm:$0xff]
  %v2122 = vld [vmem:[%s3 + $0x3f8] sm:$0xff]
  %v2123 = vld [vmem:[%s4] sm:$0x1]
  %vm2124 = vcmp.gt.f32.partialorder 0.0, 1.0
  %v2125 = vsel %vm2124, 1, 0
  %v2126 = vcvt.s32.f32 %v2125
  %v2127 = vadd.f32 %v1139, 0.0
  %v2128 = vadd.f32 %v1141, 0.0
  %v2129 = vadd.f32 %v1423, 0.0
  %v2130 = vadd.f32 %v1425, 0.0
  %v2131 = vadd.f32 %v1707, 0.0
  %v2132 = vadd.f32 %v1709, 0.0
  %v2133 = vadd.f32 %v1991, 0.0
  %v2134 = vadd.f32 %v1993, 0.0
  %v2135 = vsub.f32 %v2127, %v2126
  %v2136 = vsub.f32 %v2128, %v2126
  %v2137 = vsub.f32 %v2129, %v2126
  %v2138 = vsub.f32 %v2130, %v2126
  %v2139 = vsub.f32 %v2131, %v2126
  %v2140 = vsub.f32 %v2132, %v2126
  %v2141 = vsub.f32 %v2133, %v2126
  %v2142 = vsub.f32 %v2134, %v2126
  %vm2143 = vcmp.gt.f32.partialorder %v2135, 1.0
  %vm2144 = vcmp.gt.f32.partialorder %v2136, 1.0
  %vm2145 = vcmp.gt.f32.partialorder %v2137, 1.0
  %vm2146 = vcmp.gt.f32.partialorder %v2138, 1.0
  %vm2147 = vcmp.gt.f32.partialorder %v2139, 1.0
  %vm2148 = vcmp.gt.f32.partialorder %v2140, 1.0
  %vm2149 = vcmp.gt.f32.partialorder %v2141, 1.0
  %vm2150 = vcmp.gt.f32.partialorder %v2142, 1.0
  %v2151 = vsel %vm2143, 1, 0
  %v2152 = vsel %vm2144, 1, 0
  %v2153 = vsel %vm2145, 1, 0
  %v2154 = vsel %vm2146, 1, 0
  %v2155 = vsel %vm2147, 1, 0
  %v2156 = vsel %vm2148, 1, 0
  %v2157 = vsel %vm2149, 1, 0
  %v2158 = vsel %vm2150, 1, 0
  %v2159 = vcvt.s32.f32 %v2151
  %v2160 = vcvt.s32.f32 %v2152
  %v2161 = vcvt.s32.f32 %v2153
  %v2162 = vcvt.s32.f32 %v2154
  %v2163 = vcvt.s32.f32 %v2155
  %v2164 = vcvt.s32.f32 %v2156
  %v2165 = vcvt.s32.f32 %v2157
  %v2166 = vcvt.s32.f32 %v2158
  %v2168 = vlaneseq
  %v2169 = vshrl.u32 %v2168, 7
  %v2170 = vsub.s32 0, %v2169
  %v2171 = vrot.slane %v2123, %v2170
  %2173 = vmatprep.subr.mxu0 0.0
  %2174 = vmatpush1.msra.mxu0 %v2010
  %2175 = vmatprep.subr.mxu0 0.0
  %2176 = vmatpush1.msra.mxu0 %v2009
  %2177 = vmatprep.subr.mxu0 0.0
  %2178 = vmatpush1.msra.mxu0 %v2008
  %2179 = vmatprep.subr.mxu0 0.0
  %2180 = vmatpush1.msra.mxu0 %v2007
  %2181 = vmatprep.subr.mxu0 0.0
  %2182 = vmatpush1.msra.mxu0 %v2006
  %2183 = vmatprep.subr.mxu0 0.0
  %2184 = vmatpush1.msra.mxu0 %v2005
  %2185 = vmatprep.subr.mxu0 0.0
  %2186 = vmatpush1.msra.mxu0 %v2004
  %2187 = vmatprep.subr.mxu0 0.0
  %2188 = vmatpush1.msra.mxu0 %v2003
  %2189 = vmatprep.subr.mxu0 0.0
  %2190 = vmatpush1.msra.mxu0 %v2002
  %2191 = vmatprep.subr.mxu0 0.0
  %2192 = vmatpush1.msra.mxu0 %v2001
  %2193 = vmatprep.subr.mxu0 0.0
  %2194 = vmatpush1.msra.mxu0 %v2000
  %2195 = vmatprep.subr.mxu0 0.0
  %2196 = vmatpush1.msra.mxu0 %v1999
  %2197 = vmatprep.subr.mxu0 0.0
  %2198 = vmatpush1.msra.mxu0 %v1998
  %2199 = vmatprep.subr.mxu0 0.0
  %2200 = vmatpush1.msra.mxu0 %v1997
  %2201 = vmatprep.subr.mxu0 0.0
  %2202 = vmatpush1.msra.mxu0 %v1996
  %2203 = vmatprep.subr.mxu0 0.0
  %2204 = vmatpush1.msra.mxu0 %v1995
  %2205 = vmatprep.subr.mxu0 0.0
  %2206 = vmatpush2.msra.mxu0 %v2026
  %2207 = vmatprep.subr.mxu0 0.0
  %2208 = vmatpush2.msra.mxu0 %v2025
  %2209 = vmatprep.subr.mxu0 0.0
  %2210 = vmatpush2.msra.mxu0 %v2024
  %2211 = vmatprep.subr.mxu0 0.0
  %2212 = vmatpush2.msra.mxu0 %v2023
  %2213 = vmatprep.subr.mxu0 0.0
  %2214 = vmatpush2.msra.mxu0 %v2022
  %2215 = vmatprep.subr.mxu0 0.0
  %2216 = vmatpush2.msra.mxu0 %v2021
  %2217 = vmatprep.subr.mxu0 0.0
  %2218 = vmatpush2.msra.mxu0 %v2020
  %2219 = vmatprep.subr.mxu0 0.0
  %2220 = vmatpush2.msra.mxu0 %v2019
  %2221 = vmatprep.subr.mxu0 0.0
  %2222 = vmatpush2.msra.mxu0 %v2018
  %2223 = vmatprep.subr.mxu0 0.0
  %2224 = vmatpush2.msra.mxu0 %v2017
  %2225 = vmatprep.subr.mxu0 0.0
  %2226 = vmatpush2.msra.mxu0 %v2016
  %2227 = vmatprep.subr.mxu0 0.0
  %2228 = vmatpush2.msra.mxu0 %v2015
  %2229 = vmatprep.subr.mxu0 0.0
  %2230 = vmatpush2.msra.mxu0 %v2014
  %2231 = vmatprep.subr.mxu0 0.0
  %2232 = vmatpush2.msra.mxu0 %v2013
  %2233 = vmatprep.subr.mxu0 0.0
  %2234 = vmatpush2.msra.mxu0 %v2012
  %2235 = vmatprep.subr.mxu0 0.0
  %2236 = vmatpush2.msra.mxu0 %v2011
  %2237 = vmatprep.mubr.f32.mxu0 %v2160
  %2238 = vmatmul.mubr.f32.gmra.mxu0 %v2159
  %v2239 = vpop.f32.mrf.mxu0
  %v2240 = vadd.f32 %v2171, %v2239
  %v2241 = vpop.f32.mrf.mxu0
  %2242 = vdwg.mxu0
  %2243 = vmatprep.subr.mxu0 0.0
  %2244 = vmatpush1.msra.mxu0 %v2042
  %2245 = vmatprep.subr.mxu0 0.0
  %2246 = vmatpush1.msra.mxu0 %v2041
  %2247 = vmatprep.subr.mxu0 0.0
  %2248 = vmatpush1.msra.mxu0 %v2040
  %2249 = vmatprep.subr.mxu0 0.0
  %2250 = vmatpush1.msra.mxu0 %v2039
  %2251 = vmatprep.subr.mxu0 0.0
  %2252 = vmatpush1.msra.mxu0 %v2038
  %2253 = vmatprep.subr.mxu0 0.0
  %2254 = vmatpush1.msra.mxu0 %v2037
  %2255 = vmatprep.subr.mxu0 0.0
  %2256 = vmatpush1.msra.mxu0 %v2036
  %2257 = vmatprep.subr.mxu0 0.0
  %2258 = vmatpush1.msra.mxu0 %v2035
  %2259 = vmatprep.subr.mxu0 0.0
  %2260 = vmatpush1.msra.mxu0 %v2034
  %2261 = vmatprep.subr.mxu0 0.0
  %2262 = vmatpush1.msra.mxu0 %v2033
  %2263 = vmatprep.subr.mxu0 0.0
  %2264 = vmatpush1.msra.mxu0 %v2032
  %2265 = vmatprep.subr.mxu0 0.0
  %2266 = vmatpush1.msra.mxu0 %v2031
  %2267 = vmatprep.subr.mxu0 0.0
  %2268 = vmatpush1.msra.mxu0 %v2030
  %2269 = vmatprep.subr.mxu0 0.0
  %2270 = vmatpush1.msra.mxu0 %v2029
  %2271 = vmatprep.subr.mxu0 0.0
  %2272 = vmatpush1.msra.mxu0 %v2028
  %2273 = vmatprep.subr.mxu0 0.0
  %2274 = vmatpush1.msra.mxu0 %v2027
  %2275 = vmatprep.subr.mxu0 0.0
  %2276 = vmatpush2.msra.mxu0 %v2058
  %2277 = vmatprep.subr.mxu0 0.0
  %2278 = vmatpush2.msra.mxu0 %v2057
  %2279 = vmatprep.subr.mxu0 0.0
  %2280 = vmatpush2.msra.mxu0 %v2056
  %2281 = vmatprep.subr.mxu0 0.0
  %2282 = vmatpush2.msra.mxu0 %v2055
  %2283 = vmatprep.subr.mxu0 0.0
  %2284 = vmatpush2.msra.mxu0 %v2054
  %2285 = vmatprep.subr.mxu0 0.0
  %2286 = vmatpush2.msra.mxu0 %v2053
  %2287 = vmatprep.subr.mxu0 0.0
  %2288 = vmatpush2.msra.mxu0 %v2052
  %2289 = vmatprep.subr.mxu0 0.0
  %2290 = vmatpush2.msra.mxu0 %v2051
  %2291 = vmatprep.subr.mxu0 0.0
  %2292 = vmatpush2.msra.mxu0 %v2050
  %2293 = vmatprep.subr.mxu0 0.0
  %2294 = vmatpush2.msra.mxu0 %v2049
  %2295 = vmatprep.subr.mxu0 0.0
  %2296 = vmatpush2.msra.mxu0 %v2048
  %2297 = vmatprep.subr.mxu0 0.0
  %2298 = vmatpush2.msra.mxu0 %v2047
  %2299 = vmatprep.subr.mxu0 0.0
  %2300 = vmatpush2.msra.mxu0 %v2046
  %2301 = vmatprep.subr.mxu0 0.0
  %2302 = vmatpush2.msra.mxu0 %v2045
  %2303 = vmatprep.subr.mxu0 0.0
  %2304 = vmatpush2.msra.mxu0 %v2044
  %2305 = vmatprep.subr.mxu0 0.0
  %2306 = vmatpush2.msra.mxu0 %v2043
  %2307 = vmatprep.mubr.f32.mxu0 %v2162
  %2308 = vmatmul.mubr.f32.gmra.mxu0 %v2161
  %v2309 = vpop.f32.mrf.mxu0
  %v2310 = vadd.f32 %v2240, %v2309
  %v2311 = vpop.f32.mrf.mxu0
  %2312 = vdwg.mxu0
  %2313 = vmatprep.subr.mxu0 0.0
  %2314 = vmatpush1.msra.mxu0 %v2074
  %2315 = vmatprep.subr.mxu0 0.0
  %2316 = vmatpush1.msra.mxu0 %v2073
  %2317 = vmatprep.subr.mxu0 0.0
  %2318 = vmatpush1.msra.mxu0 %v2072
  %2319 = vmatprep.subr.mxu0 0.0
  %2320 = vmatpush1.msra.mxu0 %v2071
  %2321 = vmatprep.subr.mxu0 0.0
  %2322 = vmatpush1.msra.mxu0 %v2070
  %2323 = vmatprep.subr.mxu0 0.0
  %2324 = vmatpush1.msra.mxu0 %v2069
  %2325 = vmatprep.subr.mxu0 0.0
  %2326 = vmatpush1.msra.mxu0 %v2068
  %2327 = vmatprep.subr.mxu0 0.0
  %2328 = vmatpush1.msra.mxu0 %v2067
  %2329 = vmatprep.subr.mxu0 0.0
  %2330 = vmatpush1.msra.mxu0 %v2066
  %2331 = vmatprep.subr.mxu0 0.0
  %2332 = vmatpush1.msra.mxu0 %v2065
  %2333 = vmatprep.subr.mxu0 0.0
  %2334 = vmatpush1.msra.mxu0 %v2064
  %2335 = vmatprep.subr.mxu0 0.0
  %2336 = vmatpush1.msra.mxu0 %v2063
  %2337 = vmatprep.subr.mxu0 0.0
  %2338 = vmatpush1.msra.mxu0 %v2062
  %2339 = vmatprep.subr.mxu0 0.0
  %2340 = vmatpush1.msra.mxu0 %v2061
  %2341 = vmatprep.subr.mxu0 0.0
  %2342 = vmatpush1.msra.mxu0 %v2060
  %2343 = vmatprep.subr.mxu0 0.0
  %2344 = vmatpush1.msra.mxu0 %v2059
  %2345 = vmatprep.subr.mxu0 0.0
  %2346 = vmatpush2.msra.mxu0 %v2090
  %2347 = vmatprep.subr.mxu0 0.0
  %2348 = vmatpush2.msra.mxu0 %v2089
  %2349 = vmatprep.subr.mxu0 0.0
  %2350 = vmatpush2.msra.mxu0 %v2088
  %2351 = vmatprep.subr.mxu0 0.0
  %2352 = vmatpush2.msra.mxu0 %v2087
  %2353 = vmatprep.subr.mxu0 0.0
  %2354 = vmatpush2.msra.mxu0 %v2086
  %2355 = vmatprep.subr.mxu0 0.0
  %2356 = vmatpush2.msra.mxu0 %v2085
  %2357 = vmatprep.subr.mxu0 0.0
  %2358 = vmatpush2.msra.mxu0 %v2084
  %2359 = vmatprep.subr.mxu0 0.0
  %2360 = vmatpush2.msra.mxu0 %v2083
  %2361 = vmatprep.subr.mxu0 0.0
  %2362 = vmatpush2.msra.mxu0 %v2082
  %2363 = vmatprep.subr.mxu0 0.0
  %2364 = vmatpush2.msra.mxu0 %v2081
  %2365 = vmatprep.subr.mxu0 0.0
  %2366 = vmatpush2.msra.mxu0 %v2080
  %2367 = vmatprep.subr.mxu0 0.0
  %2368 = vmatpush2.msra.mxu0 %v2079
  %2369 = vmatprep.subr.mxu0 0.0
  %2370 = vmatpush2.msra.mxu0 %v2078
  %2371 = vmatprep.subr.mxu0 0.0
  %2372 = vmatpush2.msra.mxu0 %v2077
  %2373 = vmatprep.subr.mxu0 0.0
  %2374 = vmatpush2.msra.mxu0 %v2076
  %2375 = vmatprep.subr.mxu0 0.0
  %2376 = vmatpush2.msra.mxu0 %v2075
  %2377 = vmatprep.mubr.f32.mxu0 %v2164
  %2378 = vmatmul.mubr.f32.gmra.mxu0 %v2163
  %v2379 = vpop.f32.mrf.mxu0
  %v2380 = vadd.f32 %v2310, %v2379
  %v2381 = vpop.f32.mrf.mxu0
  %2382 = vdwg.mxu0
  %2383 = vmatprep.subr.mxu0 0.0
  %2384 = vmatpush1.msra.mxu0 %v2106
  %2385 = vmatprep.subr.mxu0 0.0
  %2386 = vmatpush1.msra.mxu0 %v2105
  %2387 = vmatprep.subr.mxu0 0.0
  %2388 = vmatpush1.msra.mxu0 %v2104
  %2389 = vmatprep.subr.mxu0 0.0
  %2390 = vmatpush1.msra.mxu0 %v2103
  %2391 = vmatprep.subr.mxu0 0.0
  %2392 = vmatpush1.msra.mxu0 %v2102
  %2393 = vmatprep.subr.mxu0 0.0
  %2394 = vmatpush1.msra.mxu0 %v2101
  %2395 = vmatprep.subr.mxu0 0.0
  %2396 = vmatpush1.msra.mxu0 %v2100
  %2397 = vmatprep.subr.mxu0 0.0
  %2398 = vmatpush1.msra.mxu0 %v2099
  %2399 = vmatprep.subr.mxu0 0.0
  %2400 = vmatpush1.msra.mxu0 %v2098
  %2401 = vmatprep.subr.mxu0 0.0
  %2402 = vmatpush1.msra.mxu0 %v2097
  %2403 = vmatprep.subr.mxu0 0.0
  %2404 = vmatpush1.msra.mxu0 %v2096
  %2405 = vmatprep.subr.mxu0 0.0
  %2406 = vmatpush1.msra.mxu0 %v2095
  %2407 = vmatprep.subr.mxu0 0.0
  %2408 = vmatpush1.msra.mxu0 %v2094
  %2409 = vmatprep.subr.mxu0 0.0
  %2410 = vmatpush1.msra.mxu0 %v2093
  %2411 = vmatprep.subr.mxu0 0.0
  %2412 = vmatpush1.msra.mxu0 %v2092
  %2413 = vmatprep.subr.mxu0 0.0
  %2414 = vmatpush1.msra.mxu0 %v2091
  %2415 = vmatprep.subr.mxu0 0.0
  %2416 = vmatpush2.msra.mxu0 %v2122
  %2417 = vmatprep.subr.mxu0 0.0
  %2418 = vmatpush2.msra.mxu0 %v2121
  %2419 = vmatprep.subr.mxu0 0.0
  %2420 = vmatpush2.msra.mxu0 %v2120
  %2421 = vmatprep.subr.mxu0 0.0
  %2422 = vmatpush2.msra.mxu0 %v2119
  %2423 = vmatprep.subr.mxu0 0.0
  %2424 = vmatpush2.msra.mxu0 %v2118
  %2425 = vmatprep.subr.mxu0 0.0
  %2426 = vmatpush2.msra.mxu0 %v2117
  %2427 = vmatprep.subr.mxu0 0.0
  %2428 = vmatpush2.msra.mxu0 %v2116
  %2429 = vmatprep.subr.mxu0 0.0
  %2430 = vmatpush2.msra.mxu0 %v2115
  %2431 = vmatprep.subr.mxu0 0.0
  %2432 = vmatpush2.msra.mxu0 %v2114
  %2433 = vmatprep.subr.mxu0 0.0
  %2434 = vmatpush2.msra.mxu0 %v2113
  %2435 = vmatprep.subr.mxu0 0.0
  %2436 = vmatpush2.msra.mxu0 %v2112
  %2437 = vmatprep.subr.mxu0 0.0
  %2438 = vmatpush2.msra.mxu0 %v2111
  %2439 = vmatprep.subr.mxu0 0.0
  %2440 = vmatpush2.msra.mxu0 %v2110
  %2441 = vmatprep.subr.mxu0 0.0
  %2442 = vmatpush2.msra.mxu0 %v2109
  %2443 = vmatprep.subr.mxu0 0.0
  %2444 = vmatpush2.msra.mxu0 %v2108
  %2445 = vmatprep.subr.mxu0 0.0
  %2446 = vmatpush2.msra.mxu0 %v2107
  %2447 = vmatprep.mubr.f32.mxu0 %v2166
  %2448 = vmatmul.mubr.f32.gmra.mxu0 %v2165
  %v2449 = vpop.f32.mrf.mxu0
  %v2450 = vadd.f32 %v2380, %v2449
  %v2451 = vpop.f32.mrf.mxu0
  %2452 = vdwg.mxu0
  %v2453 = vadd.f32 %v2450, 0.0
  %v2454 = vsub.f32 %v2453, %v2126
  %vm2455 = vcmp.gt.f32.partialorder %v2454, 1.0
  %v2456 = vsel %vm2455, 1, 0
  %v2457 = vcvt.s32.f32 %v2456
  %2458 = vst [vmem:[%s5] sm:$0xff] %v2457
  %2459 = vst [vmem:[%s6] sm:$0xff] %v2454
  %v2460 = vmul.f32 %v2135, 0.95
  %v2461 = vmul.f32 %v2136, 0.95
  %v2462 = vmul.f32 %v2137, 0.95
  %v2463 = vmul.f32 %v2138, 0.95
  %v2464 = vmul.f32 %v2139, 0.95
  %v2465 = vmul.f32 %v2140, 0.95
  %v2466 = vmul.f32 %v2141, 0.95
  %v2467 = vmul.f32 %v2142, 0.95
  %v2468 = vadd.f32 %v2460, %v1139
  %v2469 = vadd.f32 %v2461, %v1141
  %v2470 = vadd.f32 %v2462, %v1423
  %v2471 = vadd.f32 %v2463, %v1425
  %v2472 = vadd.f32 %v2464, %v1707
  %v2473 = vadd.f32 %v2465, %v1709
  %v2474 = vadd.f32 %v2466, %v1991
  %v2475 = vadd.f32 %v2467, %v1993
  %v2476 = vsub.f32 %v2468, %v2159
  %v2477 = vsub.f32 %v2469, %v2160
  %v2478 = vsub.f32 %v2470, %v2161
  %v2479 = vsub.f32 %v2471, %v2162
  %v2480 = vsub.f32 %v2472, %v2163
  %v2481 = vsub.f32 %v2473, %v2164
  %v2482 = vsub.f32 %v2474, %v2165
  %v2483 = vsub.f32 %v2475, %v2166
  %vm2484 = vcmp.gt.f32.partialorder %v2476, 1.0
  %vm2485 = vcmp.gt.f32.partialorder %v2477, 1.0
  %vm2486 = vcmp.gt.f32.partialorder %v2478, 1.0
  %vm2487 = vcmp.gt.f32.partialorder %v2479, 1.0
  %vm2488 = vcmp.gt.f32.partialorder %v2480, 1.0
  %vm2489 = vcmp.gt.f32.partialorder %v2481, 1.0
  %vm2490 = vcmp.gt.f32.partialorder %v2482, 1.0
  %vm2491 = vcmp.gt.f32.partialorder %v2483, 1.0
  %v2492 = vsel %vm2484, 1, 0
  %v2493 = vsel %vm2485, 1, 0
  %v2494 = vsel %vm2486, 1, 0
  %v2495 = vsel %vm2487, 1, 0
  %v2496 = vsel %vm2488, 1, 0
  %v2497 = vsel %vm2489, 1, 0
  %v2498 = vsel %vm2490, 1, 0
  %v2499 = vsel %vm2491, 1, 0
  %v2500 = vcvt.s32.f32 %v2492
  %v2501 = vcvt.s32.f32 %v2493
  %v2502 = vcvt.s32.f32 %v2494
  %v2503 = vcvt.s32.f32 %v2495
  %v2504 = vcvt.s32.f32 %v2496
  %v2505 = vcvt.s32.f32 %v2497
  %v2506 = vcvt.s32.f32 %v2498
  %v2507 = vcvt.s32.f32 %v2499
  %2508 = vmatprep.subr.mxu0 0.0
  %2509 = vmatpush1.msra.mxu0 %v2010
  %2510 = vmatprep.subr.mxu0 0.0
  %2511 = vmatpush1.msra.mxu0 %v2009
  %2512 = vmatprep.subr.mxu0 0.0
  %2513 = vmatpush1.msra.mxu0 %v2008
  %2514 = vmatprep.subr.mxu0 0.0
  %2515 = vmatpush1.msra.mxu0 %v2007
  %2516 = vmatprep.subr.mxu0 0.0
  %2517 = vmatpush1.msra.mxu0 %v2006
  %2518 = vmatprep.subr.mxu0 0.0
  %2519 = vmatpush1.msra.mxu0 %v2005
  %2520 = vmatprep.subr.mxu0 0.0
  %2521 = vmatpush1.msra.mxu0 %v2004
  %2522 = vmatprep.subr.mxu0 0.0
  %2523 = vmatpush1.msra.mxu0 %v2003
  %2524 = vmatprep.subr.mxu0 0.0
  %2525 = vmatpush1.msra.mxu0 %v2002
  %2526 = vmatprep.subr.mxu0 0.0
  %2527 = vmatpush1.msra.mxu0 %v2001
  %2528 = vmatprep.subr.mxu0 0.0
  %2529 = vmatpush1.msra.mxu0 %v2000
  %2530 = vmatprep.subr.mxu0 0.0
  %2531 = vmatpush1.msra.mxu0 %v1999
  %2532 = vmatprep.subr.mxu0 0.0
  %2533 = vmatpush1.msra.mxu0 %v1998
  %2534 = vmatprep.subr.mxu0 0.0
  %2535 = vmatpush1.msra.mxu0 %v1997
  %2536 = vmatprep.subr.mxu0 0.0
  %2537 = vmatpush1.msra.mxu0 %v1996
  %2538 = vmatprep.subr.mxu0 0.0
  %2539 = vmatpush1.msra.mxu0 %v1995
  %2540 = vmatprep.subr.mxu0 0.0
  %2541 = vmatpush2.msra.mxu0 %v2026
  %2542 = vmatprep.subr.mxu0 0.0
  %2543 = vmatpush2.msra.mxu0 %v2025
  %2544 = vmatprep.subr.mxu0 0.0
  %2545 = vmatpush2.msra.mxu0 %v2024
  %2546 = vmatprep.subr.mxu0 0.0
  %2547 = vmatpush2.msra.mxu0 %v2023
  %2548 = vmatprep.subr.mxu0 0.0
  %2549 = vmatpush2.msra.mxu0 %v2022
  %2550 = vmatprep.subr.mxu0 0.0
  %2551 = vmatpush2.msra.mxu0 %v2021
  %2552 = vmatprep.subr.mxu0 0.0
  %2553 = vmatpush2.msra.mxu0 %v2020
  %2554 = vmatprep.subr.mxu0 0.0
  %2555 = vmatpush2.msra.mxu0 %v2019
  %2556 = vmatprep.subr.mxu0 0.0
  %2557 = vmatpush2.msra.mxu0 %v2018
  %2558 = vmatprep.subr.mxu0 0.0
  %2559 = vmatpush2.msra.mxu0 %v2017
  %2560 = vmatprep.subr.mxu0 0.0
  %2561 = vmatpush2.msra.mxu0 %v2016
  %2562 = vmatprep.subr.mxu0 0.0
  %2563 = vmatpush2.msra.mxu0 %v2015
  %2564 = vmatprep.subr.mxu0 0.0
  %2565 = vmatpush2.msra.mxu0 %v2014
  %2566 = vmatprep.subr.mxu0 0.0
  %2567 = vmatpush2.msra.mxu0 %v2013
  %2568 = vmatprep.subr.mxu0 0.0
  %2569 = vmatpush2.msra.mxu0 %v2012
  %2570 = vmatprep.subr.mxu0 0.0
  %2571 = vmatpush2.msra.mxu0 %v2011
  %2572 = vmatprep.mubr.f32.mxu0 %v2501
  %2573 = vmatmul.mubr.f32.gmra.mxu0 %v2500
  %v2574 = vpop.f32.mrf.mxu0
  %v2575 = vadd.f32 %v2171, %v2574
  %v2576 = vpop.f32.mrf.mxu0
  %2577 = vdwg.mxu0
  %2578 = vmatprep.subr.mxu0 0.0
  %2579 = vmatpush1.msra.mxu0 %v2042
  %2580 = vmatprep.subr.mxu0 0.0
  %2581 = vmatpush1.msra.mxu0 %v2041
  %2582 = vmatprep.subr.mxu0 0.0
  %2583 = vmatpush1.msra.mxu0 %v2040
  %2584 = vmatprep.subr.mxu0 0.0
  %2585 = vmatpush1.msra.mxu0 %v2039
  %2586 = vmatprep.subr.mxu0 0.0
  %2587 = vmatpush1.msra.mxu0 %v2038
  %2588 = vmatprep.subr.mxu0 0.0
  %2589 = vmatpush1.msra.mxu0 %v2037
  %2590 = vmatprep.subr.mxu0 0.0
  %2591 = vmatpush1.msra.mxu0 %v2036
  %2592 = vmatprep.subr.mxu0 0.0
  %2593 = vmatpush1.msra.mxu0 %v2035
  %2594 = vmatprep.subr.mxu0 0.0
  %2595 = vmatpush1.msra.mxu0 %v2034
  %2596 = vmatprep.subr.mxu0 0.0
  %2597 = vmatpush1.msra.mxu0 %v2033
  %2598 = vmatprep.subr.mxu0 0.0
  %2599 = vmatpush1.msra.mxu0 %v2032
  %2600 = vmatprep.subr.mxu0 0.0
  %2601 = vmatpush1.msra.mxu0 %v2031
  %2602 = vmatprep.subr.mxu0 0.0
  %2603 = vmatpush1.msra.mxu0 %v2030
  %2604 = vmatprep.subr.mxu0 0.0
  %2605 = vmatpush1.msra.mxu0 %v2029
  %2606 = vmatprep.subr.mxu0 0.0
  %2607 = vmatpush1.msra.mxu0 %v2028
  %2608 = vmatprep.subr.mxu0 0.0
  %2609 = vmatpush1.msra.mxu0 %v2027
  %2610 = vmatprep.subr.mxu0 0.0
  %2611 = vmatpush2.msra.mxu0 %v2058
  %2612 = vmatprep.subr.mxu0 0.0
  %2613 = vmatpush2.msra.mxu0 %v2057
  %2614 = vmatprep.subr.mxu0 0.0
  %2615 = vmatpush2.msra.mxu0 %v2056
  %2616 = vmatprep.subr.mxu0 0.0
  %2617 = vmatpush2.msra.mxu0 %v2055
  %2618 = vmatprep.subr.mxu0 0.0
  %2619 = vmatpush2.msra.mxu0 %v2054
  %2620 = vmatprep.subr.mxu0 0.0
  %2621 = vmatpush2.msra.mxu0 %v2053
  %2622 = vmatprep.subr.mxu0 0.0
  %2623 = vmatpush2.msra.mxu0 %v2052
  %2624 = vmatprep.subr.mxu0 0.0
  %2625 = vmatpush2.msra.mxu0 %v2051
  %2626 = vmatprep.subr.mxu0 0.0
  %2627 = vmatpush2.msra.mxu0 %v2050
  %2628 = vmatprep.subr.mxu0 0.0
  %2629 = vmatpush2.msra.mxu0 %v2049
  %2630 = vmatprep.subr.mxu0 0.0
  %2631 = vmatpush2.msra.mxu0 %v2048
  %2632 = vmatprep.subr.mxu0 0.0
  %2633 = vmatpush2.msra.mxu0 %v2047
  %2634 = vmatprep.subr.mxu0 0.0
  %2635 = vmatpush2.msra.mxu0 %v2046
  %2636 = vmatprep.subr.mxu0 0.0
  %2637 = vmatpush2.msra.mxu0 %v2045
  %2638 = vmatprep.subr.mxu0 0.0
  %2639 = vmatpush2.msra.mxu0 %v2044
  %2640 = vmatprep.subr.mxu0 0.0
  %2641 = vmatpush2.msra.mxu0 %v2043
  %2642 = vmatprep.mubr.f32.mxu0 %v2503
  %2643 = vmatmul.mubr.f32.gmra.mxu0 %v2502
  %v2644 = vpop.f32.mrf.mxu0
  %v2645 = vadd.f32 %v2575, %v2644
  %v2646 = vpop.f32.mrf.mxu0
  %2647 = vdwg.mxu0
  %2648 = vmatprep.subr.mxu0 0.0
  %2649 = vmatpush1.msra.mxu0 %v2074
  %2650 = vmatprep.subr.mxu0 0.0
  %2651 = vmatpush1.msra.mxu0 %v2073
  %2652 = vmatprep.subr.mxu0 0.0
  %2653 = vmatpush1.msra.mxu0 %v2072
  %2654 = vmatprep.subr.mxu0 0.0
  %2655 = vmatpush1.msra.mxu0 %v2071
  %2656 = vmatprep.subr.mxu0 0.0
  %2657 = vmatpush1.msra.mxu0 %v2070
  %2658 = vmatprep.subr.mxu0 0.0
  %2659 = vmatpush1.msra.mxu0 %v2069
  %2660 = vmatprep.subr.mxu0 0.0
  %2661 = vmatpush1.msra.mxu0 %v2068
  %2662 = vmatprep.subr.mxu0 0.0
  %2663 = vmatpush1.msra.mxu0 %v2067
  %2664 = vmatprep.subr.mxu0 0.0
  %2665 = vmatpush1.msra.mxu0 %v2066
  %2666 = vmatprep.subr.mxu0 0.0
  %2667 = vmatpush1.msra.mxu0 %v2065
  %2668 = vmatprep.subr.mxu0 0.0
  %2669 = vmatpush1.msra.mxu0 %v2064
  %2670 = vmatprep.subr.mxu0 0.0
  %2671 = vmatpush1.msra.mxu0 %v2063
  %2672 = vmatprep.subr.mxu0 0.0
  %2673 = vmatpush1.msra.mxu0 %v2062
  %2674 = vmatprep.subr.mxu0 0.0
  %2675 = vmatpush1.msra.mxu0 %v2061
  %2676 = vmatprep.subr.mxu0 0.0
  %2677 = vmatpush1.msra.mxu0 %v2060
  %2678 = vmatprep.subr.mxu0 0.0
  %2679 = vmatpush1.msra.mxu0 %v2059
  %2680 = vmatprep.subr.mxu0 0.0
  %2681 = vmatpush2.msra.mxu0 %v2090
  %2682 = vmatprep.subr.mxu0 0.0
  %2683 = vmatpush2.msra.mxu0 %v2089
  %2684 = vmatprep.subr.mxu0 0.0
  %2685 = vmatpush2.msra.mxu0 %v2088
  %2686 = vmatprep.subr.mxu0 0.0
  %2687 = vmatpush2.msra.mxu0 %v2087
  %2688 = vmatprep.subr.mxu0 0.0
  %2689 = vmatpush2.msra.mxu0 %v2086
  %2690 = vmatprep.subr.mxu0 0.0
  %2691 = vmatpush2.msra.mxu0 %v2085
  %2692 = vmatprep.subr.mxu0 0.0
  %2693 = vmatpush2.msra.mxu0 %v2084
  %2694 = vmatprep.subr.mxu0 0.0
  %2695 = vmatpush2.msra.mxu0 %v2083
  %2696 = vmatprep.subr.mxu0 0.0
  %2697 = vmatpush2.msra.mxu0 %v2082
  %2698 = vmatprep.subr.mxu0 0.0
  %2699 = vmatpush2.msra.mxu0 %v2081
  %2700 = vmatprep.subr.mxu0 0.0
  %2701 = vmatpush2.msra.mxu0 %v2080
  %2702 = vmatprep.subr.mxu0 0.0
  %2703 = vmatpush2.msra.mxu0 %v2079
  %2704 = vmatprep.subr.mxu0 0.0
  %2705 = vmatpush2.msra.mxu0 %v2078
  %2706 = vmatprep.subr.mxu0 0.0
  %2707 = vmatpush2.msra.mxu0 %v2077
  %2708 = vmatprep.subr.mxu0 0.0
  %2709 = vmatpush2.msra.mxu0 %v2076
  %2710 = vmatprep.subr.mxu0 0.0
  %2711 = vmatpush2.msra.mxu0 %v2075
  %2712 = vmatprep.mubr.f32.mxu0 %v2505
  %2713 = vmatmul.mubr.f32.gmra.mxu0 %v2504
  %v2714 = vpop.f32.mrf.mxu0
  %v2715 = vadd.f32 %v2645, %v2714
  %v2716 = vpop.f32.mrf.mxu0
  %2717 = vdwg.mxu0
  %2718 = vmatprep.subr.mxu0 0.0
  %2719 = vmatpush1.msra.mxu0 %v2106
  %2720 = vmatprep.subr.mxu0 0.0
  %2721 = vmatpush1.msra.mxu0 %v2105
  %2722 = vmatprep.subr.mxu0 0.0
  %2723 = vmatpush1.msra.mxu0 %v2104
  %2724 = vmatprep.subr.mxu0 0.0
  %2725 = vmatpush1.msra.mxu0 %v2103
  %2726 = vmatprep.subr.mxu0 0.0
  %2727 = vmatpush1.msra.mxu0 %v2102
  %2728 = vmatprep.subr.mxu0 0.0
  %2729 = vmatpush1.msra.mxu0 %v2101
  %2730 = vmatprep.subr.mxu0 0.0
  %2731 = vmatpush1.msra.mxu0 %v2100
  %2732 = vmatprep.subr.mxu0 0.0
  %2733 = vmatpush1.msra.mxu0 %v2099
  %2734 = vmatprep.subr.mxu0 0.0
  %2735 = vmatpush1.msra.mxu0 %v2098
  %2736 = vmatprep.subr.mxu0 0.0
  %2737 = vmatpush1.msra.mxu0 %v2097
  %2738 = vmatprep.subr.mxu0 0.0
  %2739 = vmatpush1.msra.mxu0 %v2096
  %2740 = vmatprep.subr.mxu0 0.0
  %2741 = vmatpush1.msra.mxu0 %v2095
  %2742 = vmatprep.subr.mxu0 0.0
  %2743 = vmatpush1.msra.mxu0 %v2094
  %2744 = vmatprep.subr.mxu0 0.0
  %2745 = vmatpush1.msra.mxu0 %v2093
  %2746 = vmatprep.subr.mxu0 0.0
  %2747 = vmatpush1.msra.mxu0 %v2092
  %2748 = vmatprep.subr.mxu0 0.0
  %2749 = vmatpush1.msra.mxu0 %v2091
  %2750 = vmatprep.subr.mxu0 0.0
  %2751 = vmatpush2.msra.mxu0 %v2122
  %2752 = vmatprep.subr.mxu0 0.0
  %2753 = vmatpush2.msra.mxu0 %v2121
  %2754 = vmatprep.subr.mxu0 0.0
  %2755 = vmatpush2.msra.mxu0 %v2120
  %2756 = vmatprep.subr.mxu0 0.0
  %2757 = vmatpush2.msra.mxu0 %v2119
  %2758 = vmatprep.subr.mxu0 0.0
  %2759 = vmatpush2.msra.mxu0 %v2118
  %2760 = vmatprep.subr.mxu0 0.0
  %2761 = vmatpush2.msra.mxu0 %v2117
  %2762 = vmatprep.subr.mxu0 0.0
  %2763 = vmatpush2.msra.mxu0 %v2116
  %2764 = vmatprep.subr.mxu0 0.0
  %2765 = vmatpush2.msra.mxu0 %v2115
  %2766 = vmatprep.subr.mxu0 0.0
  %2767 = vmatpush2.msra.mxu0 %v2114
  %2768 = vmatprep.subr.mxu0 0.0
  %2769 = vmatpush2.msra.mxu0 %v2113
  %2770 = vmatprep.subr.mxu0 0.0
  %2771 = vmatpush2.msra.mxu0 %v2112
  %2772 = vmatprep.subr.mxu0 0.0
  %2773 = vmatpush2.msra.mxu0 %v2111
  %2774 = vmatprep.subr.mxu0 0.0
  %2775 = vmatpush2.msra.mxu0 %v2110
  %2776 = vmatprep.subr.mxu0 0.0
  %2777 = vmatpush2.msra.mxu0 %v2109
  %2778 = vmatprep.subr.mxu0 0.0
  %2779 = vmatpush2.msra.mxu0 %v2108
  %2780 = vmatprep.subr.mxu0 0.0
  %2781 = vmatpush2.msra.mxu0 %v2107
  %2782 = vmatprep.mubr.f32.mxu0 %v2507
  %2783 = vmatmul.mubr.f32.gmra.mxu0 %v2506
  %v2784 = vpop.f32.mrf.mxu0
  %v2785 = vadd.f32 %v2715, %v2784
  %v2786 = vpop.f32.mrf.mxu0
  %2787 = vdwg.mxu0
  %v2788 = vmul.f32 %v2454, 0.95
  %v2789 = vadd.f32 %v2788, %v2785
  %v2790 = vsub.f32 %v2789, %v2457
  %vm2791 = vcmp.gt.f32.partialorder %v2790, 1.0
  %v2792 = vsel %vm2791, 1, 0
  %v2793 = vcvt.s32.f32 %v2792
  %s2794 = scalar_lea.vmem %s5, 8
  %2795 = vst [vmem:[%s2794] sm:$0xff] %v2793
  %s2796 = scalar_lea.vmem %s6, 8
  %2797 = vst [vmem:[%s2796] sm:$0xff] %v2790
  %v2798 = vmul.f32 %v2476, 0.95
  %v2799 = vmul.f32 %v2477, 0.95
  %v2800 = vmul.f32 %v2478, 0.95
  %v2801 = vmul.f32 %v2479, 0.95
  %v2802 = vmul.f32 %v2480, 0.95
  %v2803 = vmul.f32 %v2481, 0.95
  %v2804 = vmul.f32 %v2482, 0.95
  %v2805 = vmul.f32 %v2483, 0.95
  %v2806 = vadd.f32 %v2798, %v1139
  %v2807 = vadd.f32 %v2799, %v1141
  %v2808 = vadd.f32 %v2800, %v1423
  %v2809 = vadd.f32 %v2801, %v1425
  %v2810 = vadd.f32 %v2802, %v1707
  %v2811 = vadd.f32 %v2803, %v1709
  %v2812 = vadd.f32 %v2804, %v1991
  %v2813 = vadd.f32 %v2805, %v1993
  %v2814 = vsub.f32 %v2806, %v2500
  %v2815 = vsub.f32 %v2807, %v2501
  %v2816 = vsub.f32 %v2808, %v2502
  %v2817 = vsub.f32 %v2809, %v2503
  %v2818 = vsub.f32 %v2810, %v2504
  %v2819 = vsub.f32 %v2811, %v2505
  %v2820 = vsub.f32 %v2812, %v2506
  %v2821 = vsub.f32 %v2813, %v2507
  %vm2822 = vcmp.gt.f32.partialorder %v2814, 1.0
  %vm2823 = vcmp.gt.f32.partialorder %v2815, 1.0
  %vm2824 = vcmp.gt.f32.partialorder %v2816, 1.0
  %vm2825 = vcmp.gt.f32.partialorder %v2817, 1.0
  %vm2826 = vcmp.gt.f32.partialorder %v2818, 1.0
  %vm2827 = vcmp.gt.f32.partialorder %v2819, 1.0
  %vm2828 = vcmp.gt.f32.partialorder %v2820, 1.0
  %vm2829 = vcmp.gt.f32.partialorder %v2821, 1.0
  %v2830 = vsel %vm2822, 1, 0
  %v2831 = vsel %vm2823, 1, 0
  %v2832 = vsel %vm2824, 1, 0
  %v2833 = vsel %vm2825, 1, 0
  %v2834 = vsel %vm2826, 1, 0
  %v2835 = vsel %vm2827, 1, 0
  %v2836 = vsel %vm2828, 1, 0
  %v2837 = vsel %vm2829, 1, 0
  %v2838 = vcvt.s32.f32 %v2830
  %v2839 = vcvt.s32.f32 %v2831
  %v2840 = vcvt.s32.f32 %v2832
  %v2841 = vcvt.s32.f32 %v2833
  %v2842 = vcvt.s32.f32 %v2834
  %v2843 = vcvt.s32.f32 %v2835
  %v2844 = vcvt.s32.f32 %v2836
  %v2845 = vcvt.s32.f32 %v2837
  %2846 = vmatprep.subr.mxu0 0.0
  %2847 = vmatpush1.msra.mxu0 %v2010
  %2848 = vmatprep.subr.mxu0 0.0
  %2849 = vmatpush1.msra.mxu0 %v2009
  %2850 = vmatprep.subr.mxu0 0.0
  %2851 = vmatpush1.msra.mxu0 %v2008
  %2852 = vmatprep.subr.mxu0 0.0
  %2853 = vmatpush1.msra.mxu0 %v2007
  %2854 = vmatprep.subr.mxu0 0.0
  %2855 = vmatpush1.msra.mxu0 %v2006
  %2856 = vmatprep.subr.mxu0 0.0
  %2857 = vmatpush1.msra.mxu0 %v2005
  %2858 = vmatprep.subr.mxu0 0.0
  %2859 = vmatpush1.msra.mxu0 %v2004
  %2860 = vmatprep.subr.mxu0 0.0
  %2861 = vmatpush1.msra.mxu0 %v2003
  %2862 = vmatprep.subr.mxu0 0.0
  %2863 = vmatpush1.msra.mxu0 %v2002
  %2864 = vmatprep.subr.mxu0 0.0
  %2865 = vmatpush1.msra.mxu0 %v2001
  %2866 = vmatprep.subr.mxu0 0.0
  %2867 = vmatpush1.msra.mxu0 %v2000
  %2868 = vmatprep.subr.mxu0 0.0
  %2869 = vmatpush1.msra.mxu0 %v1999
  %2870 = vmatprep.subr.mxu0 0.0
  %2871 = vmatpush1.msra.mxu0 %v1998
  %2872 = vmatprep.subr.mxu0 0.0
  %2873 = vmatpush1.msra.mxu0 %v1997
  %2874 = vmatprep.subr.mxu0 0.0
  %2875 = vmatpush1.msra.mxu0 %v1996
  %2876 = vmatprep.subr.mxu0 0.0
  %2877 = vmatpush1.msra.mxu0 %v1995
  %2878 = vmatprep.subr.mxu0 0.0
  %2879 = vmatpush2.msra.mxu0 %v2026
  %2880 = vmatprep.subr.mxu0 0.0
  %2881 = vmatpush2.msra.mxu0 %v2025
  %2882 = vmatprep.subr.mxu0 0.0
  %2883 = vmatpush2.msra.mxu0 %v2024
  %2884 = vmatprep.subr.mxu0 0.0
  %2885 = vmatpush2.msra.mxu0 %v2023
  %2886 = vmatprep.subr.mxu0 0.0
  %2887 = vmatpush2.msra.mxu0 %v2022
  %2888 = vmatprep.subr.mxu0 0.0
  %2889 = vmatpush2.msra.mxu0 %v2021
  %2890 = vmatprep.subr.mxu0 0.0
  %2891 = vmatpush2.msra.mxu0 %v2020
  %2892 = vmatprep.subr.mxu0 0.0
  %2893 = vmatpush2.msra.mxu0 %v2019
  %2894 = vmatprep.subr.mxu0 0.0
  %2895 = vmatpush2.msra.mxu0 %v2018
  %2896 = vmatprep.subr.mxu0 0.0
  %2897 = vmatpush2.msra.mxu0 %v2017
  %2898 = vmatprep.subr.mxu0 0.0
  %2899 = vmatpush2.msra.mxu0 %v2016
  %2900 = vmatprep.subr.mxu0 0.0
  %2901 = vmatpush2.msra.mxu0 %v2015
  %2902 = vmatprep.subr.mxu0 0.0
  %2903 = vmatpush2.msra.mxu0 %v2014
  %2904 = vmatprep.subr.mxu0 0.0
  %2905 = vmatpush2.msra.mxu0 %v2013
  %2906 = vmatprep.subr.mxu0 0.0
  %2907 = vmatpush2.msra.mxu0 %v2012
  %2908 = vmatprep.subr.mxu0 0.0
  %2909 = vmatpush2.msra.mxu0 %v2011
  %2910 = vmatprep.mubr.f32.mxu0 %v2839
  %2911 = vmatmul.mubr.f32.gmra.mxu0 %v2838
  %v2912 = vpop.f32.mrf.mxu0
  %v2913 = vadd.f32 %v2171, %v2912
  %v2914 = vpop.f32.mrf.mxu0
  %2915 = vdwg.mxu0
  %2916 = vmatprep.subr.mxu0 0.0
  %2917 = vmatpush1.msra.mxu0 %v2042
  %2918 = vmatprep.subr.mxu0 0.0
  %2919 = vmatpush1.msra.mxu0 %v2041
  %2920 = vmatprep.subr.mxu0 0.0
  %2921 = vmatpush1.msra.mxu0 %v2040
  %2922 = vmatprep.subr.mxu0 0.0
  %2923 = vmatpush1.msra.mxu0 %v2039
  %2924 = vmatprep.subr.mxu0 0.0
  %2925 = vmatpush1.msra.mxu0 %v2038
  %2926 = vmatprep.subr.mxu0 0.0
  %2927 = vmatpush1.msra.mxu0 %v2037
  %2928 = vmatprep.subr.mxu0 0.0
  %2929 = vmatpush1.msra.mxu0 %v2036
  %2930 = vmatprep.subr.mxu0 0.0
  %2931 = vmatpush1.msra.mxu0 %v2035
  %2932 = vmatprep.subr.mxu0 0.0
  %2933 = vmatpush1.msra.mxu0 %v2034
  %2934 = vmatprep.subr.mxu0 0.0
  %2935 = vmatpush1.msra.mxu0 %v2033
  %2936 = vmatprep.subr.mxu0 0.0
  %2937 = vmatpush1.msra.mxu0 %v2032
  %2938 = vmatprep.subr.mxu0 0.0
  %2939 = vmatpush1.msra.mxu0 %v2031
  %2940 = vmatprep.subr.mxu0 0.0
  %2941 = vmatpush1.msra.mxu0 %v2030
  %2942 = vmatprep.subr.mxu0 0.0
  %2943 = vmatpush1.msra.mxu0 %v2029
  %2944 = vmatprep.subr.mxu0 0.0
  %2945 = vmatpush1.msra.mxu0 %v2028
  %2946 = vmatprep.subr.mxu0 0.0
  %2947 = vmatpush1.msra.mxu0 %v2027
  %2948 = vmatprep.subr.mxu0 0.0
  %2949 = vmatpush2.msra.mxu0 %v2058
  %2950 = vmatprep.subr.mxu0 0.0
  %2951 = vmatpush2.msra.mxu0 %v2057
  %2952 = vmatprep.subr.mxu0 0.0
  %2953 = vmatpush2.msra.mxu0 %v2056
  %2954 = vmatprep.subr.mxu0 0.0
  %2955 = vmatpush2.msra.mxu0 %v2055
  %2956 = vmatprep.subr.mxu0 0.0
  %2957 = vmatpush2.msra.mxu0 %v2054
  %2958 = vmatprep.subr.mxu0 0.0
  %2959 = vmatpush2.msra.mxu0 %v2053
  %2960 = vmatprep.subr.mxu0 0.0
  %2961 = vmatpush2.msra.mxu0 %v2052
  %2962 = vmatprep.subr.mxu0 0.0
  %2963 = vmatpush2.msra.mxu0 %v2051
  %2964 = vmatprep.subr.mxu0 0.0
  %2965 = vmatpush2.msra.mxu0 %v2050
  %2966 = vmatprep.subr.mxu0 0.0
  %2967 = vmatpush2.msra.mxu0 %v2049
  %2968 = vmatprep.subr.mxu0 0.0
  %2969 = vmatpush2.msra.mxu0 %v2048
  %2970 = vmatprep.subr.mxu0 0.0
  %2971 = vmatpush2.msra.mxu0 %v2047
  %2972 = vmatprep.subr.mxu0 0.0
  %2973 = vmatpush2.msra.mxu0 %v2046
  %2974 = vmatprep.subr.mxu0 0.0
  %2975 = vmatpush2.msra.mxu0 %v2045
  %2976 = vmatprep.subr.mxu0 0.0
  %2977 = vmatpush2.msra.mxu0 %v2044
  %2978 = vmatprep.subr.mxu0 0.0
  %2979 = vmatpush2.msra.mxu0 %v2043
  %2980 = vmatprep.mubr.f32.mxu0 %v2841
  %2981 = vmatmul.mubr.f32.gmra.mxu0 %v2840
  %v2982 = vpop.f32.mrf.mxu0
  %v2983 = vadd.f32 %v2913, %v2982
  %v2984 = vpop.f32.mrf.mxu0
  %2985 = vdwg.mxu0
  %2986 = vmatprep.subr.mxu0 0.0
  %2987 = vmatpush1.msra.mxu0 %v2074
  %2988 = vmatprep.subr.mxu0 0.0
  %2989 = vmatpush1.msra.mxu0 %v2073
  %2990 = vmatprep.subr.mxu0 0.0
  %2991 = vmatpush1.msra.mxu0 %v2072
  %2992 = vmatprep.subr.mxu0 0.0
  %2993 = vmatpush1.msra.mxu0 %v2071
  %2994 = vmatprep.subr.mxu0 0.0
  %2995 = vmatpush1.msra.mxu0 %v2070
  %2996 = vmatprep.subr.mxu0 0.0
  %2997 = vmatpush1.msra.mxu0 %v2069
  %2998 = vmatprep.subr.mxu0 0.0
  %2999 = vmatpush1.msra.mxu0 %v2068
  %3000 = vmatprep.subr.mxu0 0.0
  %3001 = vmatpush1.msra.mxu0 %v2067
  %3002 = vmatprep.subr.mxu0 0.0
  %3003 = vmatpush1.msra.mxu0 %v2066
  %3004 = vmatprep.subr.mxu0 0.0
  %3005 = vmatpush1.msra.mxu0 %v2065
  %3006 = vmatprep.subr.mxu0 0.0
  %3007 = vmatpush1.msra.mxu0 %v2064
  %3008 = vmatprep.subr.mxu0 0.0
  %3009 = vmatpush1.msra.mxu0 %v2063
  %3010 = vmatprep.subr.mxu0 0.0
  %3011 = vmatpush1.msra.mxu0 %v2062
  %3012 = vmatprep.subr.mxu0 0.0
  %3013 = vmatpush1.msra.mxu0 %v2061
  %3014 = vmatprep.subr.mxu0 0.0
  %3015 = vmatpush1.msra.mxu0 %v2060
  %3016 = vmatprep.subr.mxu0 0.0
  %3017 = vmatpush1.msra.mxu0 %v2059
  %3018 = vmatprep.subr.mxu0 0.0
  %3019 = vmatpush2.msra.mxu0 %v2090
  %3020 = vmatprep.subr.mxu0 0.0
  %3021 = vmatpush2.msra.mxu0 %v2089
  %3022 = vmatprep.subr.mxu0 0.0
  %3023 = vmatpush2.msra.mxu0 %v2088
  %3024 = vmatprep.subr.mxu0 0.0
  %3025 = vmatpush2.msra.mxu0 %v2087
  %3026 = vmatprep.subr.mxu0 0.0
  %3027 = vmatpush2.msra.mxu0 %v2086
  %3028 = vmatprep.subr.mxu0 0.0
  %3029 = vmatpush2.msra.mxu0 %v2085
  %3030 = vmatprep.subr.mxu0 0.0
  %3031 = vmatpush2.msra.mxu0 %v2084
  %3032 = vmatprep.subr.mxu0 0.0
  %3033 = vmatpush2.msra.mxu0 %v2083
  %3034 = vmatprep.subr.mxu0 0.0
  %3035 = vmatpush2.msra.mxu0 %v2082
  %3036 = vmatprep.subr.mxu0 0.0
  %3037 = vmatpush2.msra.mxu0 %v2081
  %3038 = vmatprep.subr.mxu0 0.0
  %3039 = vmatpush2.msra.mxu0 %v2080
  %3040 = vmatprep.subr.mxu0 0.0
  %3041 = vmatpush2.msra.mxu0 %v2079
  %3042 = vmatprep.subr.mxu0 0.0
  %3043 = vmatpush2.msra.mxu0 %v2078
  %3044 = vmatprep.subr.mxu0 0.0
  %3045 = vmatpush2.msra.mxu0 %v2077
  %3046 = vmatprep.subr.mxu0 0.0
  %3047 = vmatpush2.msra.mxu0 %v2076
  %3048 = vmatprep.subr.mxu0 0.0
  %3049 = vmatpush2.msra.mxu0 %v2075
  %3050 = vmatprep.mubr.f32.mxu0 %v2843
  %3051 = vmatmul.mubr.f32.gmra.mxu0 %v2842
  %v3052 = vpop.f32.mrf.mxu0
  %v3053 = vadd.f32 %v2983, %v3052
  %v3054 = vpop.f32.mrf.mxu0
  %3055 = vdwg.mxu0
  %3056 = vmatprep.subr.mxu0 0.0
  %3057 = vmatpush1.msra.mxu0 %v2106
  %3058 = vmatprep.subr.mxu0 0.0
  %3059 = vmatpush1.msra.mxu0 %v2105
  %3060 = vmatprep.subr.mxu0 0.0
  %3061 = vmatpush1.msra.mxu0 %v2104
  %3062 = vmatprep.subr.mxu0 0.0
  %3063 = vmatpush1.msra.mxu0 %v2103
  %3064 = vmatprep.subr.mxu0 0.0
  %3065 = vmatpush1.msra.mxu0 %v2102
  %3066 = vmatprep.subr.mxu0 0.0
  %3067 = vmatpush1.msra.mxu0 %v2101
  %3068 = vmatprep.subr.mxu0 0.0
  %3069 = vmatpush1.msra.mxu0 %v2100
  %3070 = vmatprep.subr.mxu0 0.0
  %3071 = vmatpush1.msra.mxu0 %v2099
  %3072 = vmatprep.subr.mxu0 0.0
  %3073 = vmatpush1.msra.mxu0 %v2098
  %3074 = vmatprep.subr.mxu0 0.0
  %3075 = vmatpush1.msra.mxu0 %v2097
  %3076 = vmatprep.subr.mxu0 0.0
  %3077 = vmatpush1.msra.mxu0 %v2096
  %3078 = vmatprep.subr.mxu0 0.0
  %3079 = vmatpush1.msra.mxu0 %v2095
  %3080 = vmatprep.subr.mxu0 0.0
  %3081 = vmatpush1.msra.mxu0 %v2094
  %3082 = vmatprep.subr.mxu0 0.0
  %3083 = vmatpush1.msra.mxu0 %v2093
  %3084 = vmatprep.subr.mxu0 0.0
  %3085 = vmatpush1.msra.mxu0 %v2092
  %3086 = vmatprep.subr.mxu0 0.0
  %3087 = vmatpush1.msra.mxu0 %v2091
  %3088 = vmatprep.subr.mxu0 0.0
  %3089 = vmatpush2.msra.mxu0 %v2122
  %3090 = vmatprep.subr.mxu0 0.0
  %3091 = vmatpush2.msra.mxu0 %v2121
  %3092 = vmatprep.subr.mxu0 0.0
  %3093 = vmatpush2.msra.mxu0 %v2120
  %3094 = vmatprep.subr.mxu0 0.0
  %3095 = vmatpush2.msra.mxu0 %v2119
  %3096 = vmatprep.subr.mxu0 0.0
  %3097 = vmatpush2.msra.mxu0 %v2118
  %3098 = vmatprep.subr.mxu0 0.0
  %3099 = vmatpush2.msra.mxu0 %v2117
  %3100 = vmatprep.subr.mxu0 0.0
  %3101 = vmatpush2.msra.mxu0 %v2116
  %3102 = vmatprep.subr.mxu0 0.0
  %3103 = vmatpush2.msra.mxu0 %v2115
  %3104 = vmatprep.subr.mxu0 0.0
  %3105 = vmatpush2.msra.mxu0 %v2114
  %3106 = vmatprep.subr.mxu0 0.0
  %3107 = vmatpush2.msra.mxu0 %v2113
  %3108 = vmatprep.subr.mxu0 0.0
  %3109 = vmatpush2.msra.mxu0 %v2112
  %3110 = vmatprep.subr.mxu0 0.0
  %3111 = vmatpush2.msra.mxu0 %v2111
  %3112 = vmatprep.subr.mxu0 0.0
  %3113 = vmatpush2.msra.mxu0 %v2110
  %3114 = vmatprep.subr.mxu0 0.0
  %3115 = vmatpush2.msra.mxu0 %v2109
  %3116 = vmatprep.subr.mxu0 0.0
  %3117 = vmatpush2.msra.mxu0 %v2108
  %3118 = vmatprep.subr.mxu0 0.0
  %3119 = vmatpush2.msra.mxu0 %v2107
  %3120 = vmatprep.mubr.f32.mxu0 %v2845
  %3121 = vmatmul.mubr.f32.gmra.mxu0 %v2844
  %v3122 = vpop.f32.mrf.mxu0
  %v3123 = vadd.f32 %v3053, %v3122
  %v3124 = vpop.f32.mrf.mxu0
  %3125 = vdwg.mxu0
  %v3126 = vmul.f32 %v2790, 0.95
  %v3127 = vadd.f32 %v3126, %v3123
  %v3128 = vsub.f32 %v3127, %v2793
  %vm3129 = vcmp.gt.f32.partialorder %v3128, 1.0
  %v3130 = vsel %vm3129, 1, 0
  %v3131 = vcvt.s32.f32 %v3130
  %s3132 = scalar_lea.vmem %s5, 16
  %3133 = vst [vmem:[%s3132] sm:$0xff] %v3131
  %s3134 = scalar_lea.vmem %s6, 16
  %3135 = vst [vmem:[%s3134] sm:$0xff] %v3128
  %v3136 = vmul.f32 %v2814, 0.95
  %v3137 = vmul.f32 %v2815, 0.95
  %v3138 = vmul.f32 %v2816, 0.95
  %v3139 = vmul.f32 %v2817, 0.95
  %v3140 = vmul.f32 %v2818, 0.95
  %v3141 = vmul.f32 %v2819, 0.95
  %v3142 = vmul.f32 %v2820, 0.95
  %v3143 = vmul.f32 %v2821, 0.95
  %v3144 = vadd.f32 %v3136, %v1139
  %v3145 = vadd.f32 %v3137, %v1141
  %v3146 = vadd.f32 %v3138, %v1423
  %v3147 = vadd.f32 %v3139, %v1425
  %v3148 = vadd.f32 %v3140, %v1707
  %v3149 = vadd.f32 %v3141, %v1709
  %v3150 = vadd.f32 %v3142, %v1991
  %v3151 = vadd.f32 %v3143, %v1993
  %v3152 = vsub.f32 %v3144, %v2838
  %v3153 = vsub.f32 %v3145, %v2839
  %v3154 = vsub.f32 %v3146, %v2840
  %v3155 = vsub.f32 %v3147, %v2841
  %v3156 = vsub.f32 %v3148, %v2842
  %v3157 = vsub.f32 %v3149, %v2843
  %v3158 = vsub.f32 %v3150, %v2844
  %v3159 = vsub.f32 %v3151, %v2845
  %vm3160 = vcmp.gt.f32.partialorder %v3152, 1.0
  %vm3161 = vcmp.gt.f32.partialorder %v3153, 1.0
  %vm3162 = vcmp.gt.f32.partialorder %v3154, 1.0
  %vm3163 = vcmp.gt.f32.partialorder %v3155, 1.0
  %vm3164 = vcmp.gt.f32.partialorder %v3156, 1.0
  %vm3165 = vcmp.gt.f32.partialorder %v3157, 1.0
  %vm3166 = vcmp.gt.f32.partialorder %v3158, 1.0
  %vm3167 = vcmp.gt.f32.partialorder %v3159, 1.0
  %v3168 = vsel %vm3160, 1, 0
  %v3169 = vsel %vm3161, 1, 0
  %v3170 = vsel %vm3162, 1, 0
  %v3171 = vsel %vm3163, 1, 0
  %v3172 = vsel %vm3164, 1, 0
  %v3173 = vsel %vm3165, 1, 0
  %v3174 = vsel %vm3166, 1, 0
  %v3175 = vsel %vm3167, 1, 0
  %v3176 = vcvt.s32.f32 %v3168
  %v3177 = vcvt.s32.f32 %v3169
  %v3178 = vcvt.s32.f32 %v3170
  %v3179 = vcvt.s32.f32 %v3171
  %v3180 = vcvt.s32.f32 %v3172
  %v3181 = vcvt.s32.f32 %v3173
  %v3182 = vcvt.s32.f32 %v3174
  %v3183 = vcvt.s32.f32 %v3175
  %3184 = vmatprep.subr.mxu0 0.0
  %3185 = vmatpush1.msra.mxu0 %v2010
  %3186 = vmatprep.subr.mxu0 0.0
  %3187 = vmatpush1.msra.mxu0 %v2009
  %3188 = vmatprep.subr.mxu0 0.0
  %3189 = vmatpush1.msra.mxu0 %v2008
  %3190 = vmatprep.subr.mxu0 0.0
  %3191 = vmatpush1.msra.mxu0 %v2007
  %3192 = vmatprep.subr.mxu0 0.0
  %3193 = vmatpush1.msra.mxu0 %v2006
  %3194 = vmatprep.subr.mxu0 0.0
  %3195 = vmatpush1.msra.mxu0 %v2005
  %3196 = vmatprep.subr.mxu0 0.0
  %3197 = vmatpush1.msra.mxu0 %v2004
  %3198 = vmatprep.subr.mxu0 0.0
  %3199 = vmatpush1.msra.mxu0 %v2003
  %3200 = vmatprep.subr.mxu0 0.0
  %3201 = vmatpush1.msra.mxu0 %v2002
  %3202 = vmatprep.subr.mxu0 0.0
  %3203 = vmatpush1.msra.mxu0 %v2001
  %3204 = vmatprep.subr.mxu0 0.0
  %3205 = vmatpush1.msra.mxu0 %v2000
  %3206 = vmatprep.subr.mxu0 0.0
  %3207 = vmatpush1.msra.mxu0 %v1999
  %3208 = vmatprep.subr.mxu0 0.0
  %3209 = vmatpush1.msra.mxu0 %v1998
  %3210 = vmatprep.subr.mxu0 0.0
  %3211 = vmatpush1.msra.mxu0 %v1997
  %3212 = vmatprep.subr.mxu0 0.0
  %3213 = vmatpush1.msra.mxu0 %v1996
  %3214 = vmatprep.subr.mxu0 0.0
  %3215 = vmatpush1.msra.mxu0 %v1995
  %3216 = vmatprep.subr.mxu0 0.0
  %3217 = vmatpush2.msra.mxu0 %v2026
  %3218 = vmatprep.subr.mxu0 0.0
  %3219 = vmatpush2.msra.mxu0 %v2025
  %3220 = vmatprep.subr.mxu0 0.0
  %3221 = vmatpush2.msra.mxu0 %v2024
  %3222 = vmatprep.subr.mxu0 0.0
  %3223 = vmatpush2.msra.mxu0 %v2023
  %3224 = vmatprep.subr.mxu0 0.0
  %3225 = vmatpush2.msra.mxu0 %v2022
  %3226 = vmatprep.subr.mxu0 0.0
  %3227 = vmatpush2.msra.mxu0 %v2021
  %3228 = vmatprep.subr.mxu0 0.0
  %3229 = vmatpush2.msra.mxu0 %v2020
  %3230 = vmatprep.subr.mxu0 0.0
  %3231 = vmatpush2.msra.mxu0 %v2019
  %3232 = vmatprep.subr.mxu0 0.0
  %3233 = vmatpush2.msra.mxu0 %v2018
  %3234 = vmatprep.subr.mxu0 0.0
  %3235 = vmatpush2.msra.mxu0 %v2017
  %3236 = vmatprep.subr.mxu0 0.0
  %3237 = vmatpush2.msra.mxu0 %v2016
  %3238 = vmatprep.subr.mxu0 0.0
  %3239 = vmatpush2.msra.mxu0 %v2015
  %3240 = vmatprep.subr.mxu0 0.0
  %3241 = vmatpush2.msra.mxu0 %v2014
  %3242 = vmatprep.subr.mxu0 0.0
  %3243 = vmatpush2.msra.mxu0 %v2013
  %3244 = vmatprep.subr.mxu0 0.0
  %3245 = vmatpush2.msra.mxu0 %v2012
  %3246 = vmatprep.subr.mxu0 0.0
  %3247 = vmatpush2.msra.mxu0 %v2011
  %3248 = vmatprep.mubr.f32.mxu0 %v3177
  %3249 = vmatmul.mubr.f32.gmra.mxu0 %v3176
  %v3250 = vpop.f32.mrf.mxu0
  %v3251 = vadd.f32 %v2171, %v3250
  %v3252 = vpop.f32.mrf.mxu0
  %3253 = vdwg.mxu0
  %3254 = vmatprep.subr.mxu0 0.0
  %3255 = vmatpush1.msra.mxu0 %v2042
  %3256 = vmatprep.subr.mxu0 0.0
  %3257 = vmatpush1.msra.mxu0 %v2041
  %3258 = vmatprep.subr.mxu0 0.0
  %3259 = vmatpush1.msra.mxu0 %v2040
  %3260 = vmatprep.subr.mxu0 0.0
  %3261 = vmatpush1.msra.mxu0 %v2039
  %3262 = vmatprep.subr.mxu0 0.0
  %3263 = vmatpush1.msra.mxu0 %v2038
  %3264 = vmatprep.subr.mxu0 0.0
  %3265 = vmatpush1.msra.mxu0 %v2037
  %3266 = vmatprep.subr.mxu0 0.0
  %3267 = vmatpush1.msra.mxu0 %v2036
  %3268 = vmatprep.subr.mxu0 0.0
  %3269 = vmatpush1.msra.mxu0 %v2035
  %3270 = vmatprep.subr.mxu0 0.0
  %3271 = vmatpush1.msra.mxu0 %v2034
  %3272 = vmatprep.subr.mxu0 0.0
  %3273 = vmatpush1.msra.mxu0 %v2033
  %3274 = vmatprep.subr.mxu0 0.0
  %3275 = vmatpush1.msra.mxu0 %v2032
  %3276 = vmatprep.subr.mxu0 0.0
  %3277 = vmatpush1.msra.mxu0 %v2031
  %3278 = vmatprep.subr.mxu0 0.0
  %3279 = vmatpush1.msra.mxu0 %v2030
  %3280 = vmatprep.subr.mxu0 0.0
  %3281 = vmatpush1.msra.mxu0 %v2029
  %3282 = vmatprep.subr.mxu0 0.0
  %3283 = vmatpush1.msra.mxu0 %v2028
  %3284 = vmatprep.subr.mxu0 0.0
  %3285 = vmatpush1.msra.mxu0 %v2027
  %3286 = vmatprep.subr.mxu0 0.0
  %3287 = vmatpush2.msra.mxu0 %v2058
  %3288 = vmatprep.subr.mxu0 0.0
  %3289 = vmatpush2.msra.mxu0 %v2057
  %3290 = vmatprep.subr.mxu0 0.0
  %3291 = vmatpush2.msra.mxu0 %v2056
  %3292 = vmatprep.subr.mxu0 0.0
  %3293 = vmatpush2.msra.mxu0 %v2055
  %3294 = vmatprep.subr.mxu0 0.0
  %3295 = vmatpush2.msra.mxu0 %v2054
  %3296 = vmatprep.subr.mxu0 0.0
  %3297 = vmatpush2.msra.mxu0 %v2053
  %3298 = vmatprep.subr.mxu0 0.0
  %3299 = vmatpush2.msra.mxu0 %v2052
  %3300 = vmatprep.subr.mxu0 0.0
  %3301 = vmatpush2.msra.mxu0 %v2051
  %3302 = vmatprep.subr.mxu0 0.0
  %3303 = vmatpush2.msra.mxu0 %v2050
  %3304 = vmatprep.subr.mxu0 0.0
  %3305 = vmatpush2.msra.mxu0 %v2049
  %3306 = vmatprep.subr.mxu0 0.0
  %3307 = vmatpush2.msra.mxu0 %v2048
  %3308 = vmatprep.subr.mxu0 0.0
  %3309 = vmatpush2.msra.mxu0 %v2047
  %3310 = vmatprep.subr.mxu0 0.0
  %3311 = vmatpush2.msra.mxu0 %v2046
  %3312 = vmatprep.subr.mxu0 0.0
  %3313 = vmatpush2.msra.mxu0 %v2045
  %3314 = vmatprep.subr.mxu0 0.0
  %3315 = vmatpush2.msra.mxu0 %v2044
  %3316 = vmatprep.subr.mxu0 0.0
  %3317 = vmatpush2.msra.mxu0 %v2043
  %3318 = vmatprep.mubr.f32.mxu0 %v3179
  %3319 = vmatmul.mubr.f32.gmra.mxu0 %v3178
  %v3320 = vpop.f32.mrf.mxu0
  %v3321 = vadd.f32 %v3251, %v3320
  %v3322 = vpop.f32.mrf.mxu0
  %3323 = vdwg.mxu0
  %3324 = vmatprep.subr.mxu0 0.0
  %3325 = vmatpush1.msra.mxu0 %v2074
  %3326 = vmatprep.subr.mxu0 0.0
  %3327 = vmatpush1.msra.mxu0 %v2073
  %3328 = vmatprep.subr.mxu0 0.0
  %3329 = vmatpush1.msra.mxu0 %v2072
  %3330 = vmatprep.subr.mxu0 0.0
  %3331 = vmatpush1.msra.mxu0 %v2071
  %3332 = vmatprep.subr.mxu0 0.0
  %3333 = vmatpush1.msra.mxu0 %v2070
  %3334 = vmatprep.subr.mxu0 0.0
  %3335 = vmatpush1.msra.mxu0 %v2069
  %3336 = vmatprep.subr.mxu0 0.0
  %3337 = vmatpush1.msra.mxu0 %v2068
  %3338 = vmatprep.subr.mxu0 0.0
  %3339 = vmatpush1.msra.mxu0 %v2067
  %3340 = vmatprep.subr.mxu0 0.0
  %3341 = vmatpush1.msra.mxu0 %v2066
  %3342 = vmatprep.subr.mxu0 0.0
  %3343 = vmatpush1.msra.mxu0 %v2065
  %3344 = vmatprep.subr.mxu0 0.0
  %3345 = vmatpush1.msra.mxu0 %v2064
  %3346 = vmatprep.subr.mxu0 0.0
  %3347 = vmatpush1.msra.mxu0 %v2063
  %3348 = vmatprep.subr.mxu0 0.0
  %3349 = vmatpush1.msra.mxu0 %v2062
  %3350 = vmatprep.subr.mxu0 0.0
  %3351 = vmatpush1.msra.mxu0 %v2061
  %3352 = vmatprep.subr.mxu0 0.0
  %3353 = vmatpush1.msra.mxu0 %v2060
  %3354 = vmatprep.subr.mxu0 0.0
  %3355 = vmatpush1.msra.mxu0 %v2059
  %3356 = vmatprep.subr.mxu0 0.0
  %3357 = vmatpush2.msra.mxu0 %v2090
  %3358 = vmatprep.subr.mxu0 0.0
  %3359 = vmatpush2.msra.mxu0 %v2089
  %3360 = vmatprep.subr.mxu0 0.0
  %3361 = vmatpush2.msra.mxu0 %v2088
  %3362 = vmatprep.subr.mxu0 0.0
  %3363 = vmatpush2.msra.mxu0 %v2087
  %3364 = vmatprep.subr.mxu0 0.0
  %3365 = vmatpush2.msra.mxu0 %v2086
  %3366 = vmatprep.subr.mxu0 0.0
  %3367 = vmatpush2.msra.mxu0 %v2085
  %3368 = vmatprep.subr.mxu0 0.0
  %3369 = vmatpush2.msra.mxu0 %v2084
  %3370 = vmatprep.subr.mxu0 0.0
  %3371 = vmatpush2.msra.mxu0 %v2083
  %3372 = vmatprep.subr.mxu0 0.0
  %3373 = vmatpush2.msra.mxu0 %v2082
  %3374 = vmatprep.subr.mxu0 0.0
  %3375 = vmatpush2.msra.mxu0 %v2081
  %3376 = vmatprep.subr.mxu0 0.0
  %3377 = vmatpush2.msra.mxu0 %v2080
  %3378 = vmatprep.subr.mxu0 0.0
  %3379 = vmatpush2.msra.mxu0 %v2079
  %3380 = vmatprep.subr.mxu0 0.0
  %3381 = vmatpush2.msra.mxu0 %v2078
  %3382 = vmatprep.subr.mxu0 0.0
  %3383 = vmatpush2.msra.mxu0 %v2077
  %3384 = vmatprep.subr.mxu0 0.0
  %3385 = vmatpush2.msra.mxu0 %v2076
  %3386 = vmatprep.subr.mxu0 0.0
  %3387 = vmatpush2.msra.mxu0 %v2075
  %3388 = vmatprep.mubr.f32.mxu0 %v3181
  %3389 = vmatmul.mubr.f32.gmra.mxu0 %v3180
  %v3390 = vpop.f32.mrf.mxu0
  %v3391 = vadd.f32 %v3321, %v3390
  %v3392 = vpop.f32.mrf.mxu0
  %3393 = vdwg.mxu0
  %3394 = vmatprep.subr.mxu0 0.0
  %3395 = vmatpush1.msra.mxu0 %v2106
  %3396 = vmatprep.subr.mxu0 0.0
  %3397 = vmatpush1.msra.mxu0 %v2105
  %3398 = vmatprep.subr.mxu0 0.0
  %3399 = vmatpush1.msra.mxu0 %v2104
  %3400 = vmatprep.subr.mxu0 0.0
  %3401 = vmatpush1.msra.mxu0 %v2103
  %3402 = vmatprep.subr.mxu0 0.0
  %3403 = vmatpush1.msra.mxu0 %v2102
  %3404 = vmatprep.subr.mxu0 0.0
  %3405 = vmatpush1.msra.mxu0 %v2101
  %3406 = vmatprep.subr.mxu0 0.0
  %3407 = vmatpush1.msra.mxu0 %v2100
  %3408 = vmatprep.subr.mxu0 0.0
  %3409 = vmatpush1.msra.mxu0 %v2099
  %3410 = vmatprep.subr.mxu0 0.0
  %3411 = vmatpush1.msra.mxu0 %v2098
  %3412 = vmatprep.subr.mxu0 0.0
  %3413 = vmatpush1.msra.mxu0 %v2097
  %3414 = vmatprep.subr.mxu0 0.0
  %3415 = vmatpush1.msra.mxu0 %v2096
  %3416 = vmatprep.subr.mxu0 0.0
  %3417 = vmatpush1.msra.mxu0 %v2095
  %3418 = vmatprep.subr.mxu0 0.0
  %3419 = vmatpush1.msra.mxu0 %v2094
  %3420 = vmatprep.subr.mxu0 0.0
  %3421 = vmatpush1.msra.mxu0 %v2093
  %3422 = vmatprep.subr.mxu0 0.0
  %3423 = vmatpush1.msra.mxu0 %v2092
  %3424 = vmatprep.subr.mxu0 0.0
  %3425 = vmatpush1.msra.mxu0 %v2091
  %3426 = vmatprep.subr.mxu0 0.0
  %3427 = vmatpush2.msra.mxu0 %v2122
  %3428 = vmatprep.subr.mxu0 0.0
  %3429 = vmatpush2.msra.mxu0 %v2121
  %3430 = vmatprep.subr.mxu0 0.0
  %3431 = vmatpush2.msra.mxu0 %v2120
  %3432 = vmatprep.subr.mxu0 0.0
  %3433 = vmatpush2.msra.mxu0 %v2119
  %3434 = vmatprep.subr.mxu0 0.0
  %3435 = vmatpush2.msra.mxu0 %v2118
  %3436 = vmatprep.subr.mxu0 0.0
  %3437 = vmatpush2.msra.mxu0 %v2117
  %3438 = vmatprep.subr.mxu0 0.0
  %3439 = vmatpush2.msra.mxu0 %v2116
  %3440 = vmatprep.subr.mxu0 0.0
  %3441 = vmatpush2.msra.mxu0 %v2115
  %3442 = vmatprep.subr.mxu0 0.0
  %3443 = vmatpush2.msra.mxu0 %v2114
  %3444 = vmatprep.subr.mxu0 0.0
  %3445 = vmatpush2.msra.mxu0 %v2113
  %3446 = vmatprep.subr.mxu0 0.0
  %3447 = vmatpush2.msra.mxu0 %v2112
  %3448 = vmatprep.subr.mxu0 0.0
  %3449 = vmatpush2.msra.mxu0 %v2111
  %3450 = vmatprep.subr.mxu0 0.0
  %3451 = vmatpush2.msra.mxu0 %v2110
  %3452 = vmatprep.subr.mxu0 0.0
  %3453 = vmatpush2.msra.mxu0 %v2109
  %3454 = vmatprep.subr.mxu0 0.0
  %3455 = vmatpush2.msra.mxu0 %v2108
  %3456 = vmatprep.subr.mxu0 0.0
  %3457 = vmatpush2.msra.mxu0 %v2107
  %3458 = vmatprep.mubr.f32.mxu0 %v3183
  %3459 = vmatmul.mubr.f32.gmra.mxu0 %v3182
  %v3460 = vpop.f32.mrf.mxu0
  %v3461 = vadd.f32 %v3391, %v3460
  %v3462 = vpop.f32.mrf.mxu0
  %3463 = vdwg.mxu0
  %v3464 = vmul.f32 %v3128, 0.95
  %v3465 = vadd.f32 %v3464, %v3461
  %v3466 = vsub.f32 %v3465, %v3131
  %vm3467 = vcmp.gt.f32.partialorder %v3466, 1.0
  %v3468 = vsel %vm3467, 1, 0
  %v3469 = vcvt.s32.f32 %v3468
  %s3470 = scalar_lea.vmem %s5, 24
  %3471 = vst [vmem:[%s3470] sm:$0xff] %v3469
  %s3472 = scalar_lea.vmem %s6, 24
  %3473 = vst [vmem:[%s3472] sm:$0xff] %v3466
  %v3474 = vmul.f32 %v3152, 0.95
  %v3475 = vmul.f32 %v3153, 0.95
  %v3476 = vmul.f32 %v3154, 0.95
  %v3477 = vmul.f32 %v3155, 0.95
  %v3478 = vmul.f32 %v3156, 0.95
  %v3479 = vmul.f32 %v3157, 0.95
  %v3480 = vmul.f32 %v3158, 0.95
  %v3481 = vmul.f32 %v3159, 0.95
  %v3482 = vadd.f32 %v3474, %v1139
  %v3483 = vadd.f32 %v3475, %v1141
  %v3484 = vadd.f32 %v3476, %v1423
  %v3485 = vadd.f32 %v3477, %v1425
  %v3486 = vadd.f32 %v3478, %v1707
  %v3487 = vadd.f32 %v3479, %v1709
  %v3488 = vadd.f32 %v3480, %v1991
  %v3489 = vadd.f32 %v3481, %v1993
  %v3490 = vsub.f32 %v3482, %v3176
  %v3491 = vsub.f32 %v3483, %v3177
  %v3492 = vsub.f32 %v3484, %v3178
  %v3493 = vsub.f32 %v3485, %v3179
  %v3494 = vsub.f32 %v3486, %v3180
  %v3495 = vsub.f32 %v3487, %v3181
  %v3496 = vsub.f32 %v3488, %v3182
  %v3497 = vsub.f32 %v3489, %v3183
  %vm3498 = vcmp.gt.f32.partialorder %v3490, 1.0
  %vm3499 = vcmp.gt.f32.partialorder %v3491, 1.0
  %vm3500 = vcmp.gt.f32.partialorder %v3492, 1.0
  %vm3501 = vcmp.gt.f32.partialorder %v3493, 1.0
  %vm3502 = vcmp.gt.f32.partialorder %v3494, 1.0
  %vm3503 = vcmp.gt.f32.partialorder %v3495, 1.0
  %vm3504 = vcmp.gt.f32.partialorder %v3496, 1.0
  %vm3505 = vcmp.gt.f32.partialorder %v3497, 1.0
  %v3506 = vsel %vm3498, 1, 0
  %v3507 = vsel %vm3499, 1, 0
  %v3508 = vsel %vm3500, 1, 0
  %v3509 = vsel %vm3501, 1, 0
  %v3510 = vsel %vm3502, 1, 0
  %v3511 = vsel %vm3503, 1, 0
  %v3512 = vsel %vm3504, 1, 0
  %v3513 = vsel %vm3505, 1, 0
  %v3514 = vcvt.s32.f32 %v3506
  %v3515 = vcvt.s32.f32 %v3507
  %v3516 = vcvt.s32.f32 %v3508
  %v3517 = vcvt.s32.f32 %v3509
  %v3518 = vcvt.s32.f32 %v3510
  %v3519 = vcvt.s32.f32 %v3511
  %v3520 = vcvt.s32.f32 %v3512
  %v3521 = vcvt.s32.f32 %v3513
  %3522 = vmatprep.subr.mxu0 0.0
  %3523 = vmatpush1.msra.mxu0 %v2010
  %3524 = vmatprep.subr.mxu0 0.0
  %3525 = vmatpush1.msra.mxu0 %v2009
  %3526 = vmatprep.subr.mxu0 0.0
  %3527 = vmatpush1.msra.mxu0 %v2008
  %3528 = vmatprep.subr.mxu0 0.0
  %3529 = vmatpush1.msra.mxu0 %v2007
  %3530 = vmatprep.subr.mxu0 0.0
  %3531 = vmatpush1.msra.mxu0 %v2006
  %3532 = vmatprep.subr.mxu0 0.0
  %3533 = vmatpush1.msra.mxu0 %v2005
  %3534 = vmatprep.subr.mxu0 0.0
  %3535 = vmatpush1.msra.mxu0 %v2004
  %3536 = vmatprep.subr.mxu0 0.0
  %3537 = vmatpush1.msra.mxu0 %v2003
  %3538 = vmatprep.subr.mxu0 0.0
  %3539 = vmatpush1.msra.mxu0 %v2002
  %3540 = vmatprep.subr.mxu0 0.0
  %3541 = vmatpush1.msra.mxu0 %v2001
  %3542 = vmatprep.subr.mxu0 0.0
  %3543 = vmatpush1.msra.mxu0 %v2000
  %3544 = vmatprep.subr.mxu0 0.0
  %3545 = vmatpush1.msra.mxu0 %v1999
  %3546 = vmatprep.subr.mxu0 0.0
  %3547 = vmatpush1.msra.mxu0 %v1998
  %3548 = vmatprep.subr.mxu0 0.0
  %3549 = vmatpush1.msra.mxu0 %v1997
  %3550 = vmatprep.subr.mxu0 0.0
  %3551 = vmatpush1.msra.mxu0 %v1996
  %3552 = vmatprep.subr.mxu0 0.0
  %3553 = vmatpush1.msra.mxu0 %v1995
  %3554 = vmatprep.subr.mxu0 0.0
  %3555 = vmatpush2.msra.mxu0 %v2026
  %3556 = vmatprep.subr.mxu0 0.0
  %3557 = vmatpush2.msra.mxu0 %v2025
  %3558 = vmatprep.subr.mxu0 0.0
  %3559 = vmatpush2.msra.mxu0 %v2024
  %3560 = vmatprep.subr.mxu0 0.0
  %3561 = vmatpush2.msra.mxu0 %v2023
  %3562 = vmatprep.subr.mxu0 0.0
  %3563 = vmatpush2.msra.mxu0 %v2022
  %3564 = vmatprep.subr.mxu0 0.0
  %3565 = vmatpush2.msra.mxu0 %v2021
  %3566 = vmatprep.subr.mxu0 0.0
  %3567 = vmatpush2.msra.mxu0 %v2020
  %3568 = vmatprep.subr.mxu0 0.0
  %3569 = vmatpush2.msra.mxu0 %v2019
  %3570 = vmatprep.subr.mxu0 0.0
  %3571 = vmatpush2.msra.mxu0 %v2018
  %3572 = vmatprep.subr.mxu0 0.0
  %3573 = vmatpush2.msra.mxu0 %v2017
  %3574 = vmatprep.subr.mxu0 0.0
  %3575 = vmatpush2.msra.mxu0 %v2016
  %3576 = vmatprep.subr.mxu0 0.0
  %3577 = vmatpush2.msra.mxu0 %v2015
  %3578 = vmatprep.subr.mxu0 0.0
  %3579 = vmatpush2.msra.mxu0 %v2014
  %3580 = vmatprep.subr.mxu0 0.0
  %3581 = vmatpush2.msra.mxu0 %v2013
  %3582 = vmatprep.subr.mxu0 0.0
  %3583 = vmatpush2.msra.mxu0 %v2012
  %3584 = vmatprep.subr.mxu0 0.0
  %3585 = vmatpush2.msra.mxu0 %v2011
  %3586 = vmatprep.mubr.f32.mxu0 %v3515
  %3587 = vmatmul.mubr.f32.gmra.mxu0 %v3514
  %v3588 = vpop.f32.mrf.mxu0
  %v3589 = vadd.f32 %v2171, %v3588
  %v3590 = vpop.f32.mrf.mxu0
  %3591 = vdwg.mxu0
  %3592 = vmatprep.subr.mxu0 0.0
  %3593 = vmatpush1.msra.mxu0 %v2042
  %3594 = vmatprep.subr.mxu0 0.0
  %3595 = vmatpush1.msra.mxu0 %v2041
  %3596 = vmatprep.subr.mxu0 0.0
  %3597 = vmatpush1.msra.mxu0 %v2040
  %3598 = vmatprep.subr.mxu0 0.0
  %3599 = vmatpush1.msra.mxu0 %v2039
  %3600 = vmatprep.subr.mxu0 0.0
  %3601 = vmatpush1.msra.mxu0 %v2038
  %3602 = vmatprep.subr.mxu0 0.0
  %3603 = vmatpush1.msra.mxu0 %v2037
  %3604 = vmatprep.subr.mxu0 0.0
  %3605 = vmatpush1.msra.mxu0 %v2036
  %3606 = vmatprep.subr.mxu0 0.0
  %3607 = vmatpush1.msra.mxu0 %v2035
  %3608 = vmatprep.subr.mxu0 0.0
  %3609 = vmatpush1.msra.mxu0 %v2034
  %3610 = vmatprep.subr.mxu0 0.0
  %3611 = vmatpush1.msra.mxu0 %v2033
  %3612 = vmatprep.subr.mxu0 0.0
  %3613 = vmatpush1.msra.mxu0 %v2032
  %3614 = vmatprep.subr.mxu0 0.0
  %3615 = vmatpush1.msra.mxu0 %v2031
  %3616 = vmatprep.subr.mxu0 0.0
  %3617 = vmatpush1.msra.mxu0 %v2030
  %3618 = vmatprep.subr.mxu0 0.0
  %3619 = vmatpush1.msra.mxu0 %v2029
  %3620 = vmatprep.subr.mxu0 0.0
  %3621 = vmatpush1.msra.mxu0 %v2028
  %3622 = vmatprep.subr.mxu0 0.0
  %3623 = vmatpush1.msra.mxu0 %v2027
  %3624 = vmatprep.subr.mxu0 0.0
  %3625 = vmatpush2.msra.mxu0 %v2058
  %3626 = vmatprep.subr.mxu0 0.0
  %3627 = vmatpush2.msra.mxu0 %v2057
  %3628 = vmatprep.subr.mxu0 0.0
  %3629 = vmatpush2.msra.mxu0 %v2056
  %3630 = vmatprep.subr.mxu0 0.0
  %3631 = vmatpush2.msra.mxu0 %v2055
  %3632 = vmatprep.subr.mxu0 0.0
  %3633 = vmatpush2.msra.mxu0 %v2054
  %3634 = vmatprep.subr.mxu0 0.0
  %3635 = vmatpush2.msra.mxu0 %v2053
  %3636 = vmatprep.subr.mxu0 0.0
  %3637 = vmatpush2.msra.mxu0 %v2052
  %3638 = vmatprep.subr.mxu0 0.0
  %3639 = vmatpush2.msra.mxu0 %v2051
  %3640 = vmatprep.subr.mxu0 0.0
  %3641 = vmatpush2.msra.mxu0 %v2050
  %3642 = vmatprep.subr.mxu0 0.0
  %3643 = vmatpush2.msra.mxu0 %v2049
  %3644 = vmatprep.subr.mxu0 0.0
  %3645 = vmatpush2.msra.mxu0 %v2048
  %3646 = vmatprep.subr.mxu0 0.0
  %3647 = vmatpush2.msra.mxu0 %v2047
  %3648 = vmatprep.subr.mxu0 0.0
  %3649 = vmatpush2.msra.mxu0 %v2046
  %3650 = vmatprep.subr.mxu0 0.0
  %3651 = vmatpush2.msra.mxu0 %v2045
  %3652 = vmatprep.subr.mxu0 0.0
  %3653 = vmatpush2.msra.mxu0 %v2044
  %3654 = vmatprep.subr.mxu0 0.0
  %3655 = vmatpush2.msra.mxu0 %v2043
  %3656 = vmatprep.mubr.f32.mxu0 %v3517
  %3657 = vmatmul.mubr.f32.gmra.mxu0 %v3516
  %v3658 = vpop.f32.mrf.mxu0
  %v3659 = vadd.f32 %v3589, %v3658
  %v3660 = vpop.f32.mrf.mxu0
  %3661 = vdwg.mxu0
  %3662 = vmatprep.subr.mxu0 0.0
  %3663 = vmatpush1.msra.mxu0 %v2074
  %3664 = vmatprep.subr.mxu0 0.0
  %3665 = vmatpush1.msra.mxu0 %v2073
  %3666 = vmatprep.subr.mxu0 0.0
  %3667 = vmatpush1.msra.mxu0 %v2072
  %3668 = vmatprep.subr.mxu0 0.0
  %3669 = vmatpush1.msra.mxu0 %v2071
  %3670 = vmatprep.subr.mxu0 0.0
  %3671 = vmatpush1.msra.mxu0 %v2070
  %3672 = vmatprep.subr.mxu0 0.0
  %3673 = vmatpush1.msra.mxu0 %v2069
  %3674 = vmatprep.subr.mxu0 0.0
  %3675 = vmatpush1.msra.mxu0 %v2068
  %3676 = vmatprep.subr.mxu0 0.0
  %3677 = vmatpush1.msra.mxu0 %v2067
  %3678 = vmatprep.subr.mxu0 0.0
  %3679 = vmatpush1.msra.mxu0 %v2066
  %3680 = vmatprep.subr.mxu0 0.0
  %3681 = vmatpush1.msra.mxu0 %v2065
  %3682 = vmatprep.subr.mxu0 0.0
  %3683 = vmatpush1.msra.mxu0 %v2064
  %3684 = vmatprep.subr.mxu0 0.0
  %3685 = vmatpush1.msra.mxu0 %v2063
  %3686 = vmatprep.subr.mxu0 0.0
  %3687 = vmatpush1.msra.mxu0 %v2062
  %3688 = vmatprep.subr.mxu0 0.0
  %3689 = vmatpush1.msra.mxu0 %v2061
  %3690 = vmatprep.subr.mxu0 0.0
  %3691 = vmatpush1.msra.mxu0 %v2060
  %3692 = vmatprep.subr.mxu0 0.0
  %3693 = vmatpush1.msra.mxu0 %v2059
  %3694 = vmatprep.subr.mxu0 0.0
  %3695 = vmatpush2.msra.mxu0 %v2090
  %3696 = vmatprep.subr.mxu0 0.0
  %3697 = vmatpush2.msra.mxu0 %v2089
  %3698 = vmatprep.subr.mxu0 0.0
  %3699 = vmatpush2.msra.mxu0 %v2088
  %3700 = vmatprep.subr.mxu0 0.0
  %3701 = vmatpush2.msra.mxu0 %v2087
  %3702 = vmatprep.subr.mxu0 0.0
  %3703 = vmatpush2.msra.mxu0 %v2086
  %3704 = vmatprep.subr.mxu0 0.0
  %3705 = vmatpush2.msra.mxu0 %v2085
  %3706 = vmatprep.subr.mxu0 0.0
  %3707 = vmatpush2.msra.mxu0 %v2084
  %3708 = vmatprep.subr.mxu0 0.0
  %3709 = vmatpush2.msra.mxu0 %v2083
  %3710 = vmatprep.subr.mxu0 0.0
  %3711 = vmatpush2.msra.mxu0 %v2082
  %3712 = vmatprep.subr.mxu0 0.0
  %3713 = vmatpush2.msra.mxu0 %v2081
  %3714 = vmatprep.subr.mxu0 0.0
  %3715 = vmatpush2.msra.mxu0 %v2080
  %3716 = vmatprep.subr.mxu0 0.0
  %3717 = vmatpush2.msra.mxu0 %v2079
  %3718 = vmatprep.subr.mxu0 0.0
  %3719 = vmatpush2.msra.mxu0 %v2078
  %3720 = vmatprep.subr.mxu0 0.0
  %3721 = vmatpush2.msra.mxu0 %v2077
  %3722 = vmatprep.subr.mxu0 0.0
  %3723 = vmatpush2.msra.mxu0 %v2076
  %3724 = vmatprep.subr.mxu0 0.0
  %3725 = vmatpush2.msra.mxu0 %v2075
  %3726 = vmatprep.mubr.f32.mxu0 %v3519
  %3727 = vmatmul.mubr.f32.gmra.mxu0 %v3518
  %v3728 = vpop.f32.mrf.mxu0
  %v3729 = vadd.f32 %v3659, %v3728
  %v3730 = vpop.f32.mrf.mxu0
  %3731 = vdwg.mxu0
  %3732 = vmatprep.subr.mxu0 0.0
  %3733 = vmatpush1.msra.mxu0 %v2106
  %3734 = vmatprep.subr.mxu0 0.0
  %3735 = vmatpush1.msra.mxu0 %v2105
  %3736 = vmatprep.subr.mxu0 0.0
  %3737 = vmatpush1.msra.mxu0 %v2104
  %3738 = vmatprep.subr.mxu0 0.0
  %3739 = vmatpush1.msra.mxu0 %v2103
  %3740 = vmatprep.subr.mxu0 0.0
  %3741 = vmatpush1.msra.mxu0 %v2102
  %3742 = vmatprep.subr.mxu0 0.0
  %3743 = vmatpush1.msra.mxu0 %v2101
  %3744 = vmatprep.subr.mxu0 0.0
  %3745 = vmatpush1.msra.mxu0 %v2100
  %3746 = vmatprep.subr.mxu0 0.0
  %3747 = vmatpush1.msra.mxu0 %v2099
  %3748 = vmatprep.subr.mxu0 0.0
  %3749 = vmatpush1.msra.mxu0 %v2098
  %3750 = vmatprep.subr.mxu0 0.0
  %3751 = vmatpush1.msra.mxu0 %v2097
  %3752 = vmatprep.subr.mxu0 0.0
  %3753 = vmatpush1.msra.mxu0 %v2096
  %3754 = vmatprep.subr.mxu0 0.0
  %3755 = vmatpush1.msra.mxu0 %v2095
  %3756 = vmatprep.subr.mxu0 0.0
  %3757 = vmatpush1.msra.mxu0 %v2094
  %3758 = vmatprep.subr.mxu0 0.0
  %3759 = vmatpush1.msra.mxu0 %v2093
  %3760 = vmatprep.subr.mxu0 0.0
  %3761 = vmatpush1.msra.mxu0 %v2092
  %3762 = vmatprep.subr.mxu0 0.0
  %3763 = vmatpush1.msra.mxu0 %v2091
  %3764 = vmatprep.subr.mxu0 0.0
  %3765 = vmatpush2.msra.mxu0 %v2122
  %3766 = vmatprep.subr.mxu0 0.0
  %3767 = vmatpush2.msra.mxu0 %v2121
  %3768 = vmatprep.subr.mxu0 0.0
  %3769 = vmatpush2.msra.mxu0 %v2120
  %3770 = vmatprep.subr.mxu0 0.0
  %3771 = vmatpush2.msra.mxu0 %v2119
  %3772 = vmatprep.subr.mxu0 0.0
  %3773 = vmatpush2.msra.mxu0 %v2118
  %3774 = vmatprep.subr.mxu0 0.0
  %3775 = vmatpush2.msra.mxu0 %v2117
  %3776 = vmatprep.subr.mxu0 0.0
  %3777 = vmatpush2.msra.mxu0 %v2116
  %3778 = vmatprep.subr.mxu0 0.0
  %3779 = vmatpush2.msra.mxu0 %v2115
  %3780 = vmatprep.subr.mxu0 0.0
  %3781 = vmatpush2.msra.mxu0 %v2114
  %3782 = vmatprep.subr.mxu0 0.0
  %3783 = vmatpush2.msra.mxu0 %v2113
  %3784 = vmatprep.subr.mxu0 0.0
  %3785 = vmatpush2.msra.mxu0 %v2112
  %3786 = vmatprep.subr.mxu0 0.0
  %3787 = vmatpush2.msra.mxu0 %v2111
  %3788 = vmatprep.subr.mxu0 0.0
  %3789 = vmatpush2.msra.mxu0 %v2110
  %3790 = vmatprep.subr.mxu0 0.0
  %3791 = vmatpush2.msra.mxu0 %v2109
  %3792 = vmatprep.subr.mxu0 0.0
  %3793 = vmatpush2.msra.mxu0 %v2108
  %3794 = vmatprep.subr.mxu0 0.0
  %3795 = vmatpush2.msra.mxu0 %v2107
  %3796 = vmatprep.mubr.f32.mxu0 %v3521
  %3797 = vmatmul.mubr.f32.gmra.mxu0 %v3520
  %v3798 = vpop.f32.mrf.mxu0
  %v3799 = vadd.f32 %v3729, %v3798
  %v3800 = vpop.f32.mrf.mxu0
  %3801 = vdwg.mxu0
  %v3802 = vmul.f32 %v3466, 0.95
  %v3803 = vadd.f32 %v3802, %v3799
  %v3804 = vsub.f32 %v3803, %v3469
  %vm3805 = vcmp.gt.f32.partialorder %v3804, 1.0
  %v3806 = vsel %vm3805, 1, 0
  %v3807 = vcvt.s32.f32 %v3806
  %s3808 = scalar_lea.vmem %s5, 32
  %3809 = vst [vmem:[%s3808] sm:$0xff] %v3807
  %s3810 = scalar_lea.vmem %s6, 32
  %3811 = vst [vmem:[%s3810] sm:$0xff] %v3804
  %v3812 = vmul.f32 %v3490, 0.95
  %v3813 = vmul.f32 %v3491, 0.95
  %v3814 = vmul.f32 %v3492, 0.95
  %v3815 = vmul.f32 %v3493, 0.95
  %v3816 = vmul.f32 %v3494, 0.95
  %v3817 = vmul.f32 %v3495, 0.95
  %v3818 = vmul.f32 %v3496, 0.95
  %v3819 = vmul.f32 %v3497, 0.95
  %v3820 = vadd.f32 %v3812, %v1139
  %v3821 = vadd.f32 %v3813, %v1141
  %v3822 = vadd.f32 %v3814, %v1423
  %v3823 = vadd.f32 %v3815, %v1425
  %v3824 = vadd.f32 %v3816, %v1707
  %v3825 = vadd.f32 %v3817, %v1709
  %v3826 = vadd.f32 %v3818, %v1991
  %v3827 = vadd.f32 %v3819, %v1993
  %v3828 = vsub.f32 %v3820, %v3514
  %v3829 = vsub.f32 %v3821, %v3515
  %v3830 = vsub.f32 %v3822, %v3516
  %v3831 = vsub.f32 %v3823, %v3517
  %v3832 = vsub.f32 %v3824, %v3518
  %v3833 = vsub.f32 %v3825, %v3519
  %v3834 = vsub.f32 %v3826, %v3520
  %v3835 = vsub.f32 %v3827, %v3521
  %vm3836 = vcmp.gt.f32.partialorder %v3828, 1.0
  %vm3837 = vcmp.gt.f32.partialorder %v3829, 1.0
  %vm3838 = vcmp.gt.f32.partialorder %v3830, 1.0
  %vm3839 = vcmp.gt.f32.partialorder %v3831, 1.0
  %vm3840 = vcmp.gt.f32.partialorder %v3832, 1.0
  %vm3841 = vcmp.gt.f32.partialorder %v3833, 1.0
  %vm3842 = vcmp.gt.f32.partialorder %v3834, 1.0
  %vm3843 = vcmp.gt.f32.partialorder %v3835, 1.0
  %v3844 = vsel %vm3836, 1, 0
  %v3845 = vsel %vm3837, 1, 0
  %v3846 = vsel %vm3838, 1, 0
  %v3847 = vsel %vm3839, 1, 0
  %v3848 = vsel %vm3840, 1, 0
  %v3849 = vsel %vm3841, 1, 0
  %v3850 = vsel %vm3842, 1, 0
  %v3851 = vsel %vm3843, 1, 0
  %v3852 = vcvt.s32.f32 %v3844
  %v3853 = vcvt.s32.f32 %v3845
  %v3854 = vcvt.s32.f32 %v3846
  %v3855 = vcvt.s32.f32 %v3847
  %v3856 = vcvt.s32.f32 %v3848
  %v3857 = vcvt.s32.f32 %v3849
  %v3858 = vcvt.s32.f32 %v3850
  %v3859 = vcvt.s32.f32 %v3851
  %3860 = vmatprep.subr.mxu0 0.0
  %3861 = vmatpush1.msra.mxu0 %v2010
  %3862 = vmatprep.subr.mxu0 0.0
  %3863 = vmatpush1.msra.mxu0 %v2009
  %3864 = vmatprep.subr.mxu0 0.0
  %3865 = vmatpush1.msra.mxu0 %v2008
  %3866 = vmatprep.subr.mxu0 0.0
  %3867 = vmatpush1.msra.mxu0 %v2007
  %3868 = vmatprep.subr.mxu0 0.0
  %3869 = vmatpush1.msra.mxu0 %v2006
  %3870 = vmatprep.subr.mxu0 0.0
  %3871 = vmatpush1.msra.mxu0 %v2005
  %3872 = vmatprep.subr.mxu0 0.0
  %3873 = vmatpush1.msra.mxu0 %v2004
  %3874 = vmatprep.subr.mxu0 0.0
  %3875 = vmatpush1.msra.mxu0 %v2003
  %3876 = vmatprep.subr.mxu0 0.0
  %3877 = vmatpush1.msra.mxu0 %v2002
  %3878 = vmatprep.subr.mxu0 0.0
  %3879 = vmatpush1.msra.mxu0 %v2001
  %3880 = vmatprep.subr.mxu0 0.0
  %3881 = vmatpush1.msra.mxu0 %v2000
  %3882 = vmatprep.subr.mxu0 0.0
  %3883 = vmatpush1.msra.mxu0 %v1999
  %3884 = vmatprep.subr.mxu0 0.0
  %3885 = vmatpush1.msra.mxu0 %v1998
  %3886 = vmatprep.subr.mxu0 0.0
  %3887 = vmatpush1.msra.mxu0 %v1997
  %3888 = vmatprep.subr.mxu0 0.0
  %3889 = vmatpush1.msra.mxu0 %v1996
  %3890 = vmatprep.subr.mxu0 0.0
  %3891 = vmatpush1.msra.mxu0 %v1995
  %3892 = vmatprep.subr.mxu0 0.0
  %3893 = vmatpush2.msra.mxu0 %v2026
  %3894 = vmatprep.subr.mxu0 0.0
  %3895 = vmatpush2.msra.mxu0 %v2025
  %3896 = vmatprep.subr.mxu0 0.0
  %3897 = vmatpush2.msra.mxu0 %v2024
  %3898 = vmatprep.subr.mxu0 0.0
  %3899 = vmatpush2.msra.mxu0 %v2023
  %3900 = vmatprep.subr.mxu0 0.0
  %3901 = vmatpush2.msra.mxu0 %v2022
  %3902 = vmatprep.subr.mxu0 0.0
  %3903 = vmatpush2.msra.mxu0 %v2021
  %3904 = vmatprep.subr.mxu0 0.0
  %3905 = vmatpush2.msra.mxu0 %v2020
  %3906 = vmatprep.subr.mxu0 0.0
  %3907 = vmatpush2.msra.mxu0 %v2019
  %3908 = vmatprep.subr.mxu0 0.0
  %3909 = vmatpush2.msra.mxu0 %v2018
  %3910 = vmatprep.subr.mxu0 0.0
  %3911 = vmatpush2.msra.mxu0 %v2017
  %3912 = vmatprep.subr.mxu0 0.0
  %3913 = vmatpush2.msra.mxu0 %v2016
  %3914 = vmatprep.subr.mxu0 0.0
  %3915 = vmatpush2.msra.mxu0 %v2015
  %3916 = vmatprep.subr.mxu0 0.0
  %3917 = vmatpush2.msra.mxu0 %v2014
  %3918 = vmatprep.subr.mxu0 0.0
  %3919 = vmatpush2.msra.mxu0 %v2013
  %3920 = vmatprep.subr.mxu0 0.0
  %3921 = vmatpush2.msra.mxu0 %v2012
  %3922 = vmatprep.subr.mxu0 0.0
  %3923 = vmatpush2.msra.mxu0 %v2011
  %3924 = vmatprep.mubr.f32.mxu0 %v3853
  %3925 = vmatmul.mubr.f32.gmra.mxu0 %v3852
  %v3926 = vpop.f32.mrf.mxu0
  %v3927 = vadd.f32 %v2171, %v3926
  %v3928 = vpop.f32.mrf.mxu0
  %3929 = vdwg.mxu0
  %3930 = vmatprep.subr.mxu0 0.0
  %3931 = vmatpush1.msra.mxu0 %v2042
  %3932 = vmatprep.subr.mxu0 0.0
  %3933 = vmatpush1.msra.mxu0 %v2041
  %3934 = vmatprep.subr.mxu0 0.0
  %3935 = vmatpush1.msra.mxu0 %v2040
  %3936 = vmatprep.subr.mxu0 0.0
  %3937 = vmatpush1.msra.mxu0 %v2039
  %3938 = vmatprep.subr.mxu0 0.0
  %3939 = vmatpush1.msra.mxu0 %v2038
  %3940 = vmatprep.subr.mxu0 0.0
  %3941 = vmatpush1.msra.mxu0 %v2037
  %3942 = vmatprep.subr.mxu0 0.0
  %3943 = vmatpush1.msra.mxu0 %v2036
  %3944 = vmatprep.subr.mxu0 0.0
  %3945 = vmatpush1.msra.mxu0 %v2035
  %3946 = vmatprep.subr.mxu0 0.0
  %3947 = vmatpush1.msra.mxu0 %v2034
  %3948 = vmatprep.subr.mxu0 0.0
  %3949 = vmatpush1.msra.mxu0 %v2033
  %3950 = vmatprep.subr.mxu0 0.0
  %3951 = vmatpush1.msra.mxu0 %v2032
  %3952 = vmatprep.subr.mxu0 0.0
  %3953 = vmatpush1.msra.mxu0 %v2031
  %3954 = vmatprep.subr.mxu0 0.0
  %3955 = vmatpush1.msra.mxu0 %v2030
  %3956 = vmatprep.subr.mxu0 0.0
  %3957 = vmatpush1.msra.mxu0 %v2029
  %3958 = vmatprep.subr.mxu0 0.0
  %3959 = vmatpush1.msra.mxu0 %v2028
  %3960 = vmatprep.subr.mxu0 0.0
  %3961 = vmatpush1.msra.mxu0 %v2027
  %3962 = vmatprep.subr.mxu0 0.0
  %3963 = vmatpush2.msra.mxu0 %v2058
  %3964 = vmatprep.subr.mxu0 0.0
  %3965 = vmatpush2.msra.mxu0 %v2057
  %3966 = vmatprep.subr.mxu0 0.0
  %3967 = vmatpush2.msra.mxu0 %v2056
  %3968 = vmatprep.subr.mxu0 0.0
  %3969 = vmatpush2.msra.mxu0 %v2055
  %3970 = vmatprep.subr.mxu0 0.0
  %3971 = vmatpush2.msra.mxu0 %v2054
  %3972 = vmatprep.subr.mxu0 0.0
  %3973 = vmatpush2.msra.mxu0 %v2053
  %3974 = vmatprep.subr.mxu0 0.0
  %3975 = vmatpush2.msra.mxu0 %v2052
  %3976 = vmatprep.subr.mxu0 0.0
  %3977 = vmatpush2.msra.mxu0 %v2051
  %3978 = vmatprep.subr.mxu0 0.0
  %3979 = vmatpush2.msra.mxu0 %v2050
  %3980 = vmatprep.subr.mxu0 0.0
  %3981 = vmatpush2.msra.mxu0 %v2049
  %3982 = vmatprep.subr.mxu0 0.0
  %3983 = vmatpush2.msra.mxu0 %v2048
  %3984 = vmatprep.subr.mxu0 0.0
  %3985 = vmatpush2.msra.mxu0 %v2047
  %3986 = vmatprep.subr.mxu0 0.0
  %3987 = vmatpush2.msra.mxu0 %v2046
  %3988 = vmatprep.subr.mxu0 0.0
  %3989 = vmatpush2.msra.mxu0 %v2045
  %3990 = vmatprep.subr.mxu0 0.0
  %3991 = vmatpush2.msra.mxu0 %v2044
  %3992 = vmatprep.subr.mxu0 0.0
  %3993 = vmatpush2.msra.mxu0 %v2043
  %3994 = vmatprep.mubr.f32.mxu0 %v3855
  %3995 = vmatmul.mubr.f32.gmra.mxu0 %v3854
  %v3996 = vpop.f32.mrf.mxu0
  %v3997 = vadd.f32 %v3927, %v3996
  %v3998 = vpop.f32.mrf.mxu0
  %3999 = vdwg.mxu0
  %4000 = vmatprep.subr.mxu0 0.0
  %4001 = vmatpush1.msra.mxu0 %v2074
  %4002 = vmatprep.subr.mxu0 0.0
  %4003 = vmatpush1.msra.mxu0 %v2073
  %4004 = vmatprep.subr.mxu0 0.0
  %4005 = vmatpush1.msra.mxu0 %v2072
  %4006 = vmatprep.subr.mxu0 0.0
  %4007 = vmatpush1.msra.mxu0 %v2071
  %4008 = vmatprep.subr.mxu0 0.0
  %4009 = vmatpush1.msra.mxu0 %v2070
  %4010 = vmatprep.subr.mxu0 0.0
  %4011 = vmatpush1.msra.mxu0 %v2069
  %4012 = vmatprep.subr.mxu0 0.0
  %4013 = vmatpush1.msra.mxu0 %v2068
  %4014 = vmatprep.subr.mxu0 0.0
  %4015 = vmatpush1.msra.mxu0 %v2067
  %4016 = vmatprep.subr.mxu0 0.0
  %4017 = vmatpush1.msra.mxu0 %v2066
  %4018 = vmatprep.subr.mxu0 0.0
  %4019 = vmatpush1.msra.mxu0 %v2065
  %4020 = vmatprep.subr.mxu0 0.0
  %4021 = vmatpush1.msra.mxu0 %v2064
  %4022 = vmatprep.subr.mxu0 0.0
  %4023 = vmatpush1.msra.mxu0 %v2063
  %4024 = vmatprep.subr.mxu0 0.0
  %4025 = vmatpush1.msra.mxu0 %v2062
  %4026 = vmatprep.subr.mxu0 0.0
  %4027 = vmatpush1.msra.mxu0 %v2061
  %4028 = vmatprep.subr.mxu0 0.0
  %4029 = vmatpush1.msra.mxu0 %v2060
  %4030 = vmatprep.subr.mxu0 0.0
  %4031 = vmatpush1.msra.mxu0 %v2059
  %4032 = vmatprep.subr.mxu0 0.0
  %4033 = vmatpush2.msra.mxu0 %v2090
  %4034 = vmatprep.subr.mxu0 0.0
  %4035 = vmatpush2.msra.mxu0 %v2089
  %4036 = vmatprep.subr.mxu0 0.0
  %4037 = vmatpush2.msra.mxu0 %v2088
  %4038 = vmatprep.subr.mxu0 0.0
  %4039 = vmatpush2.msra.mxu0 %v2087
  %4040 = vmatprep.subr.mxu0 0.0
  %4041 = vmatpush2.msra.mxu0 %v2086
  %4042 = vmatprep.subr.mxu0 0.0
  %4043 = vmatpush2.msra.mxu0 %v2085
  %4044 = vmatprep.subr.mxu0 0.0
  %4045 = vmatpush2.msra.mxu0 %v2084
  %4046 = vmatprep.subr.mxu0 0.0
  %4047 = vmatpush2.msra.mxu0 %v2083
  %4048 = vmatprep.subr.mxu0 0.0
  %4049 = vmatpush2.msra.mxu0 %v2082
  %4050 = vmatprep.subr.mxu0 0.0
  %4051 = vmatpush2.msra.mxu0 %v2081
  %4052 = vmatprep.subr.mxu0 0.0
  %4053 = vmatpush2.msra.mxu0 %v2080
  %4054 = vmatprep.subr.mxu0 0.0
  %4055 = vmatpush2.msra.mxu0 %v2079
  %4056 = vmatprep.subr.mxu0 0.0
  %4057 = vmatpush2.msra.mxu0 %v2078
  %4058 = vmatprep.subr.mxu0 0.0
  %4059 = vmatpush2.msra.mxu0 %v2077
  %4060 = vmatprep.subr.mxu0 0.0
  %4061 = vmatpush2.msra.mxu0 %v2076
  %4062 = vmatprep.subr.mxu0 0.0
  %4063 = vmatpush2.msra.mxu0 %v2075
  %4064 = vmatprep.mubr.f32.mxu0 %v3857
  %4065 = vmatmul.mubr.f32.gmra.mxu0 %v3856
  %v4066 = vpop.f32.mrf.mxu0
  %v4067 = vadd.f32 %v3997, %v4066
  %v4068 = vpop.f32.mrf.mxu0
  %4069 = vdwg.mxu0
  %4070 = vmatprep.subr.mxu0 0.0
  %4071 = vmatpush1.msra.mxu0 %v2106
  %4072 = vmatprep.subr.mxu0 0.0
  %4073 = vmatpush1.msra.mxu0 %v2105
  %4074 = vmatprep.subr.mxu0 0.0
  %4075 = vmatpush1.msra.mxu0 %v2104
  %4076 = vmatprep.subr.mxu0 0.0
  %4077 = vmatpush1.msra.mxu0 %v2103
  %4078 = vmatprep.subr.mxu0 0.0
  %4079 = vmatpush1.msra.mxu0 %v2102
  %4080 = vmatprep.subr.mxu0 0.0
  %4081 = vmatpush1.msra.mxu0 %v2101
  %4082 = vmatprep.subr.mxu0 0.0
  %4083 = vmatpush1.msra.mxu0 %v2100
  %4084 = vmatprep.subr.mxu0 0.0
  %4085 = vmatpush1.msra.mxu0 %v2099
  %4086 = vmatprep.subr.mxu0 0.0
  %4087 = vmatpush1.msra.mxu0 %v2098
  %4088 = vmatprep.subr.mxu0 0.0
  %4089 = vmatpush1.msra.mxu0 %v2097
  %4090 = vmatprep.subr.mxu0 0.0
  %4091 = vmatpush1.msra.mxu0 %v2096
  %4092 = vmatprep.subr.mxu0 0.0
  %4093 = vmatpush1.msra.mxu0 %v2095
  %4094 = vmatprep.subr.mxu0 0.0
  %4095 = vmatpush1.msra.mxu0 %v2094
  %4096 = vmatprep.subr.mxu0 0.0
  %4097 = vmatpush1.msra.mxu0 %v2093
  %4098 = vmatprep.subr.mxu0 0.0
  %4099 = vmatpush1.msra.mxu0 %v2092
  %4100 = vmatprep.subr.mxu0 0.0
  %4101 = vmatpush1.msra.mxu0 %v2091
  %4102 = vmatprep.subr.mxu0 0.0
  %4103 = vmatpush2.msra.mxu0 %v2122
  %4104 = vmatprep.subr.mxu0 0.0
  %4105 = vmatpush2.msra.mxu0 %v2121
  %4106 = vmatprep.subr.mxu0 0.0
  %4107 = vmatpush2.msra.mxu0 %v2120
  %4108 = vmatprep.subr.mxu0 0.0
  %4109 = vmatpush2.msra.mxu0 %v2119
  %4110 = vmatprep.subr.mxu0 0.0
  %4111 = vmatpush2.msra.mxu0 %v2118
  %4112 = vmatprep.subr.mxu0 0.0
  %4113 = vmatpush2.msra.mxu0 %v2117
  %4114 = vmatprep.subr.mxu0 0.0
  %4115 = vmatpush2.msra.mxu0 %v2116
  %4116 = vmatprep.subr.mxu0 0.0
  %4117 = vmatpush2.msra.mxu0 %v2115
  %4118 = vmatprep.subr.mxu0 0.0
  %4119 = vmatpush2.msra.mxu0 %v2114
  %4120 = vmatprep.subr.mxu0 0.0
  %4121 = vmatpush2.msra.mxu0 %v2113
  %4122 = vmatprep.subr.mxu0 0.0
  %4123 = vmatpush2.msra.mxu0 %v2112
  %4124 = vmatprep.subr.mxu0 0.0
  %4125 = vmatpush2.msra.mxu0 %v2111
  %4126 = vmatprep.subr.mxu0 0.0
  %4127 = vmatpush2.msra.mxu0 %v2110
  %4128 = vmatprep.subr.mxu0 0.0
  %4129 = vmatpush2.msra.mxu0 %v2109
  %4130 = vmatprep.subr.mxu0 0.0
  %4131 = vmatpush2.msra.mxu0 %v2108
  %4132 = vmatprep.subr.mxu0 0.0
  %4133 = vmatpush2.msra.mxu0 %v2107
  %4134 = vmatprep.mubr.f32.mxu0 %v3859
  %4135 = vmatmul.mubr.f32.gmra.mxu0 %v3858
  %v4136 = vpop.f32.mrf.mxu0
  %v4137 = vadd.f32 %v4067, %v4136
  %v4138 = vpop.f32.mrf.mxu0
  %4139 = vdwg.mxu0
  %v4140 = vmul.f32 %v3804, 0.95
  %v4141 = vadd.f32 %v4140, %v4137
  %v4142 = vsub.f32 %v4141, %v3807
  %vm4143 = vcmp.gt.f32.partialorder %v4142, 1.0
  %v4144 = vsel %vm4143, 1, 0
  %v4145 = vcvt.s32.f32 %v4144
  %s4146 = scalar_lea.vmem %s5, 40
  %4147 = vst [vmem:[%s4146] sm:$0xff] %v4145
  %s4148 = scalar_lea.vmem %s6, 40
  %4149 = vst [vmem:[%s4148] sm:$0xff] %v4142
  %v4150 = vmul.f32 %v3828, 0.95
  %v4151 = vmul.f32 %v3829, 0.95
  %v4152 = vmul.f32 %v3830, 0.95
  %v4153 = vmul.f32 %v3831, 0.95
  %v4154 = vmul.f32 %v3832, 0.95
  %v4155 = vmul.f32 %v3833, 0.95
  %v4156 = vmul.f32 %v3834, 0.95
  %v4157 = vmul.f32 %v3835, 0.95
  %v4158 = vadd.f32 %v4150, %v1139
  %v4159 = vadd.f32 %v4151, %v1141
  %v4160 = vadd.f32 %v4152, %v1423
  %v4161 = vadd.f32 %v4153, %v1425
  %v4162 = vadd.f32 %v4154, %v1707
  %v4163 = vadd.f32 %v4155, %v1709
  %v4164 = vadd.f32 %v4156, %v1991
  %v4165 = vadd.f32 %v4157, %v1993
  %v4166 = vsub.f32 %v4158, %v3852
  %v4167 = vsub.f32 %v4159, %v3853
  %v4168 = vsub.f32 %v4160, %v3854
  %v4169 = vsub.f32 %v4161, %v3855
  %v4170 = vsub.f32 %v4162, %v3856
  %v4171 = vsub.f32 %v4163, %v3857
  %v4172 = vsub.f32 %v4164, %v3858
  %v4173 = vsub.f32 %v4165, %v3859
  %vm4174 = vcmp.gt.f32.partialorder %v4166, 1.0
  %vm4175 = vcmp.gt.f32.partialorder %v4167, 1.0
  %vm4176 = vcmp.gt.f32.partialorder %v4168, 1.0
  %vm4177 = vcmp.gt.f32.partialorder %v4169, 1.0
  %vm4178 = vcmp.gt.f32.partialorder %v4170, 1.0
  %vm4179 = vcmp.gt.f32.partialorder %v4171, 1.0
  %vm4180 = vcmp.gt.f32.partialorder %v4172, 1.0
  %vm4181 = vcmp.gt.f32.partialorder %v4173, 1.0
  %v4182 = vsel %vm4174, 1, 0
  %v4183 = vsel %vm4175, 1, 0
  %v4184 = vsel %vm4176, 1, 0
  %v4185 = vsel %vm4177, 1, 0
  %v4186 = vsel %vm4178, 1, 0
  %v4187 = vsel %vm4179, 1, 0
  %v4188 = vsel %vm4180, 1, 0
  %v4189 = vsel %vm4181, 1, 0
  %v4190 = vcvt.s32.f32 %v4182
  %v4191 = vcvt.s32.f32 %v4183
  %v4192 = vcvt.s32.f32 %v4184
  %v4193 = vcvt.s32.f32 %v4185
  %v4194 = vcvt.s32.f32 %v4186
  %v4195 = vcvt.s32.f32 %v4187
  %v4196 = vcvt.s32.f32 %v4188
  %v4197 = vcvt.s32.f32 %v4189
  %4198 = vmatprep.subr.mxu0 0.0
  %4199 = vmatpush1.msra.mxu0 %v2010
  %4200 = vmatprep.subr.mxu0 0.0
  %4201 = vmatpush1.msra.mxu0 %v2009
  %4202 = vmatprep.subr.mxu0 0.0
  %4203 = vmatpush1.msra.mxu0 %v2008
  %4204 = vmatprep.subr.mxu0 0.0
  %4205 = vmatpush1.msra.mxu0 %v2007
  %4206 = vmatprep.subr.mxu0 0.0
  %4207 = vmatpush1.msra.mxu0 %v2006
  %4208 = vmatprep.subr.mxu0 0.0
  %4209 = vmatpush1.msra.mxu0 %v2005
  %4210 = vmatprep.subr.mxu0 0.0
  %4211 = vmatpush1.msra.mxu0 %v2004
  %4212 = vmatprep.subr.mxu0 0.0
  %4213 = vmatpush1.msra.mxu0 %v2003
  %4214 = vmatprep.subr.mxu0 0.0
  %4215 = vmatpush1.msra.mxu0 %v2002
  %4216 = vmatprep.subr.mxu0 0.0
  %4217 = vmatpush1.msra.mxu0 %v2001
  %4218 = vmatprep.subr.mxu0 0.0
  %4219 = vmatpush1.msra.mxu0 %v2000
  %4220 = vmatprep.subr.mxu0 0.0
  %4221 = vmatpush1.msra.mxu0 %v1999
  %4222 = vmatprep.subr.mxu0 0.0
  %4223 = vmatpush1.msra.mxu0 %v1998
  %4224 = vmatprep.subr.mxu0 0.0
  %4225 = vmatpush1.msra.mxu0 %v1997
  %4226 = vmatprep.subr.mxu0 0.0
  %4227 = vmatpush1.msra.mxu0 %v1996
  %4228 = vmatprep.subr.mxu0 0.0
  %4229 = vmatpush1.msra.mxu0 %v1995
  %4230 = vmatprep.subr.mxu0 0.0
  %4231 = vmatpush2.msra.mxu0 %v2026
  %4232 = vmatprep.subr.mxu0 0.0
  %4233 = vmatpush2.msra.mxu0 %v2025
  %4234 = vmatprep.subr.mxu0 0.0
  %4235 = vmatpush2.msra.mxu0 %v2024
  %4236 = vmatprep.subr.mxu0 0.0
  %4237 = vmatpush2.msra.mxu0 %v2023
  %4238 = vmatprep.subr.mxu0 0.0
  %4239 = vmatpush2.msra.mxu0 %v2022
  %4240 = vmatprep.subr.mxu0 0.0
  %4241 = vmatpush2.msra.mxu0 %v2021
  %4242 = vmatprep.subr.mxu0 0.0
  %4243 = vmatpush2.msra.mxu0 %v2020
  %4244 = vmatprep.subr.mxu0 0.0
  %4245 = vmatpush2.msra.mxu0 %v2019
  %4246 = vmatprep.subr.mxu0 0.0
  %4247 = vmatpush2.msra.mxu0 %v2018
  %4248 = vmatprep.subr.mxu0 0.0
  %4249 = vmatpush2.msra.mxu0 %v2017
  %4250 = vmatprep.subr.mxu0 0.0
  %4251 = vmatpush2.msra.mxu0 %v2016
  %4252 = vmatprep.subr.mxu0 0.0
  %4253 = vmatpush2.msra.mxu0 %v2015
  %4254 = vmatprep.subr.mxu0 0.0
  %4255 = vmatpush2.msra.mxu0 %v2014
  %4256 = vmatprep.subr.mxu0 0.0
  %4257 = vmatpush2.msra.mxu0 %v2013
  %4258 = vmatprep.subr.mxu0 0.0
  %4259 = vmatpush2.msra.mxu0 %v2012
  %4260 = vmatprep.subr.mxu0 0.0
  %4261 = vmatpush2.msra.mxu0 %v2011
  %4262 = vmatprep.mubr.f32.mxu0 %v4191
  %4263 = vmatmul.mubr.f32.gmra.mxu0 %v4190
  %v4264 = vpop.f32.mrf.mxu0
  %v4265 = vadd.f32 %v2171, %v4264
  %v4266 = vpop.f32.mrf.mxu0
  %4267 = vdwg.mxu0
  %4268 = vmatprep.subr.mxu0 0.0
  %4269 = vmatpush1.msra.mxu0 %v2042
  %4270 = vmatprep.subr.mxu0 0.0
  %4271 = vmatpush1.msra.mxu0 %v2041
  %4272 = vmatprep.subr.mxu0 0.0
  %4273 = vmatpush1.msra.mxu0 %v2040
  %4274 = vmatprep.subr.mxu0 0.0
  %4275 = vmatpush1.msra.mxu0 %v2039
  %4276 = vmatprep.subr.mxu0 0.0
  %4277 = vmatpush1.msra.mxu0 %v2038
  %4278 = vmatprep.subr.mxu0 0.0
  %4279 = vmatpush1.msra.mxu0 %v2037
  %4280 = vmatprep.subr.mxu0 0.0
  %4281 = vmatpush1.msra.mxu0 %v2036
  %4282 = vmatprep.subr.mxu0 0.0
  %4283 = vmatpush1.msra.mxu0 %v2035
  %4284 = vmatprep.subr.mxu0 0.0
  %4285 = vmatpush1.msra.mxu0 %v2034
  %4286 = vmatprep.subr.mxu0 0.0
  %4287 = vmatpush1.msra.mxu0 %v2033
  %4288 = vmatprep.subr.mxu0 0.0
  %4289 = vmatpush1.msra.mxu0 %v2032
  %4290 = vmatprep.subr.mxu0 0.0
  %4291 = vmatpush1.msra.mxu0 %v2031
  %4292 = vmatprep.subr.mxu0 0.0
  %4293 = vmatpush1.msra.mxu0 %v2030
  %4294 = vmatprep.subr.mxu0 0.0
  %4295 = vmatpush1.msra.mxu0 %v2029
  %4296 = vmatprep.subr.mxu0 0.0
  %4297 = vmatpush1.msra.mxu0 %v2028
  %4298 = vmatprep.subr.mxu0 0.0
  %4299 = vmatpush1.msra.mxu0 %v2027
  %4300 = vmatprep.subr.mxu0 0.0
  %4301 = vmatpush2.msra.mxu0 %v2058
  %4302 = vmatprep.subr.mxu0 0.0
  %4303 = vmatpush2.msra.mxu0 %v2057
  %4304 = vmatprep.subr.mxu0 0.0
  %4305 = vmatpush2.msra.mxu0 %v2056
  %4306 = vmatprep.subr.mxu0 0.0
  %4307 = vmatpush2.msra.mxu0 %v2055
  %4308 = vmatprep.subr.mxu0 0.0
  %4309 = vmatpush2.msra.mxu0 %v2054
  %4310 = vmatprep.subr.mxu0 0.0
  %4311 = vmatpush2.msra.mxu0 %v2053
  %4312 = vmatprep.subr.mxu0 0.0
  %4313 = vmatpush2.msra.mxu0 %v2052
  %4314 = vmatprep.subr.mxu0 0.0
  %4315 = vmatpush2.msra.mxu0 %v2051
  %4316 = vmatprep.subr.mxu0 0.0
  %4317 = vmatpush2.msra.mxu0 %v2050
  %4318 = vmatprep.subr.mxu0 0.0
  %4319 = vmatpush2.msra.mxu0 %v2049
  %4320 = vmatprep.subr.mxu0 0.0
  %4321 = vmatpush2.msra.mxu0 %v2048
  %4322 = vmatprep.subr.mxu0 0.0
  %4323 = vmatpush2.msra.mxu0 %v2047
  %4324 = vmatprep.subr.mxu0 0.0
  %4325 = vmatpush2.msra.mxu0 %v2046
  %4326 = vmatprep.subr.mxu0 0.0
  %4327 = vmatpush2.msra.mxu0 %v2045
  %4328 = vmatprep.subr.mxu0 0.0
  %4329 = vmatpush2.msra.mxu0 %v2044
  %4330 = vmatprep.subr.mxu0 0.0
  %4331 = vmatpush2.msra.mxu0 %v2043
  %4332 = vmatprep.mubr.f32.mxu0 %v4193
  %4333 = vmatmul.mubr.f32.gmra.mxu0 %v4192
  %v4334 = vpop.f32.mrf.mxu0
  %v4335 = vadd.f32 %v4265, %v4334
  %v4336 = vpop.f32.mrf.mxu0
  %4337 = vdwg.mxu0
  %4338 = vmatprep.subr.mxu0 0.0
  %4339 = vmatpush1.msra.mxu0 %v2074
  %4340 = vmatprep.subr.mxu0 0.0
  %4341 = vmatpush1.msra.mxu0 %v2073
  %4342 = vmatprep.subr.mxu0 0.0
  %4343 = vmatpush1.msra.mxu0 %v2072
  %4344 = vmatprep.subr.mxu0 0.0
  %4345 = vmatpush1.msra.mxu0 %v2071
  %4346 = vmatprep.subr.mxu0 0.0
  %4347 = vmatpush1.msra.mxu0 %v2070
  %4348 = vmatprep.subr.mxu0 0.0
  %4349 = vmatpush1.msra.mxu0 %v2069
  %4350 = vmatprep.subr.mxu0 0.0
  %4351 = vmatpush1.msra.mxu0 %v2068
  %4352 = vmatprep.subr.mxu0 0.0
  %4353 = vmatpush1.msra.mxu0 %v2067
  %4354 = vmatprep.subr.mxu0 0.0
  %4355 = vmatpush1.msra.mxu0 %v2066
  %4356 = vmatprep.subr.mxu0 0.0
  %4357 = vmatpush1.msra.mxu0 %v2065
  %4358 = vmatprep.subr.mxu0 0.0
  %4359 = vmatpush1.msra.mxu0 %v2064
  %4360 = vmatprep.subr.mxu0 0.0
  %4361 = vmatpush1.msra.mxu0 %v2063
  %4362 = vmatprep.subr.mxu0 0.0
  %4363 = vmatpush1.msra.mxu0 %v2062
  %4364 = vmatprep.subr.mxu0 0.0
  %4365 = vmatpush1.msra.mxu0 %v2061
  %4366 = vmatprep.subr.mxu0 0.0
  %4367 = vmatpush1.msra.mxu0 %v2060
  %4368 = vmatprep.subr.mxu0 0.0
  %4369 = vmatpush1.msra.mxu0 %v2059
  %4370 = vmatprep.subr.mxu0 0.0
  %4371 = vmatpush2.msra.mxu0 %v2090
  %4372 = vmatprep.subr.mxu0 0.0
  %4373 = vmatpush2.msra.mxu0 %v2089
  %4374 = vmatprep.subr.mxu0 0.0
  %4375 = vmatpush2.msra.mxu0 %v2088
  %4376 = vmatprep.subr.mxu0 0.0
  %4377 = vmatpush2.msra.mxu0 %v2087
  %4378 = vmatprep.subr.mxu0 0.0
  %4379 = vmatpush2.msra.mxu0 %v2086
  %4380 = vmatprep.subr.mxu0 0.0
  %4381 = vmatpush2.msra.mxu0 %v2085
  %4382 = vmatprep.subr.mxu0 0.0
  %4383 = vmatpush2.msra.mxu0 %v2084
  %4384 = vmatprep.subr.mxu0 0.0
  %4385 = vmatpush2.msra.mxu0 %v2083
  %4386 = vmatprep.subr.mxu0 0.0
  %4387 = vmatpush2.msra.mxu0 %v2082
  %4388 = vmatprep.subr.mxu0 0.0
  %4389 = vmatpush2.msra.mxu0 %v2081
  %4390 = vmatprep.subr.mxu0 0.0
  %4391 = vmatpush2.msra.mxu0 %v2080
  %4392 = vmatprep.subr.mxu0 0.0
  %4393 = vmatpush2.msra.mxu0 %v2079
  %4394 = vmatprep.subr.mxu0 0.0
  %4395 = vmatpush2.msra.mxu0 %v2078
  %4396 = vmatprep.subr.mxu0 0.0
  %4397 = vmatpush2.msra.mxu0 %v2077
  %4398 = vmatprep.subr.mxu0 0.0
  %4399 = vmatpush2.msra.mxu0 %v2076
  %4400 = vmatprep.subr.mxu0 0.0
  %4401 = vmatpush2.msra.mxu0 %v2075
  %4402 = vmatprep.mubr.f32.mxu0 %v4195
  %4403 = vmatmul.mubr.f32.gmra.mxu0 %v4194
  %v4404 = vpop.f32.mrf.mxu0
  %v4405 = vadd.f32 %v4335, %v4404
  %v4406 = vpop.f32.mrf.mxu0
  %4407 = vdwg.mxu0
  %4408 = vmatprep.subr.mxu0 0.0
  %4409 = vmatpush1.msra.mxu0 %v2106
  %4410 = vmatprep.subr.mxu0 0.0
  %4411 = vmatpush1.msra.mxu0 %v2105
  %4412 = vmatprep.subr.mxu0 0.0
  %4413 = vmatpush1.msra.mxu0 %v2104
  %4414 = vmatprep.subr.mxu0 0.0
  %4415 = vmatpush1.msra.mxu0 %v2103
  %4416 = vmatprep.subr.mxu0 0.0
  %4417 = vmatpush1.msra.mxu0 %v2102
  %4418 = vmatprep.subr.mxu0 0.0
  %4419 = vmatpush1.msra.mxu0 %v2101
  %4420 = vmatprep.subr.mxu0 0.0
  %4421 = vmatpush1.msra.mxu0 %v2100
  %4422 = vmatprep.subr.mxu0 0.0
  %4423 = vmatpush1.msra.mxu0 %v2099
  %4424 = vmatprep.subr.mxu0 0.0
  %4425 = vmatpush1.msra.mxu0 %v2098
  %4426 = vmatprep.subr.mxu0 0.0
  %4427 = vmatpush1.msra.mxu0 %v2097
  %4428 = vmatprep.subr.mxu0 0.0
  %4429 = vmatpush1.msra.mxu0 %v2096
  %4430 = vmatprep.subr.mxu0 0.0
  %4431 = vmatpush1.msra.mxu0 %v2095
  %4432 = vmatprep.subr.mxu0 0.0
  %4433 = vmatpush1.msra.mxu0 %v2094
  %4434 = vmatprep.subr.mxu0 0.0
  %4435 = vmatpush1.msra.mxu0 %v2093
  %4436 = vmatprep.subr.mxu0 0.0
  %4437 = vmatpush1.msra.mxu0 %v2092
  %4438 = vmatprep.subr.mxu0 0.0
  %4439 = vmatpush1.msra.mxu0 %v2091
  %4440 = vmatprep.subr.mxu0 0.0
  %4441 = vmatpush2.msra.mxu0 %v2122
  %4442 = vmatprep.subr.mxu0 0.0
  %4443 = vmatpush2.msra.mxu0 %v2121
  %4444 = vmatprep.subr.mxu0 0.0
  %4445 = vmatpush2.msra.mxu0 %v2120
  %4446 = vmatprep.subr.mxu0 0.0
  %4447 = vmatpush2.msra.mxu0 %v2119
  %4448 = vmatprep.subr.mxu0 0.0
  %4449 = vmatpush2.msra.mxu0 %v2118
  %4450 = vmatprep.subr.mxu0 0.0
  %4451 = vmatpush2.msra.mxu0 %v2117
  %4452 = vmatprep.subr.mxu0 0.0
  %4453 = vmatpush2.msra.mxu0 %v2116
  %4454 = vmatprep.subr.mxu0 0.0
  %4455 = vmatpush2.msra.mxu0 %v2115
  %4456 = vmatprep.subr.mxu0 0.0
  %4457 = vmatpush2.msra.mxu0 %v2114
  %4458 = vmatprep.subr.mxu0 0.0
  %4459 = vmatpush2.msra.mxu0 %v2113
  %4460 = vmatprep.subr.mxu0 0.0
  %4461 = vmatpush2.msra.mxu0 %v2112
  %4462 = vmatprep.subr.mxu0 0.0
  %4463 = vmatpush2.msra.mxu0 %v2111
  %4464 = vmatprep.subr.mxu0 0.0
  %4465 = vmatpush2.msra.mxu0 %v2110
  %4466 = vmatprep.subr.mxu0 0.0
  %4467 = vmatpush2.msra.mxu0 %v2109
  %4468 = vmatprep.subr.mxu0 0.0
  %4469 = vmatpush2.msra.mxu0 %v2108
  %4470 = vmatprep.subr.mxu0 0.0
  %4471 = vmatpush2.msra.mxu0 %v2107
  %4472 = vmatprep.mubr.f32.mxu0 %v4197
  %4473 = vmatmul.mubr.f32.gmra.mxu0 %v4196
  %v4474 = vpop.f32.mrf.mxu0
  %v4475 = vadd.f32 %v4405, %v4474
  %v4476 = vpop.f32.mrf.mxu0
  %4477 = vdwg.mxu0
  %v4478 = vmul.f32 %v4142, 0.95
  %v4479 = vadd.f32 %v4478, %v4475
  %v4480 = vsub.f32 %v4479, %v4145
  %vm4481 = vcmp.gt.f32.partialorder %v4480, 1.0
  %v4482 = vsel %vm4481, 1, 0
  %v4483 = vcvt.s32.f32 %v4482
  %s4484 = scalar_lea.vmem %s5, 48
  %4485 = vst [vmem:[%s4484] sm:$0xff] %v4483
  %s4486 = scalar_lea.vmem %s6, 48
  %4487 = vst [vmem:[%s4486] sm:$0xff] %v4480
  %v4488 = vmul.f32 %v4166, 0.95
  %v4489 = vmul.f32 %v4167, 0.95
  %v4490 = vmul.f32 %v4168, 0.95
  %v4491 = vmul.f32 %v4169, 0.95
  %v4492 = vmul.f32 %v4170, 0.95
  %v4493 = vmul.f32 %v4171, 0.95
  %v4494 = vmul.f32 %v4172, 0.95
  %v4495 = vmul.f32 %v4173, 0.95
  %v4496 = vadd.f32 %v4488, %v1139
  %v4497 = vadd.f32 %v4489, %v1141
  %v4498 = vadd.f32 %v4490, %v1423
  %v4499 = vadd.f32 %v4491, %v1425
  %v4500 = vadd.f32 %v4492, %v1707
  %v4501 = vadd.f32 %v4493, %v1709
  %v4502 = vadd.f32 %v4494, %v1991
  %v4503 = vadd.f32 %v4495, %v1993
  %v4504 = vsub.f32 %v4496, %v4190
  %v4505 = vsub.f32 %v4497, %v4191
  %v4506 = vsub.f32 %v4498, %v4192
  %v4507 = vsub.f32 %v4499, %v4193
  %v4508 = vsub.f32 %v4500, %v4194
  %v4509 = vsub.f32 %v4501, %v4195
  %v4510 = vsub.f32 %v4502, %v4196
  %v4511 = vsub.f32 %v4503, %v4197
  %vm4512 = vcmp.gt.f32.partialorder %v4504, 1.0
  %vm4513 = vcmp.gt.f32.partialorder %v4505, 1.0
  %vm4514 = vcmp.gt.f32.partialorder %v4506, 1.0
  %vm4515 = vcmp.gt.f32.partialorder %v4507, 1.0
  %vm4516 = vcmp.gt.f32.partialorder %v4508, 1.0
  %vm4517 = vcmp.gt.f32.partialorder %v4509, 1.0
  %vm4518 = vcmp.gt.f32.partialorder %v4510, 1.0
  %vm4519 = vcmp.gt.f32.partialorder %v4511, 1.0
  %v4520 = vsel %vm4512, 1, 0
  %v4521 = vsel %vm4513, 1, 0
  %v4522 = vsel %vm4514, 1, 0
  %v4523 = vsel %vm4515, 1, 0
  %v4524 = vsel %vm4516, 1, 0
  %v4525 = vsel %vm4517, 1, 0
  %v4526 = vsel %vm4518, 1, 0
  %v4527 = vsel %vm4519, 1, 0
  %v4528 = vcvt.s32.f32 %v4520
  %v4529 = vcvt.s32.f32 %v4521
  %v4530 = vcvt.s32.f32 %v4522
  %v4531 = vcvt.s32.f32 %v4523
  %v4532 = vcvt.s32.f32 %v4524
  %v4533 = vcvt.s32.f32 %v4525
  %v4534 = vcvt.s32.f32 %v4526
  %v4535 = vcvt.s32.f32 %v4527
  %4536 = vmatprep.subr.mxu0 0.0
  %4537 = vmatpush1.msra.mxu0 %v2010
  %4538 = vmatprep.subr.mxu0 0.0
  %4539 = vmatpush1.msra.mxu0 %v2009
  %4540 = vmatprep.subr.mxu0 0.0
  %4541 = vmatpush1.msra.mxu0 %v2008
  %4542 = vmatprep.subr.mxu0 0.0
  %4543 = vmatpush1.msra.mxu0 %v2007
  %4544 = vmatprep.subr.mxu0 0.0
  %4545 = vmatpush1.msra.mxu0 %v2006
  %4546 = vmatprep.subr.mxu0 0.0
  %4547 = vmatpush1.msra.mxu0 %v2005
  %4548 = vmatprep.subr.mxu0 0.0
  %4549 = vmatpush1.msra.mxu0 %v2004
  %4550 = vmatprep.subr.mxu0 0.0
  %4551 = vmatpush1.msra.mxu0 %v2003
  %4552 = vmatprep.subr.mxu0 0.0
  %4553 = vmatpush1.msra.mxu0 %v2002
  %4554 = vmatprep.subr.mxu0 0.0
  %4555 = vmatpush1.msra.mxu0 %v2001
  %4556 = vmatprep.subr.mxu0 0.0
  %4557 = vmatpush1.msra.mxu0 %v2000
  %4558 = vmatprep.subr.mxu0 0.0
  %4559 = vmatpush1.msra.mxu0 %v1999
  %4560 = vmatprep.subr.mxu0 0.0
  %4561 = vmatpush1.msra.mxu0 %v1998
  %4562 = vmatprep.subr.mxu0 0.0
  %4563 = vmatpush1.msra.mxu0 %v1997
  %4564 = vmatprep.subr.mxu0 0.0
  %4565 = vmatpush1.msra.mxu0 %v1996
  %4566 = vmatprep.subr.mxu0 0.0
  %4567 = vmatpush1.msra.mxu0 %v1995
  %4568 = vmatprep.subr.mxu0 0.0
  %4569 = vmatpush2.msra.mxu0 %v2026
  %4570 = vmatprep.subr.mxu0 0.0
  %4571 = vmatpush2.msra.mxu0 %v2025
  %4572 = vmatprep.subr.mxu0 0.0
  %4573 = vmatpush2.msra.mxu0 %v2024
  %4574 = vmatprep.subr.mxu0 0.0
  %4575 = vmatpush2.msra.mxu0 %v2023
  %4576 = vmatprep.subr.mxu0 0.0
  %4577 = vmatpush2.msra.mxu0 %v2022
  %4578 = vmatprep.subr.mxu0 0.0
  %4579 = vmatpush2.msra.mxu0 %v2021
  %4580 = vmatprep.subr.mxu0 0.0
  %4581 = vmatpush2.msra.mxu0 %v2020
  %4582 = vmatprep.subr.mxu0 0.0
  %4583 = vmatpush2.msra.mxu0 %v2019
  %4584 = vmatprep.subr.mxu0 0.0
  %4585 = vmatpush2.msra.mxu0 %v2018
  %4586 = vmatprep.subr.mxu0 0.0
  %4587 = vmatpush2.msra.mxu0 %v2017
  %4588 = vmatprep.subr.mxu0 0.0
  %4589 = vmatpush2.msra.mxu0 %v2016
  %4590 = vmatprep.subr.mxu0 0.0
  %4591 = vmatpush2.msra.mxu0 %v2015
  %4592 = vmatprep.subr.mxu0 0.0
  %4593 = vmatpush2.msra.mxu0 %v2014
  %4594 = vmatprep.subr.mxu0 0.0
  %4595 = vmatpush2.msra.mxu0 %v2013
  %4596 = vmatprep.subr.mxu0 0.0
  %4597 = vmatpush2.msra.mxu0 %v2012
  %4598 = vmatprep.subr.mxu0 0.0
  %4599 = vmatpush2.msra.mxu0 %v2011
  %4600 = vmatprep.mubr.f32.mxu0 %v4529
  %4601 = vmatmul.mubr.f32.gmra.mxu0 %v4528
  %v4602 = vpop.f32.mrf.mxu0
  %v4603 = vadd.f32 %v2171, %v4602
  %v4604 = vpop.f32.mrf.mxu0
  %4605 = vdwg.mxu0
  %4606 = vmatprep.subr.mxu0 0.0
  %4607 = vmatpush1.msra.mxu0 %v2042
  %4608 = vmatprep.subr.mxu0 0.0
  %4609 = vmatpush1.msra.mxu0 %v2041
  %4610 = vmatprep.subr.mxu0 0.0
  %4611 = vmatpush1.msra.mxu0 %v2040
  %4612 = vmatprep.subr.mxu0 0.0
  %4613 = vmatpush1.msra.mxu0 %v2039
  %4614 = vmatprep.subr.mxu0 0.0
  %4615 = vmatpush1.msra.mxu0 %v2038
  %4616 = vmatprep.subr.mxu0 0.0
  %4617 = vmatpush1.msra.mxu0 %v2037
  %4618 = vmatprep.subr.mxu0 0.0
  %4619 = vmatpush1.msra.mxu0 %v2036
  %4620 = vmatprep.subr.mxu0 0.0
  %4621 = vmatpush1.msra.mxu0 %v2035
  %4622 = vmatprep.subr.mxu0 0.0
  %4623 = vmatpush1.msra.mxu0 %v2034
  %4624 = vmatprep.subr.mxu0 0.0
  %4625 = vmatpush1.msra.mxu0 %v2033
  %4626 = vmatprep.subr.mxu0 0.0
  %4627 = vmatpush1.msra.mxu0 %v2032
  %4628 = vmatprep.subr.mxu0 0.0
  %4629 = vmatpush1.msra.mxu0 %v2031
  %4630 = vmatprep.subr.mxu0 0.0
  %4631 = vmatpush1.msra.mxu0 %v2030
  %4632 = vmatprep.subr.mxu0 0.0
  %4633 = vmatpush1.msra.mxu0 %v2029
  %4634 = vmatprep.subr.mxu0 0.0
  %4635 = vmatpush1.msra.mxu0 %v2028
  %4636 = vmatprep.subr.mxu0 0.0
  %4637 = vmatpush1.msra.mxu0 %v2027
  %4638 = vmatprep.subr.mxu0 0.0
  %4639 = vmatpush2.msra.mxu0 %v2058
  %4640 = vmatprep.subr.mxu0 0.0
  %4641 = vmatpush2.msra.mxu0 %v2057
  %4642 = vmatprep.subr.mxu0 0.0
  %4643 = vmatpush2.msra.mxu0 %v2056
  %4644 = vmatprep.subr.mxu0 0.0
  %4645 = vmatpush2.msra.mxu0 %v2055
  %4646 = vmatprep.subr.mxu0 0.0
  %4647 = vmatpush2.msra.mxu0 %v2054
  %4648 = vmatprep.subr.mxu0 0.0
  %4649 = vmatpush2.msra.mxu0 %v2053
  %4650 = vmatprep.subr.mxu0 0.0
  %4651 = vmatpush2.msra.mxu0 %v2052
  %4652 = vmatprep.subr.mxu0 0.0
  %4653 = vmatpush2.msra.mxu0 %v2051
  %4654 = vmatprep.subr.mxu0 0.0
  %4655 = vmatpush2.msra.mxu0 %v2050
  %4656 = vmatprep.subr.mxu0 0.0
  %4657 = vmatpush2.msra.mxu0 %v2049
  %4658 = vmatprep.subr.mxu0 0.0
  %4659 = vmatpush2.msra.mxu0 %v2048
  %4660 = vmatprep.subr.mxu0 0.0
  %4661 = vmatpush2.msra.mxu0 %v2047
  %4662 = vmatprep.subr.mxu0 0.0
  %4663 = vmatpush2.msra.mxu0 %v2046
  %4664 = vmatprep.subr.mxu0 0.0
  %4665 = vmatpush2.msra.mxu0 %v2045
  %4666 = vmatprep.subr.mxu0 0.0
  %4667 = vmatpush2.msra.mxu0 %v2044
  %4668 = vmatprep.subr.mxu0 0.0
  %4669 = vmatpush2.msra.mxu0 %v2043
  %4670 = vmatprep.mubr.f32.mxu0 %v4531
  %4671 = vmatmul.mubr.f32.gmra.mxu0 %v4530
  %v4672 = vpop.f32.mrf.mxu0
  %v4673 = vadd.f32 %v4603, %v4672
  %v4674 = vpop.f32.mrf.mxu0
  %4675 = vdwg.mxu0
  %4676 = vmatprep.subr.mxu0 0.0
  %4677 = vmatpush1.msra.mxu0 %v2074
  %4678 = vmatprep.subr.mxu0 0.0
  %4679 = vmatpush1.msra.mxu0 %v2073
  %4680 = vmatprep.subr.mxu0 0.0
  %4681 = vmatpush1.msra.mxu0 %v2072
  %4682 = vmatprep.subr.mxu0 0.0
  %4683 = vmatpush1.msra.mxu0 %v2071
  %4684 = vmatprep.subr.mxu0 0.0
  %4685 = vmatpush1.msra.mxu0 %v2070
  %4686 = vmatprep.subr.mxu0 0.0
  %4687 = vmatpush1.msra.mxu0 %v2069
  %4688 = vmatprep.subr.mxu0 0.0
  %4689 = vmatpush1.msra.mxu0 %v2068
  %4690 = vmatprep.subr.mxu0 0.0
  %4691 = vmatpush1.msra.mxu0 %v2067
  %4692 = vmatprep.subr.mxu0 0.0
  %4693 = vmatpush1.msra.mxu0 %v2066
  %4694 = vmatprep.subr.mxu0 0.0
  %4695 = vmatpush1.msra.mxu0 %v2065
  %4696 = vmatprep.subr.mxu0 0.0
  %4697 = vmatpush1.msra.mxu0 %v2064
  %4698 = vmatprep.subr.mxu0 0.0
  %4699 = vmatpush1.msra.mxu0 %v2063
  %4700 = vmatprep.subr.mxu0 0.0
  %4701 = vmatpush1.msra.mxu0 %v2062
  %4702 = vmatprep.subr.mxu0 0.0
  %4703 = vmatpush1.msra.mxu0 %v2061
  %4704 = vmatprep.subr.mxu0 0.0
  %4705 = vmatpush1.msra.mxu0 %v2060
  %4706 = vmatprep.subr.mxu0 0.0
  %4707 = vmatpush1.msra.mxu0 %v2059
  %4708 = vmatprep.subr.mxu0 0.0
  %4709 = vmatpush2.msra.mxu0 %v2090
  %4710 = vmatprep.subr.mxu0 0.0
  %4711 = vmatpush2.msra.mxu0 %v2089
  %4712 = vmatprep.subr.mxu0 0.0
  %4713 = vmatpush2.msra.mxu0 %v2088
  %4714 = vmatprep.subr.mxu0 0.0
  %4715 = vmatpush2.msra.mxu0 %v2087
  %4716 = vmatprep.subr.mxu0 0.0
  %4717 = vmatpush2.msra.mxu0 %v2086
  %4718 = vmatprep.subr.mxu0 0.0
  %4719 = vmatpush2.msra.mxu0 %v2085
  %4720 = vmatprep.subr.mxu0 0.0
  %4721 = vmatpush2.msra.mxu0 %v2084
  %4722 = vmatprep.subr.mxu0 0.0
  %4723 = vmatpush2.msra.mxu0 %v2083
  %4724 = vmatprep.subr.mxu0 0.0
  %4725 = vmatpush2.msra.mxu0 %v2082
  %4726 = vmatprep.subr.mxu0 0.0
  %4727 = vmatpush2.msra.mxu0 %v2081
  %4728 = vmatprep.subr.mxu0 0.0
  %4729 = vmatpush2.msra.mxu0 %v2080
  %4730 = vmatprep.subr.mxu0 0.0
  %4731 = vmatpush2.msra.mxu0 %v2079
  %4732 = vmatprep.subr.mxu0 0.0
  %4733 = vmatpush2.msra.mxu0 %v2078
  %4734 = vmatprep.subr.mxu0 0.0
  %4735 = vmatpush2.msra.mxu0 %v2077
  %4736 = vmatprep.subr.mxu0 0.0
  %4737 = vmatpush2.msra.mxu0 %v2076
  %4738 = vmatprep.subr.mxu0 0.0
  %4739 = vmatpush2.msra.mxu0 %v2075
  %4740 = vmatprep.mubr.f32.mxu0 %v4533
  %4741 = vmatmul.mubr.f32.gmra.mxu0 %v4532
  %v4742 = vpop.f32.mrf.mxu0
  %v4743 = vadd.f32 %v4673, %v4742
  %v4744 = vpop.f32.mrf.mxu0
  %4745 = vdwg.mxu0
  %4746 = vmatprep.subr.mxu0 0.0
  %4747 = vmatpush1.msra.mxu0 %v2106
  %4748 = vmatprep.subr.mxu0 0.0
  %4749 = vmatpush1.msra.mxu0 %v2105
  %4750 = vmatprep.subr.mxu0 0.0
  %4751 = vmatpush1.msra.mxu0 %v2104
  %4752 = vmatprep.subr.mxu0 0.0
  %4753 = vmatpush1.msra.mxu0 %v2103
  %4754 = vmatprep.subr.mxu0 0.0
  %4755 = vmatpush1.msra.mxu0 %v2102
  %4756 = vmatprep.subr.mxu0 0.0
  %4757 = vmatpush1.msra.mxu0 %v2101
  %4758 = vmatprep.subr.mxu0 0.0
  %4759 = vmatpush1.msra.mxu0 %v2100
  %4760 = vmatprep.subr.mxu0 0.0
  %4761 = vmatpush1.msra.mxu0 %v2099
  %4762 = vmatprep.subr.mxu0 0.0
  %4763 = vmatpush1.msra.mxu0 %v2098
  %4764 = vmatprep.subr.mxu0 0.0
  %4765 = vmatpush1.msra.mxu0 %v2097
  %4766 = vmatprep.subr.mxu0 0.0
  %4767 = vmatpush1.msra.mxu0 %v2096
  %4768 = vmatprep.subr.mxu0 0.0
  %4769 = vmatpush1.msra.mxu0 %v2095
  %4770 = vmatprep.subr.mxu0 0.0
  %4771 = vmatpush1.msra.mxu0 %v2094
  %4772 = vmatprep.subr.mxu0 0.0
  %4773 = vmatpush1.msra.mxu0 %v2093
  %4774 = vmatprep.subr.mxu0 0.0
  %4775 = vmatpush1.msra.mxu0 %v2092
  %4776 = vmatprep.subr.mxu0 0.0
  %4777 = vmatpush1.msra.mxu0 %v2091
  %4778 = vmatprep.subr.mxu0 0.0
  %4779 = vmatpush2.msra.mxu0 %v2122
  %4780 = vmatprep.subr.mxu0 0.0
  %4781 = vmatpush2.msra.mxu0 %v2121
  %4782 = vmatprep.subr.mxu0 0.0
  %4783 = vmatpush2.msra.mxu0 %v2120
  %4784 = vmatprep.subr.mxu0 0.0
  %4785 = vmatpush2.msra.mxu0 %v2119
  %4786 = vmatprep.subr.mxu0 0.0
  %4787 = vmatpush2.msra.mxu0 %v2118
  %4788 = vmatprep.subr.mxu0 0.0
  %4789 = vmatpush2.msra.mxu0 %v2117
  %4790 = vmatprep.subr.mxu0 0.0
  %4791 = vmatpush2.msra.mxu0 %v2116
  %4792 = vmatprep.subr.mxu0 0.0
  %4793 = vmatpush2.msra.mxu0 %v2115
  %4794 = vmatprep.subr.mxu0 0.0
  %4795 = vmatpush2.msra.mxu0 %v2114
  %4796 = vmatprep.subr.mxu0 0.0
  %4797 = vmatpush2.msra.mxu0 %v2113
  %4798 = vmatprep.subr.mxu0 0.0
  %4799 = vmatpush2.msra.mxu0 %v2112
  %4800 = vmatprep.subr.mxu0 0.0
  %4801 = vmatpush2.msra.mxu0 %v2111
  %4802 = vmatprep.subr.mxu0 0.0
  %4803 = vmatpush2.msra.mxu0 %v2110
  %4804 = vmatprep.subr.mxu0 0.0
  %4805 = vmatpush2.msra.mxu0 %v2109
  %4806 = vmatprep.subr.mxu0 0.0
  %4807 = vmatpush2.msra.mxu0 %v2108
  %4808 = vmatprep.subr.mxu0 0.0
  %4809 = vmatpush2.msra.mxu0 %v2107
  %4810 = vmatprep.mubr.f32.mxu0 %v4535
  %4811 = vmatmul.mubr.f32.gmra.mxu0 %v4534
  %v4812 = vpop.f32.mrf.mxu0
  %v4813 = vadd.f32 %v4743, %v4812
  %v4814 = vpop.f32.mrf.mxu0
  %4815 = vdwg.mxu0
  %v4816 = vmul.f32 %v4480, 0.95
  %v4817 = vadd.f32 %v4816, %v4813
  %v4818 = vsub.f32 %v4817, %v4483
  %vm4819 = vcmp.gt.f32.partialorder %v4818, 1.0
  %v4820 = vsel %vm4819, 1, 0
  %v4821 = vcvt.s32.f32 %v4820
  %s4822 = scalar_lea.vmem %s5, 56
  %4823 = vst [vmem:[%s4822] sm:$0xff] %v4821
  %s4824 = scalar_lea.vmem %s6, 56
  %4825 = vst [vmem:[%s4824] sm:$0xff] %v4818
  %v4826 = vmul.f32 %v4504, 0.95
  %v4827 = vmul.f32 %v4505, 0.95
  %v4828 = vmul.f32 %v4506, 0.95
  %v4829 = vmul.f32 %v4507, 0.95
  %v4830 = vmul.f32 %v4508, 0.95
  %v4831 = vmul.f32 %v4509, 0.95
  %v4832 = vmul.f32 %v4510, 0.95
  %v4833 = vmul.f32 %v4511, 0.95
  %v4834 = vadd.f32 %v4826, %v1139
  %v4835 = vadd.f32 %v4827, %v1141
  %v4836 = vadd.f32 %v4828, %v1423
  %v4837 = vadd.f32 %v4829, %v1425
  %v4838 = vadd.f32 %v4830, %v1707
  %v4839 = vadd.f32 %v4831, %v1709
  %v4840 = vadd.f32 %v4832, %v1991
  %v4841 = vadd.f32 %v4833, %v1993
  %v4842 = vsub.f32 %v4834, %v4528
  %v4843 = vsub.f32 %v4835, %v4529
  %v4844 = vsub.f32 %v4836, %v4530
  %v4845 = vsub.f32 %v4837, %v4531
  %v4846 = vsub.f32 %v4838, %v4532
  %v4847 = vsub.f32 %v4839, %v4533
  %v4848 = vsub.f32 %v4840, %v4534
  %v4849 = vsub.f32 %v4841, %v4535
  %vm4850 = vcmp.gt.f32.partialorder %v4842, 1.0
  %vm4851 = vcmp.gt.f32.partialorder %v4843, 1.0
  %vm4852 = vcmp.gt.f32.partialorder %v4844, 1.0
  %vm4853 = vcmp.gt.f32.partialorder %v4845, 1.0
  %vm4854 = vcmp.gt.f32.partialorder %v4846, 1.0
  %vm4855 = vcmp.gt.f32.partialorder %v4847, 1.0
  %vm4856 = vcmp.gt.f32.partialorder %v4848, 1.0
  %vm4857 = vcmp.gt.f32.partialorder %v4849, 1.0
  %v4858 = vsel %vm4850, 1, 0
  %v4859 = vsel %vm4851, 1, 0
  %v4860 = vsel %vm4852, 1, 0
  %v4861 = vsel %vm4853, 1, 0
  %v4862 = vsel %vm4854, 1, 0
  %v4863 = vsel %vm4855, 1, 0
  %v4864 = vsel %vm4856, 1, 0
  %v4865 = vsel %vm4857, 1, 0
  %v4866 = vcvt.s32.f32 %v4858
  %v4867 = vcvt.s32.f32 %v4859
  %v4868 = vcvt.s32.f32 %v4860
  %v4869 = vcvt.s32.f32 %v4861
  %v4870 = vcvt.s32.f32 %v4862
  %v4871 = vcvt.s32.f32 %v4863
  %v4872 = vcvt.s32.f32 %v4864
  %v4873 = vcvt.s32.f32 %v4865
  %4874 = vmatprep.subr.mxu0 0.0
  %4875 = vmatpush1.msra.mxu0 %v2010
  %4876 = vmatprep.subr.mxu0 0.0
  %4877 = vmatpush1.msra.mxu0 %v2009
  %4878 = vmatprep.subr.mxu0 0.0
  %4879 = vmatpush1.msra.mxu0 %v2008
  %4880 = vmatprep.subr.mxu0 0.0
  %4881 = vmatpush1.msra.mxu0 %v2007
  %4882 = vmatprep.subr.mxu0 0.0
  %4883 = vmatpush1.msra.mxu0 %v2006
  %4884 = vmatprep.subr.mxu0 0.0
  %4885 = vmatpush1.msra.mxu0 %v2005
  %4886 = vmatprep.subr.mxu0 0.0
  %4887 = vmatpush1.msra.mxu0 %v2004
  %4888 = vmatprep.subr.mxu0 0.0
  %4889 = vmatpush1.msra.mxu0 %v2003
  %4890 = vmatprep.subr.mxu0 0.0
  %4891 = vmatpush1.msra.mxu0 %v2002
  %4892 = vmatprep.subr.mxu0 0.0
  %4893 = vmatpush1.msra.mxu0 %v2001
  %4894 = vmatprep.subr.mxu0 0.0
  %4895 = vmatpush1.msra.mxu0 %v2000
  %4896 = vmatprep.subr.mxu0 0.0
  %4897 = vmatpush1.msra.mxu0 %v1999
  %4898 = vmatprep.subr.mxu0 0.0
  %4899 = vmatpush1.msra.mxu0 %v1998
  %4900 = vmatprep.subr.mxu0 0.0
  %4901 = vmatpush1.msra.mxu0 %v1997
  %4902 = vmatprep.subr.mxu0 0.0
  %4903 = vmatpush1.msra.mxu0 %v1996
  %4904 = vmatprep.subr.mxu0 0.0
  %4905 = vmatpush1.msra.mxu0 %v1995
  %4906 = vmatprep.subr.mxu0 0.0
  %4907 = vmatpush2.msra.mxu0 %v2026
  %4908 = vmatprep.subr.mxu0 0.0
  %4909 = vmatpush2.msra.mxu0 %v2025
  %4910 = vmatprep.subr.mxu0 0.0
  %4911 = vmatpush2.msra.mxu0 %v2024
  %4912 = vmatprep.subr.mxu0 0.0
  %4913 = vmatpush2.msra.mxu0 %v2023
  %4914 = vmatprep.subr.mxu0 0.0
  %4915 = vmatpush2.msra.mxu0 %v2022
  %4916 = vmatprep.subr.mxu0 0.0
  %4917 = vmatpush2.msra.mxu0 %v2021
  %4918 = vmatprep.subr.mxu0 0.0
  %4919 = vmatpush2.msra.mxu0 %v2020
  %4920 = vmatprep.subr.mxu0 0.0
  %4921 = vmatpush2.msra.mxu0 %v2019
  %4922 = vmatprep.subr.mxu0 0.0
  %4923 = vmatpush2.msra.mxu0 %v2018
  %4924 = vmatprep.subr.mxu0 0.0
  %4925 = vmatpush2.msra.mxu0 %v2017
  %4926 = vmatprep.subr.mxu0 0.0
  %4927 = vmatpush2.msra.mxu0 %v2016
  %4928 = vmatprep.subr.mxu0 0.0
  %4929 = vmatpush2.msra.mxu0 %v2015
  %4930 = vmatprep.subr.mxu0 0.0
  %4931 = vmatpush2.msra.mxu0 %v2014
  %4932 = vmatprep.subr.mxu0 0.0
  %4933 = vmatpush2.msra.mxu0 %v2013
  %4934 = vmatprep.subr.mxu0 0.0
  %4935 = vmatpush2.msra.mxu0 %v2012
  %4936 = vmatprep.subr.mxu0 0.0
  %4937 = vmatpush2.msra.mxu0 %v2011
  %4938 = vmatprep.mubr.f32.mxu0 %v4867
  %4939 = vmatmul.mubr.f32.gmra.mxu0 %v4866
  %v4940 = vpop.f32.mrf.mxu0
  %v4941 = vadd.f32 %v2171, %v4940
  %v4942 = vpop.f32.mrf.mxu0
  %4943 = vdwg.mxu0
  %4944 = vmatprep.subr.mxu0 0.0
  %4945 = vmatpush1.msra.mxu0 %v2042
  %4946 = vmatprep.subr.mxu0 0.0
  %4947 = vmatpush1.msra.mxu0 %v2041
  %4948 = vmatprep.subr.mxu0 0.0
  %4949 = vmatpush1.msra.mxu0 %v2040
  %4950 = vmatprep.subr.mxu0 0.0
  %4951 = vmatpush1.msra.mxu0 %v2039
  %4952 = vmatprep.subr.mxu0 0.0
  %4953 = vmatpush1.msra.mxu0 %v2038
  %4954 = vmatprep.subr.mxu0 0.0
  %4955 = vmatpush1.msra.mxu0 %v2037
  %4956 = vmatprep.subr.mxu0 0.0
  %4957 = vmatpush1.msra.mxu0 %v2036
  %4958 = vmatprep.subr.mxu0 0.0
  %4959 = vmatpush1.msra.mxu0 %v2035
  %4960 = vmatprep.subr.mxu0 0.0
  %4961 = vmatpush1.msra.mxu0 %v2034
  %4962 = vmatprep.subr.mxu0 0.0
  %4963 = vmatpush1.msra.mxu0 %v2033
  %4964 = vmatprep.subr.mxu0 0.0
  %4965 = vmatpush1.msra.mxu0 %v2032
  %4966 = vmatprep.subr.mxu0 0.0
  %4967 = vmatpush1.msra.mxu0 %v2031
  %4968 = vmatprep.subr.mxu0 0.0
  %4969 = vmatpush1.msra.mxu0 %v2030
  %4970 = vmatprep.subr.mxu0 0.0
  %4971 = vmatpush1.msra.mxu0 %v2029
  %4972 = vmatprep.subr.mxu0 0.0
  %4973 = vmatpush1.msra.mxu0 %v2028
  %4974 = vmatprep.subr.mxu0 0.0
  %4975 = vmatpush1.msra.mxu0 %v2027
  %4976 = vmatprep.subr.mxu0 0.0
  %4977 = vmatpush2.msra.mxu0 %v2058
  %4978 = vmatprep.subr.mxu0 0.0
  %4979 = vmatpush2.msra.mxu0 %v2057
  %4980 = vmatprep.subr.mxu0 0.0
  %4981 = vmatpush2.msra.mxu0 %v2056
  %4982 = vmatprep.subr.mxu0 0.0
  %4983 = vmatpush2.msra.mxu0 %v2055
  %4984 = vmatprep.subr.mxu0 0.0
  %4985 = vmatpush2.msra.mxu0 %v2054
  %4986 = vmatprep.subr.mxu0 0.0
  %4987 = vmatpush2.msra.mxu0 %v2053
  %4988 = vmatprep.subr.mxu0 0.0
  %4989 = vmatpush2.msra.mxu0 %v2052
  %4990 = vmatprep.subr.mxu0 0.0
  %4991 = vmatpush2.msra.mxu0 %v2051
  %4992 = vmatprep.subr.mxu0 0.0
  %4993 = vmatpush2.msra.mxu0 %v2050
  %4994 = vmatprep.subr.mxu0 0.0
  %4995 = vmatpush2.msra.mxu0 %v2049
  %4996 = vmatprep.subr.mxu0 0.0
  %4997 = vmatpush2.msra.mxu0 %v2048
  %4998 = vmatprep.subr.mxu0 0.0
  %4999 = vmatpush2.msra.mxu0 %v2047
  %5000 = vmatprep.subr.mxu0 0.0
  %5001 = vmatpush2.msra.mxu0 %v2046
  %5002 = vmatprep.subr.mxu0 0.0
  %5003 = vmatpush2.msra.mxu0 %v2045
  %5004 = vmatprep.subr.mxu0 0.0
  %5005 = vmatpush2.msra.mxu0 %v2044
  %5006 = vmatprep.subr.mxu0 0.0
  %5007 = vmatpush2.msra.mxu0 %v2043
  %5008 = vmatprep.mubr.f32.mxu0 %v4869
  %5009 = vmatmul.mubr.f32.gmra.mxu0 %v4868
  %v5010 = vpop.f32.mrf.mxu0
  %v5011 = vadd.f32 %v4941, %v5010
  %v5012 = vpop.f32.mrf.mxu0
  %5013 = vdwg.mxu0
  %5014 = vmatprep.subr.mxu0 0.0
  %5015 = vmatpush1.msra.mxu0 %v2074
  %5016 = vmatprep.subr.mxu0 0.0
  %5017 = vmatpush1.msra.mxu0 %v2073
  %5018 = vmatprep.subr.mxu0 0.0
  %5019 = vmatpush1.msra.mxu0 %v2072
  %5020 = vmatprep.subr.mxu0 0.0
  %5021 = vmatpush1.msra.mxu0 %v2071
  %5022 = vmatprep.subr.mxu0 0.0
  %5023 = vmatpush1.msra.mxu0 %v2070
  %5024 = vmatprep.subr.mxu0 0.0
  %5025 = vmatpush1.msra.mxu0 %v2069
  %5026 = vmatprep.subr.mxu0 0.0
  %5027 = vmatpush1.msra.mxu0 %v2068
  %5028 = vmatprep.subr.mxu0 0.0
  %5029 = vmatpush1.msra.mxu0 %v2067
  %5030 = vmatprep.subr.mxu0 0.0
  %5031 = vmatpush1.msra.mxu0 %v2066
  %5032 = vmatprep.subr.mxu0 0.0
  %5033 = vmatpush1.msra.mxu0 %v2065
  %5034 = vmatprep.subr.mxu0 0.0
  %5035 = vmatpush1.msra.mxu0 %v2064
  %5036 = vmatprep.subr.mxu0 0.0
  %5037 = vmatpush1.msra.mxu0 %v2063
  %5038 = vmatprep.subr.mxu0 0.0
  %5039 = vmatpush1.msra.mxu0 %v2062
  %5040 = vmatprep.subr.mxu0 0.0
  %5041 = vmatpush1.msra.mxu0 %v2061
  %5042 = vmatprep.subr.mxu0 0.0
  %5043 = vmatpush1.msra.mxu0 %v2060
  %5044 = vmatprep.subr.mxu0 0.0
  %5045 = vmatpush1.msra.mxu0 %v2059
  %5046 = vmatprep.subr.mxu0 0.0
  %5047 = vmatpush2.msra.mxu0 %v2090
  %5048 = vmatprep.subr.mxu0 0.0
  %5049 = vmatpush2.msra.mxu0 %v2089
  %5050 = vmatprep.subr.mxu0 0.0
  %5051 = vmatpush2.msra.mxu0 %v2088
  %5052 = vmatprep.subr.mxu0 0.0
  %5053 = vmatpush2.msra.mxu0 %v2087
  %5054 = vmatprep.subr.mxu0 0.0
  %5055 = vmatpush2.msra.mxu0 %v2086
  %5056 = vmatprep.subr.mxu0 0.0
  %5057 = vmatpush2.msra.mxu0 %v2085
  %5058 = vmatprep.subr.mxu0 0.0
  %5059 = vmatpush2.msra.mxu0 %v2084
  %5060 = vmatprep.subr.mxu0 0.0
  %5061 = vmatpush2.msra.mxu0 %v2083
  %5062 = vmatprep.subr.mxu0 0.0
  %5063 = vmatpush2.msra.mxu0 %v2082
  %5064 = vmatprep.subr.mxu0 0.0
  %5065 = vmatpush2.msra.mxu0 %v2081
  %5066 = vmatprep.subr.mxu0 0.0
  %5067 = vmatpush2.msra.mxu0 %v2080
  %5068 = vmatprep.subr.mxu0 0.0
  %5069 = vmatpush2.msra.mxu0 %v2079
  %5070 = vmatprep.subr.mxu0 0.0
  %5071 = vmatpush2.msra.mxu0 %v2078
  %5072 = vmatprep.subr.mxu0 0.0
  %5073 = vmatpush2.msra.mxu0 %v2077
  %5074 = vmatprep.subr.mxu0 0.0
  %5075 = vmatpush2.msra.mxu0 %v2076
  %5076 = vmatprep.subr.mxu0 0.0
  %5077 = vmatpush2.msra.mxu0 %v2075
  %5078 = vmatprep.mubr.f32.mxu0 %v4871
  %5079 = vmatmul.mubr.f32.gmra.mxu0 %v4870
  %v5080 = vpop.f32.mrf.mxu0
  %v5081 = vadd.f32 %v5011, %v5080
  %v5082 = vpop.f32.mrf.mxu0
  %5083 = vdwg.mxu0
  %5084 = vmatprep.subr.mxu0 0.0
  %5085 = vmatpush1.msra.mxu0 %v2106
  %5086 = vmatprep.subr.mxu0 0.0
  %5087 = vmatpush1.msra.mxu0 %v2105
  %5088 = vmatprep.subr.mxu0 0.0
  %5089 = vmatpush1.msra.mxu0 %v2104
  %5090 = vmatprep.subr.mxu0 0.0
  %5091 = vmatpush1.msra.mxu0 %v2103
  %5092 = vmatprep.subr.mxu0 0.0
  %5093 = vmatpush1.msra.mxu0 %v2102
  %5094 = vmatprep.subr.mxu0 0.0
  %5095 = vmatpush1.msra.mxu0 %v2101
  %5096 = vmatprep.subr.mxu0 0.0
  %5097 = vmatpush1.msra.mxu0 %v2100
  %5098 = vmatprep.subr.mxu0 0.0
  %5099 = vmatpush1.msra.mxu0 %v2099
  %5100 = vmatprep.subr.mxu0 0.0
  %5101 = vmatpush1.msra.mxu0 %v2098
  %5102 = vmatprep.subr.mxu0 0.0
  %5103 = vmatpush1.msra.mxu0 %v2097
  %5104 = vmatprep.subr.mxu0 0.0
  %5105 = vmatpush1.msra.mxu0 %v2096
  %5106 = vmatprep.subr.mxu0 0.0
  %5107 = vmatpush1.msra.mxu0 %v2095
  %5108 = vmatprep.subr.mxu0 0.0
  %5109 = vmatpush1.msra.mxu0 %v2094
  %5110 = vmatprep.subr.mxu0 0.0
  %5111 = vmatpush1.msra.mxu0 %v2093
  %5112 = vmatprep.subr.mxu0 0.0
  %5113 = vmatpush1.msra.mxu0 %v2092
  %5114 = vmatprep.subr.mxu0 0.0
  %5115 = vmatpush1.msra.mxu0 %v2091
  %5116 = vmatprep.subr.mxu0 0.0
  %5117 = vmatpush2.msra.mxu0 %v2122
  %5118 = vmatprep.subr.mxu0 0.0
  %5119 = vmatpush2.msra.mxu0 %v2121
  %5120 = vmatprep.subr.mxu0 0.0
  %5121 = vmatpush2.msra.mxu0 %v2120
  %5122 = vmatprep.subr.mxu0 0.0
  %5123 = vmatpush2.msra.mxu0 %v2119
  %5124 = vmatprep.subr.mxu0 0.0
  %5125 = vmatpush2.msra.mxu0 %v2118
  %5126 = vmatprep.subr.mxu0 0.0
  %5127 = vmatpush2.msra.mxu0 %v2117
  %5128 = vmatprep.subr.mxu0 0.0
  %5129 = vmatpush2.msra.mxu0 %v2116
  %5130 = vmatprep.subr.mxu0 0.0
  %5131 = vmatpush2.msra.mxu0 %v2115
  %5132 = vmatprep.subr.mxu0 0.0
  %5133 = vmatpush2.msra.mxu0 %v2114
  %5134 = vmatprep.subr.mxu0 0.0
  %5135 = vmatpush2.msra.mxu0 %v2113
  %5136 = vmatprep.subr.mxu0 0.0
  %5137 = vmatpush2.msra.mxu0 %v2112
  %5138 = vmatprep.subr.mxu0 0.0
  %5139 = vmatpush2.msra.mxu0 %v2111
  %5140 = vmatprep.subr.mxu0 0.0
  %5141 = vmatpush2.msra.mxu0 %v2110
  %5142 = vmatprep.subr.mxu0 0.0
  %5143 = vmatpush2.msra.mxu0 %v2109
  %5144 = vmatprep.subr.mxu0 0.0
  %5145 = vmatpush2.msra.mxu0 %v2108
  %5146 = vmatprep.subr.mxu0 0.0
  %5147 = vmatpush2.msra.mxu0 %v2107
  %5148 = vmatprep.mubr.f32.mxu0 %v4873
  %5149 = vmatmul.mubr.f32.gmra.mxu0 %v4872
  %v5150 = vpop.f32.mrf.mxu0
  %v5151 = vadd.f32 %v5081, %v5150
  %v5152 = vpop.f32.mrf.mxu0
  %5153 = vdwg.mxu0
  %v5154 = vmul.f32 %v4818, 0.95
  %v5155 = vadd.f32 %v5154, %v5151
  %v5156 = vsub.f32 %v5155, %v4821
  %vm5157 = vcmp.gt.f32.partialorder %v5156, 1.0
  %v5158 = vsel %vm5157, 1, 0
  %v5159 = vcvt.s32.f32 %v5158
  %s5160 = scalar_lea.vmem %s5, 64
  %5161 = vst [vmem:[%s5160] sm:$0xff] %v5159
  %s5162 = scalar_lea.vmem %s6, 64
  %5163 = vst [vmem:[%s5162] sm:$0xff] %v5156
  %v5164 = vmul.f32 %v4842, 0.95
  %v5165 = vmul.f32 %v4843, 0.95
  %v5166 = vmul.f32 %v4844, 0.95
  %v5167 = vmul.f32 %v4845, 0.95
  %v5168 = vmul.f32 %v4846, 0.95
  %v5169 = vmul.f32 %v4847, 0.95
  %v5170 = vmul.f32 %v4848, 0.95
  %v5171 = vmul.f32 %v4849, 0.95
  %v5172 = vadd.f32 %v5164, %v1139
  %v5173 = vadd.f32 %v5165, %v1141
  %v5174 = vadd.f32 %v5166, %v1423
  %v5175 = vadd.f32 %v5167, %v1425
  %v5176 = vadd.f32 %v5168, %v1707
  %v5177 = vadd.f32 %v5169, %v1709
  %v5178 = vadd.f32 %v5170, %v1991
  %v5179 = vadd.f32 %v5171, %v1993
  %v5180 = vsub.f32 %v5172, %v4866
  %v5181 = vsub.f32 %v5173, %v4867
  %v5182 = vsub.f32 %v5174, %v4868
  %v5183 = vsub.f32 %v5175, %v4869
  %v5184 = vsub.f32 %v5176, %v4870
  %v5185 = vsub.f32 %v5177, %v4871
  %v5186 = vsub.f32 %v5178, %v4872
  %v5187 = vsub.f32 %v5179, %v4873
  %vm5188 = vcmp.gt.f32.partialorder %v5180, 1.0
  %vm5189 = vcmp.gt.f32.partialorder %v5181, 1.0
  %vm5190 = vcmp.gt.f32.partialorder %v5182, 1.0
  %vm5191 = vcmp.gt.f32.partialorder %v5183, 1.0
  %vm5192 = vcmp.gt.f32.partialorder %v5184, 1.0
  %vm5193 = vcmp.gt.f32.partialorder %v5185, 1.0
  %vm5194 = vcmp.gt.f32.partialorder %v5186, 1.0
  %vm5195 = vcmp.gt.f32.partialorder %v5187, 1.0
  %v5196 = vsel %vm5188, 1, 0
  %v5197 = vsel %vm5189, 1, 0
  %v5198 = vsel %vm5190, 1, 0
  %v5199 = vsel %vm5191, 1, 0
  %v5200 = vsel %vm5192, 1, 0
  %v5201 = vsel %vm5193, 1, 0
  %v5202 = vsel %vm5194, 1, 0
  %v5203 = vsel %vm5195, 1, 0
  %v5204 = vcvt.s32.f32 %v5196
  %v5205 = vcvt.s32.f32 %v5197
  %v5206 = vcvt.s32.f32 %v5198
  %v5207 = vcvt.s32.f32 %v5199
  %v5208 = vcvt.s32.f32 %v5200
  %v5209 = vcvt.s32.f32 %v5201
  %v5210 = vcvt.s32.f32 %v5202
  %v5211 = vcvt.s32.f32 %v5203
  %5212 = vmatprep.subr.mxu0 0.0
  %5213 = vmatpush1.msra.mxu0 %v2010
  %5214 = vmatprep.subr.mxu0 0.0
  %5215 = vmatpush1.msra.mxu0 %v2009
  %5216 = vmatprep.subr.mxu0 0.0
  %5217 = vmatpush1.msra.mxu0 %v2008
  %5218 = vmatprep.subr.mxu0 0.0
  %5219 = vmatpush1.msra.mxu0 %v2007
  %5220 = vmatprep.subr.mxu0 0.0
  %5221 = vmatpush1.msra.mxu0 %v2006
  %5222 = vmatprep.subr.mxu0 0.0
  %5223 = vmatpush1.msra.mxu0 %v2005
  %5224 = vmatprep.subr.mxu0 0.0
  %5225 = vmatpush1.msra.mxu0 %v2004
  %5226 = vmatprep.subr.mxu0 0.0
  %5227 = vmatpush1.msra.mxu0 %v2003
  %5228 = vmatprep.subr.mxu0 0.0
  %5229 = vmatpush1.msra.mxu0 %v2002
  %5230 = vmatprep.subr.mxu0 0.0
  %5231 = vmatpush1.msra.mxu0 %v2001
  %5232 = vmatprep.subr.mxu0 0.0
  %5233 = vmatpush1.msra.mxu0 %v2000
  %5234 = vmatprep.subr.mxu0 0.0
  %5235 = vmatpush1.msra.mxu0 %v1999
  %5236 = vmatprep.subr.mxu0 0.0
  %5237 = vmatpush1.msra.mxu0 %v1998
  %5238 = vmatprep.subr.mxu0 0.0
  %5239 = vmatpush1.msra.mxu0 %v1997
  %5240 = vmatprep.subr.mxu0 0.0
  %5241 = vmatpush1.msra.mxu0 %v1996
  %5242 = vmatprep.subr.mxu0 0.0
  %5243 = vmatpush1.msra.mxu0 %v1995
  %5244 = vmatprep.subr.mxu0 0.0
  %5245 = vmatpush2.msra.mxu0 %v2026
  %5246 = vmatprep.subr.mxu0 0.0
  %5247 = vmatpush2.msra.mxu0 %v2025
  %5248 = vmatprep.subr.mxu0 0.0
  %5249 = vmatpush2.msra.mxu0 %v2024
  %5250 = vmatprep.subr.mxu0 0.0
  %5251 = vmatpush2.msra.mxu0 %v2023
  %5252 = vmatprep.subr.mxu0 0.0
  %5253 = vmatpush2.msra.mxu0 %v2022
  %5254 = vmatprep.subr.mxu0 0.0
  %5255 = vmatpush2.msra.mxu0 %v2021
  %5256 = vmatprep.subr.mxu0 0.0
  %5257 = vmatpush2.msra.mxu0 %v2020
  %5258 = vmatprep.subr.mxu0 0.0
  %5259 = vmatpush2.msra.mxu0 %v2019
  %5260 = vmatprep.subr.mxu0 0.0
  %5261 = vmatpush2.msra.mxu0 %v2018
  %5262 = vmatprep.subr.mxu0 0.0
  %5263 = vmatpush2.msra.mxu0 %v2017
  %5264 = vmatprep.subr.mxu0 0.0
  %5265 = vmatpush2.msra.mxu0 %v2016
  %5266 = vmatprep.subr.mxu0 0.0
  %5267 = vmatpush2.msra.mxu0 %v2015
  %5268 = vmatprep.subr.mxu0 0.0
  %5269 = vmatpush2.msra.mxu0 %v2014
  %5270 = vmatprep.subr.mxu0 0.0
  %5271 = vmatpush2.msra.mxu0 %v2013
  %5272 = vmatprep.subr.mxu0 0.0
  %5273 = vmatpush2.msra.mxu0 %v2012
  %5274 = vmatprep.subr.mxu0 0.0
  %5275 = vmatpush2.msra.mxu0 %v2011
  %5276 = vmatprep.mubr.f32.mxu0 %v5205
  %5277 = vmatmul.mubr.f32.gmra.mxu0 %v5204
  %v5278 = vpop.f32.mrf.mxu0
  %v5279 = vadd.f32 %v2171, %v5278
  %v5280 = vpop.f32.mrf.mxu0
  %5281 = vdwg.mxu0
  %5282 = vmatprep.subr.mxu0 0.0
  %5283 = vmatpush1.msra.mxu0 %v2042
  %5284 = vmatprep.subr.mxu0 0.0
  %5285 = vmatpush1.msra.mxu0 %v2041
  %5286 = vmatprep.subr.mxu0 0.0
  %5287 = vmatpush1.msra.mxu0 %v2040
  %5288 = vmatprep.subr.mxu0 0.0
  %5289 = vmatpush1.msra.mxu0 %v2039
  %5290 = vmatprep.subr.mxu0 0.0
  %5291 = vmatpush1.msra.mxu0 %v2038
  %5292 = vmatprep.subr.mxu0 0.0
  %5293 = vmatpush1.msra.mxu0 %v2037
  %5294 = vmatprep.subr.mxu0 0.0
  %5295 = vmatpush1.msra.mxu0 %v2036
  %5296 = vmatprep.subr.mxu0 0.0
  %5297 = vmatpush1.msra.mxu0 %v2035
  %5298 = vmatprep.subr.mxu0 0.0
  %5299 = vmatpush1.msra.mxu0 %v2034
  %5300 = vmatprep.subr.mxu0 0.0
  %5301 = vmatpush1.msra.mxu0 %v2033
  %5302 = vmatprep.subr.mxu0 0.0
  %5303 = vmatpush1.msra.mxu0 %v2032
  %5304 = vmatprep.subr.mxu0 0.0
  %5305 = vmatpush1.msra.mxu0 %v2031
  %5306 = vmatprep.subr.mxu0 0.0
  %5307 = vmatpush1.msra.mxu0 %v2030
  %5308 = vmatprep.subr.mxu0 0.0
  %5309 = vmatpush1.msra.mxu0 %v2029
  %5310 = vmatprep.subr.mxu0 0.0
  %5311 = vmatpush1.msra.mxu0 %v2028
  %5312 = vmatprep.subr.mxu0 0.0
  %5313 = vmatpush1.msra.mxu0 %v2027
  %5314 = vmatprep.subr.mxu0 0.0
  %5315 = vmatpush2.msra.mxu0 %v2058
  %5316 = vmatprep.subr.mxu0 0.0
  %5317 = vmatpush2.msra.mxu0 %v2057
  %5318 = vmatprep.subr.mxu0 0.0
  %5319 = vmatpush2.msra.mxu0 %v2056
  %5320 = vmatprep.subr.mxu0 0.0
  %5321 = vmatpush2.msra.mxu0 %v2055
  %5322 = vmatprep.subr.mxu0 0.0
  %5323 = vmatpush2.msra.mxu0 %v2054
  %5324 = vmatprep.subr.mxu0 0.0
  %5325 = vmatpush2.msra.mxu0 %v2053
  %5326 = vmatprep.subr.mxu0 0.0
  %5327 = vmatpush2.msra.mxu0 %v2052
  %5328 = vmatprep.subr.mxu0 0.0
  %5329 = vmatpush2.msra.mxu0 %v2051
  %5330 = vmatprep.subr.mxu0 0.0
  %5331 = vmatpush2.msra.mxu0 %v2050
  %5332 = vmatprep.subr.mxu0 0.0
  %5333 = vmatpush2.msra.mxu0 %v2049
  %5334 = vmatprep.subr.mxu0 0.0
  %5335 = vmatpush2.msra.mxu0 %v2048
  %5336 = vmatprep.subr.mxu0 0.0
  %5337 = vmatpush2.msra.mxu0 %v2047
  %5338 = vmatprep.subr.mxu0 0.0
  %5339 = vmatpush2.msra.mxu0 %v2046
  %5340 = vmatprep.subr.mxu0 0.0
  %5341 = vmatpush2.msra.mxu0 %v2045
  %5342 = vmatprep.subr.mxu0 0.0
  %5343 = vmatpush2.msra.mxu0 %v2044
  %5344 = vmatprep.subr.mxu0 0.0
  %5345 = vmatpush2.msra.mxu0 %v2043
  %5346 = vmatprep.mubr.f32.mxu0 %v5207
  %5347 = vmatmul.mubr.f32.gmra.mxu0 %v5206
  %v5348 = vpop.f32.mrf.mxu0
  %v5349 = vadd.f32 %v5279, %v5348
  %v5350 = vpop.f32.mrf.mxu0
  %5351 = vdwg.mxu0
  %5352 = vmatprep.subr.mxu0 0.0
  %5353 = vmatpush1.msra.mxu0 %v2074
  %5354 = vmatprep.subr.mxu0 0.0
  %5355 = vmatpush1.msra.mxu0 %v2073
  %5356 = vmatprep.subr.mxu0 0.0
  %5357 = vmatpush1.msra.mxu0 %v2072
  %5358 = vmatprep.subr.mxu0 0.0
  %5359 = vmatpush1.msra.mxu0 %v2071
  %5360 = vmatprep.subr.mxu0 0.0
  %5361 = vmatpush1.msra.mxu0 %v2070
  %5362 = vmatprep.subr.mxu0 0.0
  %5363 = vmatpush1.msra.mxu0 %v2069
  %5364 = vmatprep.subr.mxu0 0.0
  %5365 = vmatpush1.msra.mxu0 %v2068
  %5366 = vmatprep.subr.mxu0 0.0
  %5367 = vmatpush1.msra.mxu0 %v2067
  %5368 = vmatprep.subr.mxu0 0.0
  %5369 = vmatpush1.msra.mxu0 %v2066
  %5370 = vmatprep.subr.mxu0 0.0
  %5371 = vmatpush1.msra.mxu0 %v2065
  %5372 = vmatprep.subr.mxu0 0.0
  %5373 = vmatpush1.msra.mxu0 %v2064
  %5374 = vmatprep.subr.mxu0 0.0
  %5375 = vmatpush1.msra.mxu0 %v2063
  %5376 = vmatprep.subr.mxu0 0.0
  %5377 = vmatpush1.msra.mxu0 %v2062
  %5378 = vmatprep.subr.mxu0 0.0
  %5379 = vmatpush1.msra.mxu0 %v2061
  %5380 = vmatprep.subr.mxu0 0.0
  %5381 = vmatpush1.msra.mxu0 %v2060
  %5382 = vmatprep.subr.mxu0 0.0
  %5383 = vmatpush1.msra.mxu0 %v2059
  %5384 = vmatprep.subr.mxu0 0.0
  %5385 = vmatpush2.msra.mxu0 %v2090
  %5386 = vmatprep.subr.mxu0 0.0
  %5387 = vmatpush2.msra.mxu0 %v2089
  %5388 = vmatprep.subr.mxu0 0.0
  %5389 = vmatpush2.msra.mxu0 %v2088
  %5390 = vmatprep.subr.mxu0 0.0
  %5391 = vmatpush2.msra.mxu0 %v2087
  %5392 = vmatprep.subr.mxu0 0.0
  %5393 = vmatpush2.msra.mxu0 %v2086
  %5394 = vmatprep.subr.mxu0 0.0
  %5395 = vmatpush2.msra.mxu0 %v2085
  %5396 = vmatprep.subr.mxu0 0.0
  %5397 = vmatpush2.msra.mxu0 %v2084
  %5398 = vmatprep.subr.mxu0 0.0
  %5399 = vmatpush2.msra.mxu0 %v2083
  %5400 = vmatprep.subr.mxu0 0.0
  %5401 = vmatpush2.msra.mxu0 %v2082
  %5402 = vmatprep.subr.mxu0 0.0
  %5403 = vmatpush2.msra.mxu0 %v2081
  %5404 = vmatprep.subr.mxu0 0.0
  %5405 = vmatpush2.msra.mxu0 %v2080
  %5406 = vmatprep.subr.mxu0 0.0
  %5407 = vmatpush2.msra.mxu0 %v2079
  %5408 = vmatprep.subr.mxu0 0.0
  %5409 = vmatpush2.msra.mxu0 %v2078
  %5410 = vmatprep.subr.mxu0 0.0
  %5411 = vmatpush2.msra.mxu0 %v2077
  %5412 = vmatprep.subr.mxu0 0.0
  %5413 = vmatpush2.msra.mxu0 %v2076
  %5414 = vmatprep.subr.mxu0 0.0
  %5415 = vmatpush2.msra.mxu0 %v2075
  %5416 = vmatprep.mubr.f32.mxu0 %v5209
  %5417 = vmatmul.mubr.f32.gmra.mxu0 %v5208
  %v5418 = vpop.f32.mrf.mxu0
  %v5419 = vadd.f32 %v5349, %v5418
  %v5420 = vpop.f32.mrf.mxu0
  %5421 = vdwg.mxu0
  %5422 = vmatprep.subr.mxu0 0.0
  %5423 = vmatpush1.msra.mxu0 %v2106
  %5424 = vmatprep.subr.mxu0 0.0
  %5425 = vmatpush1.msra.mxu0 %v2105
  %5426 = vmatprep.subr.mxu0 0.0
  %5427 = vmatpush1.msra.mxu0 %v2104
  %5428 = vmatprep.subr.mxu0 0.0
  %5429 = vmatpush1.msra.mxu0 %v2103
  %5430 = vmatprep.subr.mxu0 0.0
  %5431 = vmatpush1.msra.mxu0 %v2102
  %5432 = vmatprep.subr.mxu0 0.0
  %5433 = vmatpush1.msra.mxu0 %v2101
  %5434 = vmatprep.subr.mxu0 0.0
  %5435 = vmatpush1.msra.mxu0 %v2100
  %5436 = vmatprep.subr.mxu0 0.0
  %5437 = vmatpush1.msra.mxu0 %v2099
  %5438 = vmatprep.subr.mxu0 0.0
  %5439 = vmatpush1.msra.mxu0 %v2098
  %5440 = vmatprep.subr.mxu0 0.0
  %5441 = vmatpush1.msra.mxu0 %v2097
  %5442 = vmatprep.subr.mxu0 0.0
  %5443 = vmatpush1.msra.mxu0 %v2096
  %5444 = vmatprep.subr.mxu0 0.0
  %5445 = vmatpush1.msra.mxu0 %v2095
  %5446 = vmatprep.subr.mxu0 0.0
  %5447 = vmatpush1.msra.mxu0 %v2094
  %5448 = vmatprep.subr.mxu0 0.0
  %5449 = vmatpush1.msra.mxu0 %v2093
  %5450 = vmatprep.subr.mxu0 0.0
  %5451 = vmatpush1.msra.mxu0 %v2092
  %5452 = vmatprep.subr.mxu0 0.0
  %5453 = vmatpush1.msra.mxu0 %v2091
  %5454 = vmatprep.subr.mxu0 0.0
  %5455 = vmatpush2.msra.mxu0 %v2122
  %5456 = vmatprep.subr.mxu0 0.0
  %5457 = vmatpush2.msra.mxu0 %v2121
  %5458 = vmatprep.subr.mxu0 0.0
  %5459 = vmatpush2.msra.mxu0 %v2120
  %5460 = vmatprep.subr.mxu0 0.0
  %5461 = vmatpush2.msra.mxu0 %v2119
  %5462 = vmatprep.subr.mxu0 0.0
  %5463 = vmatpush2.msra.mxu0 %v2118
  %5464 = vmatprep.subr.mxu0 0.0
  %5465 = vmatpush2.msra.mxu0 %v2117
  %5466 = vmatprep.subr.mxu0 0.0
  %5467 = vmatpush2.msra.mxu0 %v2116
  %5468 = vmatprep.subr.mxu0 0.0
  %5469 = vmatpush2.msra.mxu0 %v2115
  %5470 = vmatprep.subr.mxu0 0.0
  %5471 = vmatpush2.msra.mxu0 %v2114
  %5472 = vmatprep.subr.mxu0 0.0
  %5473 = vmatpush2.msra.mxu0 %v2113
  %5474 = vmatprep.subr.mxu0 0.0
  %5475 = vmatpush2.msra.mxu0 %v2112
  %5476 = vmatprep.subr.mxu0 0.0
  %5477 = vmatpush2.msra.mxu0 %v2111
  %5478 = vmatprep.subr.mxu0 0.0
  %5479 = vmatpush2.msra.mxu0 %v2110
  %5480 = vmatprep.subr.mxu0 0.0
  %5481 = vmatpush2.msra.mxu0 %v2109
  %5482 = vmatprep.subr.mxu0 0.0
  %5483 = vmatpush2.msra.mxu0 %v2108
  %5484 = vmatprep.subr.mxu0 0.0
  %5485 = vmatpush2.msra.mxu0 %v2107
  %5486 = vmatprep.mubr.f32.mxu0 %v5211
  %5487 = vmatmul.mubr.f32.gmra.mxu0 %v5210
  %v5488 = vpop.f32.mrf.mxu0
  %v5489 = vadd.f32 %v5419, %v5488
  %v5490 = vpop.f32.mrf.mxu0
  %5491 = vdwg.mxu0
  %v5492 = vmul.f32 %v5156, 0.95
  %v5493 = vadd.f32 %v5492, %v5489
  %v5494 = vsub.f32 %v5493, %v5159
  %vm5495 = vcmp.gt.f32.partialorder %v5494, 1.0
  %v5496 = vsel %vm5495, 1, 0
  %v5497 = vcvt.s32.f32 %v5496
  %s5498 = scalar_lea.vmem %s5, 72
  %5499 = vst [vmem:[%s5498] sm:$0xff] %v5497
  %s5500 = scalar_lea.vmem %s6, 72
  %5501 = vst [vmem:[%s5500] sm:$0xff] %v5494
  %v5502 = vmul.f32 %v5180, 0.95
  %v5503 = vmul.f32 %v5181, 0.95
  %v5504 = vmul.f32 %v5182, 0.95
  %v5505 = vmul.f32 %v5183, 0.95
  %v5506 = vmul.f32 %v5184, 0.95
  %v5507 = vmul.f32 %v5185, 0.95
  %v5508 = vmul.f32 %v5186, 0.95
  %v5509 = vmul.f32 %v5187, 0.95
  %v5510 = vadd.f32 %v5502, %v1139
  %v5511 = vadd.f32 %v5503, %v1141
  %v5512 = vadd.f32 %v5504, %v1423
  %v5513 = vadd.f32 %v5505, %v1425
  %v5514 = vadd.f32 %v5506, %v1707
  %v5515 = vadd.f32 %v5507, %v1709
  %v5516 = vadd.f32 %v5508, %v1991
  %v5517 = vadd.f32 %v5509, %v1993
  %v5518 = vsub.f32 %v5510, %v5204
  %v5519 = vsub.f32 %v5511, %v5205
  %v5520 = vsub.f32 %v5512, %v5206
  %v5521 = vsub.f32 %v5513, %v5207
  %v5522 = vsub.f32 %v5514, %v5208
  %v5523 = vsub.f32 %v5515, %v5209
  %v5524 = vsub.f32 %v5516, %v5210
  %v5525 = vsub.f32 %v5517, %v5211
  %vm5526 = vcmp.gt.f32.partialorder %v5518, 1.0
  %vm5527 = vcmp.gt.f32.partialorder %v5519, 1.0
  %vm5528 = vcmp.gt.f32.partialorder %v5520, 1.0
  %vm5529 = vcmp.gt.f32.partialorder %v5521, 1.0
  %vm5530 = vcmp.gt.f32.partialorder %v5522, 1.0
  %vm5531 = vcmp.gt.f32.partialorder %v5523, 1.0
  %vm5532 = vcmp.gt.f32.partialorder %v5524, 1.0
  %vm5533 = vcmp.gt.f32.partialorder %v5525, 1.0
  %v5534 = vsel %vm5526, 1, 0
  %v5535 = vsel %vm5527, 1, 0
  %v5536 = vsel %vm5528, 1, 0
  %v5537 = vsel %vm5529, 1, 0
  %v5538 = vsel %vm5530, 1, 0
  %v5539 = vsel %vm5531, 1, 0
  %v5540 = vsel %vm5532, 1, 0
  %v5541 = vsel %vm5533, 1, 0
  %v5542 = vcvt.s32.f32 %v5534
  %v5543 = vcvt.s32.f32 %v5535
  %v5544 = vcvt.s32.f32 %v5536
  %v5545 = vcvt.s32.f32 %v5537
  %v5546 = vcvt.s32.f32 %v5538
  %v5547 = vcvt.s32.f32 %v5539
  %v5548 = vcvt.s32.f32 %v5540
  %v5549 = vcvt.s32.f32 %v5541
  %5550 = vmatprep.subr.mxu0 0.0
  %5551 = vmatpush1.msra.mxu0 %v2010
  %5552 = vmatprep.subr.mxu0 0.0
  %5553 = vmatpush1.msra.mxu0 %v2009
  %5554 = vmatprep.subr.mxu0 0.0
  %5555 = vmatpush1.msra.mxu0 %v2008
  %5556 = vmatprep.subr.mxu0 0.0
  %5557 = vmatpush1.msra.mxu0 %v2007
  %5558 = vmatprep.subr.mxu0 0.0
  %5559 = vmatpush1.msra.mxu0 %v2006
  %5560 = vmatprep.subr.mxu0 0.0
  %5561 = vmatpush1.msra.mxu0 %v2005
  %5562 = vmatprep.subr.mxu0 0.0
  %5563 = vmatpush1.msra.mxu0 %v2004
  %5564 = vmatprep.subr.mxu0 0.0
  %5565 = vmatpush1.msra.mxu0 %v2003
  %5566 = vmatprep.subr.mxu0 0.0
  %5567 = vmatpush1.msra.mxu0 %v2002
  %5568 = vmatprep.subr.mxu0 0.0
  %5569 = vmatpush1.msra.mxu0 %v2001
  %5570 = vmatprep.subr.mxu0 0.0
  %5571 = vmatpush1.msra.mxu0 %v2000
  %5572 = vmatprep.subr.mxu0 0.0
  %5573 = vmatpush1.msra.mxu0 %v1999
  %5574 = vmatprep.subr.mxu0 0.0
  %5575 = vmatpush1.msra.mxu0 %v1998
  %5576 = vmatprep.subr.mxu0 0.0
  %5577 = vmatpush1.msra.mxu0 %v1997
  %5578 = vmatprep.subr.mxu0 0.0
  %5579 = vmatpush1.msra.mxu0 %v1996
  %5580 = vmatprep.subr.mxu0 0.0
  %5581 = vmatpush1.msra.mxu0 %v1995
  %5582 = vmatprep.subr.mxu0 0.0
  %5583 = vmatpush2.msra.mxu0 %v2026
  %5584 = vmatprep.subr.mxu0 0.0
  %5585 = vmatpush2.msra.mxu0 %v2025
  %5586 = vmatprep.subr.mxu0 0.0
  %5587 = vmatpush2.msra.mxu0 %v2024
  %5588 = vmatprep.subr.mxu0 0.0
  %5589 = vmatpush2.msra.mxu0 %v2023
  %5590 = vmatprep.subr.mxu0 0.0
  %5591 = vmatpush2.msra.mxu0 %v2022
  %5592 = vmatprep.subr.mxu0 0.0
  %5593 = vmatpush2.msra.mxu0 %v2021
  %5594 = vmatprep.subr.mxu0 0.0
  %5595 = vmatpush2.msra.mxu0 %v2020
  %5596 = vmatprep.subr.mxu0 0.0
  %5597 = vmatpush2.msra.mxu0 %v2019
  %5598 = vmatprep.subr.mxu0 0.0
  %5599 = vmatpush2.msra.mxu0 %v2018
  %5600 = vmatprep.subr.mxu0 0.0
  %5601 = vmatpush2.msra.mxu0 %v2017
  %5602 = vmatprep.subr.mxu0 0.0
  %5603 = vmatpush2.msra.mxu0 %v2016
  %5604 = vmatprep.subr.mxu0 0.0
  %5605 = vmatpush2.msra.mxu0 %v2015
  %5606 = vmatprep.subr.mxu0 0.0
  %5607 = vmatpush2.msra.mxu0 %v2014
  %5608 = vmatprep.subr.mxu0 0.0
  %5609 = vmatpush2.msra.mxu0 %v2013
  %5610 = vmatprep.subr.mxu0 0.0
  %5611 = vmatpush2.msra.mxu0 %v2012
  %5612 = vmatprep.subr.mxu0 0.0
  %5613 = vmatpush2.msra.mxu0 %v2011
  %5614 = vmatprep.mubr.f32.mxu0 %v5543
  %5615 = vmatmul.mubr.f32.gmra.mxu0 %v5542
  %v5616 = vpop.f32.mrf.mxu0
  %v5617 = vadd.f32 %v2171, %v5616
  %v5618 = vpop.f32.mrf.mxu0
  %5619 = vdwg.mxu0
  %5620 = vmatprep.subr.mxu0 0.0
  %5621 = vmatpush1.msra.mxu0 %v2042
  %5622 = vmatprep.subr.mxu0 0.0
  %5623 = vmatpush1.msra.mxu0 %v2041
  %5624 = vmatprep.subr.mxu0 0.0
  %5625 = vmatpush1.msra.mxu0 %v2040
  %5626 = vmatprep.subr.mxu0 0.0
  %5627 = vmatpush1.msra.mxu0 %v2039
  %5628 = vmatprep.subr.mxu0 0.0
  %5629 = vmatpush1.msra.mxu0 %v2038
  %5630 = vmatprep.subr.mxu0 0.0
  %5631 = vmatpush1.msra.mxu0 %v2037
  %5632 = vmatprep.subr.mxu0 0.0
  %5633 = vmatpush1.msra.mxu0 %v2036
  %5634 = vmatprep.subr.mxu0 0.0
  %5635 = vmatpush1.msra.mxu0 %v2035
  %5636 = vmatprep.subr.mxu0 0.0
  %5637 = vmatpush1.msra.mxu0 %v2034
  %5638 = vmatprep.subr.mxu0 0.0
  %5639 = vmatpush1.msra.mxu0 %v2033
  %5640 = vmatprep.subr.mxu0 0.0
  %5641 = vmatpush1.msra.mxu0 %v2032
  %5642 = vmatprep.subr.mxu0 0.0
  %5643 = vmatpush1.msra.mxu0 %v2031
  %5644 = vmatprep.subr.mxu0 0.0
  %5645 = vmatpush1.msra.mxu0 %v2030
  %5646 = vmatprep.subr.mxu0 0.0
  %5647 = vmatpush1.msra.mxu0 %v2029
  %5648 = vmatprep.subr.mxu0 0.0
  %5649 = vmatpush1.msra.mxu0 %v2028
  %5650 = vmatprep.subr.mxu0 0.0
  %5651 = vmatpush1.msra.mxu0 %v2027
  %5652 = vmatprep.subr.mxu0 0.0
  %5653 = vmatpush2.msra.mxu0 %v2058
  %5654 = vmatprep.subr.mxu0 0.0
  %5655 = vmatpush2.msra.mxu0 %v2057
  %5656 = vmatprep.subr.mxu0 0.0
  %5657 = vmatpush2.msra.mxu0 %v2056
  %5658 = vmatprep.subr.mxu0 0.0
  %5659 = vmatpush2.msra.mxu0 %v2055
  %5660 = vmatprep.subr.mxu0 0.0
  %5661 = vmatpush2.msra.mxu0 %v2054
  %5662 = vmatprep.subr.mxu0 0.0
  %5663 = vmatpush2.msra.mxu0 %v2053
  %5664 = vmatprep.subr.mxu0 0.0
  %5665 = vmatpush2.msra.mxu0 %v2052
  %5666 = vmatprep.subr.mxu0 0.0
  %5667 = vmatpush2.msra.mxu0 %v2051
  %5668 = vmatprep.subr.mxu0 0.0
  %5669 = vmatpush2.msra.mxu0 %v2050
  %5670 = vmatprep.subr.mxu0 0.0
  %5671 = vmatpush2.msra.mxu0 %v2049
  %5672 = vmatprep.subr.mxu0 0.0
  %5673 = vmatpush2.msra.mxu0 %v2048
  %5674 = vmatprep.subr.mxu0 0.0
  %5675 = vmatpush2.msra.mxu0 %v2047
  %5676 = vmatprep.subr.mxu0 0.0
  %5677 = vmatpush2.msra.mxu0 %v2046
  %5678 = vmatprep.subr.mxu0 0.0
  %5679 = vmatpush2.msra.mxu0 %v2045
  %5680 = vmatprep.subr.mxu0 0.0
  %5681 = vmatpush2.msra.mxu0 %v2044
  %5682 = vmatprep.subr.mxu0 0.0
  %5683 = vmatpush2.msra.mxu0 %v2043
  %5684 = vmatprep.mubr.f32.mxu0 %v5545
  %5685 = vmatmul.mubr.f32.gmra.mxu0 %v5544
  %v5686 = vpop.f32.mrf.mxu0
  %v5687 = vadd.f32 %v5617, %v5686
  %v5688 = vpop.f32.mrf.mxu0
  %5689 = vdwg.mxu0
  %5690 = vmatprep.subr.mxu0 0.0
  %5691 = vmatpush1.msra.mxu0 %v2074
  %5692 = vmatprep.subr.mxu0 0.0
  %5693 = vmatpush1.msra.mxu0 %v2073
  %5694 = vmatprep.subr.mxu0 0.0
  %5695 = vmatpush1.msra.mxu0 %v2072
  %5696 = vmatprep.subr.mxu0 0.0
  %5697 = vmatpush1.msra.mxu0 %v2071
  %5698 = vmatprep.subr.mxu0 0.0
  %5699 = vmatpush1.msra.mxu0 %v2070
  %5700 = vmatprep.subr.mxu0 0.0
  %5701 = vmatpush1.msra.mxu0 %v2069
  %5702 = vmatprep.subr.mxu0 0.0
  %5703 = vmatpush1.msra.mxu0 %v2068
  %5704 = vmatprep.subr.mxu0 0.0
  %5705 = vmatpush1.msra.mxu0 %v2067
  %5706 = vmatprep.subr.mxu0 0.0
  %5707 = vmatpush1.msra.mxu0 %v2066
  %5708 = vmatprep.subr.mxu0 0.0
  %5709 = vmatpush1.msra.mxu0 %v2065
  %5710 = vmatprep.subr.mxu0 0.0
  %5711 = vmatpush1.msra.mxu0 %v2064
  %5712 = vmatprep.subr.mxu0 0.0
  %5713 = vmatpush1.msra.mxu0 %v2063
  %5714 = vmatprep.subr.mxu0 0.0
  %5715 = vmatpush1.msra.mxu0 %v2062
  %5716 = vmatprep.subr.mxu0 0.0
  %5717 = vmatpush1.msra.mxu0 %v2061
  %5718 = vmatprep.subr.mxu0 0.0
  %5719 = vmatpush1.msra.mxu0 %v2060
  %5720 = vmatprep.subr.mxu0 0.0
  %5721 = vmatpush1.msra.mxu0 %v2059
  %5722 = vmatprep.subr.mxu0 0.0
  %5723 = vmatpush2.msra.mxu0 %v2090
  %5724 = vmatprep.subr.mxu0 0.0
  %5725 = vmatpush2.msra.mxu0 %v2089
  %5726 = vmatprep.subr.mxu0 0.0
  %5727 = vmatpush2.msra.mxu0 %v2088
  %5728 = vmatprep.subr.mxu0 0.0
  %5729 = vmatpush2.msra.mxu0 %v2087
  %5730 = vmatprep.subr.mxu0 0.0
  %5731 = vmatpush2.msra.mxu0 %v2086
  %5732 = vmatprep.subr.mxu0 0.0
  %5733 = vmatpush2.msra.mxu0 %v2085
  %5734 = vmatprep.subr.mxu0 0.0
  %5735 = vmatpush2.msra.mxu0 %v2084
  %5736 = vmatprep.subr.mxu0 0.0
  %5737 = vmatpush2.msra.mxu0 %v2083
  %5738 = vmatprep.subr.mxu0 0.0
  %5739 = vmatpush2.msra.mxu0 %v2082
  %5740 = vmatprep.subr.mxu0 0.0
  %5741 = vmatpush2.msra.mxu0 %v2081
  %5742 = vmatprep.subr.mxu0 0.0
  %5743 = vmatpush2.msra.mxu0 %v2080
  %5744 = vmatprep.subr.mxu0 0.0
  %5745 = vmatpush2.msra.mxu0 %v2079
  %5746 = vmatprep.subr.mxu0 0.0
  %5747 = vmatpush2.msra.mxu0 %v2078
  %5748 = vmatprep.subr.mxu0 0.0
  %5749 = vmatpush2.msra.mxu0 %v2077
  %5750 = vmatprep.subr.mxu0 0.0
  %5751 = vmatpush2.msra.mxu0 %v2076
  %5752 = vmatprep.subr.mxu0 0.0
  %5753 = vmatpush2.msra.mxu0 %v2075
  %5754 = vmatprep.mubr.f32.mxu0 %v5547
  %5755 = vmatmul.mubr.f32.gmra.mxu0 %v5546
  %v5756 = vpop.f32.mrf.mxu0
  %v5757 = vadd.f32 %v5687, %v5756
  %v5758 = vpop.f32.mrf.mxu0
  %5759 = vdwg.mxu0
  %5760 = vmatprep.subr.mxu0 0.0
  %5761 = vmatpush1.msra.mxu0 %v2106
  %5762 = vmatprep.subr.mxu0 0.0
  %5763 = vmatpush1.msra.mxu0 %v2105
  %5764 = vmatprep.subr.mxu0 0.0
  %5765 = vmatpush1.msra.mxu0 %v2104
  %5766 = vmatprep.subr.mxu0 0.0
  %5767 = vmatpush1.msra.mxu0 %v2103
  %5768 = vmatprep.subr.mxu0 0.0
  %5769 = vmatpush1.msra.mxu0 %v2102
  %5770 = vmatprep.subr.mxu0 0.0
  %5771 = vmatpush1.msra.mxu0 %v2101
  %5772 = vmatprep.subr.mxu0 0.0
  %5773 = vmatpush1.msra.mxu0 %v2100
  %5774 = vmatprep.subr.mxu0 0.0
  %5775 = vmatpush1.msra.mxu0 %v2099
  %5776 = vmatprep.subr.mxu0 0.0
  %5777 = vmatpush1.msra.mxu0 %v2098
  %5778 = vmatprep.subr.mxu0 0.0
  %5779 = vmatpush1.msra.mxu0 %v2097
  %5780 = vmatprep.subr.mxu0 0.0
  %5781 = vmatpush1.msra.mxu0 %v2096
  %5782 = vmatprep.subr.mxu0 0.0
  %5783 = vmatpush1.msra.mxu0 %v2095
  %5784 = vmatprep.subr.mxu0 0.0
  %5785 = vmatpush1.msra.mxu0 %v2094
  %5786 = vmatprep.subr.mxu0 0.0
  %5787 = vmatpush1.msra.mxu0 %v2093
  %5788 = vmatprep.subr.mxu0 0.0
  %5789 = vmatpush1.msra.mxu0 %v2092
  %5790 = vmatprep.subr.mxu0 0.0
  %5791 = vmatpush1.msra.mxu0 %v2091
  %5792 = vmatprep.subr.mxu0 0.0
  %5793 = vmatpush2.msra.mxu0 %v2122
  %5794 = vmatprep.subr.mxu0 0.0
  %5795 = vmatpush2.msra.mxu0 %v2121
  %5796 = vmatprep.subr.mxu0 0.0
  %5797 = vmatpush2.msra.mxu0 %v2120
  %5798 = vmatprep.subr.mxu0 0.0
  %5799 = vmatpush2.msra.mxu0 %v2119
  %5800 = vmatprep.subr.mxu0 0.0
  %5801 = vmatpush2.msra.mxu0 %v2118
  %5802 = vmatprep.subr.mxu0 0.0
  %5803 = vmatpush2.msra.mxu0 %v2117
  %5804 = vmatprep.subr.mxu0 0.0
  %5805 = vmatpush2.msra.mxu0 %v2116
  %5806 = vmatprep.subr.mxu0 0.0
  %5807 = vmatpush2.msra.mxu0 %v2115
  %5808 = vmatprep.subr.mxu0 0.0
  %5809 = vmatpush2.msra.mxu0 %v2114
  %5810 = vmatprep.subr.mxu0 0.0
  %5811 = vmatpush2.msra.mxu0 %v2113
  %5812 = vmatprep.subr.mxu0 0.0
  %5813 = vmatpush2.msra.mxu0 %v2112
  %5814 = vmatprep.subr.mxu0 0.0
  %5815 = vmatpush2.msra.mxu0 %v2111
  %5816 = vmatprep.subr.mxu0 0.0
  %5817 = vmatpush2.msra.mxu0 %v2110
  %5818 = vmatprep.subr.mxu0 0.0
  %5819 = vmatpush2.msra.mxu0 %v2109
  %5820 = vmatprep.subr.mxu0 0.0
  %5821 = vmatpush2.msra.mxu0 %v2108
  %5822 = vmatprep.subr.mxu0 0.0
  %5823 = vmatpush2.msra.mxu0 %v2107
  %5824 = vmatprep.mubr.f32.mxu0 %v5549
  %5825 = vmatmul.mubr.f32.gmra.mxu0 %v5548
  %v5826 = vpop.f32.mrf.mxu0
  %v5827 = vadd.f32 %v5757, %v5826
  %v5828 = vpop.f32.mrf.mxu0
  %5829 = vdwg.mxu0
  %v5830 = vmul.f32 %v5494, 0.95
  %v5831 = vadd.f32 %v5830, %v5827
  %v5832 = vsub.f32 %v5831, %v5497
  %vm5833 = vcmp.gt.f32.partialorder %v5832, 1.0
  %v5834 = vsel %vm5833, 1, 0
  %v5835 = vcvt.s32.f32 %v5834
  %s5836 = scalar_lea.vmem %s5, 80
  %5837 = vst [vmem:[%s5836] sm:$0xff] %v5835
  %s5838 = scalar_lea.vmem %s6, 80
  %5839 = vst [vmem:[%s5838] sm:$0xff] %v5832
  %v5840 = vmul.f32 %v5518, 0.95
  %v5841 = vmul.f32 %v5519, 0.95
  %v5842 = vmul.f32 %v5520, 0.95
  %v5843 = vmul.f32 %v5521, 0.95
  %v5844 = vmul.f32 %v5522, 0.95
  %v5845 = vmul.f32 %v5523, 0.95
  %v5846 = vmul.f32 %v5524, 0.95
  %v5847 = vmul.f32 %v5525, 0.95
  %v5848 = vadd.f32 %v5840, %v1139
  %v5849 = vadd.f32 %v5841, %v1141
  %v5850 = vadd.f32 %v5842, %v1423
  %v5851 = vadd.f32 %v5843, %v1425
  %v5852 = vadd.f32 %v5844, %v1707
  %v5853 = vadd.f32 %v5845, %v1709
  %v5854 = vadd.f32 %v5846, %v1991
  %v5855 = vadd.f32 %v5847, %v1993
  %v5856 = vsub.f32 %v5848, %v5542
  %v5857 = vsub.f32 %v5849, %v5543
  %v5858 = vsub.f32 %v5850, %v5544
  %v5859 = vsub.f32 %v5851, %v5545
  %v5860 = vsub.f32 %v5852, %v5546
  %v5861 = vsub.f32 %v5853, %v5547
  %v5862 = vsub.f32 %v5854, %v5548
  %v5863 = vsub.f32 %v5855, %v5549
  %vm5864 = vcmp.gt.f32.partialorder %v5856, 1.0
  %vm5865 = vcmp.gt.f32.partialorder %v5857, 1.0
  %vm5866 = vcmp.gt.f32.partialorder %v5858, 1.0
  %vm5867 = vcmp.gt.f32.partialorder %v5859, 1.0
  %vm5868 = vcmp.gt.f32.partialorder %v5860, 1.0
  %vm5869 = vcmp.gt.f32.partialorder %v5861, 1.0
  %vm5870 = vcmp.gt.f32.partialorder %v5862, 1.0
  %vm5871 = vcmp.gt.f32.partialorder %v5863, 1.0
  %v5872 = vsel %vm5864, 1, 0
  %v5873 = vsel %vm5865, 1, 0
  %v5874 = vsel %vm5866, 1, 0
  %v5875 = vsel %vm5867, 1, 0
  %v5876 = vsel %vm5868, 1, 0
  %v5877 = vsel %vm5869, 1, 0
  %v5878 = vsel %vm5870, 1, 0
  %v5879 = vsel %vm5871, 1, 0
  %v5880 = vcvt.s32.f32 %v5872
  %v5881 = vcvt.s32.f32 %v5873
  %v5882 = vcvt.s32.f32 %v5874
  %v5883 = vcvt.s32.f32 %v5875
  %v5884 = vcvt.s32.f32 %v5876
  %v5885 = vcvt.s32.f32 %v5877
  %v5886 = vcvt.s32.f32 %v5878
  %v5887 = vcvt.s32.f32 %v5879
  %5888 = vmatprep.subr.mxu0 0.0
  %5889 = vmatpush1.msra.mxu0 %v2010
  %5890 = vmatprep.subr.mxu0 0.0
  %5891 = vmatpush1.msra.mxu0 %v2009
  %5892 = vmatprep.subr.mxu0 0.0
  %5893 = vmatpush1.msra.mxu0 %v2008
  %5894 = vmatprep.subr.mxu0 0.0
  %5895 = vmatpush1.msra.mxu0 %v2007
  %5896 = vmatprep.subr.mxu0 0.0
  %5897 = vmatpush1.msra.mxu0 %v2006
  %5898 = vmatprep.subr.mxu0 0.0
  %5899 = vmatpush1.msra.mxu0 %v2005
  %5900 = vmatprep.subr.mxu0 0.0
  %5901 = vmatpush1.msra.mxu0 %v2004
  %5902 = vmatprep.subr.mxu0 0.0
  %5903 = vmatpush1.msra.mxu0 %v2003
  %5904 = vmatprep.subr.mxu0 0.0
  %5905 = vmatpush1.msra.mxu0 %v2002
  %5906 = vmatprep.subr.mxu0 0.0
  %5907 = vmatpush1.msra.mxu0 %v2001
  %5908 = vmatprep.subr.mxu0 0.0
  %5909 = vmatpush1.msra.mxu0 %v2000
  %5910 = vmatprep.subr.mxu0 0.0
  %5911 = vmatpush1.msra.mxu0 %v1999
  %5912 = vmatprep.subr.mxu0 0.0
  %5913 = vmatpush1.msra.mxu0 %v1998
  %5914 = vmatprep.subr.mxu0 0.0
  %5915 = vmatpush1.msra.mxu0 %v1997
  %5916 = vmatprep.subr.mxu0 0.0
  %5917 = vmatpush1.msra.mxu0 %v1996
  %5918 = vmatprep.subr.mxu0 0.0
  %5919 = vmatpush1.msra.mxu0 %v1995
  %5920 = vmatprep.subr.mxu0 0.0
  %5921 = vmatpush2.msra.mxu0 %v2026
  %5922 = vmatprep.subr.mxu0 0.0
  %5923 = vmatpush2.msra.mxu0 %v2025
  %5924 = vmatprep.subr.mxu0 0.0
  %5925 = vmatpush2.msra.mxu0 %v2024
  %5926 = vmatprep.subr.mxu0 0.0
  %5927 = vmatpush2.msra.mxu0 %v2023
  %5928 = vmatprep.subr.mxu0 0.0
  %5929 = vmatpush2.msra.mxu0 %v2022
  %5930 = vmatprep.subr.mxu0 0.0
  %5931 = vmatpush2.msra.mxu0 %v2021
  %5932 = vmatprep.subr.mxu0 0.0
  %5933 = vmatpush2.msra.mxu0 %v2020
  %5934 = vmatprep.subr.mxu0 0.0
  %5935 = vmatpush2.msra.mxu0 %v2019
  %5936 = vmatprep.subr.mxu0 0.0
  %5937 = vmatpush2.msra.mxu0 %v2018
  %5938 = vmatprep.subr.mxu0 0.0
  %5939 = vmatpush2.msra.mxu0 %v2017
  %5940 = vmatprep.subr.mxu0 0.0
  %5941 = vmatpush2.msra.mxu0 %v2016
  %5942 = vmatprep.subr.mxu0 0.0
  %5943 = vmatpush2.msra.mxu0 %v2015
  %5944 = vmatprep.subr.mxu0 0.0
  %5945 = vmatpush2.msra.mxu0 %v2014
  %5946 = vmatprep.subr.mxu0 0.0
  %5947 = vmatpush2.msra.mxu0 %v2013
  %5948 = vmatprep.subr.mxu0 0.0
  %5949 = vmatpush2.msra.mxu0 %v2012
  %5950 = vmatprep.subr.mxu0 0.0
  %5951 = vmatpush2.msra.mxu0 %v2011
  %5952 = vmatprep.mubr.f32.mxu0 %v5881
  %5953 = vmatmul.mubr.f32.gmra.mxu0 %v5880
  %v5954 = vpop.f32.mrf.mxu0
  %v5955 = vadd.f32 %v2171, %v5954
  %v5956 = vpop.f32.mrf.mxu0
  %5957 = vdwg.mxu0
  %5958 = vmatprep.subr.mxu0 0.0
  %5959 = vmatpush1.msra.mxu0 %v2042
  %5960 = vmatprep.subr.mxu0 0.0
  %5961 = vmatpush1.msra.mxu0 %v2041
  %5962 = vmatprep.subr.mxu0 0.0
  %5963 = vmatpush1.msra.mxu0 %v2040
  %5964 = vmatprep.subr.mxu0 0.0
  %5965 = vmatpush1.msra.mxu0 %v2039
  %5966 = vmatprep.subr.mxu0 0.0
  %5967 = vmatpush1.msra.mxu0 %v2038
  %5968 = vmatprep.subr.mxu0 0.0
  %5969 = vmatpush1.msra.mxu0 %v2037
  %5970 = vmatprep.subr.mxu0 0.0
  %5971 = vmatpush1.msra.mxu0 %v2036
  %5972 = vmatprep.subr.mxu0 0.0
  %5973 = vmatpush1.msra.mxu0 %v2035
  %5974 = vmatprep.subr.mxu0 0.0
  %5975 = vmatpush1.msra.mxu0 %v2034
  %5976 = vmatprep.subr.mxu0 0.0
  %5977 = vmatpush1.msra.mxu0 %v2033
  %5978 = vmatprep.subr.mxu0 0.0
  %5979 = vmatpush1.msra.mxu0 %v2032
  %5980 = vmatprep.subr.mxu0 0.0
  %5981 = vmatpush1.msra.mxu0 %v2031
  %5982 = vmatprep.subr.mxu0 0.0
  %5983 = vmatpush1.msra.mxu0 %v2030
  %5984 = vmatprep.subr.mxu0 0.0
  %5985 = vmatpush1.msra.mxu0 %v2029
  %5986 = vmatprep.subr.mxu0 0.0
  %5987 = vmatpush1.msra.mxu0 %v2028
  %5988 = vmatprep.subr.mxu0 0.0
  %5989 = vmatpush1.msra.mxu0 %v2027
  %5990 = vmatprep.subr.mxu0 0.0
  %5991 = vmatpush2.msra.mxu0 %v2058
  %5992 = vmatprep.subr.mxu0 0.0
  %5993 = vmatpush2.msra.mxu0 %v2057
  %5994 = vmatprep.subr.mxu0 0.0
  %5995 = vmatpush2.msra.mxu0 %v2056
  %5996 = vmatprep.subr.mxu0 0.0
  %5997 = vmatpush2.msra.mxu0 %v2055
  %5998 = vmatprep.subr.mxu0 0.0
  %5999 = vmatpush2.msra.mxu0 %v2054
  %6000 = vmatprep.subr.mxu0 0.0
  %6001 = vmatpush2.msra.mxu0 %v2053
  %6002 = vmatprep.subr.mxu0 0.0
  %6003 = vmatpush2.msra.mxu0 %v2052
  %6004 = vmatprep.subr.mxu0 0.0
  %6005 = vmatpush2.msra.mxu0 %v2051
  %6006 = vmatprep.subr.mxu0 0.0
  %6007 = vmatpush2.msra.mxu0 %v2050
  %6008 = vmatprep.subr.mxu0 0.0
  %6009 = vmatpush2.msra.mxu0 %v2049
  %6010 = vmatprep.subr.mxu0 0.0
  %6011 = vmatpush2.msra.mxu0 %v2048
  %6012 = vmatprep.subr.mxu0 0.0
  %6013 = vmatpush2.msra.mxu0 %v2047
  %6014 = vmatprep.subr.mxu0 0.0
  %6015 = vmatpush2.msra.mxu0 %v2046
  %6016 = vmatprep.subr.mxu0 0.0
  %6017 = vmatpush2.msra.mxu0 %v2045
  %6018 = vmatprep.subr.mxu0 0.0
  %6019 = vmatpush2.msra.mxu0 %v2044
  %6020 = vmatprep.subr.mxu0 0.0
  %6021 = vmatpush2.msra.mxu0 %v2043
  %6022 = vmatprep.mubr.f32.mxu0 %v5883
  %6023 = vmatmul.mubr.f32.gmra.mxu0 %v5882
  %v6024 = vpop.f32.mrf.mxu0
  %v6025 = vadd.f32 %v5955, %v6024
  %v6026 = vpop.f32.mrf.mxu0
  %6027 = vdwg.mxu0
  %6028 = vmatprep.subr.mxu0 0.0
  %6029 = vmatpush1.msra.mxu0 %v2074
  %6030 = vmatprep.subr.mxu0 0.0
  %6031 = vmatpush1.msra.mxu0 %v2073
  %6032 = vmatprep.subr.mxu0 0.0
  %6033 = vmatpush1.msra.mxu0 %v2072
  %6034 = vmatprep.subr.mxu0 0.0
  %6035 = vmatpush1.msra.mxu0 %v2071
  %6036 = vmatprep.subr.mxu0 0.0
  %6037 = vmatpush1.msra.mxu0 %v2070
  %6038 = vmatprep.subr.mxu0 0.0
  %6039 = vmatpush1.msra.mxu0 %v2069
  %6040 = vmatprep.subr.mxu0 0.0
  %6041 = vmatpush1.msra.mxu0 %v2068
  %6042 = vmatprep.subr.mxu0 0.0
  %6043 = vmatpush1.msra.mxu0 %v2067
  %6044 = vmatprep.subr.mxu0 0.0
  %6045 = vmatpush1.msra.mxu0 %v2066
  %6046 = vmatprep.subr.mxu0 0.0
  %6047 = vmatpush1.msra.mxu0 %v2065
  %6048 = vmatprep.subr.mxu0 0.0
  %6049 = vmatpush1.msra.mxu0 %v2064
  %6050 = vmatprep.subr.mxu0 0.0
  %6051 = vmatpush1.msra.mxu0 %v2063
  %6052 = vmatprep.subr.mxu0 0.0
  %6053 = vmatpush1.msra.mxu0 %v2062
  %6054 = vmatprep.subr.mxu0 0.0
  %6055 = vmatpush1.msra.mxu0 %v2061
  %6056 = vmatprep.subr.mxu0 0.0
  %6057 = vmatpush1.msra.mxu0 %v2060
  %6058 = vmatprep.subr.mxu0 0.0
  %6059 = vmatpush1.msra.mxu0 %v2059
  %6060 = vmatprep.subr.mxu0 0.0
  %6061 = vmatpush2.msra.mxu0 %v2090
  %6062 = vmatprep.subr.mxu0 0.0
  %6063 = vmatpush2.msra.mxu0 %v2089
  %6064 = vmatprep.subr.mxu0 0.0
  %6065 = vmatpush2.msra.mxu0 %v2088
  %6066 = vmatprep.subr.mxu0 0.0
  %6067 = vmatpush2.msra.mxu0 %v2087
  %6068 = vmatprep.subr.mxu0 0.0
  %6069 = vmatpush2.msra.mxu0 %v2086
  %6070 = vmatprep.subr.mxu0 0.0
  %6071 = vmatpush2.msra.mxu0 %v2085
  %6072 = vmatprep.subr.mxu0 0.0
  %6073 = vmatpush2.msra.mxu0 %v2084
  %6074 = vmatprep.subr.mxu0 0.0
  %6075 = vmatpush2.msra.mxu0 %v2083
  %6076 = vmatprep.subr.mxu0 0.0
  %6077 = vmatpush2.msra.mxu0 %v2082
  %6078 = vmatprep.subr.mxu0 0.0
  %6079 = vmatpush2.msra.mxu0 %v2081
  %6080 = vmatprep.subr.mxu0 0.0
  %6081 = vmatpush2.msra.mxu0 %v2080
  %6082 = vmatprep.subr.mxu0 0.0
  %6083 = vmatpush2.msra.mxu0 %v2079
  %6084 = vmatprep.subr.mxu0 0.0
  %6085 = vmatpush2.msra.mxu0 %v2078
  %6086 = vmatprep.subr.mxu0 0.0
  %6087 = vmatpush2.msra.mxu0 %v2077
  %6088 = vmatprep.subr.mxu0 0.0
  %6089 = vmatpush2.msra.mxu0 %v2076
  %6090 = vmatprep.subr.mxu0 0.0
  %6091 = vmatpush2.msra.mxu0 %v2075
  %6092 = vmatprep.mubr.f32.mxu0 %v5885
  %6093 = vmatmul.mubr.f32.gmra.mxu0 %v5884
  %v6094 = vpop.f32.mrf.mxu0
  %v6095 = vadd.f32 %v6025, %v6094
  %v6096 = vpop.f32.mrf.mxu0
  %6097 = vdwg.mxu0
  %6098 = vmatprep.subr.mxu0 0.0
  %6099 = vmatpush1.msra.mxu0 %v2106
  %6100 = vmatprep.subr.mxu0 0.0
  %6101 = vmatpush1.msra.mxu0 %v2105
  %6102 = vmatprep.subr.mxu0 0.0
  %6103 = vmatpush1.msra.mxu0 %v2104
  %6104 = vmatprep.subr.mxu0 0.0
  %6105 = vmatpush1.msra.mxu0 %v2103
  %6106 = vmatprep.subr.mxu0 0.0
  %6107 = vmatpush1.msra.mxu0 %v2102
  %6108 = vmatprep.subr.mxu0 0.0
  %6109 = vmatpush1.msra.mxu0 %v2101
  %6110 = vmatprep.subr.mxu0 0.0
  %6111 = vmatpush1.msra.mxu0 %v2100
  %6112 = vmatprep.subr.mxu0 0.0
  %6113 = vmatpush1.msra.mxu0 %v2099
  %6114 = vmatprep.subr.mxu0 0.0
  %6115 = vmatpush1.msra.mxu0 %v2098
  %6116 = vmatprep.subr.mxu0 0.0
  %6117 = vmatpush1.msra.mxu0 %v2097
  %6118 = vmatprep.subr.mxu0 0.0
  %6119 = vmatpush1.msra.mxu0 %v2096
  %6120 = vmatprep.subr.mxu0 0.0
  %6121 = vmatpush1.msra.mxu0 %v2095
  %6122 = vmatprep.subr.mxu0 0.0
  %6123 = vmatpush1.msra.mxu0 %v2094
  %6124 = vmatprep.subr.mxu0 0.0
  %6125 = vmatpush1.msra.mxu0 %v2093
  %6126 = vmatprep.subr.mxu0 0.0
  %6127 = vmatpush1.msra.mxu0 %v2092
  %6128 = vmatprep.subr.mxu0 0.0
  %6129 = vmatpush1.msra.mxu0 %v2091
  %6130 = vmatprep.subr.mxu0 0.0
  %6131 = vmatpush2.msra.mxu0 %v2122
  %6132 = vmatprep.subr.mxu0 0.0
  %6133 = vmatpush2.msra.mxu0 %v2121
  %6134 = vmatprep.subr.mxu0 0.0
  %6135 = vmatpush2.msra.mxu0 %v2120
  %6136 = vmatprep.subr.mxu0 0.0
  %6137 = vmatpush2.msra.mxu0 %v2119
  %6138 = vmatprep.subr.mxu0 0.0
  %6139 = vmatpush2.msra.mxu0 %v2118
  %6140 = vmatprep.subr.mxu0 0.0
  %6141 = vmatpush2.msra.mxu0 %v2117
  %6142 = vmatprep.subr.mxu0 0.0
  %6143 = vmatpush2.msra.mxu0 %v2116
  %6144 = vmatprep.subr.mxu0 0.0
  %6145 = vmatpush2.msra.mxu0 %v2115
  %6146 = vmatprep.subr.mxu0 0.0
  %6147 = vmatpush2.msra.mxu0 %v2114
  %6148 = vmatprep.subr.mxu0 0.0
  %6149 = vmatpush2.msra.mxu0 %v2113
  %6150 = vmatprep.subr.mxu0 0.0
  %6151 = vmatpush2.msra.mxu0 %v2112
  %6152 = vmatprep.subr.mxu0 0.0
  %6153 = vmatpush2.msra.mxu0 %v2111
  %6154 = vmatprep.subr.mxu0 0.0
  %6155 = vmatpush2.msra.mxu0 %v2110
  %6156 = vmatprep.subr.mxu0 0.0
  %6157 = vmatpush2.msra.mxu0 %v2109
  %6158 = vmatprep.subr.mxu0 0.0
  %6159 = vmatpush2.msra.mxu0 %v2108
  %6160 = vmatprep.subr.mxu0 0.0
  %6161 = vmatpush2.msra.mxu0 %v2107
  %6162 = vmatprep.mubr.f32.mxu0 %v5887
  %6163 = vmatmul.mubr.f32.gmra.mxu0 %v5886
  %v6164 = vpop.f32.mrf.mxu0
  %v6165 = vadd.f32 %v6095, %v6164
  %v6166 = vpop.f32.mrf.mxu0
  %6167 = vdwg.mxu0
  %v6168 = vmul.f32 %v5832, 0.95
  %v6169 = vadd.f32 %v6168, %v6165
  %v6170 = vsub.f32 %v6169, %v5835
  %vm6171 = vcmp.gt.f32.partialorder %v6170, 1.0
  %v6172 = vsel %vm6171, 1, 0
  %v6173 = vcvt.s32.f32 %v6172
  %s6174 = scalar_lea.vmem %s5, 88
  %6175 = vst [vmem:[%s6174] sm:$0xff] %v6173
  %s6176 = scalar_lea.vmem %s6, 88
  %6177 = vst [vmem:[%s6176] sm:$0xff] %v6170
  %v6178 = vmul.f32 %v5856, 0.95
  %v6179 = vmul.f32 %v5857, 0.95
  %v6180 = vmul.f32 %v5858, 0.95
  %v6181 = vmul.f32 %v5859, 0.95
  %v6182 = vmul.f32 %v5860, 0.95
  %v6183 = vmul.f32 %v5861, 0.95
  %v6184 = vmul.f32 %v5862, 0.95
  %v6185 = vmul.f32 %v5863, 0.95
  %v6186 = vadd.f32 %v6178, %v1139
  %v6187 = vadd.f32 %v6179, %v1141
  %v6188 = vadd.f32 %v6180, %v1423
  %v6189 = vadd.f32 %v6181, %v1425
  %v6190 = vadd.f32 %v6182, %v1707
  %v6191 = vadd.f32 %v6183, %v1709
  %v6192 = vadd.f32 %v6184, %v1991
  %v6193 = vadd.f32 %v6185, %v1993
  %v6194 = vsub.f32 %v6186, %v5880
  %v6195 = vsub.f32 %v6187, %v5881
  %v6196 = vsub.f32 %v6188, %v5882
  %v6197 = vsub.f32 %v6189, %v5883
  %v6198 = vsub.f32 %v6190, %v5884
  %v6199 = vsub.f32 %v6191, %v5885
  %v6200 = vsub.f32 %v6192, %v5886
  %v6201 = vsub.f32 %v6193, %v5887
  %vm6202 = vcmp.gt.f32.partialorder %v6194, 1.0
  %vm6203 = vcmp.gt.f32.partialorder %v6195, 1.0
  %vm6204 = vcmp.gt.f32.partialorder %v6196, 1.0
  %vm6205 = vcmp.gt.f32.partialorder %v6197, 1.0
  %vm6206 = vcmp.gt.f32.partialorder %v6198, 1.0
  %vm6207 = vcmp.gt.f32.partialorder %v6199, 1.0
  %vm6208 = vcmp.gt.f32.partialorder %v6200, 1.0
  %vm6209 = vcmp.gt.f32.partialorder %v6201, 1.0
  %v6210 = vsel %vm6202, 1, 0
  %v6211 = vsel %vm6203, 1, 0
  %v6212 = vsel %vm6204, 1, 0
  %v6213 = vsel %vm6205, 1, 0
  %v6214 = vsel %vm6206, 1, 0
  %v6215 = vsel %vm6207, 1, 0
  %v6216 = vsel %vm6208, 1, 0
  %v6217 = vsel %vm6209, 1, 0
  %v6218 = vcvt.s32.f32 %v6210
  %v6219 = vcvt.s32.f32 %v6211
  %v6220 = vcvt.s32.f32 %v6212
  %v6221 = vcvt.s32.f32 %v6213
  %v6222 = vcvt.s32.f32 %v6214
  %v6223 = vcvt.s32.f32 %v6215
  %v6224 = vcvt.s32.f32 %v6216
  %v6225 = vcvt.s32.f32 %v6217
  %6226 = vmatprep.subr.mxu0 0.0
  %6227 = vmatpush1.msra.mxu0 %v2010
  %6228 = vmatprep.subr.mxu0 0.0
  %6229 = vmatpush1.msra.mxu0 %v2009
  %6230 = vmatprep.subr.mxu0 0.0
  %6231 = vmatpush1.msra.mxu0 %v2008
  %6232 = vmatprep.subr.mxu0 0.0
  %6233 = vmatpush1.msra.mxu0 %v2007
  %6234 = vmatprep.subr.mxu0 0.0
  %6235 = vmatpush1.msra.mxu0 %v2006
  %6236 = vmatprep.subr.mxu0 0.0
  %6237 = vmatpush1.msra.mxu0 %v2005
  %6238 = vmatprep.subr.mxu0 0.0
  %6239 = vmatpush1.msra.mxu0 %v2004
  %6240 = vmatprep.subr.mxu0 0.0
  %6241 = vmatpush1.msra.mxu0 %v2003
  %6242 = vmatprep.subr.mxu0 0.0
  %6243 = vmatpush1.msra.mxu0 %v2002
  %6244 = vmatprep.subr.mxu0 0.0
  %6245 = vmatpush1.msra.mxu0 %v2001
  %6246 = vmatprep.subr.mxu0 0.0
  %6247 = vmatpush1.msra.mxu0 %v2000
  %6248 = vmatprep.subr.mxu0 0.0
  %6249 = vmatpush1.msra.mxu0 %v1999
  %6250 = vmatprep.subr.mxu0 0.0
  %6251 = vmatpush1.msra.mxu0 %v1998
  %6252 = vmatprep.subr.mxu0 0.0
  %6253 = vmatpush1.msra.mxu0 %v1997
  %6254 = vmatprep.subr.mxu0 0.0
  %6255 = vmatpush1.msra.mxu0 %v1996
  %6256 = vmatprep.subr.mxu0 0.0
  %6257 = vmatpush1.msra.mxu0 %v1995
  %6258 = vmatprep.subr.mxu0 0.0
  %6259 = vmatpush2.msra.mxu0 %v2026
  %6260 = vmatprep.subr.mxu0 0.0
  %6261 = vmatpush2.msra.mxu0 %v2025
  %6262 = vmatprep.subr.mxu0 0.0
  %6263 = vmatpush2.msra.mxu0 %v2024
  %6264 = vmatprep.subr.mxu0 0.0
  %6265 = vmatpush2.msra.mxu0 %v2023
  %6266 = vmatprep.subr.mxu0 0.0
  %6267 = vmatpush2.msra.mxu0 %v2022
  %6268 = vmatprep.subr.mxu0 0.0
  %6269 = vmatpush2.msra.mxu0 %v2021
  %6270 = vmatprep.subr.mxu0 0.0
  %6271 = vmatpush2.msra.mxu0 %v2020
  %6272 = vmatprep.subr.mxu0 0.0
  %6273 = vmatpush2.msra.mxu0 %v2019
  %6274 = vmatprep.subr.mxu0 0.0
  %6275 = vmatpush2.msra.mxu0 %v2018
  %6276 = vmatprep.subr.mxu0 0.0
  %6277 = vmatpush2.msra.mxu0 %v2017
  %6278 = vmatprep.subr.mxu0 0.0
  %6279 = vmatpush2.msra.mxu0 %v2016
  %6280 = vmatprep.subr.mxu0 0.0
  %6281 = vmatpush2.msra.mxu0 %v2015
  %6282 = vmatprep.subr.mxu0 0.0
  %6283 = vmatpush2.msra.mxu0 %v2014
  %6284 = vmatprep.subr.mxu0 0.0
  %6285 = vmatpush2.msra.mxu0 %v2013
  %6286 = vmatprep.subr.mxu0 0.0
  %6287 = vmatpush2.msra.mxu0 %v2012
  %6288 = vmatprep.subr.mxu0 0.0
  %6289 = vmatpush2.msra.mxu0 %v2011
  %6290 = vmatprep.mubr.f32.mxu0 %v6219
  %6291 = vmatmul.mubr.f32.gmra.mxu0 %v6218
  %v6292 = vpop.f32.mrf.mxu0
  %v6293 = vadd.f32 %v2171, %v6292
  %v6294 = vpop.f32.mrf.mxu0
  %6295 = vdwg.mxu0
  %6296 = vmatprep.subr.mxu0 0.0
  %6297 = vmatpush1.msra.mxu0 %v2042
  %6298 = vmatprep.subr.mxu0 0.0
  %6299 = vmatpush1.msra.mxu0 %v2041
  %6300 = vmatprep.subr.mxu0 0.0
  %6301 = vmatpush1.msra.mxu0 %v2040
  %6302 = vmatprep.subr.mxu0 0.0
  %6303 = vmatpush1.msra.mxu0 %v2039
  %6304 = vmatprep.subr.mxu0 0.0
  %6305 = vmatpush1.msra.mxu0 %v2038
  %6306 = vmatprep.subr.mxu0 0.0
  %6307 = vmatpush1.msra.mxu0 %v2037
  %6308 = vmatprep.subr.mxu0 0.0
  %6309 = vmatpush1.msra.mxu0 %v2036
  %6310 = vmatprep.subr.mxu0 0.0
  %6311 = vmatpush1.msra.mxu0 %v2035
  %6312 = vmatprep.subr.mxu0 0.0
  %6313 = vmatpush1.msra.mxu0 %v2034
  %6314 = vmatprep.subr.mxu0 0.0
  %6315 = vmatpush1.msra.mxu0 %v2033
  %6316 = vmatprep.subr.mxu0 0.0
  %6317 = vmatpush1.msra.mxu0 %v2032
  %6318 = vmatprep.subr.mxu0 0.0
  %6319 = vmatpush1.msra.mxu0 %v2031
  %6320 = vmatprep.subr.mxu0 0.0
  %6321 = vmatpush1.msra.mxu0 %v2030
  %6322 = vmatprep.subr.mxu0 0.0
  %6323 = vmatpush1.msra.mxu0 %v2029
  %6324 = vmatprep.subr.mxu0 0.0
  %6325 = vmatpush1.msra.mxu0 %v2028
  %6326 = vmatprep.subr.mxu0 0.0
  %6327 = vmatpush1.msra.mxu0 %v2027
  %6328 = vmatprep.subr.mxu0 0.0
  %6329 = vmatpush2.msra.mxu0 %v2058
  %6330 = vmatprep.subr.mxu0 0.0
  %6331 = vmatpush2.msra.mxu0 %v2057
  %6332 = vmatprep.subr.mxu0 0.0
  %6333 = vmatpush2.msra.mxu0 %v2056
  %6334 = vmatprep.subr.mxu0 0.0
  %6335 = vmatpush2.msra.mxu0 %v2055
  %6336 = vmatprep.subr.mxu0 0.0
  %6337 = vmatpush2.msra.mxu0 %v2054
  %6338 = vmatprep.subr.mxu0 0.0
  %6339 = vmatpush2.msra.mxu0 %v2053
  %6340 = vmatprep.subr.mxu0 0.0
  %6341 = vmatpush2.msra.mxu0 %v2052
  %6342 = vmatprep.subr.mxu0 0.0
  %6343 = vmatpush2.msra.mxu0 %v2051
  %6344 = vmatprep.subr.mxu0 0.0
  %6345 = vmatpush2.msra.mxu0 %v2050
  %6346 = vmatprep.subr.mxu0 0.0
  %6347 = vmatpush2.msra.mxu0 %v2049
  %6348 = vmatprep.subr.mxu0 0.0
  %6349 = vmatpush2.msra.mxu0 %v2048
  %6350 = vmatprep.subr.mxu0 0.0
  %6351 = vmatpush2.msra.mxu0 %v2047
  %6352 = vmatprep.subr.mxu0 0.0
  %6353 = vmatpush2.msra.mxu0 %v2046
  %6354 = vmatprep.subr.mxu0 0.0
  %6355 = vmatpush2.msra.mxu0 %v2045
  %6356 = vmatprep.subr.mxu0 0.0
  %6357 = vmatpush2.msra.mxu0 %v2044
  %6358 = vmatprep.subr.mxu0 0.0
  %6359 = vmatpush2.msra.mxu0 %v2043
  %6360 = vmatprep.mubr.f32.mxu0 %v6221
  %6361 = vmatmul.mubr.f32.gmra.mxu0 %v6220
  %v6362 = vpop.f32.mrf.mxu0
  %v6363 = vadd.f32 %v6293, %v6362
  %v6364 = vpop.f32.mrf.mxu0
  %6365 = vdwg.mxu0
  %6366 = vmatprep.subr.mxu0 0.0
  %6367 = vmatpush1.msra.mxu0 %v2074
  %6368 = vmatprep.subr.mxu0 0.0
  %6369 = vmatpush1.msra.mxu0 %v2073
  %6370 = vmatprep.subr.mxu0 0.0
  %6371 = vmatpush1.msra.mxu0 %v2072
  %6372 = vmatprep.subr.mxu0 0.0
  %6373 = vmatpush1.msra.mxu0 %v2071
  %6374 = vmatprep.subr.mxu0 0.0
  %6375 = vmatpush1.msra.mxu0 %v2070
  %6376 = vmatprep.subr.mxu0 0.0
  %6377 = vmatpush1.msra.mxu0 %v2069
  %6378 = vmatprep.subr.mxu0 0.0
  %6379 = vmatpush1.msra.mxu0 %v2068
  %6380 = vmatprep.subr.mxu0 0.0
  %6381 = vmatpush1.msra.mxu0 %v2067
  %6382 = vmatprep.subr.mxu0 0.0
  %6383 = vmatpush1.msra.mxu0 %v2066
  %6384 = vmatprep.subr.mxu0 0.0
  %6385 = vmatpush1.msra.mxu0 %v2065
  %6386 = vmatprep.subr.mxu0 0.0
  %6387 = vmatpush1.msra.mxu0 %v2064
  %6388 = vmatprep.subr.mxu0 0.0
  %6389 = vmatpush1.msra.mxu0 %v2063
  %6390 = vmatprep.subr.mxu0 0.0
  %6391 = vmatpush1.msra.mxu0 %v2062
  %6392 = vmatprep.subr.mxu0 0.0
  %6393 = vmatpush1.msra.mxu0 %v2061
  %6394 = vmatprep.subr.mxu0 0.0
  %6395 = vmatpush1.msra.mxu0 %v2060
  %6396 = vmatprep.subr.mxu0 0.0
  %6397 = vmatpush1.msra.mxu0 %v2059
  %6398 = vmatprep.subr.mxu0 0.0
  %6399 = vmatpush2.msra.mxu0 %v2090
  %6400 = vmatprep.subr.mxu0 0.0
  %6401 = vmatpush2.msra.mxu0 %v2089
  %6402 = vmatprep.subr.mxu0 0.0
  %6403 = vmatpush2.msra.mxu0 %v2088
  %6404 = vmatprep.subr.mxu0 0.0
  %6405 = vmatpush2.msra.mxu0 %v2087
  %6406 = vmatprep.subr.mxu0 0.0
  %6407 = vmatpush2.msra.mxu0 %v2086
  %6408 = vmatprep.subr.mxu0 0.0
  %6409 = vmatpush2.msra.mxu0 %v2085
  %6410 = vmatprep.subr.mxu0 0.0
  %6411 = vmatpush2.msra.mxu0 %v2084
  %6412 = vmatprep.subr.mxu0 0.0
  %6413 = vmatpush2.msra.mxu0 %v2083
  %6414 = vmatprep.subr.mxu0 0.0
  %6415 = vmatpush2.msra.mxu0 %v2082
  %6416 = vmatprep.subr.mxu0 0.0
  %6417 = vmatpush2.msra.mxu0 %v2081
  %6418 = vmatprep.subr.mxu0 0.0
  %6419 = vmatpush2.msra.mxu0 %v2080
  %6420 = vmatprep.subr.mxu0 0.0
  %6421 = vmatpush2.msra.mxu0 %v2079
  %6422 = vmatprep.subr.mxu0 0.0
  %6423 = vmatpush2.msra.mxu0 %v2078
  %6424 = vmatprep.subr.mxu0 0.0
  %6425 = vmatpush2.msra.mxu0 %v2077
  %6426 = vmatprep.subr.mxu0 0.0
  %6427 = vmatpush2.msra.mxu0 %v2076
  %6428 = vmatprep.subr.mxu0 0.0
  %6429 = vmatpush2.msra.mxu0 %v2075
  %6430 = vmatprep.mubr.f32.mxu0 %v6223
  %6431 = vmatmul.mubr.f32.gmra.mxu0 %v6222
  %v6432 = vpop.f32.mrf.mxu0
  %v6433 = vadd.f32 %v6363, %v6432
  %v6434 = vpop.f32.mrf.mxu0
  %6435 = vdwg.mxu0
  %6436 = vmatprep.subr.mxu0 0.0
  %6437 = vmatpush1.msra.mxu0 %v2106
  %6438 = vmatprep.subr.mxu0 0.0
  %6439 = vmatpush1.msra.mxu0 %v2105
  %6440 = vmatprep.subr.mxu0 0.0
  %6441 = vmatpush1.msra.mxu0 %v2104
  %6442 = vmatprep.subr.mxu0 0.0
  %6443 = vmatpush1.msra.mxu0 %v2103
  %6444 = vmatprep.subr.mxu0 0.0
  %6445 = vmatpush1.msra.mxu0 %v2102
  %6446 = vmatprep.subr.mxu0 0.0
  %6447 = vmatpush1.msra.mxu0 %v2101
  %6448 = vmatprep.subr.mxu0 0.0
  %6449 = vmatpush1.msra.mxu0 %v2100
  %6450 = vmatprep.subr.mxu0 0.0
  %6451 = vmatpush1.msra.mxu0 %v2099
  %6452 = vmatprep.subr.mxu0 0.0
  %6453 = vmatpush1.msra.mxu0 %v2098
  %6454 = vmatprep.subr.mxu0 0.0
  %6455 = vmatpush1.msra.mxu0 %v2097
  %6456 = vmatprep.subr.mxu0 0.0
  %6457 = vmatpush1.msra.mxu0 %v2096
  %6458 = vmatprep.subr.mxu0 0.0
  %6459 = vmatpush1.msra.mxu0 %v2095
  %6460 = vmatprep.subr.mxu0 0.0
  %6461 = vmatpush1.msra.mxu0 %v2094
  %6462 = vmatprep.subr.mxu0 0.0
  %6463 = vmatpush1.msra.mxu0 %v2093
  %6464 = vmatprep.subr.mxu0 0.0
  %6465 = vmatpush1.msra.mxu0 %v2092
  %6466 = vmatprep.subr.mxu0 0.0
  %6467 = vmatpush1.msra.mxu0 %v2091
  %6468 = vmatprep.subr.mxu0 0.0
  %6469 = vmatpush2.msra.mxu0 %v2122
  %6470 = vmatprep.subr.mxu0 0.0
  %6471 = vmatpush2.msra.mxu0 %v2121
  %6472 = vmatprep.subr.mxu0 0.0
  %6473 = vmatpush2.msra.mxu0 %v2120
  %6474 = vmatprep.subr.mxu0 0.0
  %6475 = vmatpush2.msra.mxu0 %v2119
  %6476 = vmatprep.subr.mxu0 0.0
  %6477 = vmatpush2.msra.mxu0 %v2118
  %6478 = vmatprep.subr.mxu0 0.0
  %6479 = vmatpush2.msra.mxu0 %v2117
  %6480 = vmatprep.subr.mxu0 0.0
  %6481 = vmatpush2.msra.mxu0 %v2116
  %6482 = vmatprep.subr.mxu0 0.0
  %6483 = vmatpush2.msra.mxu0 %v2115
  %6484 = vmatprep.subr.mxu0 0.0
  %6485 = vmatpush2.msra.mxu0 %v2114
  %6486 = vmatprep.subr.mxu0 0.0
  %6487 = vmatpush2.msra.mxu0 %v2113
  %6488 = vmatprep.subr.mxu0 0.0
  %6489 = vmatpush2.msra.mxu0 %v2112
  %6490 = vmatprep.subr.mxu0 0.0
  %6491 = vmatpush2.msra.mxu0 %v2111
  %6492 = vmatprep.subr.mxu0 0.0
  %6493 = vmatpush2.msra.mxu0 %v2110
  %6494 = vmatprep.subr.mxu0 0.0
  %6495 = vmatpush2.msra.mxu0 %v2109
  %6496 = vmatprep.subr.mxu0 0.0
  %6497 = vmatpush2.msra.mxu0 %v2108
  %6498 = vmatprep.subr.mxu0 0.0
  %6499 = vmatpush2.msra.mxu0 %v2107
  %6500 = vmatprep.mubr.f32.mxu0 %v6225
  %6501 = vmatmul.mubr.f32.gmra.mxu0 %v6224
  %v6502 = vpop.f32.mrf.mxu0
  %v6503 = vadd.f32 %v6433, %v6502
  %v6504 = vpop.f32.mrf.mxu0
  %6505 = vdwg.mxu0
  %v6506 = vmul.f32 %v6170, 0.95
  %v6507 = vadd.f32 %v6506, %v6503
  %v6508 = vsub.f32 %v6507, %v6173
  %vm6509 = vcmp.gt.f32.partialorder %v6508, 1.0
  %v6510 = vsel %vm6509, 1, 0
  %v6511 = vcvt.s32.f32 %v6510
  %s6512 = scalar_lea.vmem %s5, 96
  %6513 = vst [vmem:[%s6512] sm:$0xff] %v6511
  %s6514 = scalar_lea.vmem %s6, 96
  %6515 = vst [vmem:[%s6514] sm:$0xff] %v6508
  %v6516 = vmul.f32 %v6194, 0.95
  %v6517 = vmul.f32 %v6195, 0.95
  %v6518 = vmul.f32 %v6196, 0.95
  %v6519 = vmul.f32 %v6197, 0.95
  %v6520 = vmul.f32 %v6198, 0.95
  %v6521 = vmul.f32 %v6199, 0.95
  %v6522 = vmul.f32 %v6200, 0.95
  %v6523 = vmul.f32 %v6201, 0.95
  %v6524 = vadd.f32 %v6516, %v1139
  %v6525 = vadd.f32 %v6517, %v1141
  %v6526 = vadd.f32 %v6518, %v1423
  %v6527 = vadd.f32 %v6519, %v1425
  %v6528 = vadd.f32 %v6520, %v1707
  %v6529 = vadd.f32 %v6521, %v1709
  %v6530 = vadd.f32 %v6522, %v1991
  %v6531 = vadd.f32 %v6523, %v1993
  %v6532 = vsub.f32 %v6524, %v6218
  %v6533 = vsub.f32 %v6525, %v6219
  %v6534 = vsub.f32 %v6526, %v6220
  %v6535 = vsub.f32 %v6527, %v6221
  %v6536 = vsub.f32 %v6528, %v6222
  %v6537 = vsub.f32 %v6529, %v6223
  %v6538 = vsub.f32 %v6530, %v6224
  %v6539 = vsub.f32 %v6531, %v6225
  %vm6540 = vcmp.gt.f32.partialorder %v6532, 1.0
  %vm6541 = vcmp.gt.f32.partialorder %v6533, 1.0
  %vm6542 = vcmp.gt.f32.partialorder %v6534, 1.0
  %vm6543 = vcmp.gt.f32.partialorder %v6535, 1.0
  %vm6544 = vcmp.gt.f32.partialorder %v6536, 1.0
  %vm6545 = vcmp.gt.f32.partialorder %v6537, 1.0
  %vm6546 = vcmp.gt.f32.partialorder %v6538, 1.0
  %vm6547 = vcmp.gt.f32.partialorder %v6539, 1.0
  %v6548 = vsel %vm6540, 1, 0
  %v6549 = vsel %vm6541, 1, 0
  %v6550 = vsel %vm6542, 1, 0
  %v6551 = vsel %vm6543, 1, 0
  %v6552 = vsel %vm6544, 1, 0
  %v6553 = vsel %vm6545, 1, 0
  %v6554 = vsel %vm6546, 1, 0
  %v6555 = vsel %vm6547, 1, 0
  %v6556 = vcvt.s32.f32 %v6548
  %v6557 = vcvt.s32.f32 %v6549
  %v6558 = vcvt.s32.f32 %v6550
  %v6559 = vcvt.s32.f32 %v6551
  %v6560 = vcvt.s32.f32 %v6552
  %v6561 = vcvt.s32.f32 %v6553
  %v6562 = vcvt.s32.f32 %v6554
  %v6563 = vcvt.s32.f32 %v6555
  %6564 = vmatprep.subr.mxu0 0.0
  %6565 = vmatpush1.msra.mxu0 %v2010
  %6566 = vmatprep.subr.mxu0 0.0
  %6567 = vmatpush1.msra.mxu0 %v2009
  %6568 = vmatprep.subr.mxu0 0.0
  %6569 = vmatpush1.msra.mxu0 %v2008
  %6570 = vmatprep.subr.mxu0 0.0
  %6571 = vmatpush1.msra.mxu0 %v2007
  %6572 = vmatprep.subr.mxu0 0.0
  %6573 = vmatpush1.msra.mxu0 %v2006
  %6574 = vmatprep.subr.mxu0 0.0
  %6575 = vmatpush1.msra.mxu0 %v2005
  %6576 = vmatprep.subr.mxu0 0.0
  %6577 = vmatpush1.msra.mxu0 %v2004
  %6578 = vmatprep.subr.mxu0 0.0
  %6579 = vmatpush1.msra.mxu0 %v2003
  %6580 = vmatprep.subr.mxu0 0.0
  %6581 = vmatpush1.msra.mxu0 %v2002
  %6582 = vmatprep.subr.mxu0 0.0
  %6583 = vmatpush1.msra.mxu0 %v2001
  %6584 = vmatprep.subr.mxu0 0.0
  %6585 = vmatpush1.msra.mxu0 %v2000
  %6586 = vmatprep.subr.mxu0 0.0
  %6587 = vmatpush1.msra.mxu0 %v1999
  %6588 = vmatprep.subr.mxu0 0.0
  %6589 = vmatpush1.msra.mxu0 %v1998
  %6590 = vmatprep.subr.mxu0 0.0
  %6591 = vmatpush1.msra.mxu0 %v1997
  %6592 = vmatprep.subr.mxu0 0.0
  %6593 = vmatpush1.msra.mxu0 %v1996
  %6594 = vmatprep.subr.mxu0 0.0
  %6595 = vmatpush1.msra.mxu0 %v1995
  %6596 = vmatprep.subr.mxu0 0.0
  %6597 = vmatpush2.msra.mxu0 %v2026
  %6598 = vmatprep.subr.mxu0 0.0
  %6599 = vmatpush2.msra.mxu0 %v2025
  %6600 = vmatprep.subr.mxu0 0.0
  %6601 = vmatpush2.msra.mxu0 %v2024
  %6602 = vmatprep.subr.mxu0 0.0
  %6603 = vmatpush2.msra.mxu0 %v2023
  %6604 = vmatprep.subr.mxu0 0.0
  %6605 = vmatpush2.msra.mxu0 %v2022
  %6606 = vmatprep.subr.mxu0 0.0
  %6607 = vmatpush2.msra.mxu0 %v2021
  %6608 = vmatprep.subr.mxu0 0.0
  %6609 = vmatpush2.msra.mxu0 %v2020
  %6610 = vmatprep.subr.mxu0 0.0
  %6611 = vmatpush2.msra.mxu0 %v2019
  %6612 = vmatprep.subr.mxu0 0.0
  %6613 = vmatpush2.msra.mxu0 %v2018
  %6614 = vmatprep.subr.mxu0 0.0
  %6615 = vmatpush2.msra.mxu0 %v2017
  %6616 = vmatprep.subr.mxu0 0.0
  %6617 = vmatpush2.msra.mxu0 %v2016
  %6618 = vmatprep.subr.mxu0 0.0
  %6619 = vmatpush2.msra.mxu0 %v2015
  %6620 = vmatprep.subr.mxu0 0.0
  %6621 = vmatpush2.msra.mxu0 %v2014
  %6622 = vmatprep.subr.mxu0 0.0
  %6623 = vmatpush2.msra.mxu0 %v2013
  %6624 = vmatprep.subr.mxu0 0.0
  %6625 = vmatpush2.msra.mxu0 %v2012
  %6626 = vmatprep.subr.mxu0 0.0
  %6627 = vmatpush2.msra.mxu0 %v2011
  %6628 = vmatprep.mubr.f32.mxu0 %v6557
  %6629 = vmatmul.mubr.f32.gmra.mxu0 %v6556
  %v6630 = vpop.f32.mrf.mxu0
  %v6631 = vadd.f32 %v2171, %v6630
  %v6632 = vpop.f32.mrf.mxu0
  %6633 = vdwg.mxu0
  %6634 = vmatprep.subr.mxu0 0.0
  %6635 = vmatpush1.msra.mxu0 %v2042
  %6636 = vmatprep.subr.mxu0 0.0
  %6637 = vmatpush1.msra.mxu0 %v2041
  %6638 = vmatprep.subr.mxu0 0.0
  %6639 = vmatpush1.msra.mxu0 %v2040
  %6640 = vmatprep.subr.mxu0 0.0
  %6641 = vmatpush1.msra.mxu0 %v2039
  %6642 = vmatprep.subr.mxu0 0.0
  %6643 = vmatpush1.msra.mxu0 %v2038
  %6644 = vmatprep.subr.mxu0 0.0
  %6645 = vmatpush1.msra.mxu0 %v2037
  %6646 = vmatprep.subr.mxu0 0.0
  %6647 = vmatpush1.msra.mxu0 %v2036
  %6648 = vmatprep.subr.mxu0 0.0
  %6649 = vmatpush1.msra.mxu0 %v2035
  %6650 = vmatprep.subr.mxu0 0.0
  %6651 = vmatpush1.msra.mxu0 %v2034
  %6652 = vmatprep.subr.mxu0 0.0
  %6653 = vmatpush1.msra.mxu0 %v2033
  %6654 = vmatprep.subr.mxu0 0.0
  %6655 = vmatpush1.msra.mxu0 %v2032
  %6656 = vmatprep.subr.mxu0 0.0
  %6657 = vmatpush1.msra.mxu0 %v2031
  %6658 = vmatprep.subr.mxu0 0.0
  %6659 = vmatpush1.msra.mxu0 %v2030
  %6660 = vmatprep.subr.mxu0 0.0
  %6661 = vmatpush1.msra.mxu0 %v2029
  %6662 = vmatprep.subr.mxu0 0.0
  %6663 = vmatpush1.msra.mxu0 %v2028
  %6664 = vmatprep.subr.mxu0 0.0
  %6665 = vmatpush1.msra.mxu0 %v2027
  %6666 = vmatprep.subr.mxu0 0.0
  %6667 = vmatpush2.msra.mxu0 %v2058
  %6668 = vmatprep.subr.mxu0 0.0
  %6669 = vmatpush2.msra.mxu0 %v2057
  %6670 = vmatprep.subr.mxu0 0.0
  %6671 = vmatpush2.msra.mxu0 %v2056
  %6672 = vmatprep.subr.mxu0 0.0
  %6673 = vmatpush2.msra.mxu0 %v2055
  %6674 = vmatprep.subr.mxu0 0.0
  %6675 = vmatpush2.msra.mxu0 %v2054
  %6676 = vmatprep.subr.mxu0 0.0
  %6677 = vmatpush2.msra.mxu0 %v2053
  %6678 = vmatprep.subr.mxu0 0.0
  %6679 = vmatpush2.msra.mxu0 %v2052
  %6680 = vmatprep.subr.mxu0 0.0
  %6681 = vmatpush2.msra.mxu0 %v2051
  %6682 = vmatprep.subr.mxu0 0.0
  %6683 = vmatpush2.msra.mxu0 %v2050
  %6684 = vmatprep.subr.mxu0 0.0
  %6685 = vmatpush2.msra.mxu0 %v2049
  %6686 = vmatprep.subr.mxu0 0.0
  %6687 = vmatpush2.msra.mxu0 %v2048
  %6688 = vmatprep.subr.mxu0 0.0
  %6689 = vmatpush2.msra.mxu0 %v2047
  %6690 = vmatprep.subr.mxu0 0.0
  %6691 = vmatpush2.msra.mxu0 %v2046
  %6692 = vmatprep.subr.mxu0 0.0
  %6693 = vmatpush2.msra.mxu0 %v2045
  %6694 = vmatprep.subr.mxu0 0.0
  %6695 = vmatpush2.msra.mxu0 %v2044
  %6696 = vmatprep.subr.mxu0 0.0
  %6697 = vmatpush2.msra.mxu0 %v2043
  %6698 = vmatprep.mubr.f32.mxu0 %v6559
  %6699 = vmatmul.mubr.f32.gmra.mxu0 %v6558
  %v6700 = vpop.f32.mrf.mxu0
  %v6701 = vadd.f32 %v6631, %v6700
  %v6702 = vpop.f32.mrf.mxu0
  %6703 = vdwg.mxu0
  %6704 = vmatprep.subr.mxu0 0.0
  %6705 = vmatpush1.msra.mxu0 %v2074
  %6706 = vmatprep.subr.mxu0 0.0
  %6707 = vmatpush1.msra.mxu0 %v2073
  %6708 = vmatprep.subr.mxu0 0.0
  %6709 = vmatpush1.msra.mxu0 %v2072
  %6710 = vmatprep.subr.mxu0 0.0
  %6711 = vmatpush1.msra.mxu0 %v2071
  %6712 = vmatprep.subr.mxu0 0.0
  %6713 = vmatpush1.msra.mxu0 %v2070
  %6714 = vmatprep.subr.mxu0 0.0
  %6715 = vmatpush1.msra.mxu0 %v2069
  %6716 = vmatprep.subr.mxu0 0.0
  %6717 = vmatpush1.msra.mxu0 %v2068
  %6718 = vmatprep.subr.mxu0 0.0
  %6719 = vmatpush1.msra.mxu0 %v2067
  %6720 = vmatprep.subr.mxu0 0.0
  %6721 = vmatpush1.msra.mxu0 %v2066
  %6722 = vmatprep.subr.mxu0 0.0
  %6723 = vmatpush1.msra.mxu0 %v2065
  %6724 = vmatprep.subr.mxu0 0.0
  %6725 = vmatpush1.msra.mxu0 %v2064
  %6726 = vmatprep.subr.mxu0 0.0
  %6727 = vmatpush1.msra.mxu0 %v2063
  %6728 = vmatprep.subr.mxu0 0.0
  %6729 = vmatpush1.msra.mxu0 %v2062
  %6730 = vmatprep.subr.mxu0 0.0
  %6731 = vmatpush1.msra.mxu0 %v2061
  %6732 = vmatprep.subr.mxu0 0.0
  %6733 = vmatpush1.msra.mxu0 %v2060
  %6734 = vmatprep.subr.mxu0 0.0
  %6735 = vmatpush1.msra.mxu0 %v2059
  %6736 = vmatprep.subr.mxu0 0.0
  %6737 = vmatpush2.msra.mxu0 %v2090
  %6738 = vmatprep.subr.mxu0 0.0
  %6739 = vmatpush2.msra.mxu0 %v2089
  %6740 = vmatprep.subr.mxu0 0.0
  %6741 = vmatpush2.msra.mxu0 %v2088
  %6742 = vmatprep.subr.mxu0 0.0
  %6743 = vmatpush2.msra.mxu0 %v2087
  %6744 = vmatprep.subr.mxu0 0.0
  %6745 = vmatpush2.msra.mxu0 %v2086
  %6746 = vmatprep.subr.mxu0 0.0
  %6747 = vmatpush2.msra.mxu0 %v2085
  %6748 = vmatprep.subr.mxu0 0.0
  %6749 = vmatpush2.msra.mxu0 %v2084
  %6750 = vmatprep.subr.mxu0 0.0
  %6751 = vmatpush2.msra.mxu0 %v2083
  %6752 = vmatprep.subr.mxu0 0.0
  %6753 = vmatpush2.msra.mxu0 %v2082
  %6754 = vmatprep.subr.mxu0 0.0
  %6755 = vmatpush2.msra.mxu0 %v2081
  %6756 = vmatprep.subr.mxu0 0.0
  %6757 = vmatpush2.msra.mxu0 %v2080
  %6758 = vmatprep.subr.mxu0 0.0
  %6759 = vmatpush2.msra.mxu0 %v2079
  %6760 = vmatprep.subr.mxu0 0.0
  %6761 = vmatpush2.msra.mxu0 %v2078
  %6762 = vmatprep.subr.mxu0 0.0
  %6763 = vmatpush2.msra.mxu0 %v2077
  %6764 = vmatprep.subr.mxu0 0.0
  %6765 = vmatpush2.msra.mxu0 %v2076
  %6766 = vmatprep.subr.mxu0 0.0
  %6767 = vmatpush2.msra.mxu0 %v2075
  %6768 = vmatprep.mubr.f32.mxu0 %v6561
  %6769 = vmatmul.mubr.f32.gmra.mxu0 %v6560
  %v6770 = vpop.f32.mrf.mxu0
  %v6771 = vadd.f32 %v6701, %v6770
  %v6772 = vpop.f32.mrf.mxu0
  %6773 = vdwg.mxu0
  %6774 = vmatprep.subr.mxu0 0.0
  %6775 = vmatpush1.msra.mxu0 %v2106
  %6776 = vmatprep.subr.mxu0 0.0
  %6777 = vmatpush1.msra.mxu0 %v2105
  %6778 = vmatprep.subr.mxu0 0.0
  %6779 = vmatpush1.msra.mxu0 %v2104
  %6780 = vmatprep.subr.mxu0 0.0
  %6781 = vmatpush1.msra.mxu0 %v2103
  %6782 = vmatprep.subr.mxu0 0.0
  %6783 = vmatpush1.msra.mxu0 %v2102
  %6784 = vmatprep.subr.mxu0 0.0
  %6785 = vmatpush1.msra.mxu0 %v2101
  %6786 = vmatprep.subr.mxu0 0.0
  %6787 = vmatpush1.msra.mxu0 %v2100
  %6788 = vmatprep.subr.mxu0 0.0
  %6789 = vmatpush1.msra.mxu0 %v2099
  %6790 = vmatprep.subr.mxu0 0.0
  %6791 = vmatpush1.msra.mxu0 %v2098
  %6792 = vmatprep.subr.mxu0 0.0
  %6793 = vmatpush1.msra.mxu0 %v2097
  %6794 = vmatprep.subr.mxu0 0.0
  %6795 = vmatpush1.msra.mxu0 %v2096
  %6796 = vmatprep.subr.mxu0 0.0
  %6797 = vmatpush1.msra.mxu0 %v2095
  %6798 = vmatprep.subr.mxu0 0.0
  %6799 = vmatpush1.msra.mxu0 %v2094
  %6800 = vmatprep.subr.mxu0 0.0
  %6801 = vmatpush1.msra.mxu0 %v2093
  %6802 = vmatprep.subr.mxu0 0.0
  %6803 = vmatpush1.msra.mxu0 %v2092
  %6804 = vmatprep.subr.mxu0 0.0
  %6805 = vmatpush1.msra.mxu0 %v2091
  %6806 = vmatprep.subr.mxu0 0.0
  %6807 = vmatpush2.msra.mxu0 %v2122
  %6808 = vmatprep.subr.mxu0 0.0
  %6809 = vmatpush2.msra.mxu0 %v2121
  %6810 = vmatprep.subr.mxu0 0.0
  %6811 = vmatpush2.msra.mxu0 %v2120
  %6812 = vmatprep.subr.mxu0 0.0
  %6813 = vmatpush2.msra.mxu0 %v2119
  %6814 = vmatprep.subr.mxu0 0.0
  %6815 = vmatpush2.msra.mxu0 %v2118
  %6816 = vmatprep.subr.mxu0 0.0
  %6817 = vmatpush2.msra.mxu0 %v2117
  %6818 = vmatprep.subr.mxu0 0.0
  %6819 = vmatpush2.msra.mxu0 %v2116
  %6820 = vmatprep.subr.mxu0 0.0
  %6821 = vmatpush2.msra.mxu0 %v2115
  %6822 = vmatprep.subr.mxu0 0.0
  %6823 = vmatpush2.msra.mxu0 %v2114
  %6824 = vmatprep.subr.mxu0 0.0
  %6825 = vmatpush2.msra.mxu0 %v2113
  %6826 = vmatprep.subr.mxu0 0.0
  %6827 = vmatpush2.msra.mxu0 %v2112
  %6828 = vmatprep.subr.mxu0 0.0
  %6829 = vmatpush2.msra.mxu0 %v2111
  %6830 = vmatprep.subr.mxu0 0.0
  %6831 = vmatpush2.msra.mxu0 %v2110
  %6832 = vmatprep.subr.mxu0 0.0
  %6833 = vmatpush2.msra.mxu0 %v2109
  %6834 = vmatprep.subr.mxu0 0.0
  %6835 = vmatpush2.msra.mxu0 %v2108
  %6836 = vmatprep.subr.mxu0 0.0
  %6837 = vmatpush2.msra.mxu0 %v2107
  %6838 = vmatprep.mubr.f32.mxu0 %v6563
  %6839 = vmatmul.mubr.f32.gmra.mxu0 %v6562
  %v6840 = vpop.f32.mrf.mxu0
  %v6841 = vadd.f32 %v6771, %v6840
  %v6842 = vpop.f32.mrf.mxu0
  %6843 = vdwg.mxu0
  %v6844 = vmul.f32 %v6508, 0.95
  %v6845 = vadd.f32 %v6844, %v6841
  %v6846 = vsub.f32 %v6845, %v6511
  %vm6847 = vcmp.gt.f32.partialorder %v6846, 1.0
  %v6848 = vsel %vm6847, 1, 0
  %v6849 = vcvt.s32.f32 %v6848
  %s6850 = scalar_lea.vmem %s5, 104
  %6851 = vst [vmem:[%s6850] sm:$0xff] %v6849
  %s6852 = scalar_lea.vmem %s6, 104
  %6853 = vst [vmem:[%s6852] sm:$0xff] %v6846
  %v6854 = vmul.f32 %v6532, 0.95
  %v6855 = vmul.f32 %v6533, 0.95
  %v6856 = vmul.f32 %v6534, 0.95
  %v6857 = vmul.f32 %v6535, 0.95
  %v6858 = vmul.f32 %v6536, 0.95
  %v6859 = vmul.f32 %v6537, 0.95
  %v6860 = vmul.f32 %v6538, 0.95
  %v6861 = vmul.f32 %v6539, 0.95
  %v6862 = vadd.f32 %v6854, %v1139
  %v6863 = vadd.f32 %v6855, %v1141
  %v6864 = vadd.f32 %v6856, %v1423
  %v6865 = vadd.f32 %v6857, %v1425
  %v6866 = vadd.f32 %v6858, %v1707
  %v6867 = vadd.f32 %v6859, %v1709
  %v6868 = vadd.f32 %v6860, %v1991
  %v6869 = vadd.f32 %v6861, %v1993
  %v6870 = vsub.f32 %v6862, %v6556
  %v6871 = vsub.f32 %v6863, %v6557
  %v6872 = vsub.f32 %v6864, %v6558
  %v6873 = vsub.f32 %v6865, %v6559
  %v6874 = vsub.f32 %v6866, %v6560
  %v6875 = vsub.f32 %v6867, %v6561
  %v6876 = vsub.f32 %v6868, %v6562
  %v6877 = vsub.f32 %v6869, %v6563
  %vm6878 = vcmp.gt.f32.partialorder %v6870, 1.0
  %vm6879 = vcmp.gt.f32.partialorder %v6871, 1.0
  %vm6880 = vcmp.gt.f32.partialorder %v6872, 1.0
  %vm6881 = vcmp.gt.f32.partialorder %v6873, 1.0
  %vm6882 = vcmp.gt.f32.partialorder %v6874, 1.0
  %vm6883 = vcmp.gt.f32.partialorder %v6875, 1.0
  %vm6884 = vcmp.gt.f32.partialorder %v6876, 1.0
  %vm6885 = vcmp.gt.f32.partialorder %v6877, 1.0
  %v6886 = vsel %vm6878, 1, 0
  %v6887 = vsel %vm6879, 1, 0
  %v6888 = vsel %vm6880, 1, 0
  %v6889 = vsel %vm6881, 1, 0
  %v6890 = vsel %vm6882, 1, 0
  %v6891 = vsel %vm6883, 1, 0
  %v6892 = vsel %vm6884, 1, 0
  %v6893 = vsel %vm6885, 1, 0
  %v6894 = vcvt.s32.f32 %v6886
  %v6895 = vcvt.s32.f32 %v6887
  %v6896 = vcvt.s32.f32 %v6888
  %v6897 = vcvt.s32.f32 %v6889
  %v6898 = vcvt.s32.f32 %v6890
  %v6899 = vcvt.s32.f32 %v6891
  %v6900 = vcvt.s32.f32 %v6892
  %v6901 = vcvt.s32.f32 %v6893
  %6902 = vmatprep.subr.mxu0 0.0
  %6903 = vmatpush1.msra.mxu0 %v2010
  %6904 = vmatprep.subr.mxu0 0.0
  %6905 = vmatpush1.msra.mxu0 %v2009
  %6906 = vmatprep.subr.mxu0 0.0
  %6907 = vmatpush1.msra.mxu0 %v2008
  %6908 = vmatprep.subr.mxu0 0.0
  %6909 = vmatpush1.msra.mxu0 %v2007
  %6910 = vmatprep.subr.mxu0 0.0
  %6911 = vmatpush1.msra.mxu0 %v2006
  %6912 = vmatprep.subr.mxu0 0.0
  %6913 = vmatpush1.msra.mxu0 %v2005
  %6914 = vmatprep.subr.mxu0 0.0
  %6915 = vmatpush1.msra.mxu0 %v2004
  %6916 = vmatprep.subr.mxu0 0.0
  %6917 = vmatpush1.msra.mxu0 %v2003
  %6918 = vmatprep.subr.mxu0 0.0
  %6919 = vmatpush1.msra.mxu0 %v2002
  %6920 = vmatprep.subr.mxu0 0.0
  %6921 = vmatpush1.msra.mxu0 %v2001
  %6922 = vmatprep.subr.mxu0 0.0
  %6923 = vmatpush1.msra.mxu0 %v2000
  %6924 = vmatprep.subr.mxu0 0.0
  %6925 = vmatpush1.msra.mxu0 %v1999
  %6926 = vmatprep.subr.mxu0 0.0
  %6927 = vmatpush1.msra.mxu0 %v1998
  %6928 = vmatprep.subr.mxu0 0.0
  %6929 = vmatpush1.msra.mxu0 %v1997
  %6930 = vmatprep.subr.mxu0 0.0
  %6931 = vmatpush1.msra.mxu0 %v1996
  %6932 = vmatprep.subr.mxu0 0.0
  %6933 = vmatpush1.msra.mxu0 %v1995
  %6934 = vmatprep.subr.mxu0 0.0
  %6935 = vmatpush2.msra.mxu0 %v2026
  %6936 = vmatprep.subr.mxu0 0.0
  %6937 = vmatpush2.msra.mxu0 %v2025
  %6938 = vmatprep.subr.mxu0 0.0
  %6939 = vmatpush2.msra.mxu0 %v2024
  %6940 = vmatprep.subr.mxu0 0.0
  %6941 = vmatpush2.msra.mxu0 %v2023
  %6942 = vmatprep.subr.mxu0 0.0
  %6943 = vmatpush2.msra.mxu0 %v2022
  %6944 = vmatprep.subr.mxu0 0.0
  %6945 = vmatpush2.msra.mxu0 %v2021
  %6946 = vmatprep.subr.mxu0 0.0
  %6947 = vmatpush2.msra.mxu0 %v2020
  %6948 = vmatprep.subr.mxu0 0.0
  %6949 = vmatpush2.msra.mxu0 %v2019
  %6950 = vmatprep.subr.mxu0 0.0
  %6951 = vmatpush2.msra.mxu0 %v2018
  %6952 = vmatprep.subr.mxu0 0.0
  %6953 = vmatpush2.msra.mxu0 %v2017
  %6954 = vmatprep.subr.mxu0 0.0
  %6955 = vmatpush2.msra.mxu0 %v2016
  %6956 = vmatprep.subr.mxu0 0.0
  %6957 = vmatpush2.msra.mxu0 %v2015
  %6958 = vmatprep.subr.mxu0 0.0
  %6959 = vmatpush2.msra.mxu0 %v2014
  %6960 = vmatprep.subr.mxu0 0.0
  %6961 = vmatpush2.msra.mxu0 %v2013
  %6962 = vmatprep.subr.mxu0 0.0
  %6963 = vmatpush2.msra.mxu0 %v2012
  %6964 = vmatprep.subr.mxu0 0.0
  %6965 = vmatpush2.msra.mxu0 %v2011
  %6966 = vmatprep.mubr.f32.mxu0 %v6895
  %6967 = vmatmul.mubr.f32.gmra.mxu0 %v6894
  %v6968 = vpop.f32.mrf.mxu0
  %v6969 = vadd.f32 %v2171, %v6968
  %v6970 = vpop.f32.mrf.mxu0
  %6971 = vdwg.mxu0
  %6972 = vmatprep.subr.mxu0 0.0
  %6973 = vmatpush1.msra.mxu0 %v2042
  %6974 = vmatprep.subr.mxu0 0.0
  %6975 = vmatpush1.msra.mxu0 %v2041
  %6976 = vmatprep.subr.mxu0 0.0
  %6977 = vmatpush1.msra.mxu0 %v2040
  %6978 = vmatprep.subr.mxu0 0.0
  %6979 = vmatpush1.msra.mxu0 %v2039
  %6980 = vmatprep.subr.mxu0 0.0
  %6981 = vmatpush1.msra.mxu0 %v2038
  %6982 = vmatprep.subr.mxu0 0.0
  %6983 = vmatpush1.msra.mxu0 %v2037
  %6984 = vmatprep.subr.mxu0 0.0
  %6985 = vmatpush1.msra.mxu0 %v2036
  %6986 = vmatprep.subr.mxu0 0.0
  %6987 = vmatpush1.msra.mxu0 %v2035
  %6988 = vmatprep.subr.mxu0 0.0
  %6989 = vmatpush1.msra.mxu0 %v2034
  %6990 = vmatprep.subr.mxu0 0.0
  %6991 = vmatpush1.msra.mxu0 %v2033
  %6992 = vmatprep.subr.mxu0 0.0
  %6993 = vmatpush1.msra.mxu0 %v2032
  %6994 = vmatprep.subr.mxu0 0.0
  %6995 = vmatpush1.msra.mxu0 %v2031
  %6996 = vmatprep.subr.mxu0 0.0
  %6997 = vmatpush1.msra.mxu0 %v2030
  %6998 = vmatprep.subr.mxu0 0.0
  %6999 = vmatpush1.msra.mxu0 %v2029
  %7000 = vmatprep.subr.mxu0 0.0
  %7001 = vmatpush1.msra.mxu0 %v2028
  %7002 = vmatprep.subr.mxu0 0.0
  %7003 = vmatpush1.msra.mxu0 %v2027
  %7004 = vmatprep.subr.mxu0 0.0
  %7005 = vmatpush2.msra.mxu0 %v2058
  %7006 = vmatprep.subr.mxu0 0.0
  %7007 = vmatpush2.msra.mxu0 %v2057
  %7008 = vmatprep.subr.mxu0 0.0
  %7009 = vmatpush2.msra.mxu0 %v2056
  %7010 = vmatprep.subr.mxu0 0.0
  %7011 = vmatpush2.msra.mxu0 %v2055
  %7012 = vmatprep.subr.mxu0 0.0
  %7013 = vmatpush2.msra.mxu0 %v2054
  %7014 = vmatprep.subr.mxu0 0.0
  %7015 = vmatpush2.msra.mxu0 %v2053
  %7016 = vmatprep.subr.mxu0 0.0
  %7017 = vmatpush2.msra.mxu0 %v2052
  %7018 = vmatprep.subr.mxu0 0.0
  %7019 = vmatpush2.msra.mxu0 %v2051
  %7020 = vmatprep.subr.mxu0 0.0
  %7021 = vmatpush2.msra.mxu0 %v2050
  %7022 = vmatprep.subr.mxu0 0.0
  %7023 = vmatpush2.msra.mxu0 %v2049
  %7024 = vmatprep.subr.mxu0 0.0
  %7025 = vmatpush2.msra.mxu0 %v2048
  %7026 = vmatprep.subr.mxu0 0.0
  %7027 = vmatpush2.msra.mxu0 %v2047
  %7028 = vmatprep.subr.mxu0 0.0
  %7029 = vmatpush2.msra.mxu0 %v2046
  %7030 = vmatprep.subr.mxu0 0.0
  %7031 = vmatpush2.msra.mxu0 %v2045
  %7032 = vmatprep.subr.mxu0 0.0
  %7033 = vmatpush2.msra.mxu0 %v2044
  %7034 = vmatprep.subr.mxu0 0.0
  %7035 = vmatpush2.msra.mxu0 %v2043
  %7036 = vmatprep.mubr.f32.mxu0 %v6897
  %7037 = vmatmul.mubr.f32.gmra.mxu0 %v6896
  %v7038 = vpop.f32.mrf.mxu0
  %v7039 = vadd.f32 %v6969, %v7038
  %v7040 = vpop.f32.mrf.mxu0
  %7041 = vdwg.mxu0
  %7042 = vmatprep.subr.mxu0 0.0
  %7043 = vmatpush1.msra.mxu0 %v2074
  %7044 = vmatprep.subr.mxu0 0.0
  %7045 = vmatpush1.msra.mxu0 %v2073
  %7046 = vmatprep.subr.mxu0 0.0
  %7047 = vmatpush1.msra.mxu0 %v2072
  %7048 = vmatprep.subr.mxu0 0.0
  %7049 = vmatpush1.msra.mxu0 %v2071
  %7050 = vmatprep.subr.mxu0 0.0
  %7051 = vmatpush1.msra.mxu0 %v2070
  %7052 = vmatprep.subr.mxu0 0.0
  %7053 = vmatpush1.msra.mxu0 %v2069
  %7054 = vmatprep.subr.mxu0 0.0
  %7055 = vmatpush1.msra.mxu0 %v2068
  %7056 = vmatprep.subr.mxu0 0.0
  %7057 = vmatpush1.msra.mxu0 %v2067
  %7058 = vmatprep.subr.mxu0 0.0
  %7059 = vmatpush1.msra.mxu0 %v2066
  %7060 = vmatprep.subr.mxu0 0.0
  %7061 = vmatpush1.msra.mxu0 %v2065
  %7062 = vmatprep.subr.mxu0 0.0
  %7063 = vmatpush1.msra.mxu0 %v2064
  %7064 = vmatprep.subr.mxu0 0.0
  %7065 = vmatpush1.msra.mxu0 %v2063
  %7066 = vmatprep.subr.mxu0 0.0
  %7067 = vmatpush1.msra.mxu0 %v2062
  %7068 = vmatprep.subr.mxu0 0.0
  %7069 = vmatpush1.msra.mxu0 %v2061
  %7070 = vmatprep.subr.mxu0 0.0
  %7071 = vmatpush1.msra.mxu0 %v2060
  %7072 = vmatprep.subr.mxu0 0.0
  %7073 = vmatpush1.msra.mxu0 %v2059
  %7074 = vmatprep.subr.mxu0 0.0
  %7075 = vmatpush2.msra.mxu0 %v2090
  %7076 = vmatprep.subr.mxu0 0.0
  %7077 = vmatpush2.msra.mxu0 %v2089
  %7078 = vmatprep.subr.mxu0 0.0
  %7079 = vmatpush2.msra.mxu0 %v2088
  %7080 = vmatprep.subr.mxu0 0.0
  %7081 = vmatpush2.msra.mxu0 %v2087
  %7082 = vmatprep.subr.mxu0 0.0
  %7083 = vmatpush2.msra.mxu0 %v2086
  %7084 = vmatprep.subr.mxu0 0.0
  %7085 = vmatpush2.msra.mxu0 %v2085
  %7086 = vmatprep.subr.mxu0 0.0
  %7087 = vmatpush2.msra.mxu0 %v2084
  %7088 = vmatprep.subr.mxu0 0.0
  %7089 = vmatpush2.msra.mxu0 %v2083
  %7090 = vmatprep.subr.mxu0 0.0
  %7091 = vmatpush2.msra.mxu0 %v2082
  %7092 = vmatprep.subr.mxu0 0.0
  %7093 = vmatpush2.msra.mxu0 %v2081
  %7094 = vmatprep.subr.mxu0 0.0
  %7095 = vmatpush2.msra.mxu0 %v2080
  %7096 = vmatprep.subr.mxu0 0.0
  %7097 = vmatpush2.msra.mxu0 %v2079
  %7098 = vmatprep.subr.mxu0 0.0
  %7099 = vmatpush2.msra.mxu0 %v2078
  %7100 = vmatprep.subr.mxu0 0.0
  %7101 = vmatpush2.msra.mxu0 %v2077
  %7102 = vmatprep.subr.mxu0 0.0
  %7103 = vmatpush2.msra.mxu0 %v2076
  %7104 = vmatprep.subr.mxu0 0.0
  %7105 = vmatpush2.msra.mxu0 %v2075
  %7106 = vmatprep.mubr.f32.mxu0 %v6899
  %7107 = vmatmul.mubr.f32.gmra.mxu0 %v6898
  %v7108 = vpop.f32.mrf.mxu0
  %v7109 = vadd.f32 %v7039, %v7108
  %v7110 = vpop.f32.mrf.mxu0
  %7111 = vdwg.mxu0
  %7112 = vmatprep.subr.mxu0 0.0
  %7113 = vmatpush1.msra.mxu0 %v2106
  %7114 = vmatprep.subr.mxu0 0.0
  %7115 = vmatpush1.msra.mxu0 %v2105
  %7116 = vmatprep.subr.mxu0 0.0
  %7117 = vmatpush1.msra.mxu0 %v2104
  %7118 = vmatprep.subr.mxu0 0.0
  %7119 = vmatpush1.msra.mxu0 %v2103
  %7120 = vmatprep.subr.mxu0 0.0
  %7121 = vmatpush1.msra.mxu0 %v2102
  %7122 = vmatprep.subr.mxu0 0.0
  %7123 = vmatpush1.msra.mxu0 %v2101
  %7124 = vmatprep.subr.mxu0 0.0
  %7125 = vmatpush1.msra.mxu0 %v2100
  %7126 = vmatprep.subr.mxu0 0.0
  %7127 = vmatpush1.msra.mxu0 %v2099
  %7128 = vmatprep.subr.mxu0 0.0
  %7129 = vmatpush1.msra.mxu0 %v2098
  %7130 = vmatprep.subr.mxu0 0.0
  %7131 = vmatpush1.msra.mxu0 %v2097
  %7132 = vmatprep.subr.mxu0 0.0
  %7133 = vmatpush1.msra.mxu0 %v2096
  %7134 = vmatprep.subr.mxu0 0.0
  %7135 = vmatpush1.msra.mxu0 %v2095
  %7136 = vmatprep.subr.mxu0 0.0
  %7137 = vmatpush1.msra.mxu0 %v2094
  %7138 = vmatprep.subr.mxu0 0.0
  %7139 = vmatpush1.msra.mxu0 %v2093
  %7140 = vmatprep.subr.mxu0 0.0
  %7141 = vmatpush1.msra.mxu0 %v2092
  %7142 = vmatprep.subr.mxu0 0.0
  %7143 = vmatpush1.msra.mxu0 %v2091
  %7144 = vmatprep.subr.mxu0 0.0
  %7145 = vmatpush2.msra.mxu0 %v2122
  %7146 = vmatprep.subr.mxu0 0.0
  %7147 = vmatpush2.msra.mxu0 %v2121
  %7148 = vmatprep.subr.mxu0 0.0
  %7149 = vmatpush2.msra.mxu0 %v2120
  %7150 = vmatprep.subr.mxu0 0.0
  %7151 = vmatpush2.msra.mxu0 %v2119
  %7152 = vmatprep.subr.mxu0 0.0
  %7153 = vmatpush2.msra.mxu0 %v2118
  %7154 = vmatprep.subr.mxu0 0.0
  %7155 = vmatpush2.msra.mxu0 %v2117
  %7156 = vmatprep.subr.mxu0 0.0
  %7157 = vmatpush2.msra.mxu0 %v2116
  %7158 = vmatprep.subr.mxu0 0.0
  %7159 = vmatpush2.msra.mxu0 %v2115
  %7160 = vmatprep.subr.mxu0 0.0
  %7161 = vmatpush2.msra.mxu0 %v2114
  %7162 = vmatprep.subr.mxu0 0.0
  %7163 = vmatpush2.msra.mxu0 %v2113
  %7164 = vmatprep.subr.mxu0 0.0
  %7165 = vmatpush2.msra.mxu0 %v2112
  %7166 = vmatprep.subr.mxu0 0.0
  %7167 = vmatpush2.msra.mxu0 %v2111
  %7168 = vmatprep.subr.mxu0 0.0
  %7169 = vmatpush2.msra.mxu0 %v2110
  %7170 = vmatprep.subr.mxu0 0.0
  %7171 = vmatpush2.msra.mxu0 %v2109
  %7172 = vmatprep.subr.mxu0 0.0
  %7173 = vmatpush2.msra.mxu0 %v2108
  %7174 = vmatprep.subr.mxu0 0.0
  %7175 = vmatpush2.msra.mxu0 %v2107
  %7176 = vmatprep.mubr.f32.mxu0 %v6901
  %7177 = vmatmul.mubr.f32.gmra.mxu0 %v6900
  %v7178 = vpop.f32.mrf.mxu0
  %v7179 = vadd.f32 %v7109, %v7178
  %v7180 = vpop.f32.mrf.mxu0
  %7181 = vdwg.mxu0
  %v7182 = vmul.f32 %v6846, 0.95
  %v7183 = vadd.f32 %v7182, %v7179
  %v7184 = vsub.f32 %v7183, %v6849
  %vm7185 = vcmp.gt.f32.partialorder %v7184, 1.0
  %v7186 = vsel %vm7185, 1, 0
  %v7187 = vcvt.s32.f32 %v7186
  %s7188 = scalar_lea.vmem %s5, 112
  %7189 = vst [vmem:[%s7188] sm:$0xff] %v7187
  %s7190 = scalar_lea.vmem %s6, 112
  %7191 = vst [vmem:[%s7190] sm:$0xff] %v7184
  %v7192 = vmul.f32 %v6870, 0.95
  %v7193 = vmul.f32 %v6871, 0.95
  %v7194 = vmul.f32 %v6872, 0.95
  %v7195 = vmul.f32 %v6873, 0.95
  %v7196 = vmul.f32 %v6874, 0.95
  %v7197 = vmul.f32 %v6875, 0.95
  %v7198 = vmul.f32 %v6876, 0.95
  %v7199 = vmul.f32 %v6877, 0.95
  %v7200 = vadd.f32 %v7192, %v1139
  %v7201 = vadd.f32 %v7193, %v1141
  %v7202 = vadd.f32 %v7194, %v1423
  %v7203 = vadd.f32 %v7195, %v1425
  %v7204 = vadd.f32 %v7196, %v1707
  %v7205 = vadd.f32 %v7197, %v1709
  %v7206 = vadd.f32 %v7198, %v1991
  %v7207 = vadd.f32 %v7199, %v1993
  %v7208 = vsub.f32 %v7200, %v6894
  %v7209 = vsub.f32 %v7201, %v6895
  %v7210 = vsub.f32 %v7202, %v6896
  %v7211 = vsub.f32 %v7203, %v6897
  %v7212 = vsub.f32 %v7204, %v6898
  %v7213 = vsub.f32 %v7205, %v6899
  %v7214 = vsub.f32 %v7206, %v6900
  %v7215 = vsub.f32 %v7207, %v6901
  %vm7216 = vcmp.gt.f32.partialorder %v7208, 1.0
  %vm7217 = vcmp.gt.f32.partialorder %v7209, 1.0
  %vm7218 = vcmp.gt.f32.partialorder %v7210, 1.0
  %vm7219 = vcmp.gt.f32.partialorder %v7211, 1.0
  %vm7220 = vcmp.gt.f32.partialorder %v7212, 1.0
  %vm7221 = vcmp.gt.f32.partialorder %v7213, 1.0
  %vm7222 = vcmp.gt.f32.partialorder %v7214, 1.0
  %vm7223 = vcmp.gt.f32.partialorder %v7215, 1.0
  %v7224 = vsel %vm7216, 1, 0
  %v7225 = vsel %vm7217, 1, 0
  %v7226 = vsel %vm7218, 1, 0
  %v7227 = vsel %vm7219, 1, 0
  %v7228 = vsel %vm7220, 1, 0
  %v7229 = vsel %vm7221, 1, 0
  %v7230 = vsel %vm7222, 1, 0
  %v7231 = vsel %vm7223, 1, 0
  %v7232 = vcvt.s32.f32 %v7224
  %v7233 = vcvt.s32.f32 %v7225
  %v7234 = vcvt.s32.f32 %v7226
  %v7235 = vcvt.s32.f32 %v7227
  %v7236 = vcvt.s32.f32 %v7228
  %v7237 = vcvt.s32.f32 %v7229
  %v7238 = vcvt.s32.f32 %v7230
  %v7239 = vcvt.s32.f32 %v7231
  %7240 = vmatprep.subr.mxu0 0.0
  %7241 = vmatpush1.msra.mxu0 %v2010
  %7242 = vmatprep.subr.mxu0 0.0
  %7243 = vmatpush1.msra.mxu0 %v2009
  %7244 = vmatprep.subr.mxu0 0.0
  %7245 = vmatpush1.msra.mxu0 %v2008
  %7246 = vmatprep.subr.mxu0 0.0
  %7247 = vmatpush1.msra.mxu0 %v2007
  %7248 = vmatprep.subr.mxu0 0.0
  %7249 = vmatpush1.msra.mxu0 %v2006
  %7250 = vmatprep.subr.mxu0 0.0
  %7251 = vmatpush1.msra.mxu0 %v2005
  %7252 = vmatprep.subr.mxu0 0.0
  %7253 = vmatpush1.msra.mxu0 %v2004
  %7254 = vmatprep.subr.mxu0 0.0
  %7255 = vmatpush1.msra.mxu0 %v2003
  %7256 = vmatprep.subr.mxu0 0.0
  %7257 = vmatpush1.msra.mxu0 %v2002
  %7258 = vmatprep.subr.mxu0 0.0
  %7259 = vmatpush1.msra.mxu0 %v2001
  %7260 = vmatprep.subr.mxu0 0.0
  %7261 = vmatpush1.msra.mxu0 %v2000
  %7262 = vmatprep.subr.mxu0 0.0
  %7263 = vmatpush1.msra.mxu0 %v1999
  %7264 = vmatprep.subr.mxu0 0.0
  %7265 = vmatpush1.msra.mxu0 %v1998
  %7266 = vmatprep.subr.mxu0 0.0
  %7267 = vmatpush1.msra.mxu0 %v1997
  %7268 = vmatprep.subr.mxu0 0.0
  %7269 = vmatpush1.msra.mxu0 %v1996
  %7270 = vmatprep.subr.mxu0 0.0
  %7271 = vmatpush1.msra.mxu0 %v1995
  %7272 = vmatprep.subr.mxu0 0.0
  %7273 = vmatpush2.msra.mxu0 %v2026
  %7274 = vmatprep.subr.mxu0 0.0
  %7275 = vmatpush2.msra.mxu0 %v2025
  %7276 = vmatprep.subr.mxu0 0.0
  %7277 = vmatpush2.msra.mxu0 %v2024
  %7278 = vmatprep.subr.mxu0 0.0
  %7279 = vmatpush2.msra.mxu0 %v2023
  %7280 = vmatprep.subr.mxu0 0.0
  %7281 = vmatpush2.msra.mxu0 %v2022
  %7282 = vmatprep.subr.mxu0 0.0
  %7283 = vmatpush2.msra.mxu0 %v2021
  %7284 = vmatprep.subr.mxu0 0.0
  %7285 = vmatpush2.msra.mxu0 %v2020
  %7286 = vmatprep.subr.mxu0 0.0
  %7287 = vmatpush2.msra.mxu0 %v2019
  %7288 = vmatprep.subr.mxu0 0.0
  %7289 = vmatpush2.msra.mxu0 %v2018
  %7290 = vmatprep.subr.mxu0 0.0
  %7291 = vmatpush2.msra.mxu0 %v2017
  %7292 = vmatprep.subr.mxu0 0.0
  %7293 = vmatpush2.msra.mxu0 %v2016
  %7294 = vmatprep.subr.mxu0 0.0
  %7295 = vmatpush2.msra.mxu0 %v2015
  %7296 = vmatprep.subr.mxu0 0.0
  %7297 = vmatpush2.msra.mxu0 %v2014
  %7298 = vmatprep.subr.mxu0 0.0
  %7299 = vmatpush2.msra.mxu0 %v2013
  %7300 = vmatprep.subr.mxu0 0.0
  %7301 = vmatpush2.msra.mxu0 %v2012
  %7302 = vmatprep.subr.mxu0 0.0
  %7303 = vmatpush2.msra.mxu0 %v2011
  %7304 = vmatprep.mubr.f32.mxu0 %v7233
  %7305 = vmatmul.mubr.f32.gmra.mxu0 %v7232
  %v7306 = vpop.f32.mrf.mxu0
  %v7307 = vadd.f32 %v2171, %v7306
  %v7308 = vpop.f32.mrf.mxu0
  %7309 = vdwg.mxu0
  %7310 = vmatprep.subr.mxu0 0.0
  %7311 = vmatpush1.msra.mxu0 %v2042
  %7312 = vmatprep.subr.mxu0 0.0
  %7313 = vmatpush1.msra.mxu0 %v2041
  %7314 = vmatprep.subr.mxu0 0.0
  %7315 = vmatpush1.msra.mxu0 %v2040
  %7316 = vmatprep.subr.mxu0 0.0
  %7317 = vmatpush1.msra.mxu0 %v2039
  %7318 = vmatprep.subr.mxu0 0.0
  %7319 = vmatpush1.msra.mxu0 %v2038
  %7320 = vmatprep.subr.mxu0 0.0
  %7321 = vmatpush1.msra.mxu0 %v2037
  %7322 = vmatprep.subr.mxu0 0.0
  %7323 = vmatpush1.msra.mxu0 %v2036
  %7324 = vmatprep.subr.mxu0 0.0
  %7325 = vmatpush1.msra.mxu0 %v2035
  %7326 = vmatprep.subr.mxu0 0.0
  %7327 = vmatpush1.msra.mxu0 %v2034
  %7328 = vmatprep.subr.mxu0 0.0
  %7329 = vmatpush1.msra.mxu0 %v2033
  %7330 = vmatprep.subr.mxu0 0.0
  %7331 = vmatpush1.msra.mxu0 %v2032
  %7332 = vmatprep.subr.mxu0 0.0
  %7333 = vmatpush1.msra.mxu0 %v2031
  %7334 = vmatprep.subr.mxu0 0.0
  %7335 = vmatpush1.msra.mxu0 %v2030
  %7336 = vmatprep.subr.mxu0 0.0
  %7337 = vmatpush1.msra.mxu0 %v2029
  %7338 = vmatprep.subr.mxu0 0.0
  %7339 = vmatpush1.msra.mxu0 %v2028
  %7340 = vmatprep.subr.mxu0 0.0
  %7341 = vmatpush1.msra.mxu0 %v2027
  %7342 = vmatprep.subr.mxu0 0.0
  %7343 = vmatpush2.msra.mxu0 %v2058
  %7344 = vmatprep.subr.mxu0 0.0
  %7345 = vmatpush2.msra.mxu0 %v2057
  %7346 = vmatprep.subr.mxu0 0.0
  %7347 = vmatpush2.msra.mxu0 %v2056
  %7348 = vmatprep.subr.mxu0 0.0
  %7349 = vmatpush2.msra.mxu0 %v2055
  %7350 = vmatprep.subr.mxu0 0.0
  %7351 = vmatpush2.msra.mxu0 %v2054
  %7352 = vmatprep.subr.mxu0 0.0
  %7353 = vmatpush2.msra.mxu0 %v2053
  %7354 = vmatprep.subr.mxu0 0.0
  %7355 = vmatpush2.msra.mxu0 %v2052
  %7356 = vmatprep.subr.mxu0 0.0
  %7357 = vmatpush2.msra.mxu0 %v2051
  %7358 = vmatprep.subr.mxu0 0.0
  %7359 = vmatpush2.msra.mxu0 %v2050
  %7360 = vmatprep.subr.mxu0 0.0
  %7361 = vmatpush2.msra.mxu0 %v2049
  %7362 = vmatprep.subr.mxu0 0.0
  %7363 = vmatpush2.msra.mxu0 %v2048
  %7364 = vmatprep.subr.mxu0 0.0
  %7365 = vmatpush2.msra.mxu0 %v2047
  %7366 = vmatprep.subr.mxu0 0.0
  %7367 = vmatpush2.msra.mxu0 %v2046
  %7368 = vmatprep.subr.mxu0 0.0
  %7369 = vmatpush2.msra.mxu0 %v2045
  %7370 = vmatprep.subr.mxu0 0.0
  %7371 = vmatpush2.msra.mxu0 %v2044
  %7372 = vmatprep.subr.mxu0 0.0
  %7373 = vmatpush2.msra.mxu0 %v2043
  %7374 = vmatprep.mubr.f32.mxu0 %v7235
  %7375 = vmatmul.mubr.f32.gmra.mxu0 %v7234
  %v7376 = vpop.f32.mrf.mxu0
  %v7377 = vadd.f32 %v7307, %v7376
  %v7378 = vpop.f32.mrf.mxu0
  %7379 = vdwg.mxu0
  %7380 = vmatprep.subr.mxu0 0.0
  %7381 = vmatpush1.msra.mxu0 %v2074
  %7382 = vmatprep.subr.mxu0 0.0
  %7383 = vmatpush1.msra.mxu0 %v2073
  %7384 = vmatprep.subr.mxu0 0.0
  %7385 = vmatpush1.msra.mxu0 %v2072
  %7386 = vmatprep.subr.mxu0 0.0
  %7387 = vmatpush1.msra.mxu0 %v2071
  %7388 = vmatprep.subr.mxu0 0.0
  %7389 = vmatpush1.msra.mxu0 %v2070
  %7390 = vmatprep.subr.mxu0 0.0
  %7391 = vmatpush1.msra.mxu0 %v2069
  %7392 = vmatprep.subr.mxu0 0.0
  %7393 = vmatpush1.msra.mxu0 %v2068
  %7394 = vmatprep.subr.mxu0 0.0
  %7395 = vmatpush1.msra.mxu0 %v2067
  %7396 = vmatprep.subr.mxu0 0.0
  %7397 = vmatpush1.msra.mxu0 %v2066
  %7398 = vmatprep.subr.mxu0 0.0
  %7399 = vmatpush1.msra.mxu0 %v2065
  %7400 = vmatprep.subr.mxu0 0.0
  %7401 = vmatpush1.msra.mxu0 %v2064
  %7402 = vmatprep.subr.mxu0 0.0
  %7403 = vmatpush1.msra.mxu0 %v2063
  %7404 = vmatprep.subr.mxu0 0.0
  %7405 = vmatpush1.msra.mxu0 %v2062
  %7406 = vmatprep.subr.mxu0 0.0
  %7407 = vmatpush1.msra.mxu0 %v2061
  %7408 = vmatprep.subr.mxu0 0.0
  %7409 = vmatpush1.msra.mxu0 %v2060
  %7410 = vmatprep.subr.mxu0 0.0
  %7411 = vmatpush1.msra.mxu0 %v2059
  %7412 = vmatprep.subr.mxu0 0.0
  %7413 = vmatpush2.msra.mxu0 %v2090
  %7414 = vmatprep.subr.mxu0 0.0
  %7415 = vmatpush2.msra.mxu0 %v2089
  %7416 = vmatprep.subr.mxu0 0.0
  %7417 = vmatpush2.msra.mxu0 %v2088
  %7418 = vmatprep.subr.mxu0 0.0
  %7419 = vmatpush2.msra.mxu0 %v2087
  %7420 = vmatprep.subr.mxu0 0.0
  %7421 = vmatpush2.msra.mxu0 %v2086
  %7422 = vmatprep.subr.mxu0 0.0
  %7423 = vmatpush2.msra.mxu0 %v2085
  %7424 = vmatprep.subr.mxu0 0.0
  %7425 = vmatpush2.msra.mxu0 %v2084
  %7426 = vmatprep.subr.mxu0 0.0
  %7427 = vmatpush2.msra.mxu0 %v2083
  %7428 = vmatprep.subr.mxu0 0.0
  %7429 = vmatpush2.msra.mxu0 %v2082
  %7430 = vmatprep.subr.mxu0 0.0
  %7431 = vmatpush2.msra.mxu0 %v2081
  %7432 = vmatprep.subr.mxu0 0.0
  %7433 = vmatpush2.msra.mxu0 %v2080
  %7434 = vmatprep.subr.mxu0 0.0
  %7435 = vmatpush2.msra.mxu0 %v2079
  %7436 = vmatprep.subr.mxu0 0.0
  %7437 = vmatpush2.msra.mxu0 %v2078
  %7438 = vmatprep.subr.mxu0 0.0
  %7439 = vmatpush2.msra.mxu0 %v2077
  %7440 = vmatprep.subr.mxu0 0.0
  %7441 = vmatpush2.msra.mxu0 %v2076
  %7442 = vmatprep.subr.mxu0 0.0
  %7443 = vmatpush2.msra.mxu0 %v2075
  %7444 = vmatprep.mubr.f32.mxu0 %v7237
  %7445 = vmatmul.mubr.f32.gmra.mxu0 %v7236
  %v7446 = vpop.f32.mrf.mxu0
  %v7447 = vadd.f32 %v7377, %v7446
  %v7448 = vpop.f32.mrf.mxu0
  %7449 = vdwg.mxu0
  %7450 = vmatprep.subr.mxu0 0.0
  %7451 = vmatpush1.msra.mxu0 %v2106
  %7452 = vmatprep.subr.mxu0 0.0
  %7453 = vmatpush1.msra.mxu0 %v2105
  %7454 = vmatprep.subr.mxu0 0.0
  %7455 = vmatpush1.msra.mxu0 %v2104
  %7456 = vmatprep.subr.mxu0 0.0
  %7457 = vmatpush1.msra.mxu0 %v2103
  %7458 = vmatprep.subr.mxu0 0.0
  %7459 = vmatpush1.msra.mxu0 %v2102
  %7460 = vmatprep.subr.mxu0 0.0
  %7461 = vmatpush1.msra.mxu0 %v2101
  %7462 = vmatprep.subr.mxu0 0.0
  %7463 = vmatpush1.msra.mxu0 %v2100
  %7464 = vmatprep.subr.mxu0 0.0
  %7465 = vmatpush1.msra.mxu0 %v2099
  %7466 = vmatprep.subr.mxu0 0.0
  %7467 = vmatpush1.msra.mxu0 %v2098
  %7468 = vmatprep.subr.mxu0 0.0
  %7469 = vmatpush1.msra.mxu0 %v2097
  %7470 = vmatprep.subr.mxu0 0.0
  %7471 = vmatpush1.msra.mxu0 %v2096
  %7472 = vmatprep.subr.mxu0 0.0
  %7473 = vmatpush1.msra.mxu0 %v2095
  %7474 = vmatprep.subr.mxu0 0.0
  %7475 = vmatpush1.msra.mxu0 %v2094
  %7476 = vmatprep.subr.mxu0 0.0
  %7477 = vmatpush1.msra.mxu0 %v2093
  %7478 = vmatprep.subr.mxu0 0.0
  %7479 = vmatpush1.msra.mxu0 %v2092
  %7480 = vmatprep.subr.mxu0 0.0
  %7481 = vmatpush1.msra.mxu0 %v2091
  %7482 = vmatprep.subr.mxu0 0.0
  %7483 = vmatpush2.msra.mxu0 %v2122
  %7484 = vmatprep.subr.mxu0 0.0
  %7485 = vmatpush2.msra.mxu0 %v2121
  %7486 = vmatprep.subr.mxu0 0.0
  %7487 = vmatpush2.msra.mxu0 %v2120
  %7488 = vmatprep.subr.mxu0 0.0
  %7489 = vmatpush2.msra.mxu0 %v2119
  %7490 = vmatprep.subr.mxu0 0.0
  %7491 = vmatpush2.msra.mxu0 %v2118
  %7492 = vmatprep.subr.mxu0 0.0
  %7493 = vmatpush2.msra.mxu0 %v2117
  %7494 = vmatprep.subr.mxu0 0.0
  %7495 = vmatpush2.msra.mxu0 %v2116
  %7496 = vmatprep.subr.mxu0 0.0
  %7497 = vmatpush2.msra.mxu0 %v2115
  %7498 = vmatprep.subr.mxu0 0.0
  %7499 = vmatpush2.msra.mxu0 %v2114
  %7500 = vmatprep.subr.mxu0 0.0
  %7501 = vmatpush2.msra.mxu0 %v2113
  %7502 = vmatprep.subr.mxu0 0.0
  %7503 = vmatpush2.msra.mxu0 %v2112
  %7504 = vmatprep.subr.mxu0 0.0
  %7505 = vmatpush2.msra.mxu0 %v2111
  %7506 = vmatprep.subr.mxu0 0.0
  %7507 = vmatpush2.msra.mxu0 %v2110
  %7508 = vmatprep.subr.mxu0 0.0
  %7509 = vmatpush2.msra.mxu0 %v2109
  %7510 = vmatprep.subr.mxu0 0.0
  %7511 = vmatpush2.msra.mxu0 %v2108
  %7512 = vmatprep.subr.mxu0 0.0
  %7513 = vmatpush2.msra.mxu0 %v2107
  %7514 = vmatprep.mubr.f32.mxu0 %v7239
  %7515 = vmatmul.mubr.f32.gmra.mxu0 %v7238
  %v7516 = vpop.f32.mrf.mxu0
  %v7517 = vadd.f32 %v7447, %v7516
  %v7518 = vpop.f32.mrf.mxu0
  %7519 = vdwg.mxu0
  %v7520 = vmul.f32 %v7184, 0.95
  %v7521 = vadd.f32 %v7520, %v7517
  %v7522 = vsub.f32 %v7521, %v7187
  %vm7523 = vcmp.gt.f32.partialorder %v7522, 1.0
  %v7524 = vsel %vm7523, 1, 0
  %v7525 = vcvt.s32.f32 %v7524
  %s7526 = scalar_lea.vmem %s5, 120
  %7527 = vst [vmem:[%s7526] sm:$0xff] %v7525
  %s7528 = scalar_lea.vmem %s6, 120
  %7529 = vst [vmem:[%s7528] sm:$0xff] %v7522
  %v7530 = vmul.f32 %v7208, 0.95
  %v7531 = vmul.f32 %v7209, 0.95
  %v7532 = vmul.f32 %v7210, 0.95
  %v7533 = vmul.f32 %v7211, 0.95
  %v7534 = vmul.f32 %v7212, 0.95
  %v7535 = vmul.f32 %v7213, 0.95
  %v7536 = vmul.f32 %v7214, 0.95
  %v7537 = vmul.f32 %v7215, 0.95
  %v7538 = vadd.f32 %v7530, %v1139
  %v7539 = vadd.f32 %v7531, %v1141
  %v7540 = vadd.f32 %v7532, %v1423
  %v7541 = vadd.f32 %v7533, %v1425
  %v7542 = vadd.f32 %v7534, %v1707
  %v7543 = vadd.f32 %v7535, %v1709
  %v7544 = vadd.f32 %v7536, %v1991
  %v7545 = vadd.f32 %v7537, %v1993
  %v7546 = vsub.f32 %v7538, %v7232
  %v7547 = vsub.f32 %v7539, %v7233
  %v7548 = vsub.f32 %v7540, %v7234
  %v7549 = vsub.f32 %v7541, %v7235
  %v7550 = vsub.f32 %v7542, %v7236
  %v7551 = vsub.f32 %v7543, %v7237
  %v7552 = vsub.f32 %v7544, %v7238
  %v7553 = vsub.f32 %v7545, %v7239
  %vm7554 = vcmp.gt.f32.partialorder %v7546, 1.0
  %vm7555 = vcmp.gt.f32.partialorder %v7547, 1.0
  %vm7556 = vcmp.gt.f32.partialorder %v7548, 1.0
  %vm7557 = vcmp.gt.f32.partialorder %v7549, 1.0
  %vm7558 = vcmp.gt.f32.partialorder %v7550, 1.0
  %vm7559 = vcmp.gt.f32.partialorder %v7551, 1.0
  %vm7560 = vcmp.gt.f32.partialorder %v7552, 1.0
  %vm7561 = vcmp.gt.f32.partialorder %v7553, 1.0
  %v7562 = vsel %vm7554, 1, 0
  %v7563 = vsel %vm7555, 1, 0
  %v7564 = vsel %vm7556, 1, 0
  %v7565 = vsel %vm7557, 1, 0
  %v7566 = vsel %vm7558, 1, 0
  %v7567 = vsel %vm7559, 1, 0
  %v7568 = vsel %vm7560, 1, 0
  %v7569 = vsel %vm7561, 1, 0
  %v7570 = vcvt.s32.f32 %v7562
  %v7571 = vcvt.s32.f32 %v7563
  %v7572 = vcvt.s32.f32 %v7564
  %v7573 = vcvt.s32.f32 %v7565
  %v7574 = vcvt.s32.f32 %v7566
  %v7575 = vcvt.s32.f32 %v7567
  %v7576 = vcvt.s32.f32 %v7568
  %v7577 = vcvt.s32.f32 %v7569
  %7578 = vmatprep.subr.mxu0 0.0
  %7579 = vmatpush1.msra.mxu0 %v2010
  %7580 = vmatprep.subr.mxu0 0.0
  %7581 = vmatpush1.msra.mxu0 %v2009
  %7582 = vmatprep.subr.mxu0 0.0
  %7583 = vmatpush1.msra.mxu0 %v2008
  %7584 = vmatprep.subr.mxu0 0.0
  %7585 = vmatpush1.msra.mxu0 %v2007
  %7586 = vmatprep.subr.mxu0 0.0
  %7587 = vmatpush1.msra.mxu0 %v2006
  %7588 = vmatprep.subr.mxu0 0.0
  %7589 = vmatpush1.msra.mxu0 %v2005
  %7590 = vmatprep.subr.mxu0 0.0
  %7591 = vmatpush1.msra.mxu0 %v2004
  %7592 = vmatprep.subr.mxu0 0.0
  %7593 = vmatpush1.msra.mxu0 %v2003
  %7594 = vmatprep.subr.mxu0 0.0
  %7595 = vmatpush1.msra.mxu0 %v2002
  %7596 = vmatprep.subr.mxu0 0.0
  %7597 = vmatpush1.msra.mxu0 %v2001
  %7598 = vmatprep.subr.mxu0 0.0
  %7599 = vmatpush1.msra.mxu0 %v2000
  %7600 = vmatprep.subr.mxu0 0.0
  %7601 = vmatpush1.msra.mxu0 %v1999
  %7602 = vmatprep.subr.mxu0 0.0
  %7603 = vmatpush1.msra.mxu0 %v1998
  %7604 = vmatprep.subr.mxu0 0.0
  %7605 = vmatpush1.msra.mxu0 %v1997
  %7606 = vmatprep.subr.mxu0 0.0
  %7607 = vmatpush1.msra.mxu0 %v1996
  %7608 = vmatprep.subr.mxu0 0.0
  %7609 = vmatpush1.msra.mxu0 %v1995
  %7610 = vmatprep.subr.mxu0 0.0
  %7611 = vmatpush2.msra.mxu0 %v2026
  %7612 = vmatprep.subr.mxu0 0.0
  %7613 = vmatpush2.msra.mxu0 %v2025
  %7614 = vmatprep.subr.mxu0 0.0
  %7615 = vmatpush2.msra.mxu0 %v2024
  %7616 = vmatprep.subr.mxu0 0.0
  %7617 = vmatpush2.msra.mxu0 %v2023
  %7618 = vmatprep.subr.mxu0 0.0
  %7619 = vmatpush2.msra.mxu0 %v2022
  %7620 = vmatprep.subr.mxu0 0.0
  %7621 = vmatpush2.msra.mxu0 %v2021
  %7622 = vmatprep.subr.mxu0 0.0
  %7623 = vmatpush2.msra.mxu0 %v2020
  %7624 = vmatprep.subr.mxu0 0.0
  %7625 = vmatpush2.msra.mxu0 %v2019
  %7626 = vmatprep.subr.mxu0 0.0
  %7627 = vmatpush2.msra.mxu0 %v2018
  %7628 = vmatprep.subr.mxu0 0.0
  %7629 = vmatpush2.msra.mxu0 %v2017
  %7630 = vmatprep.subr.mxu0 0.0
  %7631 = vmatpush2.msra.mxu0 %v2016
  %7632 = vmatprep.subr.mxu0 0.0
  %7633 = vmatpush2.msra.mxu0 %v2015
  %7634 = vmatprep.subr.mxu0 0.0
  %7635 = vmatpush2.msra.mxu0 %v2014
  %7636 = vmatprep.subr.mxu0 0.0
  %7637 = vmatpush2.msra.mxu0 %v2013
  %7638 = vmatprep.subr.mxu0 0.0
  %7639 = vmatpush2.msra.mxu0 %v2012
  %7640 = vmatprep.subr.mxu0 0.0
  %7641 = vmatpush2.msra.mxu0 %v2011
  %7642 = vmatprep.mubr.f32.mxu0 %v7571
  %7643 = vmatmul.mubr.f32.gmra.mxu0 %v7570
  %v7644 = vpop.f32.mrf.mxu0
  %v7645 = vadd.f32 %v2171, %v7644
  %v7646 = vpop.f32.mrf.mxu0
  %7647 = vdwg.mxu0
  %7648 = vmatprep.subr.mxu0 0.0
  %7649 = vmatpush1.msra.mxu0 %v2042
  %7650 = vmatprep.subr.mxu0 0.0
  %7651 = vmatpush1.msra.mxu0 %v2041
  %7652 = vmatprep.subr.mxu0 0.0
  %7653 = vmatpush1.msra.mxu0 %v2040
  %7654 = vmatprep.subr.mxu0 0.0
  %7655 = vmatpush1.msra.mxu0 %v2039
  %7656 = vmatprep.subr.mxu0 0.0
  %7657 = vmatpush1.msra.mxu0 %v2038
  %7658 = vmatprep.subr.mxu0 0.0
  %7659 = vmatpush1.msra.mxu0 %v2037
  %7660 = vmatprep.subr.mxu0 0.0
  %7661 = vmatpush1.msra.mxu0 %v2036
  %7662 = vmatprep.subr.mxu0 0.0
  %7663 = vmatpush1.msra.mxu0 %v2035
  %7664 = vmatprep.subr.mxu0 0.0
  %7665 = vmatpush1.msra.mxu0 %v2034
  %7666 = vmatprep.subr.mxu0 0.0
  %7667 = vmatpush1.msra.mxu0 %v2033
  %7668 = vmatprep.subr.mxu0 0.0
  %7669 = vmatpush1.msra.mxu0 %v2032
  %7670 = vmatprep.subr.mxu0 0.0
  %7671 = vmatpush1.msra.mxu0 %v2031
  %7672 = vmatprep.subr.mxu0 0.0
  %7673 = vmatpush1.msra.mxu0 %v2030
  %7674 = vmatprep.subr.mxu0 0.0
  %7675 = vmatpush1.msra.mxu0 %v2029
  %7676 = vmatprep.subr.mxu0 0.0
  %7677 = vmatpush1.msra.mxu0 %v2028
  %7678 = vmatprep.subr.mxu0 0.0
  %7679 = vmatpush1.msra.mxu0 %v2027
  %7680 = vmatprep.subr.mxu0 0.0
  %7681 = vmatpush2.msra.mxu0 %v2058
  %7682 = vmatprep.subr.mxu0 0.0
  %7683 = vmatpush2.msra.mxu0 %v2057
  %7684 = vmatprep.subr.mxu0 0.0
  %7685 = vmatpush2.msra.mxu0 %v2056
  %7686 = vmatprep.subr.mxu0 0.0
  %7687 = vmatpush2.msra.mxu0 %v2055
  %7688 = vmatprep.subr.mxu0 0.0
  %7689 = vmatpush2.msra.mxu0 %v2054
  %7690 = vmatprep.subr.mxu0 0.0
  %7691 = vmatpush2.msra.mxu0 %v2053
  %7692 = vmatprep.subr.mxu0 0.0
  %7693 = vmatpush2.msra.mxu0 %v2052
  %7694 = vmatprep.subr.mxu0 0.0
  %7695 = vmatpush2.msra.mxu0 %v2051
  %7696 = vmatprep.subr.mxu0 0.0
  %7697 = vmatpush2.msra.mxu0 %v2050
  %7698 = vmatprep.subr.mxu0 0.0
  %7699 = vmatpush2.msra.mxu0 %v2049
  %7700 = vmatprep.subr.mxu0 0.0
  %7701 = vmatpush2.msra.mxu0 %v2048
  %7702 = vmatprep.subr.mxu0 0.0
  %7703 = vmatpush2.msra.mxu0 %v2047
  %7704 = vmatprep.subr.mxu0 0.0
  %7705 = vmatpush2.msra.mxu0 %v2046
  %7706 = vmatprep.subr.mxu0 0.0
  %7707 = vmatpush2.msra.mxu0 %v2045
  %7708 = vmatprep.subr.mxu0 0.0
  %7709 = vmatpush2.msra.mxu0 %v2044
  %7710 = vmatprep.subr.mxu0 0.0
  %7711 = vmatpush2.msra.mxu0 %v2043
  %7712 = vmatprep.mubr.f32.mxu0 %v7573
  %7713 = vmatmul.mubr.f32.gmra.mxu0 %v7572
  %v7714 = vpop.f32.mrf.mxu0
  %v7715 = vadd.f32 %v7645, %v7714
  %v7716 = vpop.f32.mrf.mxu0
  %7717 = vdwg.mxu0
  %7718 = vmatprep.subr.mxu0 0.0
  %7719 = vmatpush1.msra.mxu0 %v2074
  %7720 = vmatprep.subr.mxu0 0.0
  %7721 = vmatpush1.msra.mxu0 %v2073
  %7722 = vmatprep.subr.mxu0 0.0
  %7723 = vmatpush1.msra.mxu0 %v2072
  %7724 = vmatprep.subr.mxu0 0.0
  %7725 = vmatpush1.msra.mxu0 %v2071
  %7726 = vmatprep.subr.mxu0 0.0
  %7727 = vmatpush1.msra.mxu0 %v2070
  %7728 = vmatprep.subr.mxu0 0.0
  %7729 = vmatpush1.msra.mxu0 %v2069
  %7730 = vmatprep.subr.mxu0 0.0
  %7731 = vmatpush1.msra.mxu0 %v2068
  %7732 = vmatprep.subr.mxu0 0.0
  %7733 = vmatpush1.msra.mxu0 %v2067
  %7734 = vmatprep.subr.mxu0 0.0
  %7735 = vmatpush1.msra.mxu0 %v2066
  %7736 = vmatprep.subr.mxu0 0.0
  %7737 = vmatpush1.msra.mxu0 %v2065
  %7738 = vmatprep.subr.mxu0 0.0
  %7739 = vmatpush1.msra.mxu0 %v2064
  %7740 = vmatprep.subr.mxu0 0.0
  %7741 = vmatpush1.msra.mxu0 %v2063
  %7742 = vmatprep.subr.mxu0 0.0
  %7743 = vmatpush1.msra.mxu0 %v2062
  %7744 = vmatprep.subr.mxu0 0.0
  %7745 = vmatpush1.msra.mxu0 %v2061
  %7746 = vmatprep.subr.mxu0 0.0
  %7747 = vmatpush1.msra.mxu0 %v2060
  %7748 = vmatprep.subr.mxu0 0.0
  %7749 = vmatpush1.msra.mxu0 %v2059
  %7750 = vmatprep.subr.mxu0 0.0
  %7751 = vmatpush2.msra.mxu0 %v2090
  %7752 = vmatprep.subr.mxu0 0.0
  %7753 = vmatpush2.msra.mxu0 %v2089
  %7754 = vmatprep.subr.mxu0 0.0
  %7755 = vmatpush2.msra.mxu0 %v2088
  %7756 = vmatprep.subr.mxu0 0.0
  %7757 = vmatpush2.msra.mxu0 %v2087
  %7758 = vmatprep.subr.mxu0 0.0
  %7759 = vmatpush2.msra.mxu0 %v2086
  %7760 = vmatprep.subr.mxu0 0.0
  %7761 = vmatpush2.msra.mxu0 %v2085
  %7762 = vmatprep.subr.mxu0 0.0
  %7763 = vmatpush2.msra.mxu0 %v2084
  %7764 = vmatprep.subr.mxu0 0.0
  %7765 = vmatpush2.msra.mxu0 %v2083
  %7766 = vmatprep.subr.mxu0 0.0
  %7767 = vmatpush2.msra.mxu0 %v2082
  %7768 = vmatprep.subr.mxu0 0.0
  %7769 = vmatpush2.msra.mxu0 %v2081
  %7770 = vmatprep.subr.mxu0 0.0
  %7771 = vmatpush2.msra.mxu0 %v2080
  %7772 = vmatprep.subr.mxu0 0.0
  %7773 = vmatpush2.msra.mxu0 %v2079
  %7774 = vmatprep.subr.mxu0 0.0
  %7775 = vmatpush2.msra.mxu0 %v2078
  %7776 = vmatprep.subr.mxu0 0.0
  %7777 = vmatpush2.msra.mxu0 %v2077
  %7778 = vmatprep.subr.mxu0 0.0
  %7779 = vmatpush2.msra.mxu0 %v2076
  %7780 = vmatprep.subr.mxu0 0.0
  %7781 = vmatpush2.msra.mxu0 %v2075
  %7782 = vmatprep.mubr.f32.mxu0 %v7575
  %7783 = vmatmul.mubr.f32.gmra.mxu0 %v7574
  %v7784 = vpop.f32.mrf.mxu0
  %v7785 = vadd.f32 %v7715, %v7784
  %v7786 = vpop.f32.mrf.mxu0
  %7787 = vdwg.mxu0
  %7788 = vmatprep.subr.mxu0 0.0
  %7789 = vmatpush1.msra.mxu0 %v2106
  %7790 = vmatprep.subr.mxu0 0.0
  %7791 = vmatpush1.msra.mxu0 %v2105
  %7792 = vmatprep.subr.mxu0 0.0
  %7793 = vmatpush1.msra.mxu0 %v2104
  %7794 = vmatprep.subr.mxu0 0.0
  %7795 = vmatpush1.msra.mxu0 %v2103
  %7796 = vmatprep.subr.mxu0 0.0
  %7797 = vmatpush1.msra.mxu0 %v2102
  %7798 = vmatprep.subr.mxu0 0.0
  %7799 = vmatpush1.msra.mxu0 %v2101
  %7800 = vmatprep.subr.mxu0 0.0
  %7801 = vmatpush1.msra.mxu0 %v2100
  %7802 = vmatprep.subr.mxu0 0.0
  %7803 = vmatpush1.msra.mxu0 %v2099
  %7804 = vmatprep.subr.mxu0 0.0
  %7805 = vmatpush1.msra.mxu0 %v2098
  %7806 = vmatprep.subr.mxu0 0.0
  %7807 = vmatpush1.msra.mxu0 %v2097
  %7808 = vmatprep.subr.mxu0 0.0
  %7809 = vmatpush1.msra.mxu0 %v2096
  %7810 = vmatprep.subr.mxu0 0.0
  %7811 = vmatpush1.msra.mxu0 %v2095
  %7812 = vmatprep.subr.mxu0 0.0
  %7813 = vmatpush1.msra.mxu0 %v2094
  %7814 = vmatprep.subr.mxu0 0.0
  %7815 = vmatpush1.msra.mxu0 %v2093
  %7816 = vmatprep.subr.mxu0 0.0
  %7817 = vmatpush1.msra.mxu0 %v2092
  %7818 = vmatprep.subr.mxu0 0.0
  %7819 = vmatpush1.msra.mxu0 %v2091
  %7820 = vmatprep.subr.mxu0 0.0
  %7821 = vmatpush2.msra.mxu0 %v2122
  %7822 = vmatprep.subr.mxu0 0.0
  %7823 = vmatpush2.msra.mxu0 %v2121
  %7824 = vmatprep.subr.mxu0 0.0
  %7825 = vmatpush2.msra.mxu0 %v2120
  %7826 = vmatprep.subr.mxu0 0.0
  %7827 = vmatpush2.msra.mxu0 %v2119
  %7828 = vmatprep.subr.mxu0 0.0
  %7829 = vmatpush2.msra.mxu0 %v2118
  %7830 = vmatprep.subr.mxu0 0.0
  %7831 = vmatpush2.msra.mxu0 %v2117
  %7832 = vmatprep.subr.mxu0 0.0
  %7833 = vmatpush2.msra.mxu0 %v2116
  %7834 = vmatprep.subr.mxu0 0.0
  %7835 = vmatpush2.msra.mxu0 %v2115
  %7836 = vmatprep.subr.mxu0 0.0
  %7837 = vmatpush2.msra.mxu0 %v2114
  %7838 = vmatprep.subr.mxu0 0.0
  %7839 = vmatpush2.msra.mxu0 %v2113
  %7840 = vmatprep.subr.mxu0 0.0
  %7841 = vmatpush2.msra.mxu0 %v2112
  %7842 = vmatprep.subr.mxu0 0.0
  %7843 = vmatpush2.msra.mxu0 %v2111
  %7844 = vmatprep.subr.mxu0 0.0
  %7845 = vmatpush2.msra.mxu0 %v2110
  %7846 = vmatprep.subr.mxu0 0.0
  %7847 = vmatpush2.msra.mxu0 %v2109
  %7848 = vmatprep.subr.mxu0 0.0
  %7849 = vmatpush2.msra.mxu0 %v2108
  %7850 = vmatprep.subr.mxu0 0.0
  %7851 = vmatpush2.msra.mxu0 %v2107
  %7852 = vmatprep.mubr.f32.mxu0 %v7577
  %7853 = vmatmul.mubr.f32.gmra.mxu0 %v7576
  %v7854 = vpop.f32.mrf.mxu0
  %v7855 = vadd.f32 %v7785, %v7854
  %v7856 = vpop.f32.mrf.mxu0
  %7857 = vdwg.mxu0
  %v7858 = vmul.f32 %v7522, 0.95
  %v7859 = vadd.f32 %v7858, %v7855
  %v7860 = vsub.f32 %v7859, %v7525
  %vm7861 = vcmp.gt.f32.partialorder %v7860, 1.0
  %v7862 = vsel %vm7861, 1, 0
  %v7863 = vcvt.s32.f32 %v7862
  %s7864 = scalar_lea.vmem %s5, 128
  %7865 = vst [vmem:[%s7864] sm:$0xff] %v7863
  %s7866 = scalar_lea.vmem %s6, 128
  %7867 = vst [vmem:[%s7866] sm:$0xff] %v7860
  %v7868 = vmul.f32 %v7546, 0.95
  %v7869 = vmul.f32 %v7547, 0.95
  %v7870 = vmul.f32 %v7548, 0.95
  %v7871 = vmul.f32 %v7549, 0.95
  %v7872 = vmul.f32 %v7550, 0.95
  %v7873 = vmul.f32 %v7551, 0.95
  %v7874 = vmul.f32 %v7552, 0.95
  %v7875 = vmul.f32 %v7553, 0.95
  %v7876 = vadd.f32 %v7868, %v1139
  %v7877 = vadd.f32 %v7869, %v1141
  %v7878 = vadd.f32 %v7870, %v1423
  %v7879 = vadd.f32 %v7871, %v1425
  %v7880 = vadd.f32 %v7872, %v1707
  %v7881 = vadd.f32 %v7873, %v1709
  %v7882 = vadd.f32 %v7874, %v1991
  %v7883 = vadd.f32 %v7875, %v1993
  %v7884 = vsub.f32 %v7876, %v7570
  %v7885 = vsub.f32 %v7877, %v7571
  %v7886 = vsub.f32 %v7878, %v7572
  %v7887 = vsub.f32 %v7879, %v7573
  %v7888 = vsub.f32 %v7880, %v7574
  %v7889 = vsub.f32 %v7881, %v7575
  %v7890 = vsub.f32 %v7882, %v7576
  %v7891 = vsub.f32 %v7883, %v7577
  %vm7892 = vcmp.gt.f32.partialorder %v7884, 1.0
  %vm7893 = vcmp.gt.f32.partialorder %v7885, 1.0
  %vm7894 = vcmp.gt.f32.partialorder %v7886, 1.0
  %vm7895 = vcmp.gt.f32.partialorder %v7887, 1.0
  %vm7896 = vcmp.gt.f32.partialorder %v7888, 1.0
  %vm7897 = vcmp.gt.f32.partialorder %v7889, 1.0
  %vm7898 = vcmp.gt.f32.partialorder %v7890, 1.0
  %vm7899 = vcmp.gt.f32.partialorder %v7891, 1.0
  %v7900 = vsel %vm7892, 1, 0
  %v7901 = vsel %vm7893, 1, 0
  %v7902 = vsel %vm7894, 1, 0
  %v7903 = vsel %vm7895, 1, 0
  %v7904 = vsel %vm7896, 1, 0
  %v7905 = vsel %vm7897, 1, 0
  %v7906 = vsel %vm7898, 1, 0
  %v7907 = vsel %vm7899, 1, 0
  %v7908 = vcvt.s32.f32 %v7900
  %v7909 = vcvt.s32.f32 %v7901
  %v7910 = vcvt.s32.f32 %v7902
  %v7911 = vcvt.s32.f32 %v7903
  %v7912 = vcvt.s32.f32 %v7904
  %v7913 = vcvt.s32.f32 %v7905
  %v7914 = vcvt.s32.f32 %v7906
  %v7915 = vcvt.s32.f32 %v7907
  %7916 = vmatprep.subr.mxu0 0.0
  %7917 = vmatpush1.msra.mxu0 %v2010
  %7918 = vmatprep.subr.mxu0 0.0
  %7919 = vmatpush1.msra.mxu0 %v2009
  %7920 = vmatprep.subr.mxu0 0.0
  %7921 = vmatpush1.msra.mxu0 %v2008
  %7922 = vmatprep.subr.mxu0 0.0
  %7923 = vmatpush1.msra.mxu0 %v2007
  %7924 = vmatprep.subr.mxu0 0.0
  %7925 = vmatpush1.msra.mxu0 %v2006
  %7926 = vmatprep.subr.mxu0 0.0
  %7927 = vmatpush1.msra.mxu0 %v2005
  %7928 = vmatprep.subr.mxu0 0.0
  %7929 = vmatpush1.msra.mxu0 %v2004
  %7930 = vmatprep.subr.mxu0 0.0
  %7931 = vmatpush1.msra.mxu0 %v2003
  %7932 = vmatprep.subr.mxu0 0.0
  %7933 = vmatpush1.msra.mxu0 %v2002
  %7934 = vmatprep.subr.mxu0 0.0
  %7935 = vmatpush1.msra.mxu0 %v2001
  %7936 = vmatprep.subr.mxu0 0.0
  %7937 = vmatpush1.msra.mxu0 %v2000
  %7938 = vmatprep.subr.mxu0 0.0
  %7939 = vmatpush1.msra.mxu0 %v1999
  %7940 = vmatprep.subr.mxu0 0.0
  %7941 = vmatpush1.msra.mxu0 %v1998
  %7942 = vmatprep.subr.mxu0 0.0
  %7943 = vmatpush1.msra.mxu0 %v1997
  %7944 = vmatprep.subr.mxu0 0.0
  %7945 = vmatpush1.msra.mxu0 %v1996
  %7946 = vmatprep.subr.mxu0 0.0
  %7947 = vmatpush1.msra.mxu0 %v1995
  %7948 = vmatprep.subr.mxu0 0.0
  %7949 = vmatpush2.msra.mxu0 %v2026
  %7950 = vmatprep.subr.mxu0 0.0
  %7951 = vmatpush2.msra.mxu0 %v2025
  %7952 = vmatprep.subr.mxu0 0.0
  %7953 = vmatpush2.msra.mxu0 %v2024
  %7954 = vmatprep.subr.mxu0 0.0
  %7955 = vmatpush2.msra.mxu0 %v2023
  %7956 = vmatprep.subr.mxu0 0.0
  %7957 = vmatpush2.msra.mxu0 %v2022
  %7958 = vmatprep.subr.mxu0 0.0
  %7959 = vmatpush2.msra.mxu0 %v2021
  %7960 = vmatprep.subr.mxu0 0.0
  %7961 = vmatpush2.msra.mxu0 %v2020
  %7962 = vmatprep.subr.mxu0 0.0
  %7963 = vmatpush2.msra.mxu0 %v2019
  %7964 = vmatprep.subr.mxu0 0.0
  %7965 = vmatpush2.msra.mxu0 %v2018
  %7966 = vmatprep.subr.mxu0 0.0
  %7967 = vmatpush2.msra.mxu0 %v2017
  %7968 = vmatprep.subr.mxu0 0.0
  %7969 = vmatpush2.msra.mxu0 %v2016
  %7970 = vmatprep.subr.mxu0 0.0
  %7971 = vmatpush2.msra.mxu0 %v2015
  %7972 = vmatprep.subr.mxu0 0.0
  %7973 = vmatpush2.msra.mxu0 %v2014
  %7974 = vmatprep.subr.mxu0 0.0
  %7975 = vmatpush2.msra.mxu0 %v2013
  %7976 = vmatprep.subr.mxu0 0.0
  %7977 = vmatpush2.msra.mxu0 %v2012
  %7978 = vmatprep.subr.mxu0 0.0
  %7979 = vmatpush2.msra.mxu0 %v2011
  %7980 = vmatprep.mubr.f32.mxu0 %v7909
  %7981 = vmatmul.mubr.f32.gmra.mxu0 %v7908
  %v7982 = vpop.f32.mrf.mxu0
  %v7983 = vadd.f32 %v2171, %v7982
  %v7984 = vpop.f32.mrf.mxu0
  %7985 = vdwg.mxu0
  %7986 = vmatprep.subr.mxu0 0.0
  %7987 = vmatpush1.msra.mxu0 %v2042
  %7988 = vmatprep.subr.mxu0 0.0
  %7989 = vmatpush1.msra.mxu0 %v2041
  %7990 = vmatprep.subr.mxu0 0.0
  %7991 = vmatpush1.msra.mxu0 %v2040
  %7992 = vmatprep.subr.mxu0 0.0
  %7993 = vmatpush1.msra.mxu0 %v2039
  %7994 = vmatprep.subr.mxu0 0.0
  %7995 = vmatpush1.msra.mxu0 %v2038
  %7996 = vmatprep.subr.mxu0 0.0
  %7997 = vmatpush1.msra.mxu0 %v2037
  %7998 = vmatprep.subr.mxu0 0.0
  %7999 = vmatpush1.msra.mxu0 %v2036
  %8000 = vmatprep.subr.mxu0 0.0
  %8001 = vmatpush1.msra.mxu0 %v2035
  %8002 = vmatprep.subr.mxu0 0.0
  %8003 = vmatpush1.msra.mxu0 %v2034
  %8004 = vmatprep.subr.mxu0 0.0
  %8005 = vmatpush1.msra.mxu0 %v2033
  %8006 = vmatprep.subr.mxu0 0.0
  %8007 = vmatpush1.msra.mxu0 %v2032
  %8008 = vmatprep.subr.mxu0 0.0
  %8009 = vmatpush1.msra.mxu0 %v2031
  %8010 = vmatprep.subr.mxu0 0.0
  %8011 = vmatpush1.msra.mxu0 %v2030
  %8012 = vmatprep.subr.mxu0 0.0
  %8013 = vmatpush1.msra.mxu0 %v2029
  %8014 = vmatprep.subr.mxu0 0.0
  %8015 = vmatpush1.msra.mxu0 %v2028
  %8016 = vmatprep.subr.mxu0 0.0
  %8017 = vmatpush1.msra.mxu0 %v2027
  %8018 = vmatprep.subr.mxu0 0.0
  %8019 = vmatpush2.msra.mxu0 %v2058
  %8020 = vmatprep.subr.mxu0 0.0
  %8021 = vmatpush2.msra.mxu0 %v2057
  %8022 = vmatprep.subr.mxu0 0.0
  %8023 = vmatpush2.msra.mxu0 %v2056
  %8024 = vmatprep.subr.mxu0 0.0
  %8025 = vmatpush2.msra.mxu0 %v2055
  %8026 = vmatprep.subr.mxu0 0.0
  %8027 = vmatpush2.msra.mxu0 %v2054
  %8028 = vmatprep.subr.mxu0 0.0
  %8029 = vmatpush2.msra.mxu0 %v2053
  %8030 = vmatprep.subr.mxu0 0.0
  %8031 = vmatpush2.msra.mxu0 %v2052
  %8032 = vmatprep.subr.mxu0 0.0
  %8033 = vmatpush2.msra.mxu0 %v2051
  %8034 = vmatprep.subr.mxu0 0.0
  %8035 = vmatpush2.msra.mxu0 %v2050
  %8036 = vmatprep.subr.mxu0 0.0
  %8037 = vmatpush2.msra.mxu0 %v2049
  %8038 = vmatprep.subr.mxu0 0.0
  %8039 = vmatpush2.msra.mxu0 %v2048
  %8040 = vmatprep.subr.mxu0 0.0
  %8041 = vmatpush2.msra.mxu0 %v2047
  %8042 = vmatprep.subr.mxu0 0.0
  %8043 = vmatpush2.msra.mxu0 %v2046
  %8044 = vmatprep.subr.mxu0 0.0
  %8045 = vmatpush2.msra.mxu0 %v2045
  %8046 = vmatprep.subr.mxu0 0.0
  %8047 = vmatpush2.msra.mxu0 %v2044
  %8048 = vmatprep.subr.mxu0 0.0
  %8049 = vmatpush2.msra.mxu0 %v2043
  %8050 = vmatprep.mubr.f32.mxu0 %v7911
  %8051 = vmatmul.mubr.f32.gmra.mxu0 %v7910
  %v8052 = vpop.f32.mrf.mxu0
  %v8053 = vadd.f32 %v7983, %v8052
  %v8054 = vpop.f32.mrf.mxu0
  %8055 = vdwg.mxu0
  %8056 = vmatprep.subr.mxu0 0.0
  %8057 = vmatpush1.msra.mxu0 %v2074
  %8058 = vmatprep.subr.mxu0 0.0
  %8059 = vmatpush1.msra.mxu0 %v2073
  %8060 = vmatprep.subr.mxu0 0.0
  %8061 = vmatpush1.msra.mxu0 %v2072
  %8062 = vmatprep.subr.mxu0 0.0
  %8063 = vmatpush1.msra.mxu0 %v2071
  %8064 = vmatprep.subr.mxu0 0.0
  %8065 = vmatpush1.msra.mxu0 %v2070
  %8066 = vmatprep.subr.mxu0 0.0
  %8067 = vmatpush1.msra.mxu0 %v2069
  %8068 = vmatprep.subr.mxu0 0.0
  %8069 = vmatpush1.msra.mxu0 %v2068
  %8070 = vmatprep.subr.mxu0 0.0
  %8071 = vmatpush1.msra.mxu0 %v2067
  %8072 = vmatprep.subr.mxu0 0.0
  %8073 = vmatpush1.msra.mxu0 %v2066
  %8074 = vmatprep.subr.mxu0 0.0
  %8075 = vmatpush1.msra.mxu0 %v2065
  %8076 = vmatprep.subr.mxu0 0.0
  %8077 = vmatpush1.msra.mxu0 %v2064
  %8078 = vmatprep.subr.mxu0 0.0
  %8079 = vmatpush1.msra.mxu0 %v2063
  %8080 = vmatprep.subr.mxu0 0.0
  %8081 = vmatpush1.msra.mxu0 %v2062
  %8082 = vmatprep.subr.mxu0 0.0
  %8083 = vmatpush1.msra.mxu0 %v2061
  %8084 = vmatprep.subr.mxu0 0.0
  %8085 = vmatpush1.msra.mxu0 %v2060
  %8086 = vmatprep.subr.mxu0 0.0
  %8087 = vmatpush1.msra.mxu0 %v2059
  %8088 = vmatprep.subr.mxu0 0.0
  %8089 = vmatpush2.msra.mxu0 %v2090
  %8090 = vmatprep.subr.mxu0 0.0
  %8091 = vmatpush2.msra.mxu0 %v2089
  %8092 = vmatprep.subr.mxu0 0.0
  %8093 = vmatpush2.msra.mxu0 %v2088
  %8094 = vmatprep.subr.mxu0 0.0
  %8095 = vmatpush2.msra.mxu0 %v2087
  %8096 = vmatprep.subr.mxu0 0.0
  %8097 = vmatpush2.msra.mxu0 %v2086
  %8098 = vmatprep.subr.mxu0 0.0
  %8099 = vmatpush2.msra.mxu0 %v2085
  %8100 = vmatprep.subr.mxu0 0.0
  %8101 = vmatpush2.msra.mxu0 %v2084
  %8102 = vmatprep.subr.mxu0 0.0
  %8103 = vmatpush2.msra.mxu0 %v2083
  %8104 = vmatprep.subr.mxu0 0.0
  %8105 = vmatpush2.msra.mxu0 %v2082
  %8106 = vmatprep.subr.mxu0 0.0
  %8107 = vmatpush2.msra.mxu0 %v2081
  %8108 = vmatprep.subr.mxu0 0.0
  %8109 = vmatpush2.msra.mxu0 %v2080
  %8110 = vmatprep.subr.mxu0 0.0
  %8111 = vmatpush2.msra.mxu0 %v2079
  %8112 = vmatprep.subr.mxu0 0.0
  %8113 = vmatpush2.msra.mxu0 %v2078
  %8114 = vmatprep.subr.mxu0 0.0
  %8115 = vmatpush2.msra.mxu0 %v2077
  %8116 = vmatprep.subr.mxu0 0.0
  %8117 = vmatpush2.msra.mxu0 %v2076
  %8118 = vmatprep.subr.mxu0 0.0
  %8119 = vmatpush2.msra.mxu0 %v2075
  %8120 = vmatprep.mubr.f32.mxu0 %v7913
  %8121 = vmatmul.mubr.f32.gmra.mxu0 %v7912
  %v8122 = vpop.f32.mrf.mxu0
  %v8123 = vadd.f32 %v8053, %v8122
  %v8124 = vpop.f32.mrf.mxu0
  %8125 = vdwg.mxu0
  %8126 = vmatprep.subr.mxu0 0.0
  %8127 = vmatpush1.msra.mxu0 %v2106
  %8128 = vmatprep.subr.mxu0 0.0
  %8129 = vmatpush1.msra.mxu0 %v2105
  %8130 = vmatprep.subr.mxu0 0.0
  %8131 = vmatpush1.msra.mxu0 %v2104
  %8132 = vmatprep.subr.mxu0 0.0
  %8133 = vmatpush1.msra.mxu0 %v2103
  %8134 = vmatprep.subr.mxu0 0.0
  %8135 = vmatpush1.msra.mxu0 %v2102
  %8136 = vmatprep.subr.mxu0 0.0
  %8137 = vmatpush1.msra.mxu0 %v2101
  %8138 = vmatprep.subr.mxu0 0.0
  %8139 = vmatpush1.msra.mxu0 %v2100
  %8140 = vmatprep.subr.mxu0 0.0
  %8141 = vmatpush1.msra.mxu0 %v2099
  %8142 = vmatprep.subr.mxu0 0.0
  %8143 = vmatpush1.msra.mxu0 %v2098
  %8144 = vmatprep.subr.mxu0 0.0
  %8145 = vmatpush1.msra.mxu0 %v2097
  %8146 = vmatprep.subr.mxu0 0.0
  %8147 = vmatpush1.msra.mxu0 %v2096
  %8148 = vmatprep.subr.mxu0 0.0
  %8149 = vmatpush1.msra.mxu0 %v2095
  %8150 = vmatprep.subr.mxu0 0.0
  %8151 = vmatpush1.msra.mxu0 %v2094
  %8152 = vmatprep.subr.mxu0 0.0
  %8153 = vmatpush1.msra.mxu0 %v2093
  %8154 = vmatprep.subr.mxu0 0.0
  %8155 = vmatpush1.msra.mxu0 %v2092
  %8156 = vmatprep.subr.mxu0 0.0
  %8157 = vmatpush1.msra.mxu0 %v2091
  %8158 = vmatprep.subr.mxu0 0.0
  %8159 = vmatpush2.msra.mxu0 %v2122
  %8160 = vmatprep.subr.mxu0 0.0
  %8161 = vmatpush2.msra.mxu0 %v2121
  %8162 = vmatprep.subr.mxu0 0.0
  %8163 = vmatpush2.msra.mxu0 %v2120
  %8164 = vmatprep.subr.mxu0 0.0
  %8165 = vmatpush2.msra.mxu0 %v2119
  %8166 = vmatprep.subr.mxu0 0.0
  %8167 = vmatpush2.msra.mxu0 %v2118
  %8168 = vmatprep.subr.mxu0 0.0
  %8169 = vmatpush2.msra.mxu0 %v2117
  %8170 = vmatprep.subr.mxu0 0.0
  %8171 = vmatpush2.msra.mxu0 %v2116
  %8172 = vmatprep.subr.mxu0 0.0
  %8173 = vmatpush2.msra.mxu0 %v2115
  %8174 = vmatprep.subr.mxu0 0.0
  %8175 = vmatpush2.msra.mxu0 %v2114
  %8176 = vmatprep.subr.mxu0 0.0
  %8177 = vmatpush2.msra.mxu0 %v2113
  %8178 = vmatprep.subr.mxu0 0.0
  %8179 = vmatpush2.msra.mxu0 %v2112
  %8180 = vmatprep.subr.mxu0 0.0
  %8181 = vmatpush2.msra.mxu0 %v2111
  %8182 = vmatprep.subr.mxu0 0.0
  %8183 = vmatpush2.msra.mxu0 %v2110
  %8184 = vmatprep.subr.mxu0 0.0
  %8185 = vmatpush2.msra.mxu0 %v2109
  %8186 = vmatprep.subr.mxu0 0.0
  %8187 = vmatpush2.msra.mxu0 %v2108
  %8188 = vmatprep.subr.mxu0 0.0
  %8189 = vmatpush2.msra.mxu0 %v2107
  %8190 = vmatprep.mubr.f32.mxu0 %v7915
  %8191 = vmatmul.mubr.f32.gmra.mxu0 %v7914
  %v8192 = vpop.f32.mrf.mxu0
  %v8193 = vadd.f32 %v8123, %v8192
  %v8194 = vpop.f32.mrf.mxu0
  %8195 = vdwg.mxu0
  %v8196 = vmul.f32 %v7860, 0.95
  %v8197 = vadd.f32 %v8196, %v8193
  %v8198 = vsub.f32 %v8197, %v7863
  %vm8199 = vcmp.gt.f32.partialorder %v8198, 1.0
  %v8200 = vsel %vm8199, 1, 0
  %v8201 = vcvt.s32.f32 %v8200
  %s8202 = scalar_lea.vmem %s5, 136
  %8203 = vst [vmem:[%s8202] sm:$0xff] %v8201
  %s8204 = scalar_lea.vmem %s6, 136
  %8205 = vst [vmem:[%s8204] sm:$0xff] %v8198
  %v8206 = vmul.f32 %v7884, 0.95
  %v8207 = vmul.f32 %v7885, 0.95
  %v8208 = vmul.f32 %v7886, 0.95
  %v8209 = vmul.f32 %v7887, 0.95
  %v8210 = vmul.f32 %v7888, 0.95
  %v8211 = vmul.f32 %v7889, 0.95
  %v8212 = vmul.f32 %v7890, 0.95
  %v8213 = vmul.f32 %v7891, 0.95
  %v8214 = vadd.f32 %v8206, %v1139
  %v8215 = vadd.f32 %v8207, %v1141
  %v8216 = vadd.f32 %v8208, %v1423
  %v8217 = vadd.f32 %v8209, %v1425
  %v8218 = vadd.f32 %v8210, %v1707
  %v8219 = vadd.f32 %v8211, %v1709
  %v8220 = vadd.f32 %v8212, %v1991
  %v8221 = vadd.f32 %v8213, %v1993
  %v8222 = vsub.f32 %v8214, %v7908
  %v8223 = vsub.f32 %v8215, %v7909
  %v8224 = vsub.f32 %v8216, %v7910
  %v8225 = vsub.f32 %v8217, %v7911
  %v8226 = vsub.f32 %v8218, %v7912
  %v8227 = vsub.f32 %v8219, %v7913
  %v8228 = vsub.f32 %v8220, %v7914
  %v8229 = vsub.f32 %v8221, %v7915
  %vm8230 = vcmp.gt.f32.partialorder %v8222, 1.0
  %vm8231 = vcmp.gt.f32.partialorder %v8223, 1.0
  %vm8232 = vcmp.gt.f32.partialorder %v8224, 1.0
  %vm8233 = vcmp.gt.f32.partialorder %v8225, 1.0
  %vm8234 = vcmp.gt.f32.partialorder %v8226, 1.0
  %vm8235 = vcmp.gt.f32.partialorder %v8227, 1.0
  %vm8236 = vcmp.gt.f32.partialorder %v8228, 1.0
  %vm8237 = vcmp.gt.f32.partialorder %v8229, 1.0
  %v8238 = vsel %vm8230, 1, 0
  %v8239 = vsel %vm8231, 1, 0
  %v8240 = vsel %vm8232, 1, 0
  %v8241 = vsel %vm8233, 1, 0
  %v8242 = vsel %vm8234, 1, 0
  %v8243 = vsel %vm8235, 1, 0
  %v8244 = vsel %vm8236, 1, 0
  %v8245 = vsel %vm8237, 1, 0
  %v8246 = vcvt.s32.f32 %v8238
  %v8247 = vcvt.s32.f32 %v8239
  %v8248 = vcvt.s32.f32 %v8240
  %v8249 = vcvt.s32.f32 %v8241
  %v8250 = vcvt.s32.f32 %v8242
  %v8251 = vcvt.s32.f32 %v8243
  %v8252 = vcvt.s32.f32 %v8244
  %v8253 = vcvt.s32.f32 %v8245
  %8254 = vmatprep.subr.mxu0 0.0
  %8255 = vmatpush1.msra.mxu0 %v2010
  %8256 = vmatprep.subr.mxu0 0.0
  %8257 = vmatpush1.msra.mxu0 %v2009
  %8258 = vmatprep.subr.mxu0 0.0
  %8259 = vmatpush1.msra.mxu0 %v2008
  %8260 = vmatprep.subr.mxu0 0.0
  %8261 = vmatpush1.msra.mxu0 %v2007
  %8262 = vmatprep.subr.mxu0 0.0
  %8263 = vmatpush1.msra.mxu0 %v2006
  %8264 = vmatprep.subr.mxu0 0.0
  %8265 = vmatpush1.msra.mxu0 %v2005
  %8266 = vmatprep.subr.mxu0 0.0
  %8267 = vmatpush1.msra.mxu0 %v2004
  %8268 = vmatprep.subr.mxu0 0.0
  %8269 = vmatpush1.msra.mxu0 %v2003
  %8270 = vmatprep.subr.mxu0 0.0
  %8271 = vmatpush1.msra.mxu0 %v2002
  %8272 = vmatprep.subr.mxu0 0.0
  %8273 = vmatpush1.msra.mxu0 %v2001
  %8274 = vmatprep.subr.mxu0 0.0
  %8275 = vmatpush1.msra.mxu0 %v2000
  %8276 = vmatprep.subr.mxu0 0.0
  %8277 = vmatpush1.msra.mxu0 %v1999
  %8278 = vmatprep.subr.mxu0 0.0
  %8279 = vmatpush1.msra.mxu0 %v1998
  %8280 = vmatprep.subr.mxu0 0.0
  %8281 = vmatpush1.msra.mxu0 %v1997
  %8282 = vmatprep.subr.mxu0 0.0
  %8283 = vmatpush1.msra.mxu0 %v1996
  %8284 = vmatprep.subr.mxu0 0.0
  %8285 = vmatpush1.msra.mxu0 %v1995
  %8286 = vmatprep.subr.mxu0 0.0
  %8287 = vmatpush2.msra.mxu0 %v2026
  %8288 = vmatprep.subr.mxu0 0.0
  %8289 = vmatpush2.msra.mxu0 %v2025
  %8290 = vmatprep.subr.mxu0 0.0
  %8291 = vmatpush2.msra.mxu0 %v2024
  %8292 = vmatprep.subr.mxu0 0.0
  %8293 = vmatpush2.msra.mxu0 %v2023
  %8294 = vmatprep.subr.mxu0 0.0
  %8295 = vmatpush2.msra.mxu0 %v2022
  %8296 = vmatprep.subr.mxu0 0.0
  %8297 = vmatpush2.msra.mxu0 %v2021
  %8298 = vmatprep.subr.mxu0 0.0
  %8299 = vmatpush2.msra.mxu0 %v2020
  %8300 = vmatprep.subr.mxu0 0.0
  %8301 = vmatpush2.msra.mxu0 %v2019
  %8302 = vmatprep.subr.mxu0 0.0
  %8303 = vmatpush2.msra.mxu0 %v2018
  %8304 = vmatprep.subr.mxu0 0.0
  %8305 = vmatpush2.msra.mxu0 %v2017
  %8306 = vmatprep.subr.mxu0 0.0
  %8307 = vmatpush2.msra.mxu0 %v2016
  %8308 = vmatprep.subr.mxu0 0.0
  %8309 = vmatpush2.msra.mxu0 %v2015
  %8310 = vmatprep.subr.mxu0 0.0
  %8311 = vmatpush2.msra.mxu0 %v2014
  %8312 = vmatprep.subr.mxu0 0.0
  %8313 = vmatpush2.msra.mxu0 %v2013
  %8314 = vmatprep.subr.mxu0 0.0
  %8315 = vmatpush2.msra.mxu0 %v2012
  %8316 = vmatprep.subr.mxu0 0.0
  %8317 = vmatpush2.msra.mxu0 %v2011
  %8318 = vmatprep.mubr.f32.mxu0 %v8247
  %8319 = vmatmul.mubr.f32.gmra.mxu0 %v8246
  %v8320 = vpop.f32.mrf.mxu0
  %v8321 = vadd.f32 %v2171, %v8320
  %v8322 = vpop.f32.mrf.mxu0
  %8323 = vdwg.mxu0
  %8324 = vmatprep.subr.mxu0 0.0
  %8325 = vmatpush1.msra.mxu0 %v2042
  %8326 = vmatprep.subr.mxu0 0.0
  %8327 = vmatpush1.msra.mxu0 %v2041
  %8328 = vmatprep.subr.mxu0 0.0
  %8329 = vmatpush1.msra.mxu0 %v2040
  %8330 = vmatprep.subr.mxu0 0.0
  %8331 = vmatpush1.msra.mxu0 %v2039
  %8332 = vmatprep.subr.mxu0 0.0
  %8333 = vmatpush1.msra.mxu0 %v2038
  %8334 = vmatprep.subr.mxu0 0.0
  %8335 = vmatpush1.msra.mxu0 %v2037
  %8336 = vmatprep.subr.mxu0 0.0
  %8337 = vmatpush1.msra.mxu0 %v2036
  %8338 = vmatprep.subr.mxu0 0.0
  %8339 = vmatpush1.msra.mxu0 %v2035
  %8340 = vmatprep.subr.mxu0 0.0
  %8341 = vmatpush1.msra.mxu0 %v2034
  %8342 = vmatprep.subr.mxu0 0.0
  %8343 = vmatpush1.msra.mxu0 %v2033
  %8344 = vmatprep.subr.mxu0 0.0
  %8345 = vmatpush1.msra.mxu0 %v2032
  %8346 = vmatprep.subr.mxu0 0.0
  %8347 = vmatpush1.msra.mxu0 %v2031
  %8348 = vmatprep.subr.mxu0 0.0
  %8349 = vmatpush1.msra.mxu0 %v2030
  %8350 = vmatprep.subr.mxu0 0.0
  %8351 = vmatpush1.msra.mxu0 %v2029
  %8352 = vmatprep.subr.mxu0 0.0
  %8353 = vmatpush1.msra.mxu0 %v2028
  %8354 = vmatprep.subr.mxu0 0.0
  %8355 = vmatpush1.msra.mxu0 %v2027
  %8356 = vmatprep.subr.mxu0 0.0
  %8357 = vmatpush2.msra.mxu0 %v2058
  %8358 = vmatprep.subr.mxu0 0.0
  %8359 = vmatpush2.msra.mxu0 %v2057
  %8360 = vmatprep.subr.mxu0 0.0
  %8361 = vmatpush2.msra.mxu0 %v2056
  %8362 = vmatprep.subr.mxu0 0.0
  %8363 = vmatpush2.msra.mxu0 %v2055
  %8364 = vmatprep.subr.mxu0 0.0
  %8365 = vmatpush2.msra.mxu0 %v2054
  %8366 = vmatprep.subr.mxu0 0.0
  %8367 = vmatpush2.msra.mxu0 %v2053
  %8368 = vmatprep.subr.mxu0 0.0
  %8369 = vmatpush2.msra.mxu0 %v2052
  %8370 = vmatprep.subr.mxu0 0.0
  %8371 = vmatpush2.msra.mxu0 %v2051
  %8372 = vmatprep.subr.mxu0 0.0
  %8373 = vmatpush2.msra.mxu0 %v2050
  %8374 = vmatprep.subr.mxu0 0.0
  %8375 = vmatpush2.msra.mxu0 %v2049
  %8376 = vmatprep.subr.mxu0 0.0
  %8377 = vmatpush2.msra.mxu0 %v2048
  %8378 = vmatprep.subr.mxu0 0.0
  %8379 = vmatpush2.msra.mxu0 %v2047
  %8380 = vmatprep.subr.mxu0 0.0
  %8381 = vmatpush2.msra.mxu0 %v2046
  %8382 = vmatprep.subr.mxu0 0.0
  %8383 = vmatpush2.msra.mxu0 %v2045
  %8384 = vmatprep.subr.mxu0 0.0
  %8385 = vmatpush2.msra.mxu0 %v2044
  %8386 = vmatprep.subr.mxu0 0.0
  %8387 = vmatpush2.msra.mxu0 %v2043
  %8388 = vmatprep.mubr.f32.mxu0 %v8249
  %8389 = vmatmul.mubr.f32.gmra.mxu0 %v8248
  %v8390 = vpop.f32.mrf.mxu0
  %v8391 = vadd.f32 %v8321, %v8390
  %v8392 = vpop.f32.mrf.mxu0
  %8393 = vdwg.mxu0
  %8394 = vmatprep.subr.mxu0 0.0
  %8395 = vmatpush1.msra.mxu0 %v2074
  %8396 = vmatprep.subr.mxu0 0.0
  %8397 = vmatpush1.msra.mxu0 %v2073
  %8398 = vmatprep.subr.mxu0 0.0
  %8399 = vmatpush1.msra.mxu0 %v2072
  %8400 = vmatprep.subr.mxu0 0.0
  %8401 = vmatpush1.msra.mxu0 %v2071
  %8402 = vmatprep.subr.mxu0 0.0
  %8403 = vmatpush1.msra.mxu0 %v2070
  %8404 = vmatprep.subr.mxu0 0.0
  %8405 = vmatpush1.msra.mxu0 %v2069
  %8406 = vmatprep.subr.mxu0 0.0
  %8407 = vmatpush1.msra.mxu0 %v2068
  %8408 = vmatprep.subr.mxu0 0.0
  %8409 = vmatpush1.msra.mxu0 %v2067
  %8410 = vmatprep.subr.mxu0 0.0
  %8411 = vmatpush1.msra.mxu0 %v2066
  %8412 = vmatprep.subr.mxu0 0.0
  %8413 = vmatpush1.msra.mxu0 %v2065
  %8414 = vmatprep.subr.mxu0 0.0
  %8415 = vmatpush1.msra.mxu0 %v2064
  %8416 = vmatprep.subr.mxu0 0.0
  %8417 = vmatpush1.msra.mxu0 %v2063
  %8418 = vmatprep.subr.mxu0 0.0
  %8419 = vmatpush1.msra.mxu0 %v2062
  %8420 = vmatprep.subr.mxu0 0.0
  %8421 = vmatpush1.msra.mxu0 %v2061
  %8422 = vmatprep.subr.mxu0 0.0
  %8423 = vmatpush1.msra.mxu0 %v2060
  %8424 = vmatprep.subr.mxu0 0.0
  %8425 = vmatpush1.msra.mxu0 %v2059
  %8426 = vmatprep.subr.mxu0 0.0
  %8427 = vmatpush2.msra.mxu0 %v2090
  %8428 = vmatprep.subr.mxu0 0.0
  %8429 = vmatpush2.msra.mxu0 %v2089
  %8430 = vmatprep.subr.mxu0 0.0
  %8431 = vmatpush2.msra.mxu0 %v2088
  %8432 = vmatprep.subr.mxu0 0.0
  %8433 = vmatpush2.msra.mxu0 %v2087
  %8434 = vmatprep.subr.mxu0 0.0
  %8435 = vmatpush2.msra.mxu0 %v2086
  %8436 = vmatprep.subr.mxu0 0.0
  %8437 = vmatpush2.msra.mxu0 %v2085
  %8438 = vmatprep.subr.mxu0 0.0
  %8439 = vmatpush2.msra.mxu0 %v2084
  %8440 = vmatprep.subr.mxu0 0.0
  %8441 = vmatpush2.msra.mxu0 %v2083
  %8442 = vmatprep.subr.mxu0 0.0
  %8443 = vmatpush2.msra.mxu0 %v2082
  %8444 = vmatprep.subr.mxu0 0.0
  %8445 = vmatpush2.msra.mxu0 %v2081
  %8446 = vmatprep.subr.mxu0 0.0
  %8447 = vmatpush2.msra.mxu0 %v2080
  %8448 = vmatprep.subr.mxu0 0.0
  %8449 = vmatpush2.msra.mxu0 %v2079
  %8450 = vmatprep.subr.mxu0 0.0
  %8451 = vmatpush2.msra.mxu0 %v2078
  %8452 = vmatprep.subr.mxu0 0.0
  %8453 = vmatpush2.msra.mxu0 %v2077
  %8454 = vmatprep.subr.mxu0 0.0
  %8455 = vmatpush2.msra.mxu0 %v2076
  %8456 = vmatprep.subr.mxu0 0.0
  %8457 = vmatpush2.msra.mxu0 %v2075
  %8458 = vmatprep.mubr.f32.mxu0 %v8251
  %8459 = vmatmul.mubr.f32.gmra.mxu0 %v8250
  %v8460 = vpop.f32.mrf.mxu0
  %v8461 = vadd.f32 %v8391, %v8460
  %v8462 = vpop.f32.mrf.mxu0
  %8463 = vdwg.mxu0
  %8464 = vmatprep.subr.mxu0 0.0
  %8465 = vmatpush1.msra.mxu0 %v2106
  %8466 = vmatprep.subr.mxu0 0.0
  %8467 = vmatpush1.msra.mxu0 %v2105
  %8468 = vmatprep.subr.mxu0 0.0
  %8469 = vmatpush1.msra.mxu0 %v2104
  %8470 = vmatprep.subr.mxu0 0.0
  %8471 = vmatpush1.msra.mxu0 %v2103
  %8472 = vmatprep.subr.mxu0 0.0
  %8473 = vmatpush1.msra.mxu0 %v2102
  %8474 = vmatprep.subr.mxu0 0.0
  %8475 = vmatpush1.msra.mxu0 %v2101
  %8476 = vmatprep.subr.mxu0 0.0
  %8477 = vmatpush1.msra.mxu0 %v2100
  %8478 = vmatprep.subr.mxu0 0.0
  %8479 = vmatpush1.msra.mxu0 %v2099
  %8480 = vmatprep.subr.mxu0 0.0
  %8481 = vmatpush1.msra.mxu0 %v2098
  %8482 = vmatprep.subr.mxu0 0.0
  %8483 = vmatpush1.msra.mxu0 %v2097
  %8484 = vmatprep.subr.mxu0 0.0
  %8485 = vmatpush1.msra.mxu0 %v2096
  %8486 = vmatprep.subr.mxu0 0.0
  %8487 = vmatpush1.msra.mxu0 %v2095
  %8488 = vmatprep.subr.mxu0 0.0
  %8489 = vmatpush1.msra.mxu0 %v2094
  %8490 = vmatprep.subr.mxu0 0.0
  %8491 = vmatpush1.msra.mxu0 %v2093
  %8492 = vmatprep.subr.mxu0 0.0
  %8493 = vmatpush1.msra.mxu0 %v2092
  %8494 = vmatprep.subr.mxu0 0.0
  %8495 = vmatpush1.msra.mxu0 %v2091
  %8496 = vmatprep.subr.mxu0 0.0
  %8497 = vmatpush2.msra.mxu0 %v2122
  %8498 = vmatprep.subr.mxu0 0.0
  %8499 = vmatpush2.msra.mxu0 %v2121
  %8500 = vmatprep.subr.mxu0 0.0
  %8501 = vmatpush2.msra.mxu0 %v2120
  %8502 = vmatprep.subr.mxu0 0.0
  %8503 = vmatpush2.msra.mxu0 %v2119
  %8504 = vmatprep.subr.mxu0 0.0
  %8505 = vmatpush2.msra.mxu0 %v2118
  %8506 = vmatprep.subr.mxu0 0.0
  %8507 = vmatpush2.msra.mxu0 %v2117
  %8508 = vmatprep.subr.mxu0 0.0
  %8509 = vmatpush2.msra.mxu0 %v2116
  %8510 = vmatprep.subr.mxu0 0.0
  %8511 = vmatpush2.msra.mxu0 %v2115
  %8512 = vmatprep.subr.mxu0 0.0
  %8513 = vmatpush2.msra.mxu0 %v2114
  %8514 = vmatprep.subr.mxu0 0.0
  %8515 = vmatpush2.msra.mxu0 %v2113
  %8516 = vmatprep.subr.mxu0 0.0
  %8517 = vmatpush2.msra.mxu0 %v2112
  %8518 = vmatprep.subr.mxu0 0.0
  %8519 = vmatpush2.msra.mxu0 %v2111
  %8520 = vmatprep.subr.mxu0 0.0
  %8521 = vmatpush2.msra.mxu0 %v2110
  %8522 = vmatprep.subr.mxu0 0.0
  %8523 = vmatpush2.msra.mxu0 %v2109
  %8524 = vmatprep.subr.mxu0 0.0
  %8525 = vmatpush2.msra.mxu0 %v2108
  %8526 = vmatprep.subr.mxu0 0.0
  %8527 = vmatpush2.msra.mxu0 %v2107
  %8528 = vmatprep.mubr.f32.mxu0 %v8253
  %8529 = vmatmul.mubr.f32.gmra.mxu0 %v8252
  %v8530 = vpop.f32.mrf.mxu0
  %v8531 = vadd.f32 %v8461, %v8530
  %v8532 = vpop.f32.mrf.mxu0
  %8533 = vdwg.mxu0
  %v8534 = vmul.f32 %v8198, 0.95
  %v8535 = vadd.f32 %v8534, %v8531
  %v8536 = vsub.f32 %v8535, %v8201
  %vm8537 = vcmp.gt.f32.partialorder %v8536, 1.0
  %v8538 = vsel %vm8537, 1, 0
  %v8539 = vcvt.s32.f32 %v8538
  %s8540 = scalar_lea.vmem %s5, 144
  %8541 = vst [vmem:[%s8540] sm:$0xff] %v8539
  %s8542 = scalar_lea.vmem %s6, 144
  %8543 = vst [vmem:[%s8542] sm:$0xff] %v8536
  %v8544 = vmul.f32 %v8222, 0.95
  %v8545 = vmul.f32 %v8223, 0.95
  %v8546 = vmul.f32 %v8224, 0.95
  %v8547 = vmul.f32 %v8225, 0.95
  %v8548 = vmul.f32 %v8226, 0.95
  %v8549 = vmul.f32 %v8227, 0.95
  %v8550 = vmul.f32 %v8228, 0.95
  %v8551 = vmul.f32 %v8229, 0.95
  %v8552 = vadd.f32 %v8544, %v1139
  %v8553 = vadd.f32 %v8545, %v1141
  %v8554 = vadd.f32 %v8546, %v1423
  %v8555 = vadd.f32 %v8547, %v1425
  %v8556 = vadd.f32 %v8548, %v1707
  %v8557 = vadd.f32 %v8549, %v1709
  %v8558 = vadd.f32 %v8550, %v1991
  %v8559 = vadd.f32 %v8551, %v1993
  %v8560 = vsub.f32 %v8552, %v8246
  %v8561 = vsub.f32 %v8553, %v8247
  %v8562 = vsub.f32 %v8554, %v8248
  %v8563 = vsub.f32 %v8555, %v8249
  %v8564 = vsub.f32 %v8556, %v8250
  %v8565 = vsub.f32 %v8557, %v8251
  %v8566 = vsub.f32 %v8558, %v8252
  %v8567 = vsub.f32 %v8559, %v8253
  %vm8568 = vcmp.gt.f32.partialorder %v8560, 1.0
  %vm8569 = vcmp.gt.f32.partialorder %v8561, 1.0
  %vm8570 = vcmp.gt.f32.partialorder %v8562, 1.0
  %vm8571 = vcmp.gt.f32.partialorder %v8563, 1.0
  %vm8572 = vcmp.gt.f32.partialorder %v8564, 1.0
  %vm8573 = vcmp.gt.f32.partialorder %v8565, 1.0
  %vm8574 = vcmp.gt.f32.partialorder %v8566, 1.0
  %vm8575 = vcmp.gt.f32.partialorder %v8567, 1.0
  %v8576 = vsel %vm8568, 1, 0
  %v8577 = vsel %vm8569, 1, 0
  %v8578 = vsel %vm8570, 1, 0
  %v8579 = vsel %vm8571, 1, 0
  %v8580 = vsel %vm8572, 1, 0
  %v8581 = vsel %vm8573, 1, 0
  %v8582 = vsel %vm8574, 1, 0
  %v8583 = vsel %vm8575, 1, 0
  %v8584 = vcvt.s32.f32 %v8576
  %v8585 = vcvt.s32.f32 %v8577
  %v8586 = vcvt.s32.f32 %v8578
  %v8587 = vcvt.s32.f32 %v8579
  %v8588 = vcvt.s32.f32 %v8580
  %v8589 = vcvt.s32.f32 %v8581
  %v8590 = vcvt.s32.f32 %v8582
  %v8591 = vcvt.s32.f32 %v8583
  %8592 = vmatprep.subr.mxu0 0.0
  %8593 = vmatpush1.msra.mxu0 %v2010
  %8594 = vmatprep.subr.mxu0 0.0
  %8595 = vmatpush1.msra.mxu0 %v2009
  %8596 = vmatprep.subr.mxu0 0.0
  %8597 = vmatpush1.msra.mxu0 %v2008
  %8598 = vmatprep.subr.mxu0 0.0
  %8599 = vmatpush1.msra.mxu0 %v2007
  %8600 = vmatprep.subr.mxu0 0.0
  %8601 = vmatpush1.msra.mxu0 %v2006
  %8602 = vmatprep.subr.mxu0 0.0
  %8603 = vmatpush1.msra.mxu0 %v2005
  %8604 = vmatprep.subr.mxu0 0.0
  %8605 = vmatpush1.msra.mxu0 %v2004
  %8606 = vmatprep.subr.mxu0 0.0
  %8607 = vmatpush1.msra.mxu0 %v2003
  %8608 = vmatprep.subr.mxu0 0.0
  %8609 = vmatpush1.msra.mxu0 %v2002
  %8610 = vmatprep.subr.mxu0 0.0
  %8611 = vmatpush1.msra.mxu0 %v2001
  %8612 = vmatprep.subr.mxu0 0.0
  %8613 = vmatpush1.msra.mxu0 %v2000
  %8614 = vmatprep.subr.mxu0 0.0
  %8615 = vmatpush1.msra.mxu0 %v1999
  %8616 = vmatprep.subr.mxu0 0.0
  %8617 = vmatpush1.msra.mxu0 %v1998
  %8618 = vmatprep.subr.mxu0 0.0
  %8619 = vmatpush1.msra.mxu0 %v1997
  %8620 = vmatprep.subr.mxu0 0.0
  %8621 = vmatpush1.msra.mxu0 %v1996
  %8622 = vmatprep.subr.mxu0 0.0
  %8623 = vmatpush1.msra.mxu0 %v1995
  %8624 = vmatprep.subr.mxu0 0.0
  %8625 = vmatpush2.msra.mxu0 %v2026
  %8626 = vmatprep.subr.mxu0 0.0
  %8627 = vmatpush2.msra.mxu0 %v2025
  %8628 = vmatprep.subr.mxu0 0.0
  %8629 = vmatpush2.msra.mxu0 %v2024
  %8630 = vmatprep.subr.mxu0 0.0
  %8631 = vmatpush2.msra.mxu0 %v2023
  %8632 = vmatprep.subr.mxu0 0.0
  %8633 = vmatpush2.msra.mxu0 %v2022
  %8634 = vmatprep.subr.mxu0 0.0
  %8635 = vmatpush2.msra.mxu0 %v2021
  %8636 = vmatprep.subr.mxu0 0.0
  %8637 = vmatpush2.msra.mxu0 %v2020
  %8638 = vmatprep.subr.mxu0 0.0
  %8639 = vmatpush2.msra.mxu0 %v2019
  %8640 = vmatprep.subr.mxu0 0.0
  %8641 = vmatpush2.msra.mxu0 %v2018
  %8642 = vmatprep.subr.mxu0 0.0
  %8643 = vmatpush2.msra.mxu0 %v2017
  %8644 = vmatprep.subr.mxu0 0.0
  %8645 = vmatpush2.msra.mxu0 %v2016
  %8646 = vmatprep.subr.mxu0 0.0
  %8647 = vmatpush2.msra.mxu0 %v2015
  %8648 = vmatprep.subr.mxu0 0.0
  %8649 = vmatpush2.msra.mxu0 %v2014
  %8650 = vmatprep.subr.mxu0 0.0
  %8651 = vmatpush2.msra.mxu0 %v2013
  %8652 = vmatprep.subr.mxu0 0.0
  %8653 = vmatpush2.msra.mxu0 %v2012
  %8654 = vmatprep.subr.mxu0 0.0
  %8655 = vmatpush2.msra.mxu0 %v2011
  %8656 = vmatprep.mubr.f32.mxu0 %v8585
  %8657 = vmatmul.mubr.f32.gmra.mxu0 %v8584
  %v8658 = vpop.f32.mrf.mxu0
  %v8659 = vadd.f32 %v2171, %v8658
  %v8660 = vpop.f32.mrf.mxu0
  %8661 = vdwg.mxu0
  %8662 = vmatprep.subr.mxu0 0.0
  %8663 = vmatpush1.msra.mxu0 %v2042
  %8664 = vmatprep.subr.mxu0 0.0
  %8665 = vmatpush1.msra.mxu0 %v2041
  %8666 = vmatprep.subr.mxu0 0.0
  %8667 = vmatpush1.msra.mxu0 %v2040
  %8668 = vmatprep.subr.mxu0 0.0
  %8669 = vmatpush1.msra.mxu0 %v2039
  %8670 = vmatprep.subr.mxu0 0.0
  %8671 = vmatpush1.msra.mxu0 %v2038
  %8672 = vmatprep.subr.mxu0 0.0
  %8673 = vmatpush1.msra.mxu0 %v2037
  %8674 = vmatprep.subr.mxu0 0.0
  %8675 = vmatpush1.msra.mxu0 %v2036
  %8676 = vmatprep.subr.mxu0 0.0
  %8677 = vmatpush1.msra.mxu0 %v2035
  %8678 = vmatprep.subr.mxu0 0.0
  %8679 = vmatpush1.msra.mxu0 %v2034
  %8680 = vmatprep.subr.mxu0 0.0
  %8681 = vmatpush1.msra.mxu0 %v2033
  %8682 = vmatprep.subr.mxu0 0.0
  %8683 = vmatpush1.msra.mxu0 %v2032
  %8684 = vmatprep.subr.mxu0 0.0
  %8685 = vmatpush1.msra.mxu0 %v2031
  %8686 = vmatprep.subr.mxu0 0.0
  %8687 = vmatpush1.msra.mxu0 %v2030
  %8688 = vmatprep.subr.mxu0 0.0
  %8689 = vmatpush1.msra.mxu0 %v2029
  %8690 = vmatprep.subr.mxu0 0.0
  %8691 = vmatpush1.msra.mxu0 %v2028
  %8692 = vmatprep.subr.mxu0 0.0
  %8693 = vmatpush1.msra.mxu0 %v2027
  %8694 = vmatprep.subr.mxu0 0.0
  %8695 = vmatpush2.msra.mxu0 %v2058
  %8696 = vmatprep.subr.mxu0 0.0
  %8697 = vmatpush2.msra.mxu0 %v2057
  %8698 = vmatprep.subr.mxu0 0.0
  %8699 = vmatpush2.msra.mxu0 %v2056
  %8700 = vmatprep.subr.mxu0 0.0
  %8701 = vmatpush2.msra.mxu0 %v2055
  %8702 = vmatprep.subr.mxu0 0.0
  %8703 = vmatpush2.msra.mxu0 %v2054
  %8704 = vmatprep.subr.mxu0 0.0
  %8705 = vmatpush2.msra.mxu0 %v2053
  %8706 = vmatprep.subr.mxu0 0.0
  %8707 = vmatpush2.msra.mxu0 %v2052
  %8708 = vmatprep.subr.mxu0 0.0
  %8709 = vmatpush2.msra.mxu0 %v2051
  %8710 = vmatprep.subr.mxu0 0.0
  %8711 = vmatpush2.msra.mxu0 %v2050
  %8712 = vmatprep.subr.mxu0 0.0
  %8713 = vmatpush2.msra.mxu0 %v2049
  %8714 = vmatprep.subr.mxu0 0.0
  %8715 = vmatpush2.msra.mxu0 %v2048
  %8716 = vmatprep.subr.mxu0 0.0
  %8717 = vmatpush2.msra.mxu0 %v2047
  %8718 = vmatprep.subr.mxu0 0.0
  %8719 = vmatpush2.msra.mxu0 %v2046
  %8720 = vmatprep.subr.mxu0 0.0
  %8721 = vmatpush2.msra.mxu0 %v2045
  %8722 = vmatprep.subr.mxu0 0.0
  %8723 = vmatpush2.msra.mxu0 %v2044
  %8724 = vmatprep.subr.mxu0 0.0
  %8725 = vmatpush2.msra.mxu0 %v2043
  %8726 = vmatprep.mubr.f32.mxu0 %v8587
  %8727 = vmatmul.mubr.f32.gmra.mxu0 %v8586
  %v8728 = vpop.f32.mrf.mxu0
  %v8729 = vadd.f32 %v8659, %v8728
  %v8730 = vpop.f32.mrf.mxu0
  %8731 = vdwg.mxu0
  %8732 = vmatprep.subr.mxu0 0.0
  %8733 = vmatpush1.msra.mxu0 %v2074
  %8734 = vmatprep.subr.mxu0 0.0
  %8735 = vmatpush1.msra.mxu0 %v2073
  %8736 = vmatprep.subr.mxu0 0.0
  %8737 = vmatpush1.msra.mxu0 %v2072
  %8738 = vmatprep.subr.mxu0 0.0
  %8739 = vmatpush1.msra.mxu0 %v2071
  %8740 = vmatprep.subr.mxu0 0.0
  %8741 = vmatpush1.msra.mxu0 %v2070
  %8742 = vmatprep.subr.mxu0 0.0
  %8743 = vmatpush1.msra.mxu0 %v2069
  %8744 = vmatprep.subr.mxu0 0.0
  %8745 = vmatpush1.msra.mxu0 %v2068
  %8746 = vmatprep.subr.mxu0 0.0
  %8747 = vmatpush1.msra.mxu0 %v2067
  %8748 = vmatprep.subr.mxu0 0.0
  %8749 = vmatpush1.msra.mxu0 %v2066
  %8750 = vmatprep.subr.mxu0 0.0
  %8751 = vmatpush1.msra.mxu0 %v2065
  %8752 = vmatprep.subr.mxu0 0.0
  %8753 = vmatpush1.msra.mxu0 %v2064
  %8754 = vmatprep.subr.mxu0 0.0
  %8755 = vmatpush1.msra.mxu0 %v2063
  %8756 = vmatprep.subr.mxu0 0.0
  %8757 = vmatpush1.msra.mxu0 %v2062
  %8758 = vmatprep.subr.mxu0 0.0
  %8759 = vmatpush1.msra.mxu0 %v2061
  %8760 = vmatprep.subr.mxu0 0.0
  %8761 = vmatpush1.msra.mxu0 %v2060
  %8762 = vmatprep.subr.mxu0 0.0
  %8763 = vmatpush1.msra.mxu0 %v2059
  %8764 = vmatprep.subr.mxu0 0.0
  %8765 = vmatpush2.msra.mxu0 %v2090
  %8766 = vmatprep.subr.mxu0 0.0
  %8767 = vmatpush2.msra.mxu0 %v2089
  %8768 = vmatprep.subr.mxu0 0.0
  %8769 = vmatpush2.msra.mxu0 %v2088
  %8770 = vmatprep.subr.mxu0 0.0
  %8771 = vmatpush2.msra.mxu0 %v2087
  %8772 = vmatprep.subr.mxu0 0.0
  %8773 = vmatpush2.msra.mxu0 %v2086
  %8774 = vmatprep.subr.mxu0 0.0
  %8775 = vmatpush2.msra.mxu0 %v2085
  %8776 = vmatprep.subr.mxu0 0.0
  %8777 = vmatpush2.msra.mxu0 %v2084
  %8778 = vmatprep.subr.mxu0 0.0
  %8779 = vmatpush2.msra.mxu0 %v2083
  %8780 = vmatprep.subr.mxu0 0.0
  %8781 = vmatpush2.msra.mxu0 %v2082
  %8782 = vmatprep.subr.mxu0 0.0
  %8783 = vmatpush2.msra.mxu0 %v2081
  %8784 = vmatprep.subr.mxu0 0.0
  %8785 = vmatpush2.msra.mxu0 %v2080
  %8786 = vmatprep.subr.mxu0 0.0
  %8787 = vmatpush2.msra.mxu0 %v2079
  %8788 = vmatprep.subr.mxu0 0.0
  %8789 = vmatpush2.msra.mxu0 %v2078
  %8790 = vmatprep.subr.mxu0 0.0
  %8791 = vmatpush2.msra.mxu0 %v2077
  %8792 = vmatprep.subr.mxu0 0.0
  %8793 = vmatpush2.msra.mxu0 %v2076
  %8794 = vmatprep.subr.mxu0 0.0
  %8795 = vmatpush2.msra.mxu0 %v2075
  %8796 = vmatprep.mubr.f32.mxu0 %v8589
  %8797 = vmatmul.mubr.f32.gmra.mxu0 %v8588
  %v8798 = vpop.f32.mrf.mxu0
  %v8799 = vadd.f32 %v8729, %v8798
  %v8800 = vpop.f32.mrf.mxu0
  %8801 = vdwg.mxu0
  %8802 = vmatprep.subr.mxu0 0.0
  %8803 = vmatpush1.msra.mxu0 %v2106
  %8804 = vmatprep.subr.mxu0 0.0
  %8805 = vmatpush1.msra.mxu0 %v2105
  %8806 = vmatprep.subr.mxu0 0.0
  %8807 = vmatpush1.msra.mxu0 %v2104
  %8808 = vmatprep.subr.mxu0 0.0
  %8809 = vmatpush1.msra.mxu0 %v2103
  %8810 = vmatprep.subr.mxu0 0.0
  %8811 = vmatpush1.msra.mxu0 %v2102
  %8812 = vmatprep.subr.mxu0 0.0
  %8813 = vmatpush1.msra.mxu0 %v2101
  %8814 = vmatprep.subr.mxu0 0.0
  %8815 = vmatpush1.msra.mxu0 %v2100
  %8816 = vmatprep.subr.mxu0 0.0
  %8817 = vmatpush1.msra.mxu0 %v2099
  %8818 = vmatprep.subr.mxu0 0.0
  %8819 = vmatpush1.msra.mxu0 %v2098
  %8820 = vmatprep.subr.mxu0 0.0
  %8821 = vmatpush1.msra.mxu0 %v2097
  %8822 = vmatprep.subr.mxu0 0.0
  %8823 = vmatpush1.msra.mxu0 %v2096
  %8824 = vmatprep.subr.mxu0 0.0
  %8825 = vmatpush1.msra.mxu0 %v2095
  %8826 = vmatprep.subr.mxu0 0.0
  %8827 = vmatpush1.msra.mxu0 %v2094
  %8828 = vmatprep.subr.mxu0 0.0
  %8829 = vmatpush1.msra.mxu0 %v2093
  %8830 = vmatprep.subr.mxu0 0.0
  %8831 = vmatpush1.msra.mxu0 %v2092
  %8832 = vmatprep.subr.mxu0 0.0
  %8833 = vmatpush1.msra.mxu0 %v2091
  %8834 = vmatprep.subr.mxu0 0.0
  %8835 = vmatpush2.msra.mxu0 %v2122
  %8836 = vmatprep.subr.mxu0 0.0
  %8837 = vmatpush2.msra.mxu0 %v2121
  %8838 = vmatprep.subr.mxu0 0.0
  %8839 = vmatpush2.msra.mxu0 %v2120
  %8840 = vmatprep.subr.mxu0 0.0
  %8841 = vmatpush2.msra.mxu0 %v2119
  %8842 = vmatprep.subr.mxu0 0.0
  %8843 = vmatpush2.msra.mxu0 %v2118
  %8844 = vmatprep.subr.mxu0 0.0
  %8845 = vmatpush2.msra.mxu0 %v2117
  %8846 = vmatprep.subr.mxu0 0.0
  %8847 = vmatpush2.msra.mxu0 %v2116
  %8848 = vmatprep.subr.mxu0 0.0
  %8849 = vmatpush2.msra.mxu0 %v2115
  %8850 = vmatprep.subr.mxu0 0.0
  %8851 = vmatpush2.msra.mxu0 %v2114
  %8852 = vmatprep.subr.mxu0 0.0
  %8853 = vmatpush2.msra.mxu0 %v2113
  %8854 = vmatprep.subr.mxu0 0.0
  %8855 = vmatpush2.msra.mxu0 %v2112
  %8856 = vmatprep.subr.mxu0 0.0
  %8857 = vmatpush2.msra.mxu0 %v2111
  %8858 = vmatprep.subr.mxu0 0.0
  %8859 = vmatpush2.msra.mxu0 %v2110
  %8860 = vmatprep.subr.mxu0 0.0
  %8861 = vmatpush2.msra.mxu0 %v2109
  %8862 = vmatprep.subr.mxu0 0.0
  %8863 = vmatpush2.msra.mxu0 %v2108
  %8864 = vmatprep.subr.mxu0 0.0
  %8865 = vmatpush2.msra.mxu0 %v2107
  %8866 = vmatprep.mubr.f32.mxu0 %v8591
  %8867 = vmatmul.mubr.f32.gmra.mxu0 %v8590
  %v8868 = vpop.f32.mrf.mxu0
  %v8869 = vadd.f32 %v8799, %v8868
  %v8870 = vpop.f32.mrf.mxu0
  %8871 = vdwg.mxu0
  %v8872 = vmul.f32 %v8536, 0.95
  %v8873 = vadd.f32 %v8872, %v8869
  %v8874 = vsub.f32 %v8873, %v8539
  %vm8875 = vcmp.gt.f32.partialorder %v8874, 1.0
  %v8876 = vsel %vm8875, 1, 0
  %v8877 = vcvt.s32.f32 %v8876
  %s8878 = scalar_lea.vmem %s5, 152
  %8879 = vst [vmem:[%s8878] sm:$0xff] %v8877
  %s8880 = scalar_lea.vmem %s6, 152
  %8881 = vst [vmem:[%s8880] sm:$0xff] %v8874
  %v8882 = vmul.f32 %v8560, 0.95
  %v8883 = vmul.f32 %v8561, 0.95
  %v8884 = vmul.f32 %v8562, 0.95
  %v8885 = vmul.f32 %v8563, 0.95
  %v8886 = vmul.f32 %v8564, 0.95
  %v8887 = vmul.f32 %v8565, 0.95
  %v8888 = vmul.f32 %v8566, 0.95
  %v8889 = vmul.f32 %v8567, 0.95
  %v8890 = vadd.f32 %v8882, %v1139
  %v8891 = vadd.f32 %v8883, %v1141
  %v8892 = vadd.f32 %v8884, %v1423
  %v8893 = vadd.f32 %v8885, %v1425
  %v8894 = vadd.f32 %v8886, %v1707
  %v8895 = vadd.f32 %v8887, %v1709
  %v8896 = vadd.f32 %v8888, %v1991
  %v8897 = vadd.f32 %v8889, %v1993
  %v8898 = vsub.f32 %v8890, %v8584
  %v8899 = vsub.f32 %v8891, %v8585
  %v8900 = vsub.f32 %v8892, %v8586
  %v8901 = vsub.f32 %v8893, %v8587
  %v8902 = vsub.f32 %v8894, %v8588
  %v8903 = vsub.f32 %v8895, %v8589
  %v8904 = vsub.f32 %v8896, %v8590
  %v8905 = vsub.f32 %v8897, %v8591
  %vm8906 = vcmp.gt.f32.partialorder %v8898, 1.0
  %vm8907 = vcmp.gt.f32.partialorder %v8899, 1.0
  %vm8908 = vcmp.gt.f32.partialorder %v8900, 1.0
  %vm8909 = vcmp.gt.f32.partialorder %v8901, 1.0
  %vm8910 = vcmp.gt.f32.partialorder %v8902, 1.0
  %vm8911 = vcmp.gt.f32.partialorder %v8903, 1.0
  %vm8912 = vcmp.gt.f32.partialorder %v8904, 1.0
  %vm8913 = vcmp.gt.f32.partialorder %v8905, 1.0
  %v8914 = vsel %vm8906, 1, 0
  %v8915 = vsel %vm8907, 1, 0
  %v8916 = vsel %vm8908, 1, 0
  %v8917 = vsel %vm8909, 1, 0
  %v8918 = vsel %vm8910, 1, 0
  %v8919 = vsel %vm8911, 1, 0
  %v8920 = vsel %vm8912, 1, 0
  %v8921 = vsel %vm8913, 1, 0
  %v8922 = vcvt.s32.f32 %v8914
  %v8923 = vcvt.s32.f32 %v8915
  %v8924 = vcvt.s32.f32 %v8916
  %v8925 = vcvt.s32.f32 %v8917
  %v8926 = vcvt.s32.f32 %v8918
  %v8927 = vcvt.s32.f32 %v8919
  %v8928 = vcvt.s32.f32 %v8920
  %v8929 = vcvt.s32.f32 %v8921
  %8930 = vmatprep.subr.mxu0 0.0
  %8931 = vmatpush1.msra.mxu0 %v2010
  %8932 = vmatprep.subr.mxu0 0.0
  %8933 = vmatpush1.msra.mxu0 %v2009
  %8934 = vmatprep.subr.mxu0 0.0
  %8935 = vmatpush1.msra.mxu0 %v2008
  %8936 = vmatprep.subr.mxu0 0.0
  %8937 = vmatpush1.msra.mxu0 %v2007
  %8938 = vmatprep.subr.mxu0 0.0
  %8939 = vmatpush1.msra.mxu0 %v2006
  %8940 = vmatprep.subr.mxu0 0.0
  %8941 = vmatpush1.msra.mxu0 %v2005
  %8942 = vmatprep.subr.mxu0 0.0
  %8943 = vmatpush1.msra.mxu0 %v2004
  %8944 = vmatprep.subr.mxu0 0.0
  %8945 = vmatpush1.msra.mxu0 %v2003
  %8946 = vmatprep.subr.mxu0 0.0
  %8947 = vmatpush1.msra.mxu0 %v2002
  %8948 = vmatprep.subr.mxu0 0.0
  %8949 = vmatpush1.msra.mxu0 %v2001
  %8950 = vmatprep.subr.mxu0 0.0
  %8951 = vmatpush1.msra.mxu0 %v2000
  %8952 = vmatprep.subr.mxu0 0.0
  %8953 = vmatpush1.msra.mxu0 %v1999
  %8954 = vmatprep.subr.mxu0 0.0
  %8955 = vmatpush1.msra.mxu0 %v1998
  %8956 = vmatprep.subr.mxu0 0.0
  %8957 = vmatpush1.msra.mxu0 %v1997
  %8958 = vmatprep.subr.mxu0 0.0
  %8959 = vmatpush1.msra.mxu0 %v1996
  %8960 = vmatprep.subr.mxu0 0.0
  %8961 = vmatpush1.msra.mxu0 %v1995
  %8962 = vmatprep.subr.mxu0 0.0
  %8963 = vmatpush2.msra.mxu0 %v2026
  %8964 = vmatprep.subr.mxu0 0.0
  %8965 = vmatpush2.msra.mxu0 %v2025
  %8966 = vmatprep.subr.mxu0 0.0
  %8967 = vmatpush2.msra.mxu0 %v2024
  %8968 = vmatprep.subr.mxu0 0.0
  %8969 = vmatpush2.msra.mxu0 %v2023
  %8970 = vmatprep.subr.mxu0 0.0
  %8971 = vmatpush2.msra.mxu0 %v2022
  %8972 = vmatprep.subr.mxu0 0.0
  %8973 = vmatpush2.msra.mxu0 %v2021
  %8974 = vmatprep.subr.mxu0 0.0
  %8975 = vmatpush2.msra.mxu0 %v2020
  %8976 = vmatprep.subr.mxu0 0.0
  %8977 = vmatpush2.msra.mxu0 %v2019
  %8978 = vmatprep.subr.mxu0 0.0
  %8979 = vmatpush2.msra.mxu0 %v2018
  %8980 = vmatprep.subr.mxu0 0.0
  %8981 = vmatpush2.msra.mxu0 %v2017
  %8982 = vmatprep.subr.mxu0 0.0
  %8983 = vmatpush2.msra.mxu0 %v2016
  %8984 = vmatprep.subr.mxu0 0.0
  %8985 = vmatpush2.msra.mxu0 %v2015
  %8986 = vmatprep.subr.mxu0 0.0
  %8987 = vmatpush2.msra.mxu0 %v2014
  %8988 = vmatprep.subr.mxu0 0.0
  %8989 = vmatpush2.msra.mxu0 %v2013
  %8990 = vmatprep.subr.mxu0 0.0
  %8991 = vmatpush2.msra.mxu0 %v2012
  %8992 = vmatprep.subr.mxu0 0.0
  %8993 = vmatpush2.msra.mxu0 %v2011
  %8994 = vmatprep.mubr.f32.mxu0 %v8923
  %8995 = vmatmul.mubr.f32.gmra.mxu0 %v8922
  %v8996 = vpop.f32.mrf.mxu0
  %v8997 = vadd.f32 %v2171, %v8996
  %v8998 = vpop.f32.mrf.mxu0
  %8999 = vdwg.mxu0
  %9000 = vmatprep.subr.mxu0 0.0
  %9001 = vmatpush1.msra.mxu0 %v2042
  %9002 = vmatprep.subr.mxu0 0.0
  %9003 = vmatpush1.msra.mxu0 %v2041
  %9004 = vmatprep.subr.mxu0 0.0
  %9005 = vmatpush1.msra.mxu0 %v2040
  %9006 = vmatprep.subr.mxu0 0.0
  %9007 = vmatpush1.msra.mxu0 %v2039
  %9008 = vmatprep.subr.mxu0 0.0
  %9009 = vmatpush1.msra.mxu0 %v2038
  %9010 = vmatprep.subr.mxu0 0.0
  %9011 = vmatpush1.msra.mxu0 %v2037
  %9012 = vmatprep.subr.mxu0 0.0
  %9013 = vmatpush1.msra.mxu0 %v2036
  %9014 = vmatprep.subr.mxu0 0.0
  %9015 = vmatpush1.msra.mxu0 %v2035
  %9016 = vmatprep.subr.mxu0 0.0
  %9017 = vmatpush1.msra.mxu0 %v2034
  %9018 = vmatprep.subr.mxu0 0.0
  %9019 = vmatpush1.msra.mxu0 %v2033
  %9020 = vmatprep.subr.mxu0 0.0
  %9021 = vmatpush1.msra.mxu0 %v2032
  %9022 = vmatprep.subr.mxu0 0.0
  %9023 = vmatpush1.msra.mxu0 %v2031
  %9024 = vmatprep.subr.mxu0 0.0
  %9025 = vmatpush1.msra.mxu0 %v2030
  %9026 = vmatprep.subr.mxu0 0.0
  %9027 = vmatpush1.msra.mxu0 %v2029
  %9028 = vmatprep.subr.mxu0 0.0
  %9029 = vmatpush1.msra.mxu0 %v2028
  %9030 = vmatprep.subr.mxu0 0.0
  %9031 = vmatpush1.msra.mxu0 %v2027
  %9032 = vmatprep.subr.mxu0 0.0
  %9033 = vmatpush2.msra.mxu0 %v2058
  %9034 = vmatprep.subr.mxu0 0.0
  %9035 = vmatpush2.msra.mxu0 %v2057
  %9036 = vmatprep.subr.mxu0 0.0
  %9037 = vmatpush2.msra.mxu0 %v2056
  %9038 = vmatprep.subr.mxu0 0.0
  %9039 = vmatpush2.msra.mxu0 %v2055
  %9040 = vmatprep.subr.mxu0 0.0
  %9041 = vmatpush2.msra.mxu0 %v2054
  %9042 = vmatprep.subr.mxu0 0.0
  %9043 = vmatpush2.msra.mxu0 %v2053
  %9044 = vmatprep.subr.mxu0 0.0
  %9045 = vmatpush2.msra.mxu0 %v2052
  %9046 = vmatprep.subr.mxu0 0.0
  %9047 = vmatpush2.msra.mxu0 %v2051
  %9048 = vmatprep.subr.mxu0 0.0
  %9049 = vmatpush2.msra.mxu0 %v2050
  %9050 = vmatprep.subr.mxu0 0.0
  %9051 = vmatpush2.msra.mxu0 %v2049
  %9052 = vmatprep.subr.mxu0 0.0
  %9053 = vmatpush2.msra.mxu0 %v2048
  %9054 = vmatprep.subr.mxu0 0.0
  %9055 = vmatpush2.msra.mxu0 %v2047
  %9056 = vmatprep.subr.mxu0 0.0
  %9057 = vmatpush2.msra.mxu0 %v2046
  %9058 = vmatprep.subr.mxu0 0.0
  %9059 = vmatpush2.msra.mxu0 %v2045
  %9060 = vmatprep.subr.mxu0 0.0
  %9061 = vmatpush2.msra.mxu0 %v2044
  %9062 = vmatprep.subr.mxu0 0.0
  %9063 = vmatpush2.msra.mxu0 %v2043
  %9064 = vmatprep.mubr.f32.mxu0 %v8925
  %9065 = vmatmul.mubr.f32.gmra.mxu0 %v8924
  %v9066 = vpop.f32.mrf.mxu0
  %v9067 = vadd.f32 %v8997, %v9066
  %v9068 = vpop.f32.mrf.mxu0
  %9069 = vdwg.mxu0
  %9070 = vmatprep.subr.mxu0 0.0
  %9071 = vmatpush1.msra.mxu0 %v2074
  %9072 = vmatprep.subr.mxu0 0.0
  %9073 = vmatpush1.msra.mxu0 %v2073
  %9074 = vmatprep.subr.mxu0 0.0
  %9075 = vmatpush1.msra.mxu0 %v2072
  %9076 = vmatprep.subr.mxu0 0.0
  %9077 = vmatpush1.msra.mxu0 %v2071
  %9078 = vmatprep.subr.mxu0 0.0
  %9079 = vmatpush1.msra.mxu0 %v2070
  %9080 = vmatprep.subr.mxu0 0.0
  %9081 = vmatpush1.msra.mxu0 %v2069
  %9082 = vmatprep.subr.mxu0 0.0
  %9083 = vmatpush1.msra.mxu0 %v2068
  %9084 = vmatprep.subr.mxu0 0.0
  %9085 = vmatpush1.msra.mxu0 %v2067
  %9086 = vmatprep.subr.mxu0 0.0
  %9087 = vmatpush1.msra.mxu0 %v2066
  %9088 = vmatprep.subr.mxu0 0.0
  %9089 = vmatpush1.msra.mxu0 %v2065
  %9090 = vmatprep.subr.mxu0 0.0
  %9091 = vmatpush1.msra.mxu0 %v2064
  %9092 = vmatprep.subr.mxu0 0.0
  %9093 = vmatpush1.msra.mxu0 %v2063
  %9094 = vmatprep.subr.mxu0 0.0
  %9095 = vmatpush1.msra.mxu0 %v2062
  %9096 = vmatprep.subr.mxu0 0.0
  %9097 = vmatpush1.msra.mxu0 %v2061
  %9098 = vmatprep.subr.mxu0 0.0
  %9099 = vmatpush1.msra.mxu0 %v2060
  %9100 = vmatprep.subr.mxu0 0.0
  %9101 = vmatpush1.msra.mxu0 %v2059
  %9102 = vmatprep.subr.mxu0 0.0
  %9103 = vmatpush2.msra.mxu0 %v2090
  %9104 = vmatprep.subr.mxu0 0.0
  %9105 = vmatpush2.msra.mxu0 %v2089
  %9106 = vmatprep.subr.mxu0 0.0
  %9107 = vmatpush2.msra.mxu0 %v2088
  %9108 = vmatprep.subr.mxu0 0.0
  %9109 = vmatpush2.msra.mxu0 %v2087
  %9110 = vmatprep.subr.mxu0 0.0
  %9111 = vmatpush2.msra.mxu0 %v2086
  %9112 = vmatprep.subr.mxu0 0.0
  %9113 = vmatpush2.msra.mxu0 %v2085
  %9114 = vmatprep.subr.mxu0 0.0
  %9115 = vmatpush2.msra.mxu0 %v2084
  %9116 = vmatprep.subr.mxu0 0.0
  %9117 = vmatpush2.msra.mxu0 %v2083
  %9118 = vmatprep.subr.mxu0 0.0
  %9119 = vmatpush2.msra.mxu0 %v2082
  %9120 = vmatprep.subr.mxu0 0.0
  %9121 = vmatpush2.msra.mxu0 %v2081
  %9122 = vmatprep.subr.mxu0 0.0
  %9123 = vmatpush2.msra.mxu0 %v2080
  %9124 = vmatprep.subr.mxu0 0.0
  %9125 = vmatpush2.msra.mxu0 %v2079
  %9126 = vmatprep.subr.mxu0 0.0
  %9127 = vmatpush2.msra.mxu0 %v2078
  %9128 = vmatprep.subr.mxu0 0.0
  %9129 = vmatpush2.msra.mxu0 %v2077
  %9130 = vmatprep.subr.mxu0 0.0
  %9131 = vmatpush2.msra.mxu0 %v2076
  %9132 = vmatprep.subr.mxu0 0.0
  %9133 = vmatpush2.msra.mxu0 %v2075
  %9134 = vmatprep.mubr.f32.mxu0 %v8927
  %9135 = vmatmul.mubr.f32.gmra.mxu0 %v8926
  %v9136 = vpop.f32.mrf.mxu0
  %v9137 = vadd.f32 %v9067, %v9136
  %v9138 = vpop.f32.mrf.mxu0
  %9139 = vdwg.mxu0
  %9140 = vmatprep.subr.mxu0 0.0
  %9141 = vmatpush1.msra.mxu0 %v2106
  %9142 = vmatprep.subr.mxu0 0.0
  %9143 = vmatpush1.msra.mxu0 %v2105
  %9144 = vmatprep.subr.mxu0 0.0
  %9145 = vmatpush1.msra.mxu0 %v2104
  %9146 = vmatprep.subr.mxu0 0.0
  %9147 = vmatpush1.msra.mxu0 %v2103
  %9148 = vmatprep.subr.mxu0 0.0
  %9149 = vmatpush1.msra.mxu0 %v2102
  %9150 = vmatprep.subr.mxu0 0.0
  %9151 = vmatpush1.msra.mxu0 %v2101
  %9152 = vmatprep.subr.mxu0 0.0
  %9153 = vmatpush1.msra.mxu0 %v2100
  %9154 = vmatprep.subr.mxu0 0.0
  %9155 = vmatpush1.msra.mxu0 %v2099
  %9156 = vmatprep.subr.mxu0 0.0
  %9157 = vmatpush1.msra.mxu0 %v2098
  %9158 = vmatprep.subr.mxu0 0.0
  %9159 = vmatpush1.msra.mxu0 %v2097
  %9160 = vmatprep.subr.mxu0 0.0
  %9161 = vmatpush1.msra.mxu0 %v2096
  %9162 = vmatprep.subr.mxu0 0.0
  %9163 = vmatpush1.msra.mxu0 %v2095
  %9164 = vmatprep.subr.mxu0 0.0
  %9165 = vmatpush1.msra.mxu0 %v2094
  %9166 = vmatprep.subr.mxu0 0.0
  %9167 = vmatpush1.msra.mxu0 %v2093
  %9168 = vmatprep.subr.mxu0 0.0
  %9169 = vmatpush1.msra.mxu0 %v2092
  %9170 = vmatprep.subr.mxu0 0.0
  %9171 = vmatpush1.msra.mxu0 %v2091
  %9172 = vmatprep.subr.mxu0 0.0
  %9173 = vmatpush2.msra.mxu0 %v2122
  %9174 = vmatprep.subr.mxu0 0.0
  %9175 = vmatpush2.msra.mxu0 %v2121
  %9176 = vmatprep.subr.mxu0 0.0
  %9177 = vmatpush2.msra.mxu0 %v2120
  %9178 = vmatprep.subr.mxu0 0.0
  %9179 = vmatpush2.msra.mxu0 %v2119
  %9180 = vmatprep.subr.mxu0 0.0
  %9181 = vmatpush2.msra.mxu0 %v2118
  %9182 = vmatprep.subr.mxu0 0.0
  %9183 = vmatpush2.msra.mxu0 %v2117
  %9184 = vmatprep.subr.mxu0 0.0
  %9185 = vmatpush2.msra.mxu0 %v2116
  %9186 = vmatprep.subr.mxu0 0.0
  %9187 = vmatpush2.msra.mxu0 %v2115
  %9188 = vmatprep.subr.mxu0 0.0
  %9189 = vmatpush2.msra.mxu0 %v2114
  %9190 = vmatprep.subr.mxu0 0.0
  %9191 = vmatpush2.msra.mxu0 %v2113
  %9192 = vmatprep.subr.mxu0 0.0
  %9193 = vmatpush2.msra.mxu0 %v2112
  %9194 = vmatprep.subr.mxu0 0.0
  %9195 = vmatpush2.msra.mxu0 %v2111
  %9196 = vmatprep.subr.mxu0 0.0
  %9197 = vmatpush2.msra.mxu0 %v2110
  %9198 = vmatprep.subr.mxu0 0.0
  %9199 = vmatpush2.msra.mxu0 %v2109
  %9200 = vmatprep.subr.mxu0 0.0
  %9201 = vmatpush2.msra.mxu0 %v2108
  %9202 = vmatprep.subr.mxu0 0.0
  %9203 = vmatpush2.msra.mxu0 %v2107
  %9204 = vmatprep.mubr.f32.mxu0 %v8929
  %9205 = vmatmul.mubr.f32.gmra.mxu0 %v8928
  %v9206 = vpop.f32.mrf.mxu0
  %v9207 = vadd.f32 %v9137, %v9206
  %v9208 = vpop.f32.mrf.mxu0
  %9209 = vdwg.mxu0
  %v9210 = vmul.f32 %v8874, 0.95
  %v9211 = vadd.f32 %v9210, %v9207
  %v9212 = vsub.f32 %v9211, %v8877
  %vm9213 = vcmp.gt.f32.partialorder %v9212, 1.0
  %v9214 = vsel %vm9213, 1, 0
  %v9215 = vcvt.s32.f32 %v9214
  %s9216 = scalar_lea.vmem %s5, 160
  %9217 = vst [vmem:[%s9216] sm:$0xff] %v9215
  %s9218 = scalar_lea.vmem %s6, 160
  %9219 = vst [vmem:[%s9218] sm:$0xff] %v9212
  %v9220 = vmul.f32 %v8898, 0.95
  %v9221 = vmul.f32 %v8899, 0.95
  %v9222 = vmul.f32 %v8900, 0.95
  %v9223 = vmul.f32 %v8901, 0.95
  %v9224 = vmul.f32 %v8902, 0.95
  %v9225 = vmul.f32 %v8903, 0.95
  %v9226 = vmul.f32 %v8904, 0.95
  %v9227 = vmul.f32 %v8905, 0.95
  %v9228 = vadd.f32 %v9220, %v1139
  %v9229 = vadd.f32 %v9221, %v1141
  %v9230 = vadd.f32 %v9222, %v1423
  %v9231 = vadd.f32 %v9223, %v1425
  %v9232 = vadd.f32 %v9224, %v1707
  %v9233 = vadd.f32 %v9225, %v1709
  %v9234 = vadd.f32 %v9226, %v1991
  %v9235 = vadd.f32 %v9227, %v1993
  %v9236 = vsub.f32 %v9228, %v8922
  %v9237 = vsub.f32 %v9229, %v8923
  %v9238 = vsub.f32 %v9230, %v8924
  %v9239 = vsub.f32 %v9231, %v8925
  %v9240 = vsub.f32 %v9232, %v8926
  %v9241 = vsub.f32 %v9233, %v8927
  %v9242 = vsub.f32 %v9234, %v8928
  %v9243 = vsub.f32 %v9235, %v8929
  %vm9244 = vcmp.gt.f32.partialorder %v9236, 1.0
  %vm9245 = vcmp.gt.f32.partialorder %v9237, 1.0
  %vm9246 = vcmp.gt.f32.partialorder %v9238, 1.0
  %vm9247 = vcmp.gt.f32.partialorder %v9239, 1.0
  %vm9248 = vcmp.gt.f32.partialorder %v9240, 1.0
  %vm9249 = vcmp.gt.f32.partialorder %v9241, 1.0
  %vm9250 = vcmp.gt.f32.partialorder %v9242, 1.0
  %vm9251 = vcmp.gt.f32.partialorder %v9243, 1.0
  %v9252 = vsel %vm9244, 1, 0
  %v9253 = vsel %vm9245, 1, 0
  %v9254 = vsel %vm9246, 1, 0
  %v9255 = vsel %vm9247, 1, 0
  %v9256 = vsel %vm9248, 1, 0
  %v9257 = vsel %vm9249, 1, 0
  %v9258 = vsel %vm9250, 1, 0
  %v9259 = vsel %vm9251, 1, 0
  %v9260 = vcvt.s32.f32 %v9252
  %v9261 = vcvt.s32.f32 %v9253
  %v9262 = vcvt.s32.f32 %v9254
  %v9263 = vcvt.s32.f32 %v9255
  %v9264 = vcvt.s32.f32 %v9256
  %v9265 = vcvt.s32.f32 %v9257
  %v9266 = vcvt.s32.f32 %v9258
  %v9267 = vcvt.s32.f32 %v9259
  %9268 = vmatprep.subr.mxu0 0.0
  %9269 = vmatpush1.msra.mxu0 %v2010
  %9270 = vmatprep.subr.mxu0 0.0
  %9271 = vmatpush1.msra.mxu0 %v2009
  %9272 = vmatprep.subr.mxu0 0.0
  %9273 = vmatpush1.msra.mxu0 %v2008
  %9274 = vmatprep.subr.mxu0 0.0
  %9275 = vmatpush1.msra.mxu0 %v2007
  %9276 = vmatprep.subr.mxu0 0.0
  %9277 = vmatpush1.msra.mxu0 %v2006
  %9278 = vmatprep.subr.mxu0 0.0
  %9279 = vmatpush1.msra.mxu0 %v2005
  %9280 = vmatprep.subr.mxu0 0.0
  %9281 = vmatpush1.msra.mxu0 %v2004
  %9282 = vmatprep.subr.mxu0 0.0
  %9283 = vmatpush1.msra.mxu0 %v2003
  %9284 = vmatprep.subr.mxu0 0.0
  %9285 = vmatpush1.msra.mxu0 %v2002
  %9286 = vmatprep.subr.mxu0 0.0
  %9287 = vmatpush1.msra.mxu0 %v2001
  %9288 = vmatprep.subr.mxu0 0.0
  %9289 = vmatpush1.msra.mxu0 %v2000
  %9290 = vmatprep.subr.mxu0 0.0
  %9291 = vmatpush1.msra.mxu0 %v1999
  %9292 = vmatprep.subr.mxu0 0.0
  %9293 = vmatpush1.msra.mxu0 %v1998
  %9294 = vmatprep.subr.mxu0 0.0
  %9295 = vmatpush1.msra.mxu0 %v1997
  %9296 = vmatprep.subr.mxu0 0.0
  %9297 = vmatpush1.msra.mxu0 %v1996
  %9298 = vmatprep.subr.mxu0 0.0
  %9299 = vmatpush1.msra.mxu0 %v1995
  %9300 = vmatprep.subr.mxu0 0.0
  %9301 = vmatpush2.msra.mxu0 %v2026
  %9302 = vmatprep.subr.mxu0 0.0
  %9303 = vmatpush2.msra.mxu0 %v2025
  %9304 = vmatprep.subr.mxu0 0.0
  %9305 = vmatpush2.msra.mxu0 %v2024
  %9306 = vmatprep.subr.mxu0 0.0
  %9307 = vmatpush2.msra.mxu0 %v2023
  %9308 = vmatprep.subr.mxu0 0.0
  %9309 = vmatpush2.msra.mxu0 %v2022
  %9310 = vmatprep.subr.mxu0 0.0
  %9311 = vmatpush2.msra.mxu0 %v2021
  %9312 = vmatprep.subr.mxu0 0.0
  %9313 = vmatpush2.msra.mxu0 %v2020
  %9314 = vmatprep.subr.mxu0 0.0
  %9315 = vmatpush2.msra.mxu0 %v2019
  %9316 = vmatprep.subr.mxu0 0.0
  %9317 = vmatpush2.msra.mxu0 %v2018
  %9318 = vmatprep.subr.mxu0 0.0
  %9319 = vmatpush2.msra.mxu0 %v2017
  %9320 = vmatprep.subr.mxu0 0.0
  %9321 = vmatpush2.msra.mxu0 %v2016
  %9322 = vmatprep.subr.mxu0 0.0
  %9323 = vmatpush2.msra.mxu0 %v2015
  %9324 = vmatprep.subr.mxu0 0.0
  %9325 = vmatpush2.msra.mxu0 %v2014
  %9326 = vmatprep.subr.mxu0 0.0
  %9327 = vmatpush2.msra.mxu0 %v2013
  %9328 = vmatprep.subr.mxu0 0.0
  %9329 = vmatpush2.msra.mxu0 %v2012
  %9330 = vmatprep.subr.mxu0 0.0
  %9331 = vmatpush2.msra.mxu0 %v2011
  %9332 = vmatprep.mubr.f32.mxu0 %v9261
  %9333 = vmatmul.mubr.f32.gmra.mxu0 %v9260
  %v9334 = vpop.f32.mrf.mxu0
  %v9335 = vadd.f32 %v2171, %v9334
  %v9336 = vpop.f32.mrf.mxu0
  %9337 = vdwg.mxu0
  %9338 = vmatprep.subr.mxu0 0.0
  %9339 = vmatpush1.msra.mxu0 %v2042
  %9340 = vmatprep.subr.mxu0 0.0
  %9341 = vmatpush1.msra.mxu0 %v2041
  %9342 = vmatprep.subr.mxu0 0.0
  %9343 = vmatpush1.msra.mxu0 %v2040
  %9344 = vmatprep.subr.mxu0 0.0
  %9345 = vmatpush1.msra.mxu0 %v2039
  %9346 = vmatprep.subr.mxu0 0.0
  %9347 = vmatpush1.msra.mxu0 %v2038
  %9348 = vmatprep.subr.mxu0 0.0
  %9349 = vmatpush1.msra.mxu0 %v2037
  %9350 = vmatprep.subr.mxu0 0.0
  %9351 = vmatpush1.msra.mxu0 %v2036
  %9352 = vmatprep.subr.mxu0 0.0
  %9353 = vmatpush1.msra.mxu0 %v2035
  %9354 = vmatprep.subr.mxu0 0.0
  %9355 = vmatpush1.msra.mxu0 %v2034
  %9356 = vmatprep.subr.mxu0 0.0
  %9357 = vmatpush1.msra.mxu0 %v2033
  %9358 = vmatprep.subr.mxu0 0.0
  %9359 = vmatpush1.msra.mxu0 %v2032
  %9360 = vmatprep.subr.mxu0 0.0
  %9361 = vmatpush1.msra.mxu0 %v2031
  %9362 = vmatprep.subr.mxu0 0.0
  %9363 = vmatpush1.msra.mxu0 %v2030
  %9364 = vmatprep.subr.mxu0 0.0
  %9365 = vmatpush1.msra.mxu0 %v2029
  %9366 = vmatprep.subr.mxu0 0.0
  %9367 = vmatpush1.msra.mxu0 %v2028
  %9368 = vmatprep.subr.mxu0 0.0
  %9369 = vmatpush1.msra.mxu0 %v2027
  %9370 = vmatprep.subr.mxu0 0.0
  %9371 = vmatpush2.msra.mxu0 %v2058
  %9372 = vmatprep.subr.mxu0 0.0
  %9373 = vmatpush2.msra.mxu0 %v2057
  %9374 = vmatprep.subr.mxu0 0.0
  %9375 = vmatpush2.msra.mxu0 %v2056
  %9376 = vmatprep.subr.mxu0 0.0
  %9377 = vmatpush2.msra.mxu0 %v2055
  %9378 = vmatprep.subr.mxu0 0.0
  %9379 = vmatpush2.msra.mxu0 %v2054
  %9380 = vmatprep.subr.mxu0 0.0
  %9381 = vmatpush2.msra.mxu0 %v2053
  %9382 = vmatprep.subr.mxu0 0.0
  %9383 = vmatpush2.msra.mxu0 %v2052
  %9384 = vmatprep.subr.mxu0 0.0
  %9385 = vmatpush2.msra.mxu0 %v2051
  %9386 = vmatprep.subr.mxu0 0.0
  %9387 = vmatpush2.msra.mxu0 %v2050
  %9388 = vmatprep.subr.mxu0 0.0
  %9389 = vmatpush2.msra.mxu0 %v2049
  %9390 = vmatprep.subr.mxu0 0.0
  %9391 = vmatpush2.msra.mxu0 %v2048
  %9392 = vmatprep.subr.mxu0 0.0
  %9393 = vmatpush2.msra.mxu0 %v2047
  %9394 = vmatprep.subr.mxu0 0.0
  %9395 = vmatpush2.msra.mxu0 %v2046
  %9396 = vmatprep.subr.mxu0 0.0
  %9397 = vmatpush2.msra.mxu0 %v2045
  %9398 = vmatprep.subr.mxu0 0.0
  %9399 = vmatpush2.msra.mxu0 %v2044
  %9400 = vmatprep.subr.mxu0 0.0
  %9401 = vmatpush2.msra.mxu0 %v2043
  %9402 = vmatprep.mubr.f32.mxu0 %v9263
  %9403 = vmatmul.mubr.f32.gmra.mxu0 %v9262
  %v9404 = vpop.f32.mrf.mxu0
  %v9405 = vadd.f32 %v9335, %v9404
  %v9406 = vpop.f32.mrf.mxu0
  %9407 = vdwg.mxu0
  %9408 = vmatprep.subr.mxu0 0.0
  %9409 = vmatpush1.msra.mxu0 %v2074
  %9410 = vmatprep.subr.mxu0 0.0
  %9411 = vmatpush1.msra.mxu0 %v2073
  %9412 = vmatprep.subr.mxu0 0.0
  %9413 = vmatpush1.msra.mxu0 %v2072
  %9414 = vmatprep.subr.mxu0 0.0
  %9415 = vmatpush1.msra.mxu0 %v2071
  %9416 = vmatprep.subr.mxu0 0.0
  %9417 = vmatpush1.msra.mxu0 %v2070
  %9418 = vmatprep.subr.mxu0 0.0
  %9419 = vmatpush1.msra.mxu0 %v2069
  %9420 = vmatprep.subr.mxu0 0.0
  %9421 = vmatpush1.msra.mxu0 %v2068
  %9422 = vmatprep.subr.mxu0 0.0
  %9423 = vmatpush1.msra.mxu0 %v2067
  %9424 = vmatprep.subr.mxu0 0.0
  %9425 = vmatpush1.msra.mxu0 %v2066
  %9426 = vmatprep.subr.mxu0 0.0
  %9427 = vmatpush1.msra.mxu0 %v2065
  %9428 = vmatprep.subr.mxu0 0.0
  %9429 = vmatpush1.msra.mxu0 %v2064
  %9430 = vmatprep.subr.mxu0 0.0
  %9431 = vmatpush1.msra.mxu0 %v2063
  %9432 = vmatprep.subr.mxu0 0.0
  %9433 = vmatpush1.msra.mxu0 %v2062
  %9434 = vmatprep.subr.mxu0 0.0
  %9435 = vmatpush1.msra.mxu0 %v2061
  %9436 = vmatprep.subr.mxu0 0.0
  %9437 = vmatpush1.msra.mxu0 %v2060
  %9438 = vmatprep.subr.mxu0 0.0
  %9439 = vmatpush1.msra.mxu0 %v2059
  %9440 = vmatprep.subr.mxu0 0.0
  %9441 = vmatpush2.msra.mxu0 %v2090
  %9442 = vmatprep.subr.mxu0 0.0
  %9443 = vmatpush2.msra.mxu0 %v2089
  %9444 = vmatprep.subr.mxu0 0.0
  %9445 = vmatpush2.msra.mxu0 %v2088
  %9446 = vmatprep.subr.mxu0 0.0
  %9447 = vmatpush2.msra.mxu0 %v2087
  %9448 = vmatprep.subr.mxu0 0.0
  %9449 = vmatpush2.msra.mxu0 %v2086
  %9450 = vmatprep.subr.mxu0 0.0
  %9451 = vmatpush2.msra.mxu0 %v2085
  %9452 = vmatprep.subr.mxu0 0.0
  %9453 = vmatpush2.msra.mxu0 %v2084
  %9454 = vmatprep.subr.mxu0 0.0
  %9455 = vmatpush2.msra.mxu0 %v2083
  %9456 = vmatprep.subr.mxu0 0.0
  %9457 = vmatpush2.msra.mxu0 %v2082
  %9458 = vmatprep.subr.mxu0 0.0
  %9459 = vmatpush2.msra.mxu0 %v2081
  %9460 = vmatprep.subr.mxu0 0.0
  %9461 = vmatpush2.msra.mxu0 %v2080
  %9462 = vmatprep.subr.mxu0 0.0
  %9463 = vmatpush2.msra.mxu0 %v2079
  %9464 = vmatprep.subr.mxu0 0.0
  %9465 = vmatpush2.msra.mxu0 %v2078
  %9466 = vmatprep.subr.mxu0 0.0
  %9467 = vmatpush2.msra.mxu0 %v2077
  %9468 = vmatprep.subr.mxu0 0.0
  %9469 = vmatpush2.msra.mxu0 %v2076
  %9470 = vmatprep.subr.mxu0 0.0
  %9471 = vmatpush2.msra.mxu0 %v2075
  %9472 = vmatprep.mubr.f32.mxu0 %v9265
  %9473 = vmatmul.mubr.f32.gmra.mxu0 %v9264
  %v9474 = vpop.f32.mrf.mxu0
  %v9475 = vadd.f32 %v9405, %v9474
  %v9476 = vpop.f32.mrf.mxu0
  %9477 = vdwg.mxu0
  %9478 = vmatprep.subr.mxu0 0.0
  %9479 = vmatpush1.msra.mxu0 %v2106
  %9480 = vmatprep.subr.mxu0 0.0
  %9481 = vmatpush1.msra.mxu0 %v2105
  %9482 = vmatprep.subr.mxu0 0.0
  %9483 = vmatpush1.msra.mxu0 %v2104
  %9484 = vmatprep.subr.mxu0 0.0
  %9485 = vmatpush1.msra.mxu0 %v2103
  %9486 = vmatprep.subr.mxu0 0.0
  %9487 = vmatpush1.msra.mxu0 %v2102
  %9488 = vmatprep.subr.mxu0 0.0
  %9489 = vmatpush1.msra.mxu0 %v2101
  %9490 = vmatprep.subr.mxu0 0.0
  %9491 = vmatpush1.msra.mxu0 %v2100
  %9492 = vmatprep.subr.mxu0 0.0
  %9493 = vmatpush1.msra.mxu0 %v2099
  %9494 = vmatprep.subr.mxu0 0.0
  %9495 = vmatpush1.msra.mxu0 %v2098
  %9496 = vmatprep.subr.mxu0 0.0
  %9497 = vmatpush1.msra.mxu0 %v2097
  %9498 = vmatprep.subr.mxu0 0.0
  %9499 = vmatpush1.msra.mxu0 %v2096
  %9500 = vmatprep.subr.mxu0 0.0
  %9501 = vmatpush1.msra.mxu0 %v2095
  %9502 = vmatprep.subr.mxu0 0.0
  %9503 = vmatpush1.msra.mxu0 %v2094
  %9504 = vmatprep.subr.mxu0 0.0
  %9505 = vmatpush1.msra.mxu0 %v2093
  %9506 = vmatprep.subr.mxu0 0.0
  %9507 = vmatpush1.msra.mxu0 %v2092
  %9508 = vmatprep.subr.mxu0 0.0
  %9509 = vmatpush1.msra.mxu0 %v2091
  %9510 = vmatprep.subr.mxu0 0.0
  %9511 = vmatpush2.msra.mxu0 %v2122
  %9512 = vmatprep.subr.mxu0 0.0
  %9513 = vmatpush2.msra.mxu0 %v2121
  %9514 = vmatprep.subr.mxu0 0.0
  %9515 = vmatpush2.msra.mxu0 %v2120
  %9516 = vmatprep.subr.mxu0 0.0
  %9517 = vmatpush2.msra.mxu0 %v2119
  %9518 = vmatprep.subr.mxu0 0.0
  %9519 = vmatpush2.msra.mxu0 %v2118
  %9520 = vmatprep.subr.mxu0 0.0
  %9521 = vmatpush2.msra.mxu0 %v2117
  %9522 = vmatprep.subr.mxu0 0.0
  %9523 = vmatpush2.msra.mxu0 %v2116
  %9524 = vmatprep.subr.mxu0 0.0
  %9525 = vmatpush2.msra.mxu0 %v2115
  %9526 = vmatprep.subr.mxu0 0.0
  %9527 = vmatpush2.msra.mxu0 %v2114
  %9528 = vmatprep.subr.mxu0 0.0
  %9529 = vmatpush2.msra.mxu0 %v2113
  %9530 = vmatprep.subr.mxu0 0.0
  %9531 = vmatpush2.msra.mxu0 %v2112
  %9532 = vmatprep.subr.mxu0 0.0
  %9533 = vmatpush2.msra.mxu0 %v2111
  %9534 = vmatprep.subr.mxu0 0.0
  %9535 = vmatpush2.msra.mxu0 %v2110
  %9536 = vmatprep.subr.mxu0 0.0
  %9537 = vmatpush2.msra.mxu0 %v2109
  %9538 = vmatprep.subr.mxu0 0.0
  %9539 = vmatpush2.msra.mxu0 %v2108
  %9540 = vmatprep.subr.mxu0 0.0
  %9541 = vmatpush2.msra.mxu0 %v2107
  %9542 = vmatprep.mubr.f32.mxu0 %v9267
  %9543 = vmatmul.mubr.f32.gmra.mxu0 %v9266
  %v9544 = vpop.f32.mrf.mxu0
  %v9545 = vadd.f32 %v9475, %v9544
  %v9546 = vpop.f32.mrf.mxu0
  %9547 = vdwg.mxu0
  %v9548 = vmul.f32 %v9212, 0.95
  %v9549 = vadd.f32 %v9548, %v9545
  %v9550 = vsub.f32 %v9549, %v9215
  %vm9551 = vcmp.gt.f32.partialorder %v9550, 1.0
  %v9552 = vsel %vm9551, 1, 0
  %v9553 = vcvt.s32.f32 %v9552
  %s9554 = scalar_lea.vmem %s5, 168
  %9555 = vst [vmem:[%s9554] sm:$0xff] %v9553
  %s9556 = scalar_lea.vmem %s6, 168
  %9557 = vst [vmem:[%s9556] sm:$0xff] %v9550
  %v9558 = vmul.f32 %v9236, 0.95
  %v9559 = vmul.f32 %v9237, 0.95
  %v9560 = vmul.f32 %v9238, 0.95
  %v9561 = vmul.f32 %v9239, 0.95
  %v9562 = vmul.f32 %v9240, 0.95
  %v9563 = vmul.f32 %v9241, 0.95
  %v9564 = vmul.f32 %v9242, 0.95
  %v9565 = vmul.f32 %v9243, 0.95
  %v9566 = vadd.f32 %v9558, %v1139
  %v9567 = vadd.f32 %v9559, %v1141
  %v9568 = vadd.f32 %v9560, %v1423
  %v9569 = vadd.f32 %v9561, %v1425
  %v9570 = vadd.f32 %v9562, %v1707
  %v9571 = vadd.f32 %v9563, %v1709
  %v9572 = vadd.f32 %v9564, %v1991
  %v9573 = vadd.f32 %v9565, %v1993
  %v9574 = vsub.f32 %v9566, %v9260
  %v9575 = vsub.f32 %v9567, %v9261
  %v9576 = vsub.f32 %v9568, %v9262
  %v9577 = vsub.f32 %v9569, %v9263
  %v9578 = vsub.f32 %v9570, %v9264
  %v9579 = vsub.f32 %v9571, %v9265
  %v9580 = vsub.f32 %v9572, %v9266
  %v9581 = vsub.f32 %v9573, %v9267
  %vm9582 = vcmp.gt.f32.partialorder %v9574, 1.0
  %vm9583 = vcmp.gt.f32.partialorder %v9575, 1.0
  %vm9584 = vcmp.gt.f32.partialorder %v9576, 1.0
  %vm9585 = vcmp.gt.f32.partialorder %v9577, 1.0
  %vm9586 = vcmp.gt.f32.partialorder %v9578, 1.0
  %vm9587 = vcmp.gt.f32.partialorder %v9579, 1.0
  %vm9588 = vcmp.gt.f32.partialorder %v9580, 1.0
  %vm9589 = vcmp.gt.f32.partialorder %v9581, 1.0
  %v9590 = vsel %vm9582, 1, 0
  %v9591 = vsel %vm9583, 1, 0
  %v9592 = vsel %vm9584, 1, 0
  %v9593 = vsel %vm9585, 1, 0
  %v9594 = vsel %vm9586, 1, 0
  %v9595 = vsel %vm9587, 1, 0
  %v9596 = vsel %vm9588, 1, 0
  %v9597 = vsel %vm9589, 1, 0
  %v9598 = vcvt.s32.f32 %v9590
  %v9599 = vcvt.s32.f32 %v9591
  %v9600 = vcvt.s32.f32 %v9592
  %v9601 = vcvt.s32.f32 %v9593
  %v9602 = vcvt.s32.f32 %v9594
  %v9603 = vcvt.s32.f32 %v9595
  %v9604 = vcvt.s32.f32 %v9596
  %v9605 = vcvt.s32.f32 %v9597
  %9606 = vmatprep.subr.mxu0 0.0
  %9607 = vmatpush1.msra.mxu0 %v2010
  %9608 = vmatprep.subr.mxu0 0.0
  %9609 = vmatpush1.msra.mxu0 %v2009
  %9610 = vmatprep.subr.mxu0 0.0
  %9611 = vmatpush1.msra.mxu0 %v2008
  %9612 = vmatprep.subr.mxu0 0.0
  %9613 = vmatpush1.msra.mxu0 %v2007
  %9614 = vmatprep.subr.mxu0 0.0
  %9615 = vmatpush1.msra.mxu0 %v2006
  %9616 = vmatprep.subr.mxu0 0.0
  %9617 = vmatpush1.msra.mxu0 %v2005
  %9618 = vmatprep.subr.mxu0 0.0
  %9619 = vmatpush1.msra.mxu0 %v2004
  %9620 = vmatprep.subr.mxu0 0.0
  %9621 = vmatpush1.msra.mxu0 %v2003
  %9622 = vmatprep.subr.mxu0 0.0
  %9623 = vmatpush1.msra.mxu0 %v2002
  %9624 = vmatprep.subr.mxu0 0.0
  %9625 = vmatpush1.msra.mxu0 %v2001
  %9626 = vmatprep.subr.mxu0 0.0
  %9627 = vmatpush1.msra.mxu0 %v2000
  %9628 = vmatprep.subr.mxu0 0.0
  %9629 = vmatpush1.msra.mxu0 %v1999
  %9630 = vmatprep.subr.mxu0 0.0
  %9631 = vmatpush1.msra.mxu0 %v1998
  %9632 = vmatprep.subr.mxu0 0.0
  %9633 = vmatpush1.msra.mxu0 %v1997
  %9634 = vmatprep.subr.mxu0 0.0
  %9635 = vmatpush1.msra.mxu0 %v1996
  %9636 = vmatprep.subr.mxu0 0.0
  %9637 = vmatpush1.msra.mxu0 %v1995
  %9638 = vmatprep.subr.mxu0 0.0
  %9639 = vmatpush2.msra.mxu0 %v2026
  %9640 = vmatprep.subr.mxu0 0.0
  %9641 = vmatpush2.msra.mxu0 %v2025
  %9642 = vmatprep.subr.mxu0 0.0
  %9643 = vmatpush2.msra.mxu0 %v2024
  %9644 = vmatprep.subr.mxu0 0.0
  %9645 = vmatpush2.msra.mxu0 %v2023
  %9646 = vmatprep.subr.mxu0 0.0
  %9647 = vmatpush2.msra.mxu0 %v2022
  %9648 = vmatprep.subr.mxu0 0.0
  %9649 = vmatpush2.msra.mxu0 %v2021
  %9650 = vmatprep.subr.mxu0 0.0
  %9651 = vmatpush2.msra.mxu0 %v2020
  %9652 = vmatprep.subr.mxu0 0.0
  %9653 = vmatpush2.msra.mxu0 %v2019
  %9654 = vmatprep.subr.mxu0 0.0
  %9655 = vmatpush2.msra.mxu0 %v2018
  %9656 = vmatprep.subr.mxu0 0.0
  %9657 = vmatpush2.msra.mxu0 %v2017
  %9658 = vmatprep.subr.mxu0 0.0
  %9659 = vmatpush2.msra.mxu0 %v2016
  %9660 = vmatprep.subr.mxu0 0.0
  %9661 = vmatpush2.msra.mxu0 %v2015
  %9662 = vmatprep.subr.mxu0 0.0
  %9663 = vmatpush2.msra.mxu0 %v2014
  %9664 = vmatprep.subr.mxu0 0.0
  %9665 = vmatpush2.msra.mxu0 %v2013
  %9666 = vmatprep.subr.mxu0 0.0
  %9667 = vmatpush2.msra.mxu0 %v2012
  %9668 = vmatprep.subr.mxu0 0.0
  %9669 = vmatpush2.msra.mxu0 %v2011
  %9670 = vmatprep.mubr.f32.mxu0 %v9599
  %9671 = vmatmul.mubr.f32.gmra.mxu0 %v9598
  %v9672 = vpop.f32.mrf.mxu0
  %v9673 = vadd.f32 %v2171, %v9672
  %v9674 = vpop.f32.mrf.mxu0
  %9675 = vdwg.mxu0
  %9676 = vmatprep.subr.mxu0 0.0
  %9677 = vmatpush1.msra.mxu0 %v2042
  %9678 = vmatprep.subr.mxu0 0.0
  %9679 = vmatpush1.msra.mxu0 %v2041
  %9680 = vmatprep.subr.mxu0 0.0
  %9681 = vmatpush1.msra.mxu0 %v2040
  %9682 = vmatprep.subr.mxu0 0.0
  %9683 = vmatpush1.msra.mxu0 %v2039
  %9684 = vmatprep.subr.mxu0 0.0
  %9685 = vmatpush1.msra.mxu0 %v2038
  %9686 = vmatprep.subr.mxu0 0.0
  %9687 = vmatpush1.msra.mxu0 %v2037
  %9688 = vmatprep.subr.mxu0 0.0
  %9689 = vmatpush1.msra.mxu0 %v2036
  %9690 = vmatprep.subr.mxu0 0.0
  %9691 = vmatpush1.msra.mxu0 %v2035
  %9692 = vmatprep.subr.mxu0 0.0
  %9693 = vmatpush1.msra.mxu0 %v2034
  %9694 = vmatprep.subr.mxu0 0.0
  %9695 = vmatpush1.msra.mxu0 %v2033
  %9696 = vmatprep.subr.mxu0 0.0
  %9697 = vmatpush1.msra.mxu0 %v2032
  %9698 = vmatprep.subr.mxu0 0.0
  %9699 = vmatpush1.msra.mxu0 %v2031
  %9700 = vmatprep.subr.mxu0 0.0
  %9701 = vmatpush1.msra.mxu0 %v2030
  %9702 = vmatprep.subr.mxu0 0.0
  %9703 = vmatpush1.msra.mxu0 %v2029
  %9704 = vmatprep.subr.mxu0 0.0
  %9705 = vmatpush1.msra.mxu0 %v2028
  %9706 = vmatprep.subr.mxu0 0.0
  %9707 = vmatpush1.msra.mxu0 %v2027
  %9708 = vmatprep.subr.mxu0 0.0
  %9709 = vmatpush2.msra.mxu0 %v2058
  %9710 = vmatprep.subr.mxu0 0.0
  %9711 = vmatpush2.msra.mxu0 %v2057
  %9712 = vmatprep.subr.mxu0 0.0
  %9713 = vmatpush2.msra.mxu0 %v2056
  %9714 = vmatprep.subr.mxu0 0.0
  %9715 = vmatpush2.msra.mxu0 %v2055
  %9716 = vmatprep.subr.mxu0 0.0
  %9717 = vmatpush2.msra.mxu0 %v2054
  %9718 = vmatprep.subr.mxu0 0.0
  %9719 = vmatpush2.msra.mxu0 %v2053
  %9720 = vmatprep.subr.mxu0 0.0
  %9721 = vmatpush2.msra.mxu0 %v2052
  %9722 = vmatprep.subr.mxu0 0.0
  %9723 = vmatpush2.msra.mxu0 %v2051
  %9724 = vmatprep.subr.mxu0 0.0
  %9725 = vmatpush2.msra.mxu0 %v2050
  %9726 = vmatprep.subr.mxu0 0.0
  %9727 = vmatpush2.msra.mxu0 %v2049
  %9728 = vmatprep.subr.mxu0 0.0
  %9729 = vmatpush2.msra.mxu0 %v2048
  %9730 = vmatprep.subr.mxu0 0.0
  %9731 = vmatpush2.msra.mxu0 %v2047
  %9732 = vmatprep.subr.mxu0 0.0
  %9733 = vmatpush2.msra.mxu0 %v2046
  %9734 = vmatprep.subr.mxu0 0.0
  %9735 = vmatpush2.msra.mxu0 %v2045
  %9736 = vmatprep.subr.mxu0 0.0
  %9737 = vmatpush2.msra.mxu0 %v2044
  %9738 = vmatprep.subr.mxu0 0.0
  %9739 = vmatpush2.msra.mxu0 %v2043
  %9740 = vmatprep.mubr.f32.mxu0 %v9601
  %9741 = vmatmul.mubr.f32.gmra.mxu0 %v9600
  %v9742 = vpop.f32.mrf.mxu0
  %v9743 = vadd.f32 %v9673, %v9742
  %v9744 = vpop.f32.mrf.mxu0
  %9745 = vdwg.mxu0
  %9746 = vmatprep.subr.mxu0 0.0
  %9747 = vmatpush1.msra.mxu0 %v2074
  %9748 = vmatprep.subr.mxu0 0.0
  %9749 = vmatpush1.msra.mxu0 %v2073
  %9750 = vmatprep.subr.mxu0 0.0
  %9751 = vmatpush1.msra.mxu0 %v2072
  %9752 = vmatprep.subr.mxu0 0.0
  %9753 = vmatpush1.msra.mxu0 %v2071
  %9754 = vmatprep.subr.mxu0 0.0
  %9755 = vmatpush1.msra.mxu0 %v2070
  %9756 = vmatprep.subr.mxu0 0.0
  %9757 = vmatpush1.msra.mxu0 %v2069
  %9758 = vmatprep.subr.mxu0 0.0
  %9759 = vmatpush1.msra.mxu0 %v2068
  %9760 = vmatprep.subr.mxu0 0.0
  %9761 = vmatpush1.msra.mxu0 %v2067
  %9762 = vmatprep.subr.mxu0 0.0
  %9763 = vmatpush1.msra.mxu0 %v2066
  %9764 = vmatprep.subr.mxu0 0.0
  %9765 = vmatpush1.msra.mxu0 %v2065
  %9766 = vmatprep.subr.mxu0 0.0
  %9767 = vmatpush1.msra.mxu0 %v2064
  %9768 = vmatprep.subr.mxu0 0.0
  %9769 = vmatpush1.msra.mxu0 %v2063
  %9770 = vmatprep.subr.mxu0 0.0
  %9771 = vmatpush1.msra.mxu0 %v2062
  %9772 = vmatprep.subr.mxu0 0.0
  %9773 = vmatpush1.msra.mxu0 %v2061
  %9774 = vmatprep.subr.mxu0 0.0
  %9775 = vmatpush1.msra.mxu0 %v2060
  %9776 = vmatprep.subr.mxu0 0.0
  %9777 = vmatpush1.msra.mxu0 %v2059
  %9778 = vmatprep.subr.mxu0 0.0
  %9779 = vmatpush2.msra.mxu0 %v2090
  %9780 = vmatprep.subr.mxu0 0.0
  %9781 = vmatpush2.msra.mxu0 %v2089
  %9782 = vmatprep.subr.mxu0 0.0
  %9783 = vmatpush2.msra.mxu0 %v2088
  %9784 = vmatprep.subr.mxu0 0.0
  %9785 = vmatpush2.msra.mxu0 %v2087
  %9786 = vmatprep.subr.mxu0 0.0
  %9787 = vmatpush2.msra.mxu0 %v2086
  %9788 = vmatprep.subr.mxu0 0.0
  %9789 = vmatpush2.msra.mxu0 %v2085
  %9790 = vmatprep.subr.mxu0 0.0
  %9791 = vmatpush2.msra.mxu0 %v2084
  %9792 = vmatprep.subr.mxu0 0.0
  %9793 = vmatpush2.msra.mxu0 %v2083
  %9794 = vmatprep.subr.mxu0 0.0
  %9795 = vmatpush2.msra.mxu0 %v2082
  %9796 = vmatprep.subr.mxu0 0.0
  %9797 = vmatpush2.msra.mxu0 %v2081
  %9798 = vmatprep.subr.mxu0 0.0
  %9799 = vmatpush2.msra.mxu0 %v2080
  %9800 = vmatprep.subr.mxu0 0.0
  %9801 = vmatpush2.msra.mxu0 %v2079
  %9802 = vmatprep.subr.mxu0 0.0
  %9803 = vmatpush2.msra.mxu0 %v2078
  %9804 = vmatprep.subr.mxu0 0.0
  %9805 = vmatpush2.msra.mxu0 %v2077
  %9806 = vmatprep.subr.mxu0 0.0
  %9807 = vmatpush2.msra.mxu0 %v2076
  %9808 = vmatprep.subr.mxu0 0.0
  %9809 = vmatpush2.msra.mxu0 %v2075
  %9810 = vmatprep.mubr.f32.mxu0 %v9603
  %9811 = vmatmul.mubr.f32.gmra.mxu0 %v9602
  %v9812 = vpop.f32.mrf.mxu0
  %v9813 = vadd.f32 %v9743, %v9812
  %v9814 = vpop.f32.mrf.mxu0
  %9815 = vdwg.mxu0
  %9816 = vmatprep.subr.mxu0 0.0
  %9817 = vmatpush1.msra.mxu0 %v2106
  %9818 = vmatprep.subr.mxu0 0.0
  %9819 = vmatpush1.msra.mxu0 %v2105
  %9820 = vmatprep.subr.mxu0 0.0
  %9821 = vmatpush1.msra.mxu0 %v2104
  %9822 = vmatprep.subr.mxu0 0.0
  %9823 = vmatpush1.msra.mxu0 %v2103
  %9824 = vmatprep.subr.mxu0 0.0
  %9825 = vmatpush1.msra.mxu0 %v2102
  %9826 = vmatprep.subr.mxu0 0.0
  %9827 = vmatpush1.msra.mxu0 %v2101
  %9828 = vmatprep.subr.mxu0 0.0
  %9829 = vmatpush1.msra.mxu0 %v2100
  %9830 = vmatprep.subr.mxu0 0.0
  %9831 = vmatpush1.msra.mxu0 %v2099
  %9832 = vmatprep.subr.mxu0 0.0
  %9833 = vmatpush1.msra.mxu0 %v2098
  %9834 = vmatprep.subr.mxu0 0.0
  %9835 = vmatpush1.msra.mxu0 %v2097
  %9836 = vmatprep.subr.mxu0 0.0
  %9837 = vmatpush1.msra.mxu0 %v2096
  %9838 = vmatprep.subr.mxu0 0.0
  %9839 = vmatpush1.msra.mxu0 %v2095
  %9840 = vmatprep.subr.mxu0 0.0
  %9841 = vmatpush1.msra.mxu0 %v2094
  %9842 = vmatprep.subr.mxu0 0.0
  %9843 = vmatpush1.msra.mxu0 %v2093
  %9844 = vmatprep.subr.mxu0 0.0
  %9845 = vmatpush1.msra.mxu0 %v2092
  %9846 = vmatprep.subr.mxu0 0.0
  %9847 = vmatpush1.msra.mxu0 %v2091
  %9848 = vmatprep.subr.mxu0 0.0
  %9849 = vmatpush2.msra.mxu0 %v2122
  %9850 = vmatprep.subr.mxu0 0.0
  %9851 = vmatpush2.msra.mxu0 %v2121
  %9852 = vmatprep.subr.mxu0 0.0
  %9853 = vmatpush2.msra.mxu0 %v2120
  %9854 = vmatprep.subr.mxu0 0.0
  %9855 = vmatpush2.msra.mxu0 %v2119
  %9856 = vmatprep.subr.mxu0 0.0
  %9857 = vmatpush2.msra.mxu0 %v2118
  %9858 = vmatprep.subr.mxu0 0.0
  %9859 = vmatpush2.msra.mxu0 %v2117
  %9860 = vmatprep.subr.mxu0 0.0
  %9861 = vmatpush2.msra.mxu0 %v2116
  %9862 = vmatprep.subr.mxu0 0.0
  %9863 = vmatpush2.msra.mxu0 %v2115
  %9864 = vmatprep.subr.mxu0 0.0
  %9865 = vmatpush2.msra.mxu0 %v2114
  %9866 = vmatprep.subr.mxu0 0.0
  %9867 = vmatpush2.msra.mxu0 %v2113
  %9868 = vmatprep.subr.mxu0 0.0
  %9869 = vmatpush2.msra.mxu0 %v2112
  %9870 = vmatprep.subr.mxu0 0.0
  %9871 = vmatpush2.msra.mxu0 %v2111
  %9872 = vmatprep.subr.mxu0 0.0
  %9873 = vmatpush2.msra.mxu0 %v2110
  %9874 = vmatprep.subr.mxu0 0.0
  %9875 = vmatpush2.msra.mxu0 %v2109
  %9876 = vmatprep.subr.mxu0 0.0
  %9877 = vmatpush2.msra.mxu0 %v2108
  %9878 = vmatprep.subr.mxu0 0.0
  %9879 = vmatpush2.msra.mxu0 %v2107
  %9880 = vmatprep.mubr.f32.mxu0 %v9605
  %9881 = vmatmul.mubr.f32.gmra.mxu0 %v9604
  %v9882 = vpop.f32.mrf.mxu0
  %v9883 = vadd.f32 %v9813, %v9882
  %v9884 = vpop.f32.mrf.mxu0
  %9885 = vdwg.mxu0
  %v9886 = vmul.f32 %v9550, 0.95
  %v9887 = vadd.f32 %v9886, %v9883
  %v9888 = vsub.f32 %v9887, %v9553
  %vm9889 = vcmp.gt.f32.partialorder %v9888, 1.0
  %v9890 = vsel %vm9889, 1, 0
  %v9891 = vcvt.s32.f32 %v9890
  %s9892 = scalar_lea.vmem %s5, 176
  %9893 = vst [vmem:[%s9892] sm:$0xff] %v9891
  %s9894 = scalar_lea.vmem %s6, 176
  %9895 = vst [vmem:[%s9894] sm:$0xff] %v9888
  %v9896 = vmul.f32 %v9574, 0.95
  %v9897 = vmul.f32 %v9575, 0.95
  %v9898 = vmul.f32 %v9576, 0.95
  %v9899 = vmul.f32 %v9577, 0.95
  %v9900 = vmul.f32 %v9578, 0.95
  %v9901 = vmul.f32 %v9579, 0.95
  %v9902 = vmul.f32 %v9580, 0.95
  %v9903 = vmul.f32 %v9581, 0.95
  %v9904 = vadd.f32 %v9896, %v1139
  %v9905 = vadd.f32 %v9897, %v1141
  %v9906 = vadd.f32 %v9898, %v1423
  %v9907 = vadd.f32 %v9899, %v1425
  %v9908 = vadd.f32 %v9900, %v1707
  %v9909 = vadd.f32 %v9901, %v1709
  %v9910 = vadd.f32 %v9902, %v1991
  %v9911 = vadd.f32 %v9903, %v1993
  %v9912 = vsub.f32 %v9904, %v9598
  %v9913 = vsub.f32 %v9905, %v9599
  %v9914 = vsub.f32 %v9906, %v9600
  %v9915 = vsub.f32 %v9907, %v9601
  %v9916 = vsub.f32 %v9908, %v9602
  %v9917 = vsub.f32 %v9909, %v9603
  %v9918 = vsub.f32 %v9910, %v9604
  %v9919 = vsub.f32 %v9911, %v9605
  %vm9920 = vcmp.gt.f32.partialorder %v9912, 1.0
  %vm9921 = vcmp.gt.f32.partialorder %v9913, 1.0
  %vm9922 = vcmp.gt.f32.partialorder %v9914, 1.0
  %vm9923 = vcmp.gt.f32.partialorder %v9915, 1.0
  %vm9924 = vcmp.gt.f32.partialorder %v9916, 1.0
  %vm9925 = vcmp.gt.f32.partialorder %v9917, 1.0
  %vm9926 = vcmp.gt.f32.partialorder %v9918, 1.0
  %vm9927 = vcmp.gt.f32.partialorder %v9919, 1.0
  %v9928 = vsel %vm9920, 1, 0
  %v9929 = vsel %vm9921, 1, 0
  %v9930 = vsel %vm9922, 1, 0
  %v9931 = vsel %vm9923, 1, 0
  %v9932 = vsel %vm9924, 1, 0
  %v9933 = vsel %vm9925, 1, 0
  %v9934 = vsel %vm9926, 1, 0
  %v9935 = vsel %vm9927, 1, 0
  %v9936 = vcvt.s32.f32 %v9928
  %v9937 = vcvt.s32.f32 %v9929
  %v9938 = vcvt.s32.f32 %v9930
  %v9939 = vcvt.s32.f32 %v9931
  %v9940 = vcvt.s32.f32 %v9932
  %v9941 = vcvt.s32.f32 %v9933
  %v9942 = vcvt.s32.f32 %v9934
  %v9943 = vcvt.s32.f32 %v9935
  %9944 = vmatprep.subr.mxu0 0.0
  %9945 = vmatpush1.msra.mxu0 %v2010
  %9946 = vmatprep.subr.mxu0 0.0
  %9947 = vmatpush1.msra.mxu0 %v2009
  %9948 = vmatprep.subr.mxu0 0.0
  %9949 = vmatpush1.msra.mxu0 %v2008
  %9950 = vmatprep.subr.mxu0 0.0
  %9951 = vmatpush1.msra.mxu0 %v2007
  %9952 = vmatprep.subr.mxu0 0.0
  %9953 = vmatpush1.msra.mxu0 %v2006
  %9954 = vmatprep.subr.mxu0 0.0
  %9955 = vmatpush1.msra.mxu0 %v2005
  %9956 = vmatprep.subr.mxu0 0.0
  %9957 = vmatpush1.msra.mxu0 %v2004
  %9958 = vmatprep.subr.mxu0 0.0
  %9959 = vmatpush1.msra.mxu0 %v2003
  %9960 = vmatprep.subr.mxu0 0.0
  %9961 = vmatpush1.msra.mxu0 %v2002
  %9962 = vmatprep.subr.mxu0 0.0
  %9963 = vmatpush1.msra.mxu0 %v2001
  %9964 = vmatprep.subr.mxu0 0.0
  %9965 = vmatpush1.msra.mxu0 %v2000
  %9966 = vmatprep.subr.mxu0 0.0
  %9967 = vmatpush1.msra.mxu0 %v1999
  %9968 = vmatprep.subr.mxu0 0.0
  %9969 = vmatpush1.msra.mxu0 %v1998
  %9970 = vmatprep.subr.mxu0 0.0
  %9971 = vmatpush1.msra.mxu0 %v1997
  %9972 = vmatprep.subr.mxu0 0.0
  %9973 = vmatpush1.msra.mxu0 %v1996
  %9974 = vmatprep.subr.mxu0 0.0
  %9975 = vmatpush1.msra.mxu0 %v1995
  %9976 = vmatprep.subr.mxu0 0.0
  %9977 = vmatpush2.msra.mxu0 %v2026
  %9978 = vmatprep.subr.mxu0 0.0
  %9979 = vmatpush2.msra.mxu0 %v2025
  %9980 = vmatprep.subr.mxu0 0.0
  %9981 = vmatpush2.msra.mxu0 %v2024
  %9982 = vmatprep.subr.mxu0 0.0
  %9983 = vmatpush2.msra.mxu0 %v2023
  %9984 = vmatprep.subr.mxu0 0.0
  %9985 = vmatpush2.msra.mxu0 %v2022
  %9986 = vmatprep.subr.mxu0 0.0
  %9987 = vmatpush2.msra.mxu0 %v2021
  %9988 = vmatprep.subr.mxu0 0.0
  %9989 = vmatpush2.msra.mxu0 %v2020
  %9990 = vmatprep.subr.mxu0 0.0
  %9991 = vmatpush2.msra.mxu0 %v2019
  %9992 = vmatprep.subr.mxu0 0.0
  %9993 = vmatpush2.msra.mxu0 %v2018
  %9994 = vmatprep.subr.mxu0 0.0
  %9995 = vmatpush2.msra.mxu0 %v2017
  %9996 = vmatprep.subr.mxu0 0.0
  %9997 = vmatpush2.msra.mxu0 %v2016
  %9998 = vmatprep.subr.mxu0 0.0
  %9999 = vmatpush2.msra.mxu0 %v2015
  %10000 = vmatprep.subr.mxu0 0.0
  %10001 = vmatpush2.msra.mxu0 %v2014
  %10002 = vmatprep.subr.mxu0 0.0
  %10003 = vmatpush2.msra.mxu0 %v2013
  %10004 = vmatprep.subr.mxu0 0.0
  %10005 = vmatpush2.msra.mxu0 %v2012
  %10006 = vmatprep.subr.mxu0 0.0
  %10007 = vmatpush2.msra.mxu0 %v2011
  %10008 = vmatprep.mubr.f32.mxu0 %v9937
  %10009 = vmatmul.mubr.f32.gmra.mxu0 %v9936
  %v10010 = vpop.f32.mrf.mxu0
  %v10011 = vadd.f32 %v2171, %v10010
  %v10012 = vpop.f32.mrf.mxu0
  %10013 = vdwg.mxu0
  %10014 = vmatprep.subr.mxu0 0.0
  %10015 = vmatpush1.msra.mxu0 %v2042
  %10016 = vmatprep.subr.mxu0 0.0
  %10017 = vmatpush1.msra.mxu0 %v2041
  %10018 = vmatprep.subr.mxu0 0.0
  %10019 = vmatpush1.msra.mxu0 %v2040
  %10020 = vmatprep.subr.mxu0 0.0
  %10021 = vmatpush1.msra.mxu0 %v2039
  %10022 = vmatprep.subr.mxu0 0.0
  %10023 = vmatpush1.msra.mxu0 %v2038
  %10024 = vmatprep.subr.mxu0 0.0
  %10025 = vmatpush1.msra.mxu0 %v2037
  %10026 = vmatprep.subr.mxu0 0.0
  %10027 = vmatpush1.msra.mxu0 %v2036
  %10028 = vmatprep.subr.mxu0 0.0
  %10029 = vmatpush1.msra.mxu0 %v2035
  %10030 = vmatprep.subr.mxu0 0.0
  %10031 = vmatpush1.msra.mxu0 %v2034
  %10032 = vmatprep.subr.mxu0 0.0
  %10033 = vmatpush1.msra.mxu0 %v2033
  %10034 = vmatprep.subr.mxu0 0.0
  %10035 = vmatpush1.msra.mxu0 %v2032
  %10036 = vmatprep.subr.mxu0 0.0
  %10037 = vmatpush1.msra.mxu0 %v2031
  %10038 = vmatprep.subr.mxu0 0.0
  %10039 = vmatpush1.msra.mxu0 %v2030
  %10040 = vmatprep.subr.mxu0 0.0
  %10041 = vmatpush1.msra.mxu0 %v2029
  %10042 = vmatprep.subr.mxu0 0.0
  %10043 = vmatpush1.msra.mxu0 %v2028
  %10044 = vmatprep.subr.mxu0 0.0
  %10045 = vmatpush1.msra.mxu0 %v2027
  %10046 = vmatprep.subr.mxu0 0.0
  %10047 = vmatpush2.msra.mxu0 %v2058
  %10048 = vmatprep.subr.mxu0 0.0
  %10049 = vmatpush2.msra.mxu0 %v2057
  %10050 = vmatprep.subr.mxu0 0.0
  %10051 = vmatpush2.msra.mxu0 %v2056
  %10052 = vmatprep.subr.mxu0 0.0
  %10053 = vmatpush2.msra.mxu0 %v2055
  %10054 = vmatprep.subr.mxu0 0.0
  %10055 = vmatpush2.msra.mxu0 %v2054
  %10056 = vmatprep.subr.mxu0 0.0
  %10057 = vmatpush2.msra.mxu0 %v2053
  %10058 = vmatprep.subr.mxu0 0.0
  %10059 = vmatpush2.msra.mxu0 %v2052
  %10060 = vmatprep.subr.mxu0 0.0
  %10061 = vmatpush2.msra.mxu0 %v2051
  %10062 = vmatprep.subr.mxu0 0.0
  %10063 = vmatpush2.msra.mxu0 %v2050
  %10064 = vmatprep.subr.mxu0 0.0
  %10065 = vmatpush2.msra.mxu0 %v2049
  %10066 = vmatprep.subr.mxu0 0.0
  %10067 = vmatpush2.msra.mxu0 %v2048
  %10068 = vmatprep.subr.mxu0 0.0
  %10069 = vmatpush2.msra.mxu0 %v2047
  %10070 = vmatprep.subr.mxu0 0.0
  %10071 = vmatpush2.msra.mxu0 %v2046
  %10072 = vmatprep.subr.mxu0 0.0
  %10073 = vmatpush2.msra.mxu0 %v2045
  %10074 = vmatprep.subr.mxu0 0.0
  %10075 = vmatpush2.msra.mxu0 %v2044
  %10076 = vmatprep.subr.mxu0 0.0
  %10077 = vmatpush2.msra.mxu0 %v2043
  %10078 = vmatprep.mubr.f32.mxu0 %v9939
  %10079 = vmatmul.mubr.f32.gmra.mxu0 %v9938
  %v10080 = vpop.f32.mrf.mxu0
  %v10081 = vadd.f32 %v10011, %v10080
  %v10082 = vpop.f32.mrf.mxu0
  %10083 = vdwg.mxu0
  %10084 = vmatprep.subr.mxu0 0.0
  %10085 = vmatpush1.msra.mxu0 %v2074
  %10086 = vmatprep.subr.mxu0 0.0
  %10087 = vmatpush1.msra.mxu0 %v2073
  %10088 = vmatprep.subr.mxu0 0.0
  %10089 = vmatpush1.msra.mxu0 %v2072
  %10090 = vmatprep.subr.mxu0 0.0
  %10091 = vmatpush1.msra.mxu0 %v2071
  %10092 = vmatprep.subr.mxu0 0.0
  %10093 = vmatpush1.msra.mxu0 %v2070
  %10094 = vmatprep.subr.mxu0 0.0
  %10095 = vmatpush1.msra.mxu0 %v2069
  %10096 = vmatprep.subr.mxu0 0.0
  %10097 = vmatpush1.msra.mxu0 %v2068
  %10098 = vmatprep.subr.mxu0 0.0
  %10099 = vmatpush1.msra.mxu0 %v2067
  %10100 = vmatprep.subr.mxu0 0.0
  %10101 = vmatpush1.msra.mxu0 %v2066
  %10102 = vmatprep.subr.mxu0 0.0
  %10103 = vmatpush1.msra.mxu0 %v2065
  %10104 = vmatprep.subr.mxu0 0.0
  %10105 = vmatpush1.msra.mxu0 %v2064
  %10106 = vmatprep.subr.mxu0 0.0
  %10107 = vmatpush1.msra.mxu0 %v2063
  %10108 = vmatprep.subr.mxu0 0.0
  %10109 = vmatpush1.msra.mxu0 %v2062
  %10110 = vmatprep.subr.mxu0 0.0
  %10111 = vmatpush1.msra.mxu0 %v2061
  %10112 = vmatprep.subr.mxu0 0.0
  %10113 = vmatpush1.msra.mxu0 %v2060
  %10114 = vmatprep.subr.mxu0 0.0
  %10115 = vmatpush1.msra.mxu0 %v2059
  %10116 = vmatprep.subr.mxu0 0.0
  %10117 = vmatpush2.msra.mxu0 %v2090
  %10118 = vmatprep.subr.mxu0 0.0
  %10119 = vmatpush2.msra.mxu0 %v2089
  %10120 = vmatprep.subr.mxu0 0.0
  %10121 = vmatpush2.msra.mxu0 %v2088
  %10122 = vmatprep.subr.mxu0 0.0
  %10123 = vmatpush2.msra.mxu0 %v2087
  %10124 = vmatprep.subr.mxu0 0.0
  %10125 = vmatpush2.msra.mxu0 %v2086
  %10126 = vmatprep.subr.mxu0 0.0
  %10127 = vmatpush2.msra.mxu0 %v2085
  %10128 = vmatprep.subr.mxu0 0.0
  %10129 = vmatpush2.msra.mxu0 %v2084
  %10130 = vmatprep.subr.mxu0 0.0
  %10131 = vmatpush2.msra.mxu0 %v2083
  %10132 = vmatprep.subr.mxu0 0.0
  %10133 = vmatpush2.msra.mxu0 %v2082
  %10134 = vmatprep.subr.mxu0 0.0
  %10135 = vmatpush2.msra.mxu0 %v2081
  %10136 = vmatprep.subr.mxu0 0.0
  %10137 = vmatpush2.msra.mxu0 %v2080
  %10138 = vmatprep.subr.mxu0 0.0
  %10139 = vmatpush2.msra.mxu0 %v2079
  %10140 = vmatprep.subr.mxu0 0.0
  %10141 = vmatpush2.msra.mxu0 %v2078
  %10142 = vmatprep.subr.mxu0 0.0
  %10143 = vmatpush2.msra.mxu0 %v2077
  %10144 = vmatprep.subr.mxu0 0.0
  %10145 = vmatpush2.msra.mxu0 %v2076
  %10146 = vmatprep.subr.mxu0 0.0
  %10147 = vmatpush2.msra.mxu0 %v2075
  %10148 = vmatprep.mubr.f32.mxu0 %v9941
  %10149 = vmatmul.mubr.f32.gmra.mxu0 %v9940
  %v10150 = vpop.f32.mrf.mxu0
  %v10151 = vadd.f32 %v10081, %v10150
  %v10152 = vpop.f32.mrf.mxu0
  %10153 = vdwg.mxu0
  %10154 = vmatprep.subr.mxu0 0.0
  %10155 = vmatpush1.msra.mxu0 %v2106
  %10156 = vmatprep.subr.mxu0 0.0
  %10157 = vmatpush1.msra.mxu0 %v2105
  %10158 = vmatprep.subr.mxu0 0.0
  %10159 = vmatpush1.msra.mxu0 %v2104
  %10160 = vmatprep.subr.mxu0 0.0
  %10161 = vmatpush1.msra.mxu0 %v2103
  %10162 = vmatprep.subr.mxu0 0.0
  %10163 = vmatpush1.msra.mxu0 %v2102
  %10164 = vmatprep.subr.mxu0 0.0
  %10165 = vmatpush1.msra.mxu0 %v2101
  %10166 = vmatprep.subr.mxu0 0.0
  %10167 = vmatpush1.msra.mxu0 %v2100
  %10168 = vmatprep.subr.mxu0 0.0
  %10169 = vmatpush1.msra.mxu0 %v2099
  %10170 = vmatprep.subr.mxu0 0.0
  %10171 = vmatpush1.msra.mxu0 %v2098
  %10172 = vmatprep.subr.mxu0 0.0
  %10173 = vmatpush1.msra.mxu0 %v2097
  %10174 = vmatprep.subr.mxu0 0.0
  %10175 = vmatpush1.msra.mxu0 %v2096
  %10176 = vmatprep.subr.mxu0 0.0
  %10177 = vmatpush1.msra.mxu0 %v2095
  %10178 = vmatprep.subr.mxu0 0.0
  %10179 = vmatpush1.msra.mxu0 %v2094
  %10180 = vmatprep.subr.mxu0 0.0
  %10181 = vmatpush1.msra.mxu0 %v2093
  %10182 = vmatprep.subr.mxu0 0.0
  %10183 = vmatpush1.msra.mxu0 %v2092
  %10184 = vmatprep.subr.mxu0 0.0
  %10185 = vmatpush1.msra.mxu0 %v2091
  %10186 = vmatprep.subr.mxu0 0.0
  %10187 = vmatpush2.msra.mxu0 %v2122
  %10188 = vmatprep.subr.mxu0 0.0
  %10189 = vmatpush2.msra.mxu0 %v2121
  %10190 = vmatprep.subr.mxu0 0.0
  %10191 = vmatpush2.msra.mxu0 %v2120
  %10192 = vmatprep.subr.mxu0 0.0
  %10193 = vmatpush2.msra.mxu0 %v2119
  %10194 = vmatprep.subr.mxu0 0.0
  %10195 = vmatpush2.msra.mxu0 %v2118
  %10196 = vmatprep.subr.mxu0 0.0
  %10197 = vmatpush2.msra.mxu0 %v2117
  %10198 = vmatprep.subr.mxu0 0.0
  %10199 = vmatpush2.msra.mxu0 %v2116
  %10200 = vmatprep.subr.mxu0 0.0
  %10201 = vmatpush2.msra.mxu0 %v2115
  %10202 = vmatprep.subr.mxu0 0.0
  %10203 = vmatpush2.msra.mxu0 %v2114
  %10204 = vmatprep.subr.mxu0 0.0
  %10205 = vmatpush2.msra.mxu0 %v2113
  %10206 = vmatprep.subr.mxu0 0.0
  %10207 = vmatpush2.msra.mxu0 %v2112
  %10208 = vmatprep.subr.mxu0 0.0
  %10209 = vmatpush2.msra.mxu0 %v2111
  %10210 = vmatprep.subr.mxu0 0.0
  %10211 = vmatpush2.msra.mxu0 %v2110
  %10212 = vmatprep.subr.mxu0 0.0
  %10213 = vmatpush2.msra.mxu0 %v2109
  %10214 = vmatprep.subr.mxu0 0.0
  %10215 = vmatpush2.msra.mxu0 %v2108
  %10216 = vmatprep.subr.mxu0 0.0
  %10217 = vmatpush2.msra.mxu0 %v2107
  %10218 = vmatprep.mubr.f32.mxu0 %v9943
  %10219 = vmatmul.mubr.f32.gmra.mxu0 %v9942
  %v10220 = vpop.f32.mrf.mxu0
  %v10221 = vadd.f32 %v10151, %v10220
  %v10222 = vpop.f32.mrf.mxu0
  %10223 = vdwg.mxu0
  %v10224 = vmul.f32 %v9888, 0.95
  %v10225 = vadd.f32 %v10224, %v10221
  %v10226 = vsub.f32 %v10225, %v9891
  %vm10227 = vcmp.gt.f32.partialorder %v10226, 1.0
  %v10228 = vsel %vm10227, 1, 0
  %v10229 = vcvt.s32.f32 %v10228
  %s10230 = scalar_lea.vmem %s5, 184
  %10231 = vst [vmem:[%s10230] sm:$0xff] %v10229
  %s10232 = scalar_lea.vmem %s6, 184
  %10233 = vst [vmem:[%s10232] sm:$0xff] %v10226
  %v10234 = vmul.f32 %v9912, 0.95
  %v10235 = vmul.f32 %v9913, 0.95
  %v10236 = vmul.f32 %v9914, 0.95
  %v10237 = vmul.f32 %v9915, 0.95
  %v10238 = vmul.f32 %v9916, 0.95
  %v10239 = vmul.f32 %v9917, 0.95
  %v10240 = vmul.f32 %v9918, 0.95
  %v10241 = vmul.f32 %v9919, 0.95
  %v10242 = vadd.f32 %v10234, %v1139
  %v10243 = vadd.f32 %v10235, %v1141
  %v10244 = vadd.f32 %v10236, %v1423
  %v10245 = vadd.f32 %v10237, %v1425
  %v10246 = vadd.f32 %v10238, %v1707
  %v10247 = vadd.f32 %v10239, %v1709
  %v10248 = vadd.f32 %v10240, %v1991
  %v10249 = vadd.f32 %v10241, %v1993
  %v10250 = vsub.f32 %v10242, %v9936
  %v10251 = vsub.f32 %v10243, %v9937
  %v10252 = vsub.f32 %v10244, %v9938
  %v10253 = vsub.f32 %v10245, %v9939
  %v10254 = vsub.f32 %v10246, %v9940
  %v10255 = vsub.f32 %v10247, %v9941
  %v10256 = vsub.f32 %v10248, %v9942
  %v10257 = vsub.f32 %v10249, %v9943
  %vm10258 = vcmp.gt.f32.partialorder %v10250, 1.0
  %vm10259 = vcmp.gt.f32.partialorder %v10251, 1.0
  %vm10260 = vcmp.gt.f32.partialorder %v10252, 1.0
  %vm10261 = vcmp.gt.f32.partialorder %v10253, 1.0
  %vm10262 = vcmp.gt.f32.partialorder %v10254, 1.0
  %vm10263 = vcmp.gt.f32.partialorder %v10255, 1.0
  %vm10264 = vcmp.gt.f32.partialorder %v10256, 1.0
  %vm10265 = vcmp.gt.f32.partialorder %v10257, 1.0
  %v10266 = vsel %vm10258, 1, 0
  %v10267 = vsel %vm10259, 1, 0
  %v10268 = vsel %vm10260, 1, 0
  %v10269 = vsel %vm10261, 1, 0
  %v10270 = vsel %vm10262, 1, 0
  %v10271 = vsel %vm10263, 1, 0
  %v10272 = vsel %vm10264, 1, 0
  %v10273 = vsel %vm10265, 1, 0
  %v10274 = vcvt.s32.f32 %v10266
  %v10275 = vcvt.s32.f32 %v10267
  %v10276 = vcvt.s32.f32 %v10268
  %v10277 = vcvt.s32.f32 %v10269
  %v10278 = vcvt.s32.f32 %v10270
  %v10279 = vcvt.s32.f32 %v10271
  %v10280 = vcvt.s32.f32 %v10272
  %v10281 = vcvt.s32.f32 %v10273
  %10282 = vmatprep.subr.mxu0 0.0
  %10283 = vmatpush1.msra.mxu0 %v2010
  %10284 = vmatprep.subr.mxu0 0.0
  %10285 = vmatpush1.msra.mxu0 %v2009
  %10286 = vmatprep.subr.mxu0 0.0
  %10287 = vmatpush1.msra.mxu0 %v2008
  %10288 = vmatprep.subr.mxu0 0.0
  %10289 = vmatpush1.msra.mxu0 %v2007
  %10290 = vmatprep.subr.mxu0 0.0
  %10291 = vmatpush1.msra.mxu0 %v2006
  %10292 = vmatprep.subr.mxu0 0.0
  %10293 = vmatpush1.msra.mxu0 %v2005
  %10294 = vmatprep.subr.mxu0 0.0
  %10295 = vmatpush1.msra.mxu0 %v2004
  %10296 = vmatprep.subr.mxu0 0.0
  %10297 = vmatpush1.msra.mxu0 %v2003
  %10298 = vmatprep.subr.mxu0 0.0
  %10299 = vmatpush1.msra.mxu0 %v2002
  %10300 = vmatprep.subr.mxu0 0.0
  %10301 = vmatpush1.msra.mxu0 %v2001
  %10302 = vmatprep.subr.mxu0 0.0
  %10303 = vmatpush1.msra.mxu0 %v2000
  %10304 = vmatprep.subr.mxu0 0.0
  %10305 = vmatpush1.msra.mxu0 %v1999
  %10306 = vmatprep.subr.mxu0 0.0
  %10307 = vmatpush1.msra.mxu0 %v1998
  %10308 = vmatprep.subr.mxu0 0.0
  %10309 = vmatpush1.msra.mxu0 %v1997
  %10310 = vmatprep.subr.mxu0 0.0
  %10311 = vmatpush1.msra.mxu0 %v1996
  %10312 = vmatprep.subr.mxu0 0.0
  %10313 = vmatpush1.msra.mxu0 %v1995
  %10314 = vmatprep.subr.mxu0 0.0
  %10315 = vmatpush2.msra.mxu0 %v2026
  %10316 = vmatprep.subr.mxu0 0.0
  %10317 = vmatpush2.msra.mxu0 %v2025
  %10318 = vmatprep.subr.mxu0 0.0
  %10319 = vmatpush2.msra.mxu0 %v2024
  %10320 = vmatprep.subr.mxu0 0.0
  %10321 = vmatpush2.msra.mxu0 %v2023
  %10322 = vmatprep.subr.mxu0 0.0
  %10323 = vmatpush2.msra.mxu0 %v2022
  %10324 = vmatprep.subr.mxu0 0.0
  %10325 = vmatpush2.msra.mxu0 %v2021
  %10326 = vmatprep.subr.mxu0 0.0
  %10327 = vmatpush2.msra.mxu0 %v2020
  %10328 = vmatprep.subr.mxu0 0.0
  %10329 = vmatpush2.msra.mxu0 %v2019
  %10330 = vmatprep.subr.mxu0 0.0
  %10331 = vmatpush2.msra.mxu0 %v2018
  %10332 = vmatprep.subr.mxu0 0.0
  %10333 = vmatpush2.msra.mxu0 %v2017
  %10334 = vmatprep.subr.mxu0 0.0
  %10335 = vmatpush2.msra.mxu0 %v2016
  %10336 = vmatprep.subr.mxu0 0.0
  %10337 = vmatpush2.msra.mxu0 %v2015
  %10338 = vmatprep.subr.mxu0 0.0
  %10339 = vmatpush2.msra.mxu0 %v2014
  %10340 = vmatprep.subr.mxu0 0.0
  %10341 = vmatpush2.msra.mxu0 %v2013
  %10342 = vmatprep.subr.mxu0 0.0
  %10343 = vmatpush2.msra.mxu0 %v2012
  %10344 = vmatprep.subr.mxu0 0.0
  %10345 = vmatpush2.msra.mxu0 %v2011
  %10346 = vmatprep.mubr.f32.mxu0 %v10275
  %10347 = vmatmul.mubr.f32.gmra.mxu0 %v10274
  %v10348 = vpop.f32.mrf.mxu0
  %v10349 = vadd.f32 %v2171, %v10348
  %v10350 = vpop.f32.mrf.mxu0
  %10351 = vdwg.mxu0
  %10352 = vmatprep.subr.mxu0 0.0
  %10353 = vmatpush1.msra.mxu0 %v2042
  %10354 = vmatprep.subr.mxu0 0.0
  %10355 = vmatpush1.msra.mxu0 %v2041
  %10356 = vmatprep.subr.mxu0 0.0
  %10357 = vmatpush1.msra.mxu0 %v2040
  %10358 = vmatprep.subr.mxu0 0.0
  %10359 = vmatpush1.msra.mxu0 %v2039
  %10360 = vmatprep.subr.mxu0 0.0
  %10361 = vmatpush1.msra.mxu0 %v2038
  %10362 = vmatprep.subr.mxu0 0.0
  %10363 = vmatpush1.msra.mxu0 %v2037
  %10364 = vmatprep.subr.mxu0 0.0
  %10365 = vmatpush1.msra.mxu0 %v2036
  %10366 = vmatprep.subr.mxu0 0.0
  %10367 = vmatpush1.msra.mxu0 %v2035
  %10368 = vmatprep.subr.mxu0 0.0
  %10369 = vmatpush1.msra.mxu0 %v2034
  %10370 = vmatprep.subr.mxu0 0.0
  %10371 = vmatpush1.msra.mxu0 %v2033
  %10372 = vmatprep.subr.mxu0 0.0
  %10373 = vmatpush1.msra.mxu0 %v2032
  %10374 = vmatprep.subr.mxu0 0.0
  %10375 = vmatpush1.msra.mxu0 %v2031
  %10376 = vmatprep.subr.mxu0 0.0
  %10377 = vmatpush1.msra.mxu0 %v2030
  %10378 = vmatprep.subr.mxu0 0.0
  %10379 = vmatpush1.msra.mxu0 %v2029
  %10380 = vmatprep.subr.mxu0 0.0
  %10381 = vmatpush1.msra.mxu0 %v2028
  %10382 = vmatprep.subr.mxu0 0.0
  %10383 = vmatpush1.msra.mxu0 %v2027
  %10384 = vmatprep.subr.mxu0 0.0
  %10385 = vmatpush2.msra.mxu0 %v2058
  %10386 = vmatprep.subr.mxu0 0.0
  %10387 = vmatpush2.msra.mxu0 %v2057
  %10388 = vmatprep.subr.mxu0 0.0
  %10389 = vmatpush2.msra.mxu0 %v2056
  %10390 = vmatprep.subr.mxu0 0.0
  %10391 = vmatpush2.msra.mxu0 %v2055
  %10392 = vmatprep.subr.mxu0 0.0
  %10393 = vmatpush2.msra.mxu0 %v2054
  %10394 = vmatprep.subr.mxu0 0.0
  %10395 = vmatpush2.msra.mxu0 %v2053
  %10396 = vmatprep.subr.mxu0 0.0
  %10397 = vmatpush2.msra.mxu0 %v2052
  %10398 = vmatprep.subr.mxu0 0.0
  %10399 = vmatpush2.msra.mxu0 %v2051
  %10400 = vmatprep.subr.mxu0 0.0
  %10401 = vmatpush2.msra.mxu0 %v2050
  %10402 = vmatprep.subr.mxu0 0.0
  %10403 = vmatpush2.msra.mxu0 %v2049
  %10404 = vmatprep.subr.mxu0 0.0
  %10405 = vmatpush2.msra.mxu0 %v2048
  %10406 = vmatprep.subr.mxu0 0.0
  %10407 = vmatpush2.msra.mxu0 %v2047
  %10408 = vmatprep.subr.mxu0 0.0
  %10409 = vmatpush2.msra.mxu0 %v2046
  %10410 = vmatprep.subr.mxu0 0.0
  %10411 = vmatpush2.msra.mxu0 %v2045
  %10412 = vmatprep.subr.mxu0 0.0
  %10413 = vmatpush2.msra.mxu0 %v2044
  %10414 = vmatprep.subr.mxu0 0.0
  %10415 = vmatpush2.msra.mxu0 %v2043
  %10416 = vmatprep.mubr.f32.mxu0 %v10277
  %10417 = vmatmul.mubr.f32.gmra.mxu0 %v10276
  %v10418 = vpop.f32.mrf.mxu0
  %v10419 = vadd.f32 %v10349, %v10418
  %v10420 = vpop.f32.mrf.mxu0
  %10421 = vdwg.mxu0
  %10422 = vmatprep.subr.mxu0 0.0
  %10423 = vmatpush1.msra.mxu0 %v2074
  %10424 = vmatprep.subr.mxu0 0.0
  %10425 = vmatpush1.msra.mxu0 %v2073
  %10426 = vmatprep.subr.mxu0 0.0
  %10427 = vmatpush1.msra.mxu0 %v2072
  %10428 = vmatprep.subr.mxu0 0.0
  %10429 = vmatpush1.msra.mxu0 %v2071
  %10430 = vmatprep.subr.mxu0 0.0
  %10431 = vmatpush1.msra.mxu0 %v2070
  %10432 = vmatprep.subr.mxu0 0.0
  %10433 = vmatpush1.msra.mxu0 %v2069
  %10434 = vmatprep.subr.mxu0 0.0
  %10435 = vmatpush1.msra.mxu0 %v2068
  %10436 = vmatprep.subr.mxu0 0.0
  %10437 = vmatpush1.msra.mxu0 %v2067
  %10438 = vmatprep.subr.mxu0 0.0
  %10439 = vmatpush1.msra.mxu0 %v2066
  %10440 = vmatprep.subr.mxu0 0.0
  %10441 = vmatpush1.msra.mxu0 %v2065
  %10442 = vmatprep.subr.mxu0 0.0
  %10443 = vmatpush1.msra.mxu0 %v2064
  %10444 = vmatprep.subr.mxu0 0.0
  %10445 = vmatpush1.msra.mxu0 %v2063
  %10446 = vmatprep.subr.mxu0 0.0
  %10447 = vmatpush1.msra.mxu0 %v2062
  %10448 = vmatprep.subr.mxu0 0.0
  %10449 = vmatpush1.msra.mxu0 %v2061
  %10450 = vmatprep.subr.mxu0 0.0
  %10451 = vmatpush1.msra.mxu0 %v2060
  %10452 = vmatprep.subr.mxu0 0.0
  %10453 = vmatpush1.msra.mxu0 %v2059
  %10454 = vmatprep.subr.mxu0 0.0
  %10455 = vmatpush2.msra.mxu0 %v2090
  %10456 = vmatprep.subr.mxu0 0.0
  %10457 = vmatpush2.msra.mxu0 %v2089
  %10458 = vmatprep.subr.mxu0 0.0
  %10459 = vmatpush2.msra.mxu0 %v2088
  %10460 = vmatprep.subr.mxu0 0.0
  %10461 = vmatpush2.msra.mxu0 %v2087
  %10462 = vmatprep.subr.mxu0 0.0
  %10463 = vmatpush2.msra.mxu0 %v2086
  %10464 = vmatprep.subr.mxu0 0.0
  %10465 = vmatpush2.msra.mxu0 %v2085
  %10466 = vmatprep.subr.mxu0 0.0
  %10467 = vmatpush2.msra.mxu0 %v2084
  %10468 = vmatprep.subr.mxu0 0.0
  %10469 = vmatpush2.msra.mxu0 %v2083
  %10470 = vmatprep.subr.mxu0 0.0
  %10471 = vmatpush2.msra.mxu0 %v2082
  %10472 = vmatprep.subr.mxu0 0.0
  %10473 = vmatpush2.msra.mxu0 %v2081
  %10474 = vmatprep.subr.mxu0 0.0
  %10475 = vmatpush2.msra.mxu0 %v2080
  %10476 = vmatprep.subr.mxu0 0.0
  %10477 = vmatpush2.msra.mxu0 %v2079
  %10478 = vmatprep.subr.mxu0 0.0
  %10479 = vmatpush2.msra.mxu0 %v2078
  %10480 = vmatprep.subr.mxu0 0.0
  %10481 = vmatpush2.msra.mxu0 %v2077
  %10482 = vmatprep.subr.mxu0 0.0
  %10483 = vmatpush2.msra.mxu0 %v2076
  %10484 = vmatprep.subr.mxu0 0.0
  %10485 = vmatpush2.msra.mxu0 %v2075
  %10486 = vmatprep.mubr.f32.mxu0 %v10279
  %10487 = vmatmul.mubr.f32.gmra.mxu0 %v10278
  %v10488 = vpop.f32.mrf.mxu0
  %v10489 = vadd.f32 %v10419, %v10488
  %v10490 = vpop.f32.mrf.mxu0
  %10491 = vdwg.mxu0
  %10492 = vmatprep.subr.mxu0 0.0
  %10493 = vmatpush1.msra.mxu0 %v2106
  %10494 = vmatprep.subr.mxu0 0.0
  %10495 = vmatpush1.msra.mxu0 %v2105
  %10496 = vmatprep.subr.mxu0 0.0
  %10497 = vmatpush1.msra.mxu0 %v2104
  %10498 = vmatprep.subr.mxu0 0.0
  %10499 = vmatpush1.msra.mxu0 %v2103
  %10500 = vmatprep.subr.mxu0 0.0
  %10501 = vmatpush1.msra.mxu0 %v2102
  %10502 = vmatprep.subr.mxu0 0.0
  %10503 = vmatpush1.msra.mxu0 %v2101
  %10504 = vmatprep.subr.mxu0 0.0
  %10505 = vmatpush1.msra.mxu0 %v2100
  %10506 = vmatprep.subr.mxu0 0.0
  %10507 = vmatpush1.msra.mxu0 %v2099
  %10508 = vmatprep.subr.mxu0 0.0
  %10509 = vmatpush1.msra.mxu0 %v2098
  %10510 = vmatprep.subr.mxu0 0.0
  %10511 = vmatpush1.msra.mxu0 %v2097
  %10512 = vmatprep.subr.mxu0 0.0
  %10513 = vmatpush1.msra.mxu0 %v2096
  %10514 = vmatprep.subr.mxu0 0.0
  %10515 = vmatpush1.msra.mxu0 %v2095
  %10516 = vmatprep.subr.mxu0 0.0
  %10517 = vmatpush1.msra.mxu0 %v2094
  %10518 = vmatprep.subr.mxu0 0.0
  %10519 = vmatpush1.msra.mxu0 %v2093
  %10520 = vmatprep.subr.mxu0 0.0
  %10521 = vmatpush1.msra.mxu0 %v2092
  %10522 = vmatprep.subr.mxu0 0.0
  %10523 = vmatpush1.msra.mxu0 %v2091
  %10524 = vmatprep.subr.mxu0 0.0
  %10525 = vmatpush2.msra.mxu0 %v2122
  %10526 = vmatprep.subr.mxu0 0.0
  %10527 = vmatpush2.msra.mxu0 %v2121
  %10528 = vmatprep.subr.mxu0 0.0
  %10529 = vmatpush2.msra.mxu0 %v2120
  %10530 = vmatprep.subr.mxu0 0.0
  %10531 = vmatpush2.msra.mxu0 %v2119
  %10532 = vmatprep.subr.mxu0 0.0
  %10533 = vmatpush2.msra.mxu0 %v2118
  %10534 = vmatprep.subr.mxu0 0.0
  %10535 = vmatpush2.msra.mxu0 %v2117
  %10536 = vmatprep.subr.mxu0 0.0
  %10537 = vmatpush2.msra.mxu0 %v2116
  %10538 = vmatprep.subr.mxu0 0.0
  %10539 = vmatpush2.msra.mxu0 %v2115
  %10540 = vmatprep.subr.mxu0 0.0
  %10541 = vmatpush2.msra.mxu0 %v2114
  %10542 = vmatprep.subr.mxu0 0.0
  %10543 = vmatpush2.msra.mxu0 %v2113
  %10544 = vmatprep.subr.mxu0 0.0
  %10545 = vmatpush2.msra.mxu0 %v2112
  %10546 = vmatprep.subr.mxu0 0.0
  %10547 = vmatpush2.msra.mxu0 %v2111
  %10548 = vmatprep.subr.mxu0 0.0
  %10549 = vmatpush2.msra.mxu0 %v2110
  %10550 = vmatprep.subr.mxu0 0.0
  %10551 = vmatpush2.msra.mxu0 %v2109
  %10552 = vmatprep.subr.mxu0 0.0
  %10553 = vmatpush2.msra.mxu0 %v2108
  %10554 = vmatprep.subr.mxu0 0.0
  %10555 = vmatpush2.msra.mxu0 %v2107
  %10556 = vmatprep.mubr.f32.mxu0 %v10281
  %10557 = vmatmul.mubr.f32.gmra.mxu0 %v10280
  %v10558 = vpop.f32.mrf.mxu0
  %v10559 = vadd.f32 %v10489, %v10558
  %v10560 = vpop.f32.mrf.mxu0
  %10561 = vdwg.mxu0
  %v10562 = vmul.f32 %v10226, 0.95
  %v10563 = vadd.f32 %v10562, %v10559
  %v10564 = vsub.f32 %v10563, %v10229
  %vm10565 = vcmp.gt.f32.partialorder %v10564, 1.0
  %v10566 = vsel %vm10565, 1, 0
  %v10567 = vcvt.s32.f32 %v10566
  %s10568 = scalar_lea.vmem %s5, 192
  %10569 = vst [vmem:[%s10568] sm:$0xff] %v10567
  %s10570 = scalar_lea.vmem %s6, 192
  %10571 = vst [vmem:[%s10570] sm:$0xff] %v10564
  // Predicated region
  $region22: #{snn_forward.1} parent=0 // pred_check
    _
  $region23: #{snn_forward.1} parent=0 // pred_check_branch
    %10573 = sbr.rel (0) target = $region25
  $region24: #{snn_forward.1} parent=0 // pred_region
    _
  $region25: #{snn_forward.1} parent=0 // pred_fallthru
    _
  // Predicated region
  $region26: #{snn_forward.1} parent=0 // pred_check
    _
  $region27: #{snn_forward.1} parent=0 // pred_check_branch
    %10575 = sbr.rel (0) target = $region29
  $region28: #{snn_forward.1} parent=0 // pred_region
    _
  $region29: #{snn_forward.1} parent=0 // pred_fallthru
    _
  // Predicated region
  $region30: #{snn_forward.1} parent=0 // pred_check
    _
  $region31: #{snn_forward.1} parent=0 // pred_check_branch
    %10577 = sbr.rel (0) target = $region33
  $region32: #{snn_forward.1} parent=0 // pred_region
    _
  $region33: #{snn_forward.1} parent=0 // pred_fallthru
    _
  // Predicated region
  $region34: #{snn_forward.1} parent=0 // pred_check
    _
  $region35: #{snn_forward.1} parent=0 // pred_check_branch
    %10579 = sbr.rel (0) target = $region37
  $region36: #{snn_forward.1} parent=0 // pred_region
    _
  $region37: #{snn_forward.1} parent=0 // pred_fallthru
    _

</llo_original>
